<compile_context>
chip_gen: v7x
topology: tpu7x:2x2x1
jax: 0.10.0
libtpu: 0.0.40
codegen_flags: <defaults>
</compile_context>

<pallas_src>
import functools
import math

import jax
import jax.numpy as jnp
from jax import lax
from jax.experimental import pallas as pl
from jax.experimental.pallas import tpu as pltpu

_NEG_INF = -1e9


# --------------------------------------------------------------------------
# small helpers
# --------------------------------------------------------------------------
def _layer_norm(x, w, b, eps):
    mu = jnp.mean(x, axis=-1, keepdims=True)
    var = jnp.mean((x - mu) ** 2, axis=-1, keepdims=True)
    return (x - mu) * lax.rsqrt(var + eps) * w + b


def _gelu_tanh(x):
    c = 0.7978845608028654  # sqrt(2/pi)
    return 0.5 * x * (1.0 + jnp.tanh(c * (x + 0.044715 * x * x * x)))


def _round_up(n, m):
    return ((n + m - 1) // m) * m


def _pick_tile(n, max_tile, align):
    """Largest multiple of `align` <= max_tile that divides n, else n."""
    t = (min(max_tile, n) // align) * align
    while t >= align:
        if n % t == 0:
            return t
        t -= align
    return n


def _nbytes(shape, dtype):
    return math.prod(shape) * jnp.dtype(dtype).itemsize


def _vmem_cap():
    try:
        cap = getattr(pltpu.get_tpu_info(), "vmem_capacity_bytes", None)
        if cap:
            return int(cap)
    except Exception:
        pass
    return 64 << 20  # conservative default: v7x per-TensorCore VMEM


def _vmem_limit_bytes(blocks, extra_bytes=0):
    cap = _vmem_cap()
    hi = (cap // 8) * 7  # leave headroom for Mosaic internal scratch
    need = extra_bytes + sum(2 * _nbytes(s, d) for s, d in blocks)
    return int(min(max(need + (8 << 20), 32 << 20), hi))


# --------------------------------------------------------------------------
# kernel 1: LayerNorm1 + fused QKV projection      grid = (B, S // ts)
# --------------------------------------------------------------------------
def _ln_qkv_kernel(x_ref, lnw_ref, lnb_ref, w_ref, b_ref,
                   q_ref, k_ref, v_ref, *, eps, scale, d_model):
    x = x_ref[0].astype(jnp.float32)                       # (ts, D)
    h = _layer_norm(x, lnw_ref[0], lnb_ref[0], eps)        # f32 stats
    hb = h.astype(w_ref.dtype)                             # bf16 for the MXU
    y = jnp.dot(hb, w_ref[...], preferred_element_type=jnp.float32) + b_ref[0]
    # D-aligned column splits (cheap, lane-tile aligned for D % 128 == 0)
    q_ref[0] = (y[:, :d_model] * scale).astype(q_ref.dtype)   # fold 1/sqrt(hd)
    k_ref[0] = y[:, d_model:2 * d_model].astype(k_ref.dtype)
    v_ref[0] = y[:, 2 * d_model:].astype(v_ref.dtype)


# --------------------------------------------------------------------------
# kernel 2: softmax attention, all heads per step  grid = (B, S // ts)
# --------------------------------------------------------------------------
def _attention_kernel(q_ref, k_ref, v_ref, *rest, num_heads, head_dim, has_mask):
    if has_mask:
        mask_ref, o_ref = rest
    else:
        (o_ref,) = rest
    q = q_ref[0]                                           # (ts, D) bf16, pre-scaled
    k = k_ref[0]                                           # (S,  D) bf16
    v = v_ref[0]                                           # (S,  D) bf16
    m = mask_ref[0, 0].astype(jnp.float32) if has_mask else None
    outs = []
    for h in range(num_heads):                             # static unroll over heads
        lo = h * head_dim
        hi = lo + head_dim
        # q_h @ k_h^T without materializing a transpose (contract last dims)
        s = lax.dot_general(q[:, lo:hi], k[:, lo:hi],
                            (((1,), (1,)), ((), ())),
                            preferred_element_type=jnp.float32)   # (ts, S)
        if has_mask:
            s = s + m
        s = s - jnp.max(s, axis=-1, keepdims=True)
        p = jnp.exp(s)
        p = p * pl.reciprocal(jnp.sum(p, axis=-1, keepdims=True), approx=True)
        outs.append(jnp.dot(p.astype(v.dtype), v[:, lo:hi],
                            preferred_element_type=jnp.float32))  # (ts, hd)
    ctx = jnp.concatenate(outs, axis=-1)                   # (ts, D) lane-dense
    o_ref[0] = ctx.astype(o_ref.dtype)                     # single full-lane store


# --------------------------------------------------------------------------
# kernel 3: out-proj + residual + LN2 + MLP        grid = (B, S // ts)
#           (wo / fc1 / fc2 stay VMEM-resident: constant index maps)
# --------------------------------------------------------------------------
def _proj_mlp_kernel(x_ref, ctx_ref, wo_ref, bo_ref, lnw_ref, lnb_ref,
                     w1_ref, b1_ref, w2_ref, b2_ref, out_ref, *, eps):
    o = jnp.dot(ctx_ref[0], wo_ref[...],
                preferred_element_type=jnp.float32) + bo_ref[0]
    h1 = x_ref[0].astype(jnp.float32) + o                  # residual 1
    h2 = _layer_norm(h1, lnw_ref[0], lnb_ref[0], eps).astype(w1_ref.dtype)
    a = jnp.dot(h2, w1_ref[...], preferred_element_type=jnp.float32) + b1_ref[0]
    a = _gelu_tanh(a).astype(w2_ref.dtype)                 # f32 gelu, bf16 to MXU
    y = jnp.dot(a, w2_ref[...], preferred_element_type=jnp.float32) + b2_ref[0]
    out_ref[0] = (h1 + y).astype(out_ref.dtype)            # residual 2


# --------------------------------------------------------------------------
# wrapper
# --------------------------------------------------------------------------
@functools.partial(jax.jit, static_argnames=("num_heads", "eps"))
def siglip_encoder_layer(x, mask, params, *, num_heads, eps=1e-6):
    B, S, D = x.shape
    assert D % num_heads == 0, "hidden_size must be divisible by num_heads"
    hd = D // num_heads
    inter = params["w_fc1"].shape[1]
    f32, bf16 = jnp.float32, jnp.bfloat16

    # ---- host-side padding so tiling / lane alignment engages ----
    if S % 16 == 0:
        S_pad = S
    elif S < 128:
        S_pad = _round_up(S, 16)
    else:
        S_pad = _round_up(S, 128)
    inter_pad = _round_up(inter, 128)

    x_p = jnp.pad(x, ((0, 0), (0, S_pad - S), (0, 0))) if S_pad != S else x

    # additive mask, bf16 (only added to f32 scores); padded keys masked out.
    if mask is not None:
        m = mask.astype(bf16)
        if S_pad != S:
            m = jnp.pad(m, ((0, 0), (0, 0), (0, S_pad - S), (0, S_pad - S)))
            m = m.at[..., S:].set(_NEG_INF)
    elif S_pad != S:
        key_bias = jnp.where(jnp.arange(S_pad) < S, 0.0, _NEG_INF).astype(bf16)
        m = jnp.broadcast_to(key_bias.reshape(1, 1, 1, S_pad),
                             (1, 1, S_pad, S_pad))
    else:
        m = None

    # ---- weights: bf16 to the MXU, f32 biases / LN params ----
    w_qkv = jnp.concatenate(
        [params["wq"], params["wk"], params["wv"]], axis=1).astype(bf16)
    b_qkv = jnp.concatenate(
        [params["bq"], params["bk"], params["bv"]], axis=1).astype(f32)
    wo, bo = params["wo"].astype(bf16), params["bo"].astype(f32)
    w1, b1 = params["w_fc1"].astype(bf16), params["b_fc1"].astype(f32)
    w2, b2 = params["w_fc2"].astype(bf16), params["b_fc2"].astype(f32)
    if inter_pad != inter:
        w1 = jnp.pad(w1, ((0, 0), (0, inter_pad - inter)))
        b1 = jnp.pad(b1, ((0, 0), (0, inter_pad - inter)))   # keep gelu(0) = 0
        w2 = jnp.pad(w2, ((0, inter_pad - inter), (0, 0)))
    ln1w, ln1b = params["ln1_w"].astype(f32), params["ln1_b"].astype(f32)
    ln2w, ln2b = params["ln2_w"].astype(f32), params["ln2_b"].astype(f32)

    cap = _vmem_cap()
    max_ts = 256 if cap >= (96 << 20) else 128   # bigger seq tiles on v5e/v6e
    ts = _pick_tile(S_pad, max_ts, 16)           # 16-aligned (bf16 sublane pack)
    nS = S_pad // ts

    seq_in = pl.BlockSpec((1, ts, D), lambda b, si: (b, si, 0))
    vecD = pl.BlockSpec((1, D), lambda b, si: (0, 0))

    # ---------------- kernel 1: LN1 + fused QKV ----------------
    vmem1 = _vmem_limit_bytes(
        [((1, ts, D), x.dtype), ((1, D), f32), ((1, D), f32),
         ((D, 3 * D), bf16), ((1, 3 * D), f32)] + [((1, ts, D), bf16)] * 3,
        extra_bytes=4 * ts * 3 * D * 4)
    q, k, v = pl.pallas_call(
        functools.partial(_ln_qkv_kernel, eps=eps, scale=hd ** -0.5, d_model=D),
        out_shape=(jax.ShapeDtypeStruct((B, S_pad, D), bf16),) * 3,
        grid=(B, nS),
        in_specs=[seq_in, vecD, vecD,
                  pl.BlockSpec((D, 3 * D), lambda b, si: (0, 0)),   # resident
                  pl.BlockSpec((1, 3 * D), lambda b, si: (0, 0))],
        out_specs=(seq_in, seq_in, seq_in),
        compiler_params=pltpu.CompilerParams(
            dimension_semantics=("parallel", "parallel"),
            vmem_limit_bytes=vmem1),
    )(x_p, ln1w, ln1b, w_qkv, b_qkv)

    # ---------------- kernel 2: attention (heads folded in-kernel) -------------
    has_mask = m is not None
    attn_in_specs = [
        pl.BlockSpec((1, ts, D), lambda b, qi: (b, qi, 0)),         # q tile
        pl.BlockSpec((1, S_pad, D), lambda b, qi: (b, 0, 0)),       # full K
        pl.BlockSpec((1, S_pad, D), lambda b, qi: (b, 0, 0)),       # full V
    ]
    attn_args = [q, k, v]
    blocks2 = [((1, ts, D), bf16), ((1, S_pad, D), bf16), ((1, S_pad, D), bf16),
               ((1, ts, D), bf16)]
    if has_mask:
        if m.shape[0] == 1:
            mspec = pl.BlockSpec((1, 1, ts, S_pad), lambda b, qi: (0, 0, qi, 0))
        else:
            mspec = pl.BlockSpec((1, 1, ts, S_pad), lambda b, qi: (b, 0, qi, 0))
        attn_in_specs.append(mspec)
        attn_args.append(m)
        blocks2.append(((1, 1, ts, S_pad), bf16))
    vmem2 = _vmem_limit_bytes(blocks2, extra_bytes=4 * ts * S_pad * 4)
    ctx = pl.pallas_call(
        functools.partial(_attention_kernel, num_heads=num_heads,
                          head_dim=hd, has_mask=has_mask),
        out_shape=jax.ShapeDtypeStruct((B, S_pad, D), bf16),
        grid=(B, nS),
        in_specs=attn_in_specs,
        out_specs=pl.BlockSpec((1, ts, D), lambda b, qi: (b, qi, 0)),
        compiler_params=pltpu.CompilerParams(
            dimension_semantics=("parallel", "parallel"),
            vmem_limit_bytes=vmem2),
    )(*attn_args)

    # ---------------- kernel 3: out-proj + residual + LN2 + MLP ----------------
    vmem3 = _vmem_limit_bytes(
        [((1, ts, D), x.dtype), ((1, ts, D), bf16), ((D, D), bf16),
         ((1, D), f32), ((1, D), f32), ((1, D), f32),
         ((D, inter_pad), bf16), ((1, inter_pad), f32),
         ((inter_pad, D), bf16), ((1, D), f32), ((1, ts, D), x.dtype)],
        extra_bytes=2 * ts * inter_pad * 4 + 4 * ts * D * 4)
    out = pl.pallas_call(
        functools.partial(_proj_mlp_kernel, eps=eps),
        out_shape=jax.ShapeDtypeStruct((B, S_pad, D), x.dtype),
        grid=(B, nS),
        in_specs=[
            pl.BlockSpec((1, ts, D), lambda b, si: (b, si, 0)),     # x (residual)
            pl.BlockSpec((1, ts, D), lambda b, si: (b, si, 0)),     # attn ctx
            pl.BlockSpec((D, D), lambda b, si: (0, 0)),             # wo  (resident)
            pl.BlockSpec((1, D), lambda b, si: (0, 0)),             # bo
            pl.BlockSpec((1, D), lambda b, si: (0, 0)),             # ln2 w
            pl.BlockSpec((1, D), lambda b, si: (0, 0)),             # ln2 b
            pl.BlockSpec((D, inter_pad), lambda b, si: (0, 0)),     # fc1 w (resident)
            pl.BlockSpec((1, inter_pad), lambda b, si: (0, 0)),     # fc1 b
            pl.BlockSpec((inter_pad, D), lambda b, si: (0, 0)),     # fc2 w (resident)
            pl.BlockSpec((1, D), lambda b, si: (0, 0)),             # fc2 b
        ],
        out_specs=pl.BlockSpec((1, ts, D), lambda b, si: (b, si, 0)),
        compiler_params=pltpu.CompilerParams(
            dimension_semantics=("parallel", "parallel"),
            vmem_limit_bytes=vmem3),
    )(x_p, ctx, wo, bo, ln2w, ln2b, w1, b1, w2, b2)

    return out[:, :S, :] if S_pad != S else out


# --------------------------------------------------------------------------
# plain-JAX f32 reference matching the PyTorch forward
# --------------------------------------------------------------------------
def reference_encoder_layer(x, mask, params, *, num_heads, eps=1e-6):
    B, S, D = x.shape
    hd = D // num_heads

    def ln(v, w, b):
        mu = jnp.mean(v, -1, keepdims=True)
        var = jnp.mean((v - mu) ** 2, -1, keepdims=True)
        return (v - mu) / jnp.sqrt(var + eps) * w[0] + b[0]

    if mask is None:
        mask = jnp.zeros((B, 1, S, S), x.dtype)
    residual = x
    h = ln(x, params["ln1_w"], params["ln1_b"])
    q = h @ params["wq"] + params["bq"][0]
    k = h @ params["wk"] + params["bk"][0]
    v = h @ params["wv"] + params["bv"][0]
    q = q.reshape(B, S, num_heads, hd).transpose(0, 2, 1, 3) * (hd ** -0.5)
    k = k.reshape(B, S, num_heads, hd).transpose(0, 2, 1, 3)
    v = v.reshape(B, S, num_heads, hd).transpose(0, 2, 1, 3)
    s = jnp.einsum("bhqd,bhkd->bhqk", q, k) + mask
    p = jax.nn.softmax(s, axis=-1)
    o = jnp.einsum("bhqk,bhkd->bhqd", p, v).transpose(0, 2, 1, 3).reshape(B, S, D)
    o = o @ params["wo"] + params["bo"][0]
    h1 = residual + o
    h2 = ln(h1, params["ln2_w"], params["ln2_b"])
    h2 = h2 @ params["w_fc1"] + params["b_fc1"][0]
    h2 = _gelu_tanh(h2)
    h2 = h2 @ params["w_fc2"] + params["b_fc2"][0]
    return h1 + h2


def make_params(key, D, inter):
    ks = jax.random.split(key, 8)
    std = 0.02

    def lin(k, fin, fout):
        return std * jax.random.normal(k, (fin, fout), jnp.float32)

    return {
        "ln1_w": jnp.ones((1, D), jnp.float32),
        "ln1_b": jnp.zeros((1, D), jnp.float32),
        "wq": lin(ks[0], D, D), "bq": jnp.zeros((1, D), jnp.float32),
        "wk": lin(ks[1], D, D), "bk": jnp.zeros((1, D), jnp.float32),
        "wv": lin(ks[2], D, D), "bv": jnp.zeros((1, D), jnp.float32),
        "wo": lin(ks[3], D, D), "bo": jnp.zeros((1, D), jnp.float32),
        "ln2_w": jnp.ones((1, D), jnp.float32),
        "ln2_b": jnp.zeros((1, D), jnp.float32),
        "w_fc1": lin(ks[4], D, inter),
        "b_fc1": std * jax.random.normal(ks[5], (1, inter), jnp.float32),
        "w_fc2": lin(ks[6], inter, D),
        "b_fc2": std * jax.random.normal(ks[7], (1, D), jnp.float32),
    }


if __name__ == "__main__":
    B, S, D = 2, 256, 128        # batch, seq_len, hidden_size
    num_heads = 4                # head_dim = 32
    inter = 1024                 # intermediate_size
    eps = 1e-6

    key = jax.random.PRNGKey(0)
    kx, kp, kx2 = jax.random.split(key, 3)
    x = jax.random.normal(kx, (B, S, D), jnp.float32)

    # additive attention mask: mask out the last 5 key positions of batch 1
    mask = jnp.zeros((B, 1, S, S), jnp.float32)
    mask = mask.at[1, :, :, -5:].set(_NEG_INF)

    params = make_params(kp, D, inter)

    out = siglip_encoder_layer(x, mask, params, num_heads=num_heads, eps=eps)
    out = jax.block_until_ready(out)
    ref = reference_encoder_layer(x, mask, params, num_heads=num_heads, eps=eps)
    assert out.shape == (B, S, D)
    assert jnp.allclose(out, ref, atol=2e-2, rtol=2e-2), (
        f"masked path mismatch vs reference, max abs err "
        f"{jnp.max(jnp.abs(out - ref)):.4e}")

    # no-mask fast path: skips the mask DMA and the ts x S add entirely
    out_nm = siglip_encoder_layer(x, None, params, num_heads=num_heads, eps=eps)
    out_nm = jax.block_until_ready(out_nm)
    ref_nm = reference_encoder_layer(x, None, params, num_heads=num_heads, eps=eps)
    assert jnp.allclose(out_nm, ref_nm, atol=2e-2, rtol=2e-2), (
        f"no-mask path mismatch vs reference, max abs err "
        f"{jnp.max(jnp.abs(out_nm - ref_nm)):.4e}")

    # padded path: odd seq / intermediate sizes exercise host-side padding
    S2, inter2 = 200, 1000
    params2 = make_params(kp, D, inter2)
    x2 = jax.random.normal(kx2, (B, S2, D), jnp.float32)
    out_p = siglip_encoder_layer(x2, None, params2, num_heads=num_heads, eps=eps)
    out_p = jax.block_until_ready(out_p)
    ref_p = reference_encoder_layer(x2, None, params2, num_heads=num_heads, eps=eps)
    assert out_p.shape == (B, S2, D)
    assert jnp.allclose(out_p, ref_p, atol=2e-2, rtol=2e-2), (
        f"padded path mismatch vs reference, max abs err "
        f"{jnp.max(jnp.abs(out_p - ref_p)):.4e}")

    print("KERNEL_OK")
</pallas_src>

<mosaic_0001>
module attributes {stable_mosaic.version = 11 : i64} {
  func.func @_ln_qkv_kernel(%arg0: i32, %arg1: i32, %arg2: memref<1x128x128xf32, #tpu.memory_space<vmem>>, %arg3: memref<1x128xf32, #tpu.memory_space<vmem>>, %arg4: memref<1x128xf32, #tpu.memory_space<vmem>>, %arg5: memref<128x384xbf16, #tpu.memory_space<vmem>>, %arg6: memref<1x384xf32, #tpu.memory_space<vmem>>, %arg7: memref<1x128x128xbf16, #tpu.memory_space<vmem>>, %arg8: memref<1x128x128xbf16, #tpu.memory_space<vmem>>, %arg9: memref<1x128x128xbf16, #tpu.memory_space<vmem>>) attributes {dimension_semantics = [#tpu.dimension_semantics<parallel>, #tpu.dimension_semantics<parallel>], iteration_bounds = array<i64: 2, 2>, scalar_prefetch = 0 : i64, scratch_operands = 0 : i64, tpu.core_type = #tpu.core_type<tc>, window_params = [{transform_indices = @transform_0, window_bounds = array<i64: 1, 128, 128>}, {pipeline_mode = #tpu.pipeline_mode<synchronous>, transform_indices = @transform_1, window_bounds = array<i64: 1, 128>}, {pipeline_mode = #tpu.pipeline_mode<synchronous>, transform_indices = @transform_2, window_bounds = array<i64: 1, 128>}, {pipeline_mode = #tpu.pipeline_mode<synchronous>, transform_indices = @transform_3, window_bounds = array<i64: 128, 384>}, {pipeline_mode = #tpu.pipeline_mode<synchronous>, transform_indices = @transform_4, window_bounds = array<i64: 1, 384>}, {transform_indices = @transform_5, window_bounds = array<i64: 1, 128, 128>}, {transform_indices = @transform_6, window_bounds = array<i64: 1, 128, 128>}, {transform_indices = @transform_7, window_bounds = array<i64: 1, 128, 128>}]} {
    %c0 = arith.constant 0 : index
    %c0_0 = arith.constant 0 : index
    %c0_1 = arith.constant 0 : index
    %0 = vector.load %arg2[%c0, %c0_0, %c0_1] : memref<1x128x128xf32, #tpu.memory_space<vmem>>, vector<1x128x128xf32>
    %1 = vector.shape_cast %0 : vector<1x128x128xf32> to vector<128x128xf32>
    %c0_2 = arith.constant 0 : index
    %c0_3 = arith.constant 0 : index
    %2 = vector.load %arg3[%c0_2, %c0_3] : memref<1x128xf32, #tpu.memory_space<vmem>>, vector<1x128xf32>
    %3 = vector.shape_cast %2 : vector<1x128xf32> to vector<128xf32>
    %c0_4 = arith.constant 0 : index
    %c0_5 = arith.constant 0 : index
    %4 = vector.load %arg4[%c0_4, %c0_5] : memref<1x128xf32, #tpu.memory_space<vmem>>, vector<1x128xf32>
    %5 = vector.shape_cast %4 : vector<1x128xf32> to vector<128xf32>
    %cst = arith.constant dense<0.000000e+00> : vector<128xf32>
    %6 = vector.multi_reduction <add>, %1, %cst [1] : vector<128x128xf32> to vector<128xf32>
    %7 = vector.shape_cast %6 : vector<128xf32> to vector<128x1xf32>
    %cst_6 = arith.constant 1.280000e+02 : f32
    %8 = vector.broadcast %cst_6 : f32 to vector<128x1xf32>
    %9 = arith.divf %7, %8 : vector<128x1xf32>
    %10 = vector.broadcast %9 : vector<128x1xf32> to vector<128x128xf32>
    %11 = arith.subf %1, %10 : vector<128x128xf32>
    %12 = arith.mulf %11, %11 : vector<128x128xf32>
    %cst_7 = arith.constant dense<0.000000e+00> : vector<128xf32>
    %13 = vector.multi_reduction <add>, %12, %cst_7 [1] : vector<128x128xf32> to vector<128xf32>
    %14 = vector.shape_cast %13 : vector<128xf32> to vector<128x1xf32>
    %cst_8 = arith.constant 1.280000e+02 : f32
    %15 = vector.broadcast %cst_8 : f32 to vector<128x1xf32>
    %16 = arith.divf %14, %15 : vector<128x1xf32>
    %17 = vector.broadcast %9 : vector<128x1xf32> to vector<128x128xf32>
    %18 = arith.subf %1, %17 : vector<128x128xf32>
    %cst_9 = arith.constant 9.99999997E-7 : f32
    %19 = vector.broadcast %cst_9 : f32 to vector<128x1xf32>
    %20 = arith.addf %16, %19 : vector<128x1xf32>
    %21 = math.rsqrt %20 : vector<128x1xf32>
    %22 = vector.broadcast %21 : vector<128x1xf32> to vector<128x128xf32>
    %23 = arith.mulf %18, %22 : vector<128x128xf32>
    %24 = vector.shape_cast %3 : vector<128xf32> to vector<1x128xf32>
    %25 = vector.broadcast %24 : vector<1x128xf32> to vector<128x128xf32>
    %26 = arith.mulf %23, %25 : vector<128x128xf32>
    %27 = vector.shape_cast %5 : vector<128xf32> to vector<1x128xf32>
    %28 = vector.broadcast %27 : vector<1x128xf32> to vector<128x128xf32>
    %29 = arith.addf %26, %28 : vector<128x128xf32>
    %30 = arith.truncf %29 : vector<128x128xf32> to vector<128x128xbf16>
    %c0_10 = arith.constant 0 : index
    %c0_11 = arith.constant 0 : index
    %31 = vector.load %arg5[%c0_10, %c0_11] : memref<128x384xbf16, #tpu.memory_space<vmem>>, vector<128x384xbf16>
    %cst_12 = arith.constant dense<0.000000e+00> : vector<128x384xf32>
    %32 = tpu.matmul %30, %31, %cst_12 {dimension_numbers = #tpu.dot_dimension_numbers<[1], [0], [0], [1], [0, 0, 1, 1], [], []>} : vector<128x128xbf16>, vector<128x384xbf16>, vector<128x384xf32> -> vector<128x384xf32>
    %c0_13 = arith.constant 0 : index
    %c0_14 = arith.constant 0 : index
    %33 = vector.load %arg6[%c0_13, %c0_14] : memref<1x384xf32, #tpu.memory_space<vmem>>, vector<1x384xf32>
    %34 = vector.shape_cast %33 : vector<1x384xf32> to vector<384xf32>
    %35 = vector.shape_cast %34 : vector<384xf32> to vector<1x384xf32>
    %36 = vector.broadcast %35 : vector<1x384xf32> to vector<128x384xf32>
    %37 = arith.addf %32, %36 : vector<128x384xf32>
    %38 = vector.extract_strided_slice %37 {offsets = [0, 0], sizes = [128, 128], strides = [1, 1]} : vector<128x384xf32> to vector<128x128xf32>
    %cst_15 = arith.constant 0.176776692 : f32
    %39 = vector.broadcast %cst_15 : f32 to vector<128x128xf32>
    %40 = arith.mulf %38, %39 : vector<128x128xf32>
    %41 = arith.truncf %40 : vector<128x128xf32> to vector<128x128xbf16>
    %c0_16 = arith.constant 0 : index
    %c0_17 = arith.constant 0 : index
    %c0_18 = arith.constant 0 : index
    %42 = vector.load %arg7[%c0_16, %c0_17, %c0_18] : memref<1x128x128xbf16, #tpu.memory_space<vmem>>, vector<1x128x128xbf16>
    %43 = vector.shape_cast %42 : vector<1x128x128xbf16> to vector<128x128xbf16>
    %44 = vector.shape_cast %41 : vector<128x128xbf16> to vector<1x128x128xbf16>
    tpu.vector_store %arg7[%c0_16, %c0_17, %c0_18], %44 {strides = array<i32>} : memref<1x128x128xbf16, #tpu.memory_space<vmem>>, vector<1x128x128xbf16>,
    %45 = vector.extract_strided_slice %37 {offsets = [0, 128], sizes = [128, 128], strides = [1, 1]} : vector<128x384xf32> to vector<128x128xf32>
    %46 = arith.truncf %45 : vector<128x128xf32> to vector<128x128xbf16>
    %c0_19 = arith.constant 0 : index
    %c0_20 = arith.constant 0 : index
    %c0_21 = arith.constant 0 : index
    %47 = vector.load %arg8[%c0_19, %c0_20, %c0_21] : memref<1x128x128xbf16, #tpu.memory_space<vmem>>, vector<1x128x128xbf16>
    %48 = vector.shape_cast %47 : vector<1x128x128xbf16> to vector<128x128xbf16>
    %49 = vector.shape_cast %46 : vector<128x128xbf16> to vector<1x128x128xbf16>
    tpu.vector_store %arg8[%c0_19, %c0_20, %c0_21], %49 {strides = array<i32>} : memref<1x128x128xbf16, #tpu.memory_space<vmem>>, vector<1x128x128xbf16>,
    %50 = vector.extract_strided_slice %37 {offsets = [0, 256], sizes = [128, 128], strides = [1, 1]} : vector<128x384xf32> to vector<128x128xf32>
    %51 = arith.truncf %50 : vector<128x128xf32> to vector<128x128xbf16>
    %c0_22 = arith.constant 0 : index
    %c0_23 = arith.constant 0 : index
    %c0_24 = arith.constant 0 : index
    %52 = vector.load %arg9[%c0_22, %c0_23, %c0_24] : memref<1x128x128xbf16, #tpu.memory_space<vmem>>, vector<1x128x128xbf16>
    %53 = vector.shape_cast %52 : vector<1x128x128xbf16> to vector<128x128xbf16>
    %54 = vector.shape_cast %51 : vector<128x128xbf16> to vector<1x128x128xbf16>
    tpu.vector_store %arg9[%c0_22, %c0_23, %c0_24], %54 {strides = array<i32>} : memref<1x128x128xbf16, #tpu.memory_space<vmem>>, vector<1x128x128xbf16>,
    return
  }
  func.func @transform_0(%arg0: i32, %arg1: i32) -> (i32, i32, i32) {
    %c0_i32 = arith.constant 0 : i32
    %c0_i32_0 = arith.constant 0 : i32
    return %arg0, %arg1, %c0_i32 : i32, i32, i32
  }
  func.func @transform_1(%arg0: i32, %arg1: i32) -> (i32, i32) {
    %c0_i32 = arith.constant 0 : i32
    %c0_i32_0 = arith.constant 0 : i32
    %c0_i32_1 = arith.constant 0 : i32
    return %c0_i32, %c0_i32_0 : i32, i32
  }
  func.func @transform_2(%arg0: i32, %arg1: i32) -> (i32, i32) {
    %c0_i32 = arith.constant 0 : i32
    %c0_i32_0 = arith.constant 0 : i32
    %c0_i32_1 = arith.constant 0 : i32
    return %c0_i32, %c0_i32_0 : i32, i32
  }
  func.func @transform_3(%arg0: i32, %arg1: i32) -> (i32, i32) {
    %c0_i32 = arith.constant 0 : i32
    %c0_i32_0 = arith.constant 0 : i32
    %c0_i32_1 = arith.constant 0 : i32
    return %c0_i32, %c0_i32_0 : i32, i32
  }
  func.func @transform_4(%arg0: i32, %arg1: i32) -> (i32, i32) {
    %c0_i32 = arith.constant 0 : i32
    %c0_i32_0 = arith.constant 0 : i32
    %c0_i32_1 = arith.constant 0 : i32
    return %c0_i32, %c0_i32_0 : i32, i32
  }
  func.func @transform_5(%arg0: i32, %arg1: i32) -> (i32, i32, i32) {
    %c0_i32 = arith.constant 0 : i32
    %c0_i32_0 = arith.constant 0 : i32
    return %arg0, %arg1, %c0_i32 : i32, i32, i32
  }
  func.func @transform_6(%arg0: i32, %arg1: i32) -> (i32, i32, i32) {
    %c0_i32 = arith.constant 0 : i32
    %c0_i32_0 = arith.constant 0 : i32
    return %arg0, %arg1, %c0_i32 : i32, i32, i32
  }
  func.func @transform_7(%arg0: i32, %arg1: i32) -> (i32, i32, i32) {
    %c0_i32 = arith.constant 0 : i32
    %c0_i32_0 = arith.constant 0 : i32
    return %arg0, %arg1, %c0_i32 : i32, i32, i32
  }
}

module attributes {stable_mosaic.version = 11 : i64} {
  func.func @_attention_kernel(%arg0: i32, %arg1: i32, %arg2: memref<1x128x128xbf16, #tpu.memory_space<vmem>>, %arg3: memref<1x256x128xbf16, #tpu.memory_space<vmem>>, %arg4: memref<1x256x128xbf16, #tpu.memory_space<vmem>>, %arg5: memref<1x1x128x256xbf16, #tpu.memory_space<vmem>>, %arg6: memref<1x128x128xbf16, #tpu.memory_space<vmem>>) attributes {dimension_semantics = [#tpu.dimension_semantics<parallel>, #tpu.dimension_semantics<parallel>], iteration_bounds = array<i64: 2, 2>, scalar_prefetch = 0 : i64, scratch_operands = 0 : i64, tpu.core_type = #tpu.core_type<tc>, window_params = [{transform_indices = @transform_0, window_bounds = array<i64: 1, 128, 128>}, {transform_indices = @transform_1, window_bounds = array<i64: 1, 256, 128>}, {transform_indices = @transform_2, window_bounds = array<i64: 1, 256, 128>}, {transform_indices = @transform_3, window_bounds = array<i64: 1, 1, 128, 256>}, {transform_indices = @transform_4, window_bounds = array<i64: 1, 128, 128>}]} {
    %c0 = arith.constant 0 : index
    %c0_0 = arith.constant 0 : index
    %c0_1 = arith.constant 0 : index
    %0 = vector.load %arg2[%c0, %c0_0, %c0_1] : memref<1x128x128xbf16, #tpu.memory_space<vmem>>, vector<1x128x128xbf16>
    %1 = vector.shape_cast %0 : vector<1x128x128xbf16> to vector<128x128xbf16>
    %c0_2 = arith.constant 0 : index
    %c0_3 = arith.constant 0 : index
    %c0_4 = arith.constant 0 : index
    %2 = vector.load %arg3[%c0_2, %c0_3, %c0_4] : memref<1x256x128xbf16, #tpu.memory_space<vmem>>, vector<1x256x128xbf16>
    %3 = vector.shape_cast %2 : vector<1x256x128xbf16> to vector<256x128xbf16>
    %c0_5 = arith.constant 0 : index
    %c0_6 = arith.constant 0 : index
    %c0_7 = arith.constant 0 : index
    %4 = vector.load %arg4[%c0_5, %c0_6, %c0_7] : memref<1x256x128xbf16, #tpu.memory_space<vmem>>, vector<1x256x128xbf16>
    %5 = vector.shape_cast %4 : vector<1x256x128xbf16> to vector<256x128xbf16>
    %c0_8 = arith.constant 0 : index
    %c0_9 = arith.constant 0 : index
    %c0_10 = arith.constant 0 : index
    %c0_11 = arith.constant 0 : index
    %6 = vector.load %arg5[%c0_8, %c0_9, %c0_10, %c0_11] : memref<1x1x128x256xbf16, #tpu.memory_space<vmem>>, vector<1x1x128x256xbf16>
    %7 = vector.shape_cast %6 : vector<1x1x128x256xbf16> to vector<128x256xbf16>
    %8 = arith.extf %7 : vector<128x256xbf16> to vector<128x256xf32>
    %9 = vector.extract_strided_slice %1 {offsets = [0, 0], sizes = [128, 32], strides = [1, 1]} : vector<128x128xbf16> to vector<128x32xbf16>
    %10 = vector.extract_strided_slice %3 {offsets = [0, 0], sizes = [256, 32], strides = [1, 1]} : vector<256x128xbf16> to vector<256x32xbf16>
    %cst = arith.constant dense<0.000000e+00> : vector<128x256xf32>
    %11 = tpu.matmul %9, %10, %cst {dimension_numbers = #tpu.dot_dimension_numbers<[1], [1], [0], [0], [0, 0, 1, 0], [], []>} : vector<128x32xbf16>, vector<256x32xbf16>, vector<128x256xf32> -> vector<128x256xf32>
    %12 = arith.addf %11, %8 : vector<128x256xf32>
    %cst_12 = arith.constant dense<0xFF800000> : vector<128xf32>
    %13 = vector.multi_reduction <maximumf>, %12, %cst_12 [1] : vector<128x256xf32> to vector<128xf32>
    %14 = vector.shape_cast %13 : vector<128xf32> to vector<128x1xf32>
    %15 = vector.broadcast %14 : vector<128x1xf32> to vector<128x256xf32>
    %16 = arith.subf %12, %15 : vector<128x256xf32>
    %17 = math.exp %16 : vector<128x256xf32>
    %cst_13 = arith.constant dense<0.000000e+00> : vector<128xf32>
    %18 = vector.multi_reduction <add>, %17, %cst_13 [1] : vector<128x256xf32> to vector<128xf32>
    %19 = vector.shape_cast %18 : vector<128xf32> to vector<128x1xf32>
    %20 = tpu.reciprocal %19 {approx = true} : vector<128x1xf32> -> vector<128x1xf32>
    %21 = vector.broadcast %20 : vector<128x1xf32> to vector<128x256xf32>
    %22 = arith.mulf %17, %21 : vector<128x256xf32>
    %23 = arith.truncf %22 : vector<128x256xf32> to vector<128x256xbf16>
    %24 = vector.extract_strided_slice %5 {offsets = [0, 0], sizes = [256, 32], strides = [1, 1]} : vector<256x128xbf16> to vector<256x32xbf16>
    %cst_14 = arith.constant dense<0.000000e+00> : vector<128x32xf32>
    %25 = tpu.matmul %23, %24, %cst_14 {dimension_numbers = #tpu.dot_dimension_numbers<[1], [0], [0], [1], [0, 0, 1, 1], [], []>} : vector<128x256xbf16>, vector<256x32xbf16>, vector<128x32xf32> -> vector<128x32xf32>
    %26 = vector.extract_strided_slice %1 {offsets = [0, 32], sizes = [128, 32], strides = [1, 1]} : vector<128x128xbf16> to vector<128x32xbf16>
    %27 = vector.extract_strided_slice %3 {offsets = [0, 32], sizes = [256, 32], strides = [1, 1]} : vector<256x128xbf16> to vector<256x32xbf16>
    %cst_15 = arith.constant dense<0.000000e+00> : vector<128x256xf32>
    %28 = tpu.matmul %26, %27, %cst_15 {dimension_numbers = #tpu.dot_dimension_numbers<[1], [1], [0], [0], [0, 0, 1, 0], [], []>} : vector<128x32xbf16>, vector<256x32xbf16>, vector<128x256xf32> -> vector<128x256xf32>
    %29 = arith.addf %28, %8 : vector<128x256xf32>
    %cst_16 = arith.constant dense<0xFF800000> : vector<128xf32>
    %30 = vector.multi_reduction <maximumf>, %29, %cst_16 [1] : vector<128x256xf32> to vector<128xf32>
    %31 = vector.shape_cast %30 : vector<128xf32> to vector<128x1xf32>
    %32 = vector.broadcast %31 : vector<128x1xf32> to vector<128x256xf32>
    %33 = arith.subf %29, %32 : vector<128x256xf32>
    %34 = math.exp %33 : vector<128x256xf32>
    %cst_17 = arith.constant dense<0.000000e+00> : vector<128xf32>
    %35 = vector.multi_reduction <add>, %34, %cst_17 [1] : vector<128x256xf32> to vector<128xf32>
    %36 = vector.shape_cast %35 : vector<128xf32> to vector<128x1xf32>
    %37 = tpu.reciprocal %36 {approx = true} : vector<128x1xf32> -> vector<128x1xf32>
    %38 = vector.broadcast %37 : vector<128x1xf32> to vector<128x256xf32>
    %39 = arith.mulf %34, %38 : vector<128x256xf32>
    %40 = arith.truncf %39 : vector<128x256xf32> to vector<128x256xbf16>
    %41 = vector.extract_strided_slice %5 {offsets = [0, 32], sizes = [256, 32], strides = [1, 1]} : vector<256x128xbf16> to vector<256x32xbf16>
    %cst_18 = arith.constant dense<0.000000e+00> : vector<128x32xf32>
    %42 = tpu.matmul %40, %41, %cst_18 {dimension_numbers = #tpu.dot_dimension_numbers<[1], [0], [0], [1], [0, 0, 1, 1], [], []>} : vector<128x256xbf16>, vector<256x32xbf16>, vector<128x32xf32> -> vector<128x32xf32>
    %43 = vector.extract_strided_slice %1 {offsets = [0, 64], sizes = [128, 32], strides = [1, 1]} : vector<128x128xbf16> to vector<128x32xbf16>
    %44 = vector.extract_strided_slice %3 {offsets = [0, 64], sizes = [256, 32], strides = [1, 1]} : vector<256x128xbf16> to vector<256x32xbf16>
    %cst_19 = arith.constant dense<0.000000e+00> : vector<128x256xf32>
    %45 = tpu.matmul %43, %44, %cst_19 {dimension_numbers = #tpu.dot_dimension_numbers<[1], [1], [0], [0], [0, 0, 1, 0], [], []>} : vector<128x32xbf16>, vector<256x32xbf16>, vector<128x256xf32> -> vector<128x256xf32>
    %46 = arith.addf %45, %8 : vector<128x256xf32>
    %cst_20 = arith.constant dense<0xFF800000> : vector<128xf32>
    %47 = vector.multi_reduction <maximumf>, %46, %cst_20 [1] : vector<128x256xf32> to vector<128xf32>
    %48 = vector.shape_cast %47 : vector<128xf32> to vector<128x1xf32>
    %49 = vector.broadcast %48 : vector<128x1xf32> to vector<128x256xf32>
    %50 = arith.subf %46, %49 : vector<128x256xf32>
    %51 = math.exp %50 : vector<128x256xf32>
    %cst_21 = arith.constant dense<0.000000e+00> : vector<128xf32>
    %52 = vector.multi_reduction <add>, %51, %cst_21 [1] : vector<128x256xf32> to vector<128xf32>
    %53 = vector.shape_cast %52 : vector<128xf32> to vector<128x1xf32>
    %54 = tpu.reciprocal %53 {approx = true} : vector<128x1xf32> -> vector<128x1xf32>
    %55 = vector.broadcast %54 : vector<128x1xf32> to vector<128x256xf32>
    %56 = arith.mulf %51, %55 : vector<128x256xf32>
    %57 = arith.truncf %56 : vector<128x256xf32> to vector<128x256xbf16>
    %58 = vector.extract_strided_slice %5 {offsets = [0, 64], sizes = [256, 32], strides = [1, 1]} : vector<256x128xbf16> to vector<256x32xbf16>
    %cst_22 = arith.constant dense<0.000000e+00> : vector<128x32xf32>
    %59 = tpu.matmul %57, %58, %cst_22 {dimension_numbers = #tpu.dot_dimension_numbers<[1], [0], [0], [1], [0, 0, 1, 1], [], []>} : vector<128x256xbf16>, vector<256x32xbf16>, vector<128x32xf32> -> vector<128x32xf32>
    %60 = vector.extract_strided_slice %1 {offsets = [0, 96], sizes = [128, 32], strides = [1, 1]} : vector<128x128xbf16> to vector<128x32xbf16>
    %61 = vector.extract_strided_slice %3 {offsets = [0, 96], sizes = [256, 32], strides = [1, 1]} : vector<256x128xbf16> to vector<256x32xbf16>
    %cst_23 = arith.constant dense<0.000000e+00> : vector<128x256xf32>
    %62 = tpu.matmul %60, %61, %cst_23 {dimension_numbers = #tpu.dot_dimension_numbers<[1], [1], [0], [0], [0, 0, 1, 0], [], []>} : vector<128x32xbf16>, vector<256x32xbf16>, vector<128x256xf32> -> vector<128x256xf32>
    %63 = arith.addf %62, %8 : vector<128x256xf32>
    %cst_24 = arith.constant dense<0xFF800000> : vector<128xf32>
    %64 = vector.multi_reduction <maximumf>, %63, %cst_24 [1] : vector<128x256xf32> to vector<128xf32>
    %65 = vector.shape_cast %64 : vector<128xf32> to vector<128x1xf32>
    %66 = vector.broadcast %65 : vector<128x1xf32> to vector<128x256xf32>
    %67 = arith.subf %63, %66 : vector<128x256xf32>
    %68 = math.exp %67 : vector<128x256xf32>
    %cst_25 = arith.constant dense<0.000000e+00> : vector<128xf32>
    %69 = vector.multi_reduction <add>, %68, %cst_25 [1] : vector<128x256xf32> to vector<128xf32>
    %70 = vector.shape_cast %69 : vector<128xf32> to vector<128x1xf32>
    %71 = tpu.reciprocal %70 {approx = true} : vector<128x1xf32> -> vector<128x1xf32>
    %72 = vector.broadcast %71 : vector<128x1xf32> to vector<128x256xf32>
    %73 = arith.mulf %68, %72 : vector<128x256xf32>
    %74 = arith.truncf %73 : vector<128x256xf32> to vector<128x256xbf16>
    %75 = vector.extract_strided_slice %5 {offsets = [0, 96], sizes = [256, 32], strides = [1, 1]} : vector<256x128xbf16> to vector<256x32xbf16>
    %cst_26 = arith.constant dense<0.000000e+00> : vector<128x32xf32>
    %76 = tpu.matmul %74, %75, %cst_26 {dimension_numbers = #tpu.dot_dimension_numbers<[1], [0], [0], [1], [0, 0, 1, 1], [], []>} : vector<128x256xbf16>, vector<256x32xbf16>, vector<128x32xf32> -> vector<128x32xf32>
    %77 = tpu.concatenate %25, %42, %59, %76 in 1 : vector<128x32xf32>, vector<128x32xf32>, vector<128x32xf32>, vector<128x32xf32> -> vector<128x128xf32>
    %78 = arith.truncf %77 : vector<128x128xf32> to vector<128x128xbf16>
    %c0_27 = arith.constant 0 : index
    %c0_28 = arith.constant 0 : index
    %c0_29 = arith.constant 0 : index
    %79 = vector.load %arg6[%c0_27, %c0_28, %c0_29] : memref<1x128x128xbf16, #tpu.memory_space<vmem>>, vector<1x128x128xbf16>
    %80 = vector.shape_cast %79 : vector<1x128x128xbf16> to vector<128x128xbf16>
    %81 = vector.shape_cast %78 : vector<128x128xbf16> to vector<1x128x128xbf16>
    tpu.vector_store %arg6[%c0_27, %c0_28, %c0_29], %81 {strides = array<i32>} : memref<1x128x128xbf16, #tpu.memory_space<vmem>>, vector<1x128x128xbf16>,
    return
  }
  func.func @transform_0(%arg0: i32, %arg1: i32) -> (i32, i32, i32) {
    %c0_i32 = arith.constant 0 : i32
    %c0_i32_0 = arith.constant 0 : i32
    return %arg0, %arg1, %c0_i32 : i32, i32, i32
  }
  func.func @transform_1(%arg0: i32, %arg1: i32) -> (i32, i32, i32) {
    %c0_i32 = arith.constant 0 : i32
    %c0_i32_0 = arith.constant 0 : i32
    %c0_i32_1 = arith.constant 0 : i32
    return %arg0, %c0_i32, %c0_i32_0 : i32, i32, i32
  }
  func.func @transform_2(%arg0: i32, %arg1: i32) -> (i32, i32, i32) {
    %c0_i32 = arith.constant 0 : i32
    %c0_i32_0 = arith.constant 0 : i32
    %c0_i32_1 = arith.constant 0 : i32
    return %arg0, %c0_i32, %c0_i32_0 : i32, i32, i32
  }
  func.func @transform_3(%arg0: i32, %arg1: i32) -> (i32, i32, i32, i32) {
    %c0_i32 = arith.constant 0 : i32
    %c0_i32_0 = arith.constant 0 : i32
    %c0_i32_1 = arith.constant 0 : i32
    return %arg0, %c0_i32, %arg1, %c0_i32_0 : i32, i32, i32, i32
  }
  func.func @transform_4(%arg0: i32, %arg1: i32) -> (i32, i32, i32) {
    %c0_i32 = arith.constant 0 : i32
    %c0_i32_0 = arith.constant 0 : i32
    return %arg0, %arg1, %c0_i32 : i32, i32, i32
  }
}

module attributes {stable_mosaic.version = 11 : i64} {
  func.func @_proj_mlp_kernel(%arg0: i32, %arg1: i32, %arg2: memref<1x128x128xf32, #tpu.memory_space<vmem>>, %arg3: memref<1x128x128xbf16, #tpu.memory_space<vmem>>, %arg4: memref<128x128xbf16, #tpu.memory_space<vmem>>, %arg5: memref<1x128xf32, #tpu.memory_space<vmem>>, %arg6: memref<1x128xf32, #tpu.memory_space<vmem>>, %arg7: memref<1x128xf32, #tpu.memory_space<vmem>>, %arg8: memref<128x1024xbf16, #tpu.memory_space<vmem>>, %arg9: memref<1x1024xf32, #tpu.memory_space<vmem>>, %arg10: memref<1024x128xbf16, #tpu.memory_space<vmem>>, %arg11: memref<1x128xf32, #tpu.memory_space<vmem>>, %arg12: memref<1x128x128xf32, #tpu.memory_space<vmem>>) attributes {dimension_semantics = [#tpu.dimension_semantics<parallel>, #tpu.dimension_semantics<parallel>], iteration_bounds = array<i64: 2, 2>, scalar_prefetch = 0 : i64, scratch_operands = 0 : i64, tpu.core_type = #tpu.core_type<tc>, window_params = [{transform_indices = @transform_0, window_bounds = array<i64: 1, 128, 128>}, {transform_indices = @transform_1, window_bounds = array<i64: 1, 128, 128>}, {pipeline_mode = #tpu.pipeline_mode<synchronous>, transform_indices = @transform_2, window_bounds = array<i64: 128, 128>}, {pipeline_mode = #tpu.pipeline_mode<synchronous>, transform_indices = @transform_3, window_bounds = array<i64: 1, 128>}, {pipeline_mode = #tpu.pipeline_mode<synchronous>, transform_indices = @transform_4, window_bounds = array<i64: 1, 128>}, {pipeline_mode = #tpu.pipeline_mode<synchronous>, transform_indices = @transform_5, window_bounds = array<i64: 1, 128>}, {pipeline_mode = #tpu.pipeline_mode<synchronous>, transform_indices = @transform_6, window_bounds = array<i64: 128, 1024>}, {pipeline_mode = #tpu.pipeline_mode<synchronous>, transform_indices = @transform_7, window_bounds = array<i64: 1, 1024>}, {pipeline_mode = #tpu.pipeline_mode<synchronous>, transform_indices = @transform_8, window_bounds = array<i64: 1024, 128>}, {pipeline_mode = #tpu.pipeline_mode<synchronous>, transform_indices = @transform_9, window_bounds = array<i64: 1, 128>}, {transform_indices = @transform_10, window_bounds = array<i64: 1, 128, 128>}]} {
    %c0 = arith.constant 0 : index
    %c0_0 = arith.constant 0 : index
    %c0_1 = arith.constant 0 : index
    %0 = vector.load %arg3[%c0, %c0_0, %c0_1] : memref<1x128x128xbf16, #tpu.memory_space<vmem>>, vector<1x128x128xbf16>
    %1 = vector.shape_cast %0 : vector<1x128x128xbf16> to vector<128x128xbf16>
    %c0_2 = arith.constant 0 : index
    %c0_3 = arith.constant 0 : index
    %2 = vector.load %arg4[%c0_2, %c0_3] : memref<128x128xbf16, #tpu.memory_space<vmem>>, vector<128x128xbf16>
    %cst = arith.constant dense<0.000000e+00> : vector<128x128xf32>
    %3 = tpu.matmul %1, %2, %cst {dimension_numbers = #tpu.dot_dimension_numbers<[1], [0], [0], [1], [0, 0, 1, 1], [], []>} : vector<128x128xbf16>, vector<128x128xbf16>, vector<128x128xf32> -> vector<128x128xf32>
    %c0_4 = arith.constant 0 : index
    %c0_5 = arith.constant 0 : index
    %4 = vector.load %arg5[%c0_4, %c0_5] : memref<1x128xf32, #tpu.memory_space<vmem>>, vector<1x128xf32>
    %5 = vector.shape_cast %4 : vector<1x128xf32> to vector<128xf32>
    %6 = vector.shape_cast %5 : vector<128xf32> to vector<1x128xf32>
    %7 = vector.broadcast %6 : vector<1x128xf32> to vector<128x128xf32>
    %8 = arith.addf %3, %7 : vector<128x128xf32>
    %c0_6 = arith.constant 0 : index
    %c0_7 = arith.constant 0 : index
    %c0_8 = arith.constant 0 : index
    %9 = vector.load %arg2[%c0_6, %c0_7, %c0_8] : memref<1x128x128xf32, #tpu.memory_space<vmem>>, vector<1x128x128xf32>
    %10 = vector.shape_cast %9 : vector<1x128x128xf32> to vector<128x128xf32>
    %11 = arith.addf %10, %8 : vector<128x128xf32>
    %c0_9 = arith.constant 0 : index
    %c0_10 = arith.constant 0 : index
    %12 = vector.load %arg6[%c0_9, %c0_10] : memref<1x128xf32, #tpu.memory_space<vmem>>, vector<1x128xf32>
    %13 = vector.shape_cast %12 : vector<1x128xf32> to vector<128xf32>
    %c0_11 = arith.constant 0 : index
    %c0_12 = arith.constant 0 : index
    %14 = vector.load %arg7[%c0_11, %c0_12] : memref<1x128xf32, #tpu.memory_space<vmem>>, vector<1x128xf32>
    %15 = vector.shape_cast %14 : vector<1x128xf32> to vector<128xf32>
    %cst_13 = arith.constant dense<0.000000e+00> : vector<128xf32>
    %16 = vector.multi_reduction <add>, %11, %cst_13 [1] : vector<128x128xf32> to vector<128xf32>
    %17 = vector.shape_cast %16 : vector<128xf32> to vector<128x1xf32>
    %cst_14 = arith.constant 1.280000e+02 : f32
    %18 = vector.broadcast %cst_14 : f32 to vector<128x1xf32>
    %19 = arith.divf %17, %18 : vector<128x1xf32>
    %20 = vector.broadcast %19 : vector<128x1xf32> to vector<128x128xf32>
    %21 = arith.subf %11, %20 : vector<128x128xf32>
    %22 = arith.mulf %21, %21 : vector<128x128xf32>
    %cst_15 = arith.constant dense<0.000000e+00> : vector<128xf32>
    %23 = vector.multi_reduction <add>, %22, %cst_15 [1] : vector<128x128xf32> to vector<128xf32>
    %24 = vector.shape_cast %23 : vector<128xf32> to vector<128x1xf32>
    %cst_16 = arith.constant 1.280000e+02 : f32
    %25 = vector.broadcast %cst_16 : f32 to vector<128x1xf32>
    %26 = arith.divf %24, %25 : vector<128x1xf32>
    %27 = vector.broadcast %19 : vector<128x1xf32> to vector<128x128xf32>
    %28 = arith.subf %11, %27 : vector<128x128xf32>
    %cst_17 = arith.constant 9.99999997E-7 : f32
    %29 = vector.broadcast %cst_17 : f32 to vector<128x1xf32>
    %30 = arith.addf %26, %29 : vector<128x1xf32>
    %31 = math.rsqrt %30 : vector<128x1xf32>
    %32 = vector.broadcast %31 : vector<128x1xf32> to vector<128x128xf32>
    %33 = arith.mulf %28, %32 : vector<128x128xf32>
    %34 = vector.shape_cast %13 : vector<128xf32> to vector<1x128xf32>
    %35 = vector.broadcast %34 : vector<1x128xf32> to vector<128x128xf32>
    %36 = arith.mulf %33, %35 : vector<128x128xf32>
    %37 = vector.shape_cast %15 : vector<128xf32> to vector<1x128xf32>
    %38 = vector.broadcast %37 : vector<1x128xf32> to vector<128x128xf32>
    %39 = arith.addf %36, %38 : vector<128x128xf32>
    %40 = arith.truncf %39 : vector<128x128xf32> to vector<128x128xbf16>
    %c0_18 = arith.constant 0 : index
    %c0_19 = arith.constant 0 : index
    %41 = vector.load %arg8[%c0_18, %c0_19] : memref<128x1024xbf16, #tpu.memory_space<vmem>>, vector<128x1024xbf16>
    %cst_20 = arith.constant dense<0.000000e+00> : vector<128x1024xf32>
    %42 = tpu.matmul %40, %41, %cst_20 {dimension_numbers = #tpu.dot_dimension_numbers<[1], [0], [0], [1], [0, 0, 1, 1], [], []>} : vector<128x128xbf16>, vector<128x1024xbf16>, vector<128x1024xf32> -> vector<128x1024xf32>
    %c0_21 = arith.constant 0 : index
    %c0_22 = arith.constant 0 : index
    %43 = vector.load %arg9[%c0_21, %c0_22] : memref<1x1024xf32, #tpu.memory_space<vmem>>, vector<1x1024xf32>
    %44 = vector.shape_cast %43 : vector<1x1024xf32> to vector<1024xf32>
    %45 = vector.shape_cast %44 : vector<1024xf32> to vector<1x1024xf32>
    %46 = vector.broadcast %45 : vector<1x1024xf32> to vector<128x1024xf32>
    %47 = arith.addf %42, %46 : vector<128x1024xf32>
    %cst_23 = arith.constant 5.000000e-01 : f32
    %48 = vector.broadcast %cst_23 : f32 to vector<128x1024xf32>
    %49 = arith.mulf %48, %47 : vector<128x1024xf32>
    %cst_24 = arith.constant 4.471500e-02 : f32
    %50 = vector.broadcast %cst_24 : f32 to vector<128x1024xf32>
    %51 = arith.mulf %50, %47 : vector<128x1024xf32>
    %52 = arith.mulf %51, %47 : vector<128x1024xf32>
    %53 = arith.mulf %52, %47 : vector<128x1024xf32>
    %54 = arith.addf %47, %53 : vector<128x1024xf32>
    %cst_25 = arith.constant 0.797884583 : f32
    %55 = vector.broadcast %cst_25 : f32 to vector<128x1024xf32>
    %56 = arith.mulf %55, %54 : vector<128x1024xf32>
    %57 = math.tanh %56 : vector<128x1024xf32>
    %cst_26 = arith.constant 1.000000e+00 : f32
    %58 = vector.broadcast %cst_26 : f32 to vector<128x1024xf32>
    %59 = arith.addf %58, %57 : vector<128x1024xf32>
    %60 = arith.mulf %49, %59 : vector<128x1024xf32>
    %61 = arith.truncf %60 : vector<128x1024xf32> to vector<128x1024xbf16>
    %c0_27 = arith.constant 0 : index
    %c0_28 = arith.constant 0 : index
    %62 = vector.load %arg10[%c0_27, %c0_28] : memref<1024x128xbf16, #tpu.memory_space<vmem>>, vector<1024x128xbf16>
    %cst_29 = arith.constant dense<0.000000e+00> : vector<128x128xf32>
    %63 = tpu.matmul %61, %62, %cst_29 {dimension_numbers = #tpu.dot_dimension_numbers<[1], [0], [0], [1], [0, 0, 1, 1], [], []>} : vector<128x1024xbf16>, vector<1024x128xbf16>, vector<128x128xf32> -> vector<128x128xf32>
    %c0_30 = arith.constant 0 : index
    %c0_31 = arith.constant 0 : index
    %64 = vector.load %arg11[%c0_30, %c0_31] : memref<1x128xf32, #tpu.memory_space<vmem>>, vector<1x128xf32>
    %65 = vector.shape_cast %64 : vector<1x128xf32> to vector<128xf32>
    %66 = vector.shape_cast %65 : vector<128xf32> to vector<1x128xf32>
    %67 = vector.broadcast %66 : vector<1x128xf32> to vector<128x128xf32>
    %68 = arith.addf %63, %67 : vector<128x128xf32>
    %69 = arith.addf %11, %68 : vector<128x128xf32>
    %c0_32 = arith.constant 0 : index
    %c0_33 = arith.constant 0 : index
    %c0_34 = arith.constant 0 : index
    %70 = vector.load %arg12[%c0_32, %c0_33, %c0_34] : memref<1x128x128xf32, #tpu.memory_space<vmem>>, vector<1x128x128xf32>
    %71 = vector.shape_cast %70 : vector<1x128x128xf32> to vector<128x128xf32>
    %72 = vector.shape_cast %69 : vector<128x128xf32> to vector<1x128x128xf32>
    tpu.vector_store %arg12[%c0_32, %c0_33, %c0_34], %72 {strides = array<i32>} : memref<1x128x128xf32, #tpu.memory_space<vmem>>, vector<1x128x128xf32>,
    return
  }
  func.func @transform_0(%arg0: i32, %arg1: i32) -> (i32, i32, i32) {
    %c0_i32 = arith.constant 0 : i32
    %c0_i32_0 = arith.constant 0 : i32
    return %arg0, %arg1, %c0_i32 : i32, i32, i32
  }
  func.func @transform_1(%arg0: i32, %arg1: i32) -> (i32, i32, i32) {
    %c0_i32 = arith.constant 0 : i32
    %c0_i32_0 = arith.constant 0 : i32
    return %arg0, %arg1, %c0_i32 : i32, i32, i32
  }
  func.func @transform_2(%arg0: i32, %arg1: i32) -> (i32, i32) {
    %c0_i32 = arith.constant 0 : i32
    %c0_i32_0 = arith.constant 0 : i32
    %c0_i32_1 = arith.constant 0 : i32
    return %c0_i32, %c0_i32_0 : i32, i32
  }
  func.func @transform_3(%arg0: i32, %arg1: i32) -> (i32, i32) {
    %c0_i32 = arith.constant 0 : i32
    %c0_i32_0 = arith.constant 0 : i32
    %c0_i32_1 = arith.constant 0 : i32
    return %c0_i32, %c0_i32_0 : i32, i32
  }
  func.func @transform_4(%arg0: i32, %arg1: i32) -> (i32, i32) {
    %c0_i32 = arith.constant 0 : i32
    %c0_i32_0 = arith.constant 0 : i32
    %c0_i32_1 = arith.constant 0 : i32
    return %c0_i32, %c0_i32_0 : i32, i32
  }
  func.func @transform_5(%arg0: i32, %arg1: i32) -> (i32, i32) {
    %c0_i32 = arith.constant 0 : i32
    %c0_i32_0 = arith.constant 0 : i32
    %c0_i32_1 = arith.constant 0 : i32
    return %c0_i32, %c0_i32_0 : i32, i32
  }
  func.func @transform_6(%arg0: i32, %arg1: i32) -> (i32, i32) {
    %c0_i32 = arith.constant 0 : i32
    %c0_i32_0 = arith.constant 0 : i32
    %c0_i32_1 = arith.constant 0 : i32
    return %c0_i32, %c0_i32_0 : i32, i32
  }
  func.func @transform_7(%arg0: i32, %arg1: i32) -> (i32, i32) {
    %c0_i32 = arith.constant 0 : i32
    %c0_i32_0 = arith.constant 0 : i32
    %c0_i32_1 = arith.constant 0 : i32
    return %c0_i32, %c0_i32_0 : i32, i32
  }
  func.func @transform_8(%arg0: i32, %arg1: i32) -> (i32, i32) {
    %c0_i32 = arith.constant 0 : i32
    %c0_i32_0 = arith.constant 0 : i32
    %c0_i32_1 = arith.constant 0 : i32
    return %c0_i32, %c0_i32_0 : i32, i32
  }
  func.func @transform_9(%arg0: i32, %arg1: i32) -> (i32, i32) {
    %c0_i32 = arith.constant 0 : i32
    %c0_i32_0 = arith.constant 0 : i32
    %c0_i32_1 = arith.constant 0 : i32
    return %c0_i32, %c0_i32_0 : i32, i32
  }
  func.func @transform_10(%arg0: i32, %arg1: i32) -> (i32, i32, i32) {
    %c0_i32 = arith.constant 0 : i32
    %c0_i32_0 = arith.constant 0 : i32
    return %arg0, %arg1, %c0_i32 : i32, i32, i32
  }
}

</mosaic_0001>

<llo_original>
// kernel: siglip_encoder_layer.3
$region0: #{siglip_encoder_layer.3}
  #allocation0 [shape = 'u32[]', space=smem, size = 0x4, offset = 0x4, fixed_abs, tag = 'smem constant byte address 0x4 - core index']
  #allocation1 [shape = 'u32[144,128]{1,0:T(1,128)}', space=vmem, size = 0x12000, scoped, tag = 'internal scratch']
  %s0 = inlined_call_operand.vmem [shape: f32[2,256,128], index: 0, kind: input, shape index: {}]
  %s1 = inlined_call_operand.vmem [shape: f32[1,128], index: 1, kind: input, shape index: {}]
  %s2 = inlined_call_operand.vmem [shape: f32[1,128], index: 2, kind: input, shape index: {}]
  %s3 = inlined_call_operand.vmem [shape: bf16[128,384], index: 3, kind: input, shape index: {}]
  %s4 = inlined_call_operand.vmem [shape: f32[1,384], index: 4, kind: input, shape index: {}]
  %s5 = inlined_call_operand.vmem [shape: bf16[2,256,128], index: 5, kind: output, shape index: {0}]
  %s6 = inlined_call_operand.vmem [shape: bf16[2,256,128], index: 6, kind: output, shape index: {1}]
  %s7 = inlined_call_operand.vmem [shape: bf16[2,256,128], index: 7, kind: output, shape index: {2}]
  %8 = xla_tuple %s5, %s6, %s7
  %s9 = sld [smem:[#allocation0]]
  $region69: #{siglip_encoder_layer.3} parent=0
    _
  %s11 = ssub.s32 1, %s9
  %s12 = scalar_select 0, %s11, %s9
  loop: start=0, step=1, limit=6
  $region2: #{siglip_encoder_layer.3} parent=0 // loop_pre_header
    _
  $region3: #{siglip_encoder_layer.3} parent=0 // loop_header
    %s14 = sphi 0, %s18
    %p15 = scmp.ge.s32.totalorder %s14, 6
    %s21 = sphi 0, %s33
    %s22 = sphi 0, %s29
    %s23 = sphi 0, %s21
    %s24 = sphi 0, %s22
    %s25 = sphi 0, %s23
    %s26 = sphi 0, %s24
    %s38 = sphi 0, %s40
    %s41 = sphi 0, %s38
    %s42 = sphi 0, %s41
    %s58 = sphi 0, %s42
    %s62 = sphi 0, %s62
    %s64 = sphi 0, %s62
    %s65 = sphi 0, %s64
    %s79 = sphi 0, %s65
    %s83 = sphi 0, %s83
    %s85 = sphi 0, %s83
    %s86 = sphi 0, %s85
    %s100 = sphi 0, %s86
    %s104 = sphi 0, %s104
    %s106 = sphi 0, %s104
    %s107 = sphi 0, %s106
    %s121 = sphi 0, %s107
    %s125 = sphi 0, %s125
    %s127 = sphi 0, %s125
    %s128 = sphi 0, %s127
    %s142 = sphi 0, %s128
    %s150 = sphi 0, %s152
    %s153 = sphi 0, %s150
    %s154 = sphi 0, %s153
    %s170 = sphi 0, %s154
    %s178 = sphi 0, %s180
    %s181 = sphi 0, %s178
    %s182 = sphi 0, %s181
    %s198 = sphi 0, %s182
    %s206 = sphi 0, %s208
    %s209 = sphi 0, %s206
    %s210 = sphi 0, %s209
    %s226 = sphi 0, %s210
  $region4: #{siglip_encoder_layer.3} parent=0 // loop_header_branch
    %17 = sbr.rel (%p15) target = $region8
  $region5: #{siglip_encoder_layer.3} parent=0 // loop_body
    %s19 = ssub.s32 %s14, 1
    %s20 = ssub.s32 %s14, 2
    %s27 = sadd.s32 1, %s22
    %p28 = scmp.ge.s32.totalorder %s27, 2
    %s29 = scalar_select %p28, 0, %s27
    %s30 = sadd.s32 1, %s21
    %s31 = scalar_select %p28, %s30, %s21
    %p32 = scmp.ge.s32.totalorder %s31, 2
    %s33 = scalar_select %p32, 0, %s31
    %s34 = ssub.s32 %s21, %s33
    %s35 = ssub.s32 %s22, %s29
    %s36 = sor.u32 %s34, %s35
    %p37 = scmp.eq.s32.totalorder %s36, 0
    %s39 = sadd.s32 %s38, 1
    %s40 = scalar_select %p37, %s38, %s39
    %p43 = pneg %p37
    %p44 = scmp.eq.s32.totalorder %s14, 3
    %p45 = por %p43, %p44
    %p46 = scmp.ne.s32.totalorder %s38, %s41
    %p47 = scmp.eq.s32.totalorder %s14, 0
    %p48 = por %p46, %p47
    %p49 = scmp.ne.s32.totalorder %s38, %s41
    %p50 = scmp.eq.s32.totalorder %s19, 3
    %p51 = por %p49, %p50
    %p52 = scmp.ne.s32.totalorder %s41, %s42
    %p53 = scmp.eq.s32.totalorder %s19, 0
    %p54 = por %p52, %p53
    %p55 = scmp.ne.s32.totalorder %s41, %s42
    %p56 = scmp.eq.s32.totalorder %s20, 3
    %p57 = por %p55, %p56
    %p59 = scmp.ne.s32.totalorder %s42, %s58
    %p60 = scmp.eq.s32.totalorder %s20, 0
    %p61 = por %p59, %p60
    %s63 = sadd.s32 %s62, 1
    %p66 = scmp.eq.s32.totalorder %s14, 3
    %p67 = scmp.ne.s32.totalorder %s62, %s64
    %p68 = scmp.eq.s32.totalorder %s14, 0
    %p69 = por %p67, %p68
    %p70 = scmp.ne.s32.totalorder %s62, %s64
    %p71 = scmp.eq.s32.totalorder %s19, 3
    %p72 = por %p70, %p71
    %p73 = scmp.ne.s32.totalorder %s64, %s65
    %p74 = scmp.eq.s32.totalorder %s19, 0
    %p75 = por %p73, %p74
    %p76 = scmp.ne.s32.totalorder %s64, %s65
    %p77 = scmp.eq.s32.totalorder %s20, 3
    %p78 = por %p76, %p77
    %p80 = scmp.ne.s32.totalorder %s65, %s79
    %p81 = scmp.eq.s32.totalorder %s20, 0
    %p82 = por %p80, %p81
    %s84 = sadd.s32 %s83, 1
    %p87 = scmp.eq.s32.totalorder %s14, 3
    %p88 = scmp.ne.s32.totalorder %s83, %s85
    %p89 = scmp.eq.s32.totalorder %s14, 0
    %p90 = por %p88, %p89
    %p91 = scmp.ne.s32.totalorder %s83, %s85
    %p92 = scmp.eq.s32.totalorder %s19, 3
    %p93 = por %p91, %p92
    %p94 = scmp.ne.s32.totalorder %s85, %s86
    %p95 = scmp.eq.s32.totalorder %s19, 0
    %p96 = por %p94, %p95
    %p97 = scmp.ne.s32.totalorder %s85, %s86
    %p98 = scmp.eq.s32.totalorder %s20, 3
    %p99 = por %p97, %p98
    %p101 = scmp.ne.s32.totalorder %s86, %s100
    %p102 = scmp.eq.s32.totalorder %s20, 0
    %p103 = por %p101, %p102
    %s105 = sadd.s32 %s104, 1
    %p108 = scmp.eq.s32.totalorder %s14, 3
    %p109 = scmp.ne.s32.totalorder %s104, %s106
    %p110 = scmp.eq.s32.totalorder %s14, 0
    %p111 = por %p109, %p110
    %p112 = scmp.ne.s32.totalorder %s104, %s106
    %p113 = scmp.eq.s32.totalorder %s19, 3
    %p114 = por %p112, %p113
    %p115 = scmp.ne.s32.totalorder %s106, %s107
    %p116 = scmp.eq.s32.totalorder %s19, 0
    %p117 = por %p115, %p116
    %p118 = scmp.ne.s32.totalorder %s106, %s107
    %p119 = scmp.eq.s32.totalorder %s20, 3
    %p120 = por %p118, %p119
    %p122 = scmp.ne.s32.totalorder %s107, %s121
    %p123 = scmp.eq.s32.totalorder %s20, 0
    %p124 = por %p122, %p123
    %s126 = sadd.s32 %s125, 1
    %p129 = scmp.eq.s32.totalorder %s14, 3
    %p130 = scmp.ne.s32.totalorder %s125, %s127
    %p131 = scmp.eq.s32.totalorder %s14, 0
    %p132 = por %p130, %p131
    %p133 = scmp.ne.s32.totalorder %s125, %s127
    %p134 = scmp.eq.s32.totalorder %s19, 3
    %p135 = por %p133, %p134
    %p136 = scmp.ne.s32.totalorder %s127, %s128
    %p137 = scmp.eq.s32.totalorder %s19, 0
    %p138 = por %p136, %p137
    %p139 = scmp.ne.s32.totalorder %s127, %s128
    %p140 = scmp.eq.s32.totalorder %s20, 3
    %p141 = por %p139, %p140
    %p143 = scmp.ne.s32.totalorder %s128, %s142
    %p144 = scmp.eq.s32.totalorder %s20, 0
    %p145 = por %p143, %p144
    %s146 = ssub.s32 %s21, %s33
    %s147 = ssub.s32 %s22, %s29
    %s148 = sor.u32 %s146, %s147
    %p149 = scmp.eq.s32.totalorder %s148, 0
    %s151 = sadd.s32 %s150, 1
    %s152 = scalar_select %p149, %s150, %s151
    %p155 = pneg %p149
    %p156 = scmp.eq.s32.totalorder %s14, 3
    %p157 = por %p155, %p156
    %p158 = scmp.ne.s32.totalorder %s150, %s153
    %p159 = scmp.eq.s32.totalorder %s14, 0
    %p160 = por %p158, %p159
    %p161 = scmp.ne.s32.totalorder %s150, %s153
    %p162 = scmp.eq.s32.totalorder %s19, 3
    %p163 = por %p161, %p162
    %p164 = scmp.ne.s32.totalorder %s153, %s154
    %p165 = scmp.eq.s32.totalorder %s19, 0
    %p166 = por %p164, %p165
    %p167 = scmp.ne.s32.totalorder %s153, %s154
    %p168 = scmp.eq.s32.totalorder %s20, 3
    %p169 = por %p167, %p168
    %p171 = scmp.ne.s32.totalorder %s154, %s170
    %p172 = scmp.eq.s32.totalorder %s20, 0
    %p173 = por %p171, %p172
    %s174 = ssub.s32 %s21, %s33
    %s175 = ssub.s32 %s22, %s29
    %s176 = sor.u32 %s174, %s175
    %p177 = scmp.eq.s32.totalorder %s176, 0
    %s179 = sadd.s32 %s178, 1
    %s180 = scalar_select %p177, %s178, %s179
    %p183 = pneg %p177
    %p184 = scmp.eq.s32.totalorder %s14, 3
    %p185 = por %p183, %p184
    %p186 = scmp.ne.s32.totalorder %s178, %s181
    %p187 = scmp.eq.s32.totalorder %s14, 0
    %p188 = por %p186, %p187
    %p189 = scmp.ne.s32.totalorder %s178, %s181
    %p190 = scmp.eq.s32.totalorder %s19, 3
    %p191 = por %p189, %p190
    %p192 = scmp.ne.s32.totalorder %s181, %s182
    %p193 = scmp.eq.s32.totalorder %s19, 0
    %p194 = por %p192, %p193
    %p195 = scmp.ne.s32.totalorder %s181, %s182
    %p196 = scmp.eq.s32.totalorder %s20, 3
    %p197 = por %p195, %p196
    %p199 = scmp.ne.s32.totalorder %s182, %s198
    %p200 = scmp.eq.s32.totalorder %s20, 0
    %p201 = por %p199, %p200
    %s202 = ssub.s32 %s21, %s33
    %s203 = ssub.s32 %s22, %s29
    %s204 = sor.u32 %s202, %s203
    %p205 = scmp.eq.s32.totalorder %s204, 0
    %s207 = sadd.s32 %s206, 1
    %s208 = scalar_select %p205, %s206, %s207
    %p211 = pneg %p205
    %p212 = scmp.eq.s32.totalorder %s14, 3
    %p213 = por %p211, %p212
    %p214 = scmp.ne.s32.totalorder %s206, %s209
    %p215 = scmp.eq.s32.totalorder %s14, 0
    %p216 = por %p214, %p215
    %p217 = scmp.ne.s32.totalorder %s206, %s209
    %p218 = scmp.eq.s32.totalorder %s19, 3
    %p219 = por %p217, %p218
    %p220 = scmp.ne.s32.totalorder %s209, %s210
    %p221 = scmp.eq.s32.totalorder %s19, 0
    %p222 = por %p220, %p221
    %p223 = scmp.ne.s32.totalorder %s209, %s210
    %p224 = scmp.eq.s32.totalorder %s20, 3
    %p225 = por %p223, %p224
    %p227 = scmp.ne.s32.totalorder %s210, %s226
    %p228 = scmp.eq.s32.totalorder %s20, 0
    %p229 = por %p227, %p228
    %p230 = scmp.le.s32.totalorder 1, %s14
    %p231 = scmp.lt.s32.totalorder %s14, 5
    %p232 = pnand %p230, %p231
    %p233 = pneg %p232
    // Predicated region
    $region9: #{siglip_encoder_layer.3} parent=5 // pred_check
      _
    $region10: #{siglip_encoder_layer.3} parent=5 // pred_check_branch
      %235 = sbr.rel (%p232) target = $region12
    $region11: #{siglip_encoder_layer.3} parent=5 // pred_region
      %s236 = ssub.s32 %s14, 1
      // Predicated region
      $region13: #{siglip_encoder_layer.3} parent=11 // pred_check
        %p237 = pneg %p75
      $region14: #{siglip_encoder_layer.3} parent=11 // pred_check_branch
        %239 = sbr.rel (%p237) target = $region16
      $region15: #{siglip_encoder_layer.3} parent=11 // pred_region
        _
      $region16: #{siglip_encoder_layer.3} parent=11 // pred_fallthru
        _
      // Predicated region
      $region17: #{siglip_encoder_layer.3} parent=11 // pred_check
        %p240 = pneg %p96
      $region18: #{siglip_encoder_layer.3} parent=11 // pred_check_branch
        %242 = sbr.rel (%p240) target = $region20
      $region19: #{siglip_encoder_layer.3} parent=11 // pred_region
        _
      $region20: #{siglip_encoder_layer.3} parent=11 // pred_fallthru
        _
      // Predicated region
      $region21: #{siglip_encoder_layer.3} parent=11 // pred_check
        %p243 = pneg %p117
      $region22: #{siglip_encoder_layer.3} parent=11 // pred_check_branch
        %245 = sbr.rel (%p243) target = $region24
      $region23: #{siglip_encoder_layer.3} parent=11 // pred_region
        _
      $region24: #{siglip_encoder_layer.3} parent=11 // pred_fallthru
        _
      // Predicated region
      $region25: #{siglip_encoder_layer.3} parent=11 // pred_check
        %p246 = pneg %p138
      $region26: #{siglip_encoder_layer.3} parent=11 // pred_check_branch
        %248 = sbr.rel (%p246) target = $region28
      $region27: #{siglip_encoder_layer.3} parent=11 // pred_region
        _
      $region28: #{siglip_encoder_layer.3} parent=11 // pred_fallthru
        _
    $region12: #{siglip_encoder_layer.3} parent=5 // pred_fallthru
      _
    %p249 = scmp.lt.s32.totalorder %s14, 4
    // Predicated region
    $region29: #{siglip_encoder_layer.3} parent=5 // pred_check
      %p250 = pneg %p249
    $region30: #{siglip_encoder_layer.3} parent=5 // pred_check_branch
      %252 = sbr.rel (%p250) target = $region32
    $region31: #{siglip_encoder_layer.3} parent=5 // pred_region
      // Predicated region
      $region33: #{siglip_encoder_layer.3} parent=31 // pred_check
        %p253 = pneg %p48
      $region34: #{siglip_encoder_layer.3} parent=31 // pred_check_branch
        %255 = sbr.rel (%p253) target = $region36
      $region35: #{siglip_encoder_layer.3} parent=31 // pred_region
        %s256 = smul.u32 16, %s22
        %p257 = scmp.lt.s32.totalorder %s21, 1
        %s258 = scalar_select %p257, %s21, 1
        %p259 = scmp.lt.s32.totalorder %s256, 31
        %s260 = scalar_select %p259, %s256, 31
        %s261 = smul.addr %s258, 32
        %s262 = sadd.s32 %s260, %s261
        %s263 = smul.addr %s262, 8
        %s264 = scalar_lea.vmem %s0, %s263
        %s265 = smul.u32 16, %s22
      $region36: #{siglip_encoder_layer.3} parent=31 // pred_fallthru
        _
    $region32: #{siglip_encoder_layer.3} parent=5 // pred_fallthru
      _
    %p266 = scmp.le.s32.totalorder 1, %s14
    %p267 = scmp.lt.s32.totalorder %s14, 5
    %p268 = pnand %p266, %p267
    %p269 = pneg %p268
    // Predicated region
    $region37: #{siglip_encoder_layer.3} parent=5 // pred_check
      _
    $region38: #{siglip_encoder_layer.3} parent=5 // pred_check_branch
      %271 = sbr.rel (%p268) target = $region40
    $region39: #{siglip_encoder_layer.3} parent=5 // pred_region
      %s272 = ssub.s32 %s14, 1
      %s273 = smul.u32 16, %s24
      %p274 = scmp.lt.s32.totalorder %s23, 1
      %s275 = scalar_select %p274, %s23, 1
      %p276 = scmp.lt.s32.totalorder %s273, 31
      %s277 = scalar_select %p276, %s273, 31
      %s278 = smul.addr %s275, 32
      %s279 = sadd.s32 %s277, %s278
      %s280 = smul.addr %s279, 8
      %s281 = scalar_lea.vmem %s0, %s280
      %p282 = pneg %p54
      %p283 = pneg %p51
      %p284 = pneg %p75
      %p285 = pneg %p72
      %p286 = pneg %p96
      %p287 = pneg %p93
      %p288 = pneg %p117
      %p289 = pneg %p114
      %p290 = pneg %p138
      %p291 = pneg %p135
      %p292 = pneg %p166
      %p293 = pneg %p163
      %s294 = smul.u32 16, %s24
      %p295 = scmp.lt.s32.totalorder %s23, 1
      %s296 = scalar_select %p295, %s23, 1
      %p297 = scmp.lt.s32.totalorder %s294, 31
      %s298 = scalar_select %p297, %s294, 31
      %s299 = smul.addr %s296, 32
      %s300 = sadd.s32 %s298, %s299
      %s301 = smul.addr %s300, 4
      %s302 = scalar_lea.vmem %s5, %s301
      %p303 = pneg %p194
      %p304 = pneg %p191
      %s305 = smul.u32 16, %s24
      %p306 = scmp.lt.s32.totalorder %s23, 1
      %s307 = scalar_select %p306, %s23, 1
      %p308 = scmp.lt.s32.totalorder %s305, 31
      %s309 = scalar_select %p308, %s305, 31
      %s310 = smul.addr %s307, 32
      %s311 = sadd.s32 %s309, %s310
      %s312 = smul.addr %s311, 4
      %s313 = scalar_lea.vmem %s6, %s312
      %p314 = pneg %p222
      %p315 = pneg %p219
      %s316 = smul.u32 16, %s24
      %p317 = scmp.lt.s32.totalorder %s23, 1
      %s318 = scalar_select %p317, %s23, 1
      %p319 = scmp.lt.s32.totalorder %s316, 31
      %s320 = scalar_select %p319, %s316, 31
      %s321 = smul.addr %s318, 32
      %s322 = sadd.s32 %s320, %s321
      %s323 = smul.addr %s322, 4
      %s324 = scalar_lea.vmem %s7, %s323
      %s325 = smul.u32 16, %s24
      %p326 = scmp.lt.s32.totalorder %s23, 1
      %s327 = scalar_select %p326, %s23, 1
      %p328 = scmp.lt.s32.totalorder %s325, 31
      %s329 = scalar_select %p328, %s325, 31
      %s330 = smul.addr %s327, 32
      %s331 = sadd.s32 %s329, %s330
      %s332 = smul.addr %s331, 8
      %s333 = scalar_lea.vmem %s0, %s332
      %s334 = smul.u32 16, %s24
      %s335 = smul.u32 16, %s24
      %p336 = scmp.lt.s32.totalorder %s23, 1
      %s337 = scalar_select %p336, %s23, 1
      %p338 = scmp.lt.s32.totalorder %s335, 31
      %s339 = scalar_select %p338, %s335, 31
      %s340 = smul.addr %s337, 32
      %s341 = sadd.s32 %s339, %s340
      %s342 = smul.addr %s341, 4
      %s343 = scalar_lea.vmem %s5, %s342
      %s344 = smul.u32 16, %s24
      %s345 = smul.u32 16, %s24
      %p346 = scmp.lt.s32.totalorder %s23, 1
      %s347 = scalar_select %p346, %s23, 1
      %p348 = scmp.lt.s32.totalorder %s345, 31
      %s349 = scalar_select %p348, %s345, 31
      %s350 = smul.addr %s347, 32
      %s351 = sadd.s32 %s349, %s350
      %s352 = smul.addr %s351, 4
      %s353 = scalar_lea.vmem %s6, %s352
      %s354 = smul.u32 16, %s24
      %s355 = smul.u32 16, %s24
      %p356 = scmp.lt.s32.totalorder %s23, 1
      %s357 = scalar_select %p356, %s23, 1
      %p358 = scmp.lt.s32.totalorder %s355, 31
      %s359 = scalar_select %p358, %s355, 31
      %s360 = smul.addr %s357, 32
      %s361 = sadd.s32 %s359, %s360
      %s362 = smul.addr %s361, 4
      %s363 = scalar_lea.vmem %s7, %s362
      %s364 = smul.u32 16, %s24
      %v366 = vld [vmem:[%s333] sm:$0xff]
      %v367 = vld [vmem:[%s333 + $0x8] sm:$0xff]
      %v368 = vld [vmem:[%s333 + $0x10] sm:$0xff]
      %v369 = vld [vmem:[%s333 + $0x18] sm:$0xff]
      %v370 = vld [vmem:[%s333 + $0x20] sm:$0xff]
      %v371 = vld [vmem:[%s333 + $0x28] sm:$0xff]
      %v372 = vld [vmem:[%s333 + $0x30] sm:$0xff]
      %v373 = vld [vmem:[%s333 + $0x38] sm:$0xff]
      %v374 = vld [vmem:[%s333 + $0x40] sm:$0xff]
      %v375 = vld [vmem:[%s333 + $0x48] sm:$0xff]
      %v376 = vld [vmem:[%s333 + $0x50] sm:$0xff]
      %v377 = vld [vmem:[%s333 + $0x58] sm:$0xff]
      %v378 = vld [vmem:[%s333 + $0x60] sm:$0xff]
      %v379 = vld [vmem:[%s333 + $0x68] sm:$0xff]
      %v380 = vld [vmem:[%s333 + $0x70] sm:$0xff]
      %v381 = vld [vmem:[%s333 + $0x78] sm:$0xff]
      %v382 = vld [vmem:[%s1] sm:$0x1]
      %v383 = vld [vmem:[%s2] sm:$0x1]
      %384 = vadd.xlane.f32.xlu0 %v366
      %v385 = vpop.xlane.xlu0 %384
      %386 = vadd.xlane.f32.xlu0 %v367
      %v387 = vpop.xlane.xlu0 %386
      %388 = vadd.xlane.f32.xlu0 %v368
      %v389 = vpop.xlane.xlu0 %388
      %390 = vadd.xlane.f32.xlu0 %v369
      %v391 = vpop.xlane.xlu0 %390
      %392 = vadd.xlane.f32.xlu0 %v370
      %v393 = vpop.xlane.xlu0 %392
      %394 = vadd.xlane.f32.xlu0 %v371
      %v395 = vpop.xlane.xlu0 %394
      %396 = vadd.xlane.f32.xlu0 %v372
      %v397 = vpop.xlane.xlu0 %396
      %398 = vadd.xlane.f32.xlu0 %v373
      %v399 = vpop.xlane.xlu0 %398
      %400 = vadd.xlane.f32.xlu0 %v374
      %v401 = vpop.xlane.xlu0 %400
      %402 = vadd.xlane.f32.xlu0 %v375
      %v403 = vpop.xlane.xlu0 %402
      %404 = vadd.xlane.f32.xlu0 %v376
      %v405 = vpop.xlane.xlu0 %404
      %406 = vadd.xlane.f32.xlu0 %v377
      %v407 = vpop.xlane.xlu0 %406
      %408 = vadd.xlane.f32.xlu0 %v378
      %v409 = vpop.xlane.xlu0 %408
      %410 = vadd.xlane.f32.xlu0 %v379
      %v411 = vpop.xlane.xlu0 %410
      %412 = vadd.xlane.f32.xlu0 %v380
      %v413 = vpop.xlane.xlu0 %412
      %414 = vadd.xlane.f32.xlu0 %v381
      %v415 = vpop.xlane.xlu0 %414
      %v416 = vrcp.pop 128.0
      %v417 = vmul.f32 %v385, %v416
      %v418 = vmul.f32 %v387, %v416
      %v419 = vmul.f32 %v389, %v416
      %v420 = vmul.f32 %v391, %v416
      %v421 = vmul.f32 %v393, %v416
      %v422 = vmul.f32 %v395, %v416
      %v423 = vmul.f32 %v397, %v416
      %v424 = vmul.f32 %v399, %v416
      %v425 = vmul.f32 %v401, %v416
      %v426 = vmul.f32 %v403, %v416
      %v427 = vmul.f32 %v405, %v416
      %v428 = vmul.f32 %v407, %v416
      %v429 = vmul.f32 %v409, %v416
      %v430 = vmul.f32 %v411, %v416
      %v431 = vmul.f32 %v413, %v416
      %v432 = vmul.f32 %v415, %v416
      %v433 = vsub.f32 %v366, %v417
      %v434 = vsub.f32 %v367, %v418
      %v435 = vsub.f32 %v368, %v419
      %v436 = vsub.f32 %v369, %v420
      %v437 = vsub.f32 %v370, %v421
      %v438 = vsub.f32 %v371, %v422
      %v439 = vsub.f32 %v372, %v423
      %v440 = vsub.f32 %v373, %v424
      %v441 = vsub.f32 %v374, %v425
      %v442 = vsub.f32 %v375, %v426
      %v443 = vsub.f32 %v376, %v427
      %v444 = vsub.f32 %v377, %v428
      %v445 = vsub.f32 %v378, %v429
      %v446 = vsub.f32 %v379, %v430
      %v447 = vsub.f32 %v380, %v431
      %v448 = vsub.f32 %v381, %v432
      %v449 = vmul.f32 %v433, %v433
      %v450 = vmul.f32 %v434, %v434
      %v451 = vmul.f32 %v435, %v435
      %v452 = vmul.f32 %v436, %v436
      %v453 = vmul.f32 %v437, %v437
      %v454 = vmul.f32 %v438, %v438
      %v455 = vmul.f32 %v439, %v439
      %v456 = vmul.f32 %v440, %v440
      %v457 = vmul.f32 %v441, %v441
      %v458 = vmul.f32 %v442, %v442
      %v459 = vmul.f32 %v443, %v443
      %v460 = vmul.f32 %v444, %v444
      %v461 = vmul.f32 %v445, %v445
      %v462 = vmul.f32 %v446, %v446
      %v463 = vmul.f32 %v447, %v447
      %v464 = vmul.f32 %v448, %v448
      %465 = vadd.xlane.f32.xlu0 %v449
      %v466 = vpop.xlane.xlu0 %465
      %467 = vadd.xlane.f32.xlu0 %v450
      %v468 = vpop.xlane.xlu0 %467
      %469 = vadd.xlane.f32.xlu0 %v451
      %v470 = vpop.xlane.xlu0 %469
      %471 = vadd.xlane.f32.xlu0 %v452
      %v472 = vpop.xlane.xlu0 %471
      %473 = vadd.xlane.f32.xlu0 %v453
      %v474 = vpop.xlane.xlu0 %473
      %475 = vadd.xlane.f32.xlu0 %v454
      %v476 = vpop.xlane.xlu0 %475
      %477 = vadd.xlane.f32.xlu0 %v455
      %v478 = vpop.xlane.xlu0 %477
      %479 = vadd.xlane.f32.xlu0 %v456
      %v480 = vpop.xlane.xlu0 %479
      %481 = vadd.xlane.f32.xlu0 %v457
      %v482 = vpop.xlane.xlu0 %481
      %483 = vadd.xlane.f32.xlu0 %v458
      %v484 = vpop.xlane.xlu0 %483
      %485 = vadd.xlane.f32.xlu0 %v459
      %v486 = vpop.xlane.xlu0 %485
      %487 = vadd.xlane.f32.xlu0 %v460
      %v488 = vpop.xlane.xlu0 %487
      %489 = vadd.xlane.f32.xlu0 %v461
      %v490 = vpop.xlane.xlu0 %489
      %491 = vadd.xlane.f32.xlu0 %v462
      %v492 = vpop.xlane.xlu0 %491
      %493 = vadd.xlane.f32.xlu0 %v463
      %v494 = vpop.xlane.xlu0 %493
      %495 = vadd.xlane.f32.xlu0 %v464
      %v496 = vpop.xlane.xlu0 %495
      %v497 = vmul.f32 %v466, %v416
      %v498 = vmul.f32 %v468, %v416
      %v499 = vmul.f32 %v470, %v416
      %v500 = vmul.f32 %v472, %v416
      %v501 = vmul.f32 %v474, %v416
      %v502 = vmul.f32 %v476, %v416
      %v503 = vmul.f32 %v478, %v416
      %v504 = vmul.f32 %v480, %v416
      %v505 = vmul.f32 %v482, %v416
      %v506 = vmul.f32 %v484, %v416
      %v507 = vmul.f32 %v486, %v416
      %v508 = vmul.f32 %v488, %v416
      %v509 = vmul.f32 %v490, %v416
      %v510 = vmul.f32 %v492, %v416
      %v511 = vmul.f32 %v494, %v416
      %v512 = vmul.f32 %v496, %v416
      %v513 = vadd.f32 %v497, 1e-06
      %v514 = vadd.f32 %v498, 1e-06
      %v515 = vadd.f32 %v499, 1e-06
      %v516 = vadd.f32 %v500, 1e-06
      %v517 = vadd.f32 %v501, 1e-06
      %v518 = vadd.f32 %v502, 1e-06
      %v519 = vadd.f32 %v503, 1e-06
      %v520 = vadd.f32 %v504, 1e-06
      %v521 = vadd.f32 %v505, 1e-06
      %v522 = vadd.f32 %v506, 1e-06
      %v523 = vadd.f32 %v507, 1e-06
      %v524 = vadd.f32 %v508, 1e-06
      %v525 = vadd.f32 %v509, 1e-06
      %v526 = vadd.f32 %v510, 1e-06
      %v527 = vadd.f32 %v511, 1e-06
      %v528 = vadd.f32 %v512, 1e-06
      %v529 = vrsqrt.pop %v513
      %v530 = vrsqrt.pop %v514
      %v531 = vrsqrt.pop %v515
      %v532 = vrsqrt.pop %v516
      %v533 = vrsqrt.pop %v517
      %v534 = vrsqrt.pop %v518
      %v535 = vrsqrt.pop %v519
      %v536 = vrsqrt.pop %v520
      %v537 = vrsqrt.pop %v521
      %v538 = vrsqrt.pop %v522
      %v539 = vrsqrt.pop %v523
      %v540 = vrsqrt.pop %v524
      %v541 = vrsqrt.pop %v525
      %v542 = vrsqrt.pop %v526
      %v543 = vrsqrt.pop %v527
      %v544 = vrsqrt.pop %v528
      %v545 = vmul.f32 %v433, %v529
      %v546 = vmul.f32 %v434, %v530
      %v547 = vmul.f32 %v435, %v531
      %v548 = vmul.f32 %v436, %v532
      %v549 = vmul.f32 %v437, %v533
      %v550 = vmul.f32 %v438, %v534
      %v551 = vmul.f32 %v439, %v535
      %v552 = vmul.f32 %v440, %v536
      %v553 = vmul.f32 %v441, %v537
      %v554 = vmul.f32 %v442, %v538
      %v555 = vmul.f32 %v443, %v539
      %v556 = vmul.f32 %v444, %v540
      %v557 = vmul.f32 %v445, %v541
      %v558 = vmul.f32 %v446, %v542
      %v559 = vmul.f32 %v447, %v543
      %v560 = vmul.f32 %v448, %v544
      %v562 = vlaneseq
      %v563 = vshrl.u32 %v562, 7
      %v564 = vsub.s32 0, %v563
      %v565 = vrot.slane %v382, %v564
      %v567 = vmul.f32 %v545, %v565
      %v568 = vmul.f32 %v546, %v565
      %v569 = vmul.f32 %v547, %v565
      %v570 = vmul.f32 %v548, %v565
      %v571 = vmul.f32 %v549, %v565
      %v572 = vmul.f32 %v550, %v565
      %v573 = vmul.f32 %v551, %v565
      %v574 = vmul.f32 %v552, %v565
      %v575 = vmul.f32 %v553, %v565
      %v576 = vmul.f32 %v554, %v565
      %v577 = vmul.f32 %v555, %v565
      %v578 = vmul.f32 %v556, %v565
      %v579 = vmul.f32 %v557, %v565
      %v580 = vmul.f32 %v558, %v565
      %v581 = vmul.f32 %v559, %v565
      %v582 = vmul.f32 %v560, %v565
      %v584 = vlaneseq
      %v585 = vshrl.u32 %v584, 7
      %v586 = vsub.s32 0, %v585
      %v587 = vrot.slane %v383, %v586
      %v589 = vadd.f32 %v567, %v587
      %v590 = vadd.f32 %v568, %v587
      %v591 = vadd.f32 %v569, %v587
      %v592 = vadd.f32 %v570, %v587
      %v593 = vadd.f32 %v571, %v587
      %v594 = vadd.f32 %v572, %v587
      %v595 = vadd.f32 %v573, %v587
      %v596 = vadd.f32 %v574, %v587
      %v597 = vadd.f32 %v575, %v587
      %v598 = vadd.f32 %v576, %v587
      %v599 = vadd.f32 %v577, %v587
      %v600 = vadd.f32 %v578, %v587
      %v601 = vadd.f32 %v579, %v587
      %v602 = vadd.f32 %v580, %v587
      %v603 = vadd.f32 %v581, %v587
      %v604 = vadd.f32 %v582, %v587
      %v605 = vpack.c.bf16 %v590, %v589
      %v606 = vpack.c.bf16 %v592, %v591
      %v607 = vpack.c.bf16 %v594, %v593
      %v608 = vpack.c.bf16 %v596, %v595
      %v609 = vpack.c.bf16 %v598, %v597
      %v610 = vpack.c.bf16 %v600, %v599
      %v611 = vpack.c.bf16 %v602, %v601
      %v612 = vpack.c.bf16 %v604, %v603
      %v613 = vld [vmem:[%s3] sm:$0xff]
      %v614 = vld [vmem:[%s3 + $0x8] sm:$0xf]
      %v615 = vld [vmem:[%s3 + $0xc] sm:$0xff]
      %v616 = vld [vmem:[%s3 + $0x14] sm:$0xf]
      %v617 = vld [vmem:[%s3 + $0x18] sm:$0xff]
      %v618 = vld [vmem:[%s3 + $0x20] sm:$0xf]
      %v619 = vld [vmem:[%s3 + $0x24] sm:$0xff]
      %v620 = vld [vmem:[%s3 + $0x2c] sm:$0xf]
      %v621 = vld [vmem:[%s3 + $0x30] sm:$0xff]
      %v622 = vld [vmem:[%s3 + $0x38] sm:$0xf]
      %v623 = vld [vmem:[%s3 + $0x3c] sm:$0xff]
      %v624 = vld [vmem:[%s3 + $0x44] sm:$0xf]
      %v625 = vld [vmem:[%s3 + $0x48] sm:$0xff]
      %v626 = vld [vmem:[%s3 + $0x50] sm:$0xf]
      %v627 = vld [vmem:[%s3 + $0x54] sm:$0xff]
      %v628 = vld [vmem:[%s3 + $0x5c] sm:$0xf]
      %v629 = vld [vmem:[%s3 + $0x60] sm:$0xff]
      %v630 = vld [vmem:[%s3 + $0x68] sm:$0xf]
      %v631 = vld [vmem:[%s3 + $0x6c] sm:$0xff]
      %v632 = vld [vmem:[%s3 + $0x74] sm:$0xf]
      %v633 = vld [vmem:[%s3 + $0x78] sm:$0xff]
      %v634 = vld [vmem:[%s3 + $0x80] sm:$0xf]
      %v635 = vld [vmem:[%s3 + $0x84] sm:$0xff]
      %v636 = vld [vmem:[%s3 + $0x8c] sm:$0xf]
      %v637 = vld [vmem:[%s3 + $0x90] sm:$0xff]
      %v638 = vld [vmem:[%s3 + $0x98] sm:$0xf]
      %v639 = vld [vmem:[%s3 + $0x9c] sm:$0xff]
      %v640 = vld [vmem:[%s3 + $0xa4] sm:$0xf]
      %v641 = vld [vmem:[%s3 + $0xa8] sm:$0xff]
      %v642 = vld [vmem:[%s3 + $0xb0] sm:$0xf]
      %v643 = vld [vmem:[%s3 + $0xb4] sm:$0xff]
      %v644 = vld [vmem:[%s3 + $0xbc] sm:$0xf]
      %v645 = vld [vmem:[%s4] sm:$0x7]
      %v647 = vlaneseq
      %v648 = vshrl.u32 %v647, 7
      %v649 = vsub.s32 0, %v648
      %v650 = vrot.slane %v645, %v649
      %v651 = vlaneseq
      %v652 = vshrl.u32 %v651, 7
      %v653 = vsub.s32 1, %v652
      %v654 = vrot.slane %v645, %v653
      %v655 = vlaneseq
      %v656 = vshrl.u32 %v655, 7
      %v657 = vsub.s32 2, %v656
      %v658 = vrot.slane %v645, %v657
      %v694 = vunpack.c.l.b16 %v613
      %v695 = vunpack.c.h.b16 %v613
      %v696 = vunpack.c.l.b16 %v614
      %v697 = vunpack.c.l.b16 %v615
      %v698 = vunpack.c.h.b16 %v615
      %v699 = vunpack.c.l.b16 %v616
      %v700 = vunpack.c.l.b16 %v617
      %v701 = vunpack.c.h.b16 %v617
      %v702 = vunpack.c.l.b16 %v618
      %v703 = vunpack.c.l.b16 %v619
      %v704 = vunpack.c.h.b16 %v619
      %v705 = vunpack.c.l.b16 %v620
      %v706 = vunpack.c.l.b16 %v621
      %v707 = vunpack.c.h.b16 %v621
      %v708 = vunpack.c.l.b16 %v622
      %v709 = vunpack.c.l.b16 %v623
      %v710 = vunpack.c.h.b16 %v623
      %v711 = vunpack.c.l.b16 %v624
      %v712 = vunpack.c.l.b16 %v625
      %v713 = vunpack.c.h.b16 %v625
      %v714 = vunpack.c.l.b16 %v626
      %v715 = vunpack.c.l.b16 %v627
      %v716 = vunpack.c.h.b16 %v627
      %v717 = vunpack.c.l.b16 %v628
      %v718 = vunpack.c.l.b16 %v629
      %v719 = vunpack.c.h.b16 %v629
      %v720 = vunpack.c.l.b16 %v630
      %v721 = vunpack.c.l.b16 %v631
      %v722 = vunpack.c.h.b16 %v631
      %v723 = vunpack.c.l.b16 %v632
      %v724 = vunpack.c.l.b16 %v633
      %v725 = vunpack.c.h.b16 %v633
      %v726 = vunpack.c.l.b16 %v634
      %v727 = vunpack.c.l.b16 %v635
      %v728 = vunpack.c.h.b16 %v635
      %v729 = vunpack.c.l.b16 %v636
      %v730 = vunpack.c.l.b16 %v637
      %v731 = vunpack.c.h.b16 %v637
      %v732 = vunpack.c.l.b16 %v638
      %v733 = vunpack.c.l.b16 %v639
      %v734 = vunpack.c.h.b16 %v639
      %v735 = vunpack.c.l.b16 %v640
      %v736 = vunpack.c.l.b16 %v641
      %v737 = vunpack.c.h.b16 %v641
      %v738 = vunpack.c.l.b16 %v642
      %v739 = vunpack.c.l.b16 %v643
      %v740 = vunpack.c.h.b16 %v643
      %v741 = vunpack.c.l.b16 %v644
      %v742 = vpack.c.b16 %v697, %v694
      %v743 = vpack.c.b16 %v698, %v695
      %v744 = vpack.c.b16 %v699, %v696
      %v745 = vpack.c.b16 %v703, %v700
      %v746 = vpack.c.b16 %v704, %v701
      %v747 = vpack.c.b16 %v705, %v702
      %v748 = vpack.c.b16 %v709, %v706
      %v749 = vpack.c.b16 %v710, %v707
      %v750 = vpack.c.b16 %v711, %v708
      %v751 = vpack.c.b16 %v715, %v712
      %v752 = vpack.c.b16 %v716, %v713
      %v753 = vpack.c.b16 %v717, %v714
      %v754 = vpack.c.b16 %v721, %v718
      %v755 = vpack.c.b16 %v722, %v719
      %v756 = vpack.c.b16 %v723, %v720
      %v757 = vpack.c.b16 %v727, %v724
      %v758 = vpack.c.b16 %v728, %v725
      %v759 = vpack.c.b16 %v729, %v726
      %v760 = vpack.c.b16 %v733, %v730
      %v761 = vpack.c.b16 %v734, %v731
      %v762 = vpack.c.b16 %v735, %v732
      %v763 = vpack.c.b16 %v739, %v736
      %v764 = vpack.c.b16 %v740, %v737
      %v765 = vpack.c.b16 %v741, %v738
      %790 = vmatprep.subr.bf16.mxu0 %v743
      %791 = vmatpush1.bf16.msra.mxu0 %v742
      %792 = vmatprep.subr.bf16.mxu0 %v746
      %793 = vmatpush1.bf16.msra.mxu0 %v745
      %794 = vmatprep.subr.bf16.mxu0 %v749
      %795 = vmatpush1.bf16.msra.mxu0 %v748
      %796 = vmatprep.subr.bf16.mxu0 %v752
      %797 = vmatpush1.bf16.msra.mxu0 %v751
      %798 = vmatprep.subr.bf16.mxu0 %v755
      %799 = vmatpush1.bf16.msra.mxu0 %v754
      %800 = vmatprep.subr.bf16.mxu0 %v758
      %801 = vmatpush1.bf16.msra.mxu0 %v757
      %802 = vmatprep.subr.bf16.mxu0 %v761
      %803 = vmatpush1.bf16.msra.mxu0 %v760
      %804 = vmatprep.subr.bf16.mxu0 %v764
      %805 = vmatpush1.bf16.msra.mxu0 %v763
      %806 = vmatprep.subr.bf16.mxu0 0
      %807 = vmatpush1.bf16.msra.mxu0 0
      %808 = vmatprep.subr.bf16.mxu0 0
      %809 = vmatpush1.bf16.msra.mxu0 0
      %810 = vmatprep.subr.bf16.mxu0 0
      %811 = vmatpush1.bf16.msra.mxu0 0
      %812 = vmatprep.subr.bf16.mxu0 0
      %813 = vmatpush1.bf16.msra.mxu0 0
      %814 = vmatprep.subr.bf16.mxu0 0
      %815 = vmatpush1.bf16.msra.mxu0 0
      %816 = vmatprep.subr.bf16.mxu0 0
      %817 = vmatpush1.bf16.msra.mxu0 0
      %818 = vmatprep.subr.bf16.mxu0 0
      %819 = vmatpush1.bf16.msra.mxu0 0
      %820 = vmatprep.subr.bf16.mxu0 0
      %821 = vmatpush1.bf16.msra.mxu0 0
      %822 = vmatprep.mubr.bf16.mxu0 0
      %823 = vmatmul.mubr.bf16.gmra.mrb[0].mxu0 %v605
      %v824 = vpop.f32.mrb[0].mxu0
      %v825 = vadd.f32 %v650, %v824
      %v826 = vpop.f32.mrb[0].mxu0
      %v827 = vadd.f32 %v654, %v826
      %v828 = vpop.f32.mrb[0].mxu0
      %v829 = vadd.f32 %v650, %v828
      %v830 = vpop.f32.mrb[0].mxu0
      %v831 = vadd.f32 %v654, %v830
      %832 = vmatprep.mubr.bf16.mxu0 0
      %833 = vmatmul.mubr.bf16.gmra.mrb[0].mxu0 %v606
      %v834 = vpop.f32.mrb[0].mxu0
      %v835 = vadd.f32 %v650, %v834
      %v836 = vpop.f32.mrb[0].mxu0
      %v837 = vadd.f32 %v654, %v836
      %v838 = vpop.f32.mrb[0].mxu0
      %v839 = vadd.f32 %v650, %v838
      %v840 = vpop.f32.mrb[0].mxu0
      %v841 = vadd.f32 %v654, %v840
      %842 = vmatprep.mubr.bf16.mxu0 0
      %843 = vmatmul.mubr.bf16.gmra.mrb[0].mxu0 %v607
      %v844 = vpop.f32.mrb[0].mxu0
      %v845 = vadd.f32 %v650, %v844
      %v846 = vpop.f32.mrb[0].mxu0
      %v847 = vadd.f32 %v654, %v846
      %v848 = vpop.f32.mrb[0].mxu0
      %v849 = vadd.f32 %v650, %v848
      %v850 = vpop.f32.mrb[0].mxu0
      %v851 = vadd.f32 %v654, %v850
      %852 = vmatprep.mubr.bf16.mxu0 0
      %853 = vmatmul.mubr.bf16.gmra.mrb[0].mxu0 %v608
      %v854 = vpop.f32.mrb[0].mxu0
      %v855 = vadd.f32 %v650, %v854
      %v856 = vpop.f32.mrb[0].mxu0
      %v857 = vadd.f32 %v654, %v856
      %v858 = vpop.f32.mrb[0].mxu0
      %v859 = vadd.f32 %v650, %v858
      %v860 = vpop.f32.mrb[0].mxu0
      %v861 = vadd.f32 %v654, %v860
      %862 = vmatprep.mubr.bf16.mxu0 0
      %863 = vmatmul.mubr.bf16.gmra.mrb[0].mxu0 %v609
      %v864 = vpop.f32.mrb[0].mxu0
      %v865 = vadd.f32 %v650, %v864
      %v866 = vpop.f32.mrb[0].mxu0
      %v867 = vadd.f32 %v654, %v866
      %v868 = vpop.f32.mrb[0].mxu0
      %v869 = vadd.f32 %v650, %v868
      %v870 = vpop.f32.mrb[0].mxu0
      %v871 = vadd.f32 %v654, %v870
      %872 = vmatprep.mubr.bf16.mxu0 0
      %873 = vmatmul.mubr.bf16.gmra.mrb[0].mxu0 %v610
      %v874 = vpop.f32.mrb[0].mxu0
      %v875 = vadd.f32 %v650, %v874
      %v876 = vpop.f32.mrb[0].mxu0
      %v877 = vadd.f32 %v654, %v876
      %v878 = vpop.f32.mrb[0].mxu0
      %v879 = vadd.f32 %v650, %v878
      %v880 = vpop.f32.mrb[0].mxu0
      %v881 = vadd.f32 %v654, %v880
      %882 = vmatprep.mubr.bf16.mxu0 0
      %883 = vmatmul.mubr.bf16.gmra.mrb[0].mxu0 %v611
      %v884 = vpop.f32.mrb[0].mxu0
      %v885 = vadd.f32 %v650, %v884
      %v886 = vpop.f32.mrb[0].mxu0
      %v887 = vadd.f32 %v654, %v886
      %v888 = vpop.f32.mrb[0].mxu0
      %v889 = vadd.f32 %v650, %v888
      %v890 = vpop.f32.mrb[0].mxu0
      %v891 = vadd.f32 %v654, %v890
      %892 = vmatprep.mubr.bf16.mxu0 0
      %893 = vmatmul.mubr.bf16.gmra.mrb[0].mxu0 %v612
      %v894 = vpop.f32.mrb[0].mxu0
      %v895 = vadd.f32 %v650, %v894
      %v896 = vpop.f32.mrb[0].mxu0
      %v897 = vadd.f32 %v654, %v896
      %v898 = vpop.f32.mrb[0].mxu0
      %v899 = vadd.f32 %v650, %v898
      %v900 = vpop.f32.mrb[0].mxu0
      %v901 = vadd.f32 %v654, %v900
      %902 = vdwg.mxu0
      %903 = vmatprep.subr.bf16.mxu0 0
      %904 = vmatpush1.bf16.msra.mxu0 %v744
      %905 = vmatprep.subr.bf16.mxu0 0
      %906 = vmatpush1.bf16.msra.mxu0 %v747
      %907 = vmatprep.subr.bf16.mxu0 0
      %908 = vmatpush1.bf16.msra.mxu0 %v750
      %909 = vmatprep.subr.bf16.mxu0 0
      %910 = vmatpush1.bf16.msra.mxu0 %v753
      %911 = vmatprep.subr.bf16.mxu0 0
      %912 = vmatpush1.bf16.msra.mxu0 %v756
      %913 = vmatprep.subr.bf16.mxu0 0
      %914 = vmatpush1.bf16.msra.mxu0 %v759
      %915 = vmatprep.subr.bf16.mxu0 0
      %916 = vmatpush1.bf16.msra.mxu0 %v762
      %917 = vmatprep.subr.bf16.mxu0 0
      %918 = vmatpush1.bf16.msra.mxu0 %v765
      %919 = vmatprep.subr.bf16.mxu0 0
      %920 = vmatpush1.bf16.msra.mxu0 0
      %921 = vmatprep.subr.bf16.mxu0 0
      %922 = vmatpush1.bf16.msra.mxu0 0
      %923 = vmatprep.subr.bf16.mxu0 0
      %924 = vmatpush1.bf16.msra.mxu0 0
      %925 = vmatprep.subr.bf16.mxu0 0
      %926 = vmatpush1.bf16.msra.mxu0 0
      %927 = vmatprep.subr.bf16.mxu0 0
      %928 = vmatpush1.bf16.msra.mxu0 0
      %929 = vmatprep.subr.bf16.mxu0 0
      %930 = vmatpush1.bf16.msra.mxu0 0
      %931 = vmatprep.subr.bf16.mxu0 0
      %932 = vmatpush1.bf16.msra.mxu0 0
      %933 = vmatprep.subr.bf16.mxu0 0
      %934 = vmatpush1.bf16.msra.mxu0 0
      %935 = vmatprep.mubr.bf16.mxu0 0
      %936 = vmatmul.mubr.bf16.gmra.mrb[0].mxu0 %v605
      %v937 = vpop.f32.mrb[0].mxu0
      %v938 = vadd.f32 %v658, %v937
      %v939 = vpop.f32.mrb[0].mxu0
      %v940 = vpop.f32.mrb[0].mxu0
      %v941 = vadd.f32 %v658, %v940
      %v942 = vpop.f32.mrb[0].mxu0
      %943 = vmatprep.mubr.bf16.mxu0 0
      %944 = vmatmul.mubr.bf16.gmra.mrb[0].mxu0 %v606
      %v945 = vpop.f32.mrb[0].mxu0
      %v946 = vadd.f32 %v658, %v945
      %v947 = vpop.f32.mrb[0].mxu0
      %v948 = vpop.f32.mrb[0].mxu0
      %v949 = vadd.f32 %v658, %v948
      %v950 = vpop.f32.mrb[0].mxu0
      %951 = vmatprep.mubr.bf16.mxu0 0
      %952 = vmatmul.mubr.bf16.gmra.mrb[0].mxu0 %v607
      %v953 = vpop.f32.mrb[0].mxu0
      %v954 = vadd.f32 %v658, %v953
      %v955 = vpop.f32.mrb[0].mxu0
      %v956 = vpop.f32.mrb[0].mxu0
      %v957 = vadd.f32 %v658, %v956
      %v958 = vpop.f32.mrb[0].mxu0
      %959 = vmatprep.mubr.bf16.mxu0 0
      %960 = vmatmul.mubr.bf16.gmra.mrb[0].mxu0 %v608
      %v961 = vpop.f32.mrb[0].mxu0
      %v962 = vadd.f32 %v658, %v961
      %v963 = vpop.f32.mrb[0].mxu0
      %v964 = vpop.f32.mrb[0].mxu0
      %v965 = vadd.f32 %v658, %v964
      %v966 = vpop.f32.mrb[0].mxu0
      %967 = vmatprep.mubr.bf16.mxu0 0
      %968 = vmatmul.mubr.bf16.gmra.mrb[0].mxu0 %v609
      %v969 = vpop.f32.mrb[0].mxu0
      %v970 = vadd.f32 %v658, %v969
      %v971 = vpop.f32.mrb[0].mxu0
      %v972 = vpop.f32.mrb[0].mxu0
      %v973 = vadd.f32 %v658, %v972
      %v974 = vpop.f32.mrb[0].mxu0
      %975 = vmatprep.mubr.bf16.mxu0 0
      %976 = vmatmul.mubr.bf16.gmra.mrb[0].mxu0 %v610
      %v977 = vpop.f32.mrb[0].mxu0
      %v978 = vadd.f32 %v658, %v977
      %v979 = vpop.f32.mrb[0].mxu0
      %v980 = vpop.f32.mrb[0].mxu0
      %v981 = vadd.f32 %v658, %v980
      %v982 = vpop.f32.mrb[0].mxu0
      %983 = vmatprep.mubr.bf16.mxu0 0
      %984 = vmatmul.mubr.bf16.gmra.mrb[0].mxu0 %v611
      %v985 = vpop.f32.mrb[0].mxu0
      %v986 = vadd.f32 %v658, %v985
      %v987 = vpop.f32.mrb[0].mxu0
      %v988 = vpop.f32.mrb[0].mxu0
      %v989 = vadd.f32 %v658, %v988
      %v990 = vpop.f32.mrb[0].mxu0
      %991 = vmatprep.mubr.bf16.mxu0 0
      %992 = vmatmul.mubr.bf16.gmra.mrb[0].mxu0 %v612
      %v993 = vpop.f32.mrb[0].mxu0
      %v994 = vadd.f32 %v658, %v993
      %v995 = vpop.f32.mrb[0].mxu0
      %v996 = vpop.f32.mrb[0].mxu0
      %v997 = vadd.f32 %v658, %v996
      %v998 = vpop.f32.mrb[0].mxu0
      %999 = vdwg.mxu0
      %v1000 = vmul.f32 %v825, 0.17677669
      %v1001 = vmul.f32 %v829, 0.17677669
      %v1002 = vmul.f32 %v835, 0.17677669
      %v1003 = vmul.f32 %v839, 0.17677669
      %v1004 = vmul.f32 %v845, 0.17677669
      %v1005 = vmul.f32 %v849, 0.17677669
      %v1006 = vmul.f32 %v855, 0.17677669
      %v1007 = vmul.f32 %v859, 0.17677669
      %v1008 = vmul.f32 %v865, 0.17677669
      %v1009 = vmul.f32 %v869, 0.17677669
      %v1010 = vmul.f32 %v875, 0.17677669
      %v1011 = vmul.f32 %v879, 0.17677669
      %v1012 = vmul.f32 %v885, 0.17677669
      %v1013 = vmul.f32 %v889, 0.17677669
      %v1014 = vmul.f32 %v895, 0.17677669
      %v1015 = vmul.f32 %v899, 0.17677669
      %v1016 = vpack.c.bf16 %v1001, %v1000
      %v1017 = vpack.c.bf16 %v1003, %v1002
      %v1018 = vpack.c.bf16 %v1005, %v1004
      %v1019 = vpack.c.bf16 %v1007, %v1006
      %v1020 = vpack.c.bf16 %v1009, %v1008
      %v1021 = vpack.c.bf16 %v1011, %v1010
      %v1022 = vpack.c.bf16 %v1013, %v1012
      %v1023 = vpack.c.bf16 %v1015, %v1014
      %v1032 = vunpack.c.l.b16 %v1016
      %v1033 = vunpack.c.h.b16 %v1016
      %v1034 = vunpack.c.l.b16 %v1017
      %v1035 = vunpack.c.h.b16 %v1017
      %v1036 = vunpack.c.l.b16 %v1018
      %v1037 = vunpack.c.h.b16 %v1018
      %v1038 = vunpack.c.l.b16 %v1019
      %v1039 = vunpack.c.h.b16 %v1019
      %v1040 = vunpack.c.l.b16 %v1020
      %v1041 = vunpack.c.h.b16 %v1020
      %v1042 = vunpack.c.l.b16 %v1021
      %v1043 = vunpack.c.h.b16 %v1021
      %v1044 = vunpack.c.l.b16 %v1022
      %v1045 = vunpack.c.h.b16 %v1022
      %v1046 = vunpack.c.l.b16 %v1023
      %v1047 = vunpack.c.h.b16 %v1023
      %v1048 = vpack.c.b16 %v1032, %v1032
      %v1049 = vpack.c.b16 %v1033, %v1033
      %v1050 = vpack.c.b16 %v1034, %v1034
      %v1051 = vpack.c.b16 %v1035, %v1035
      %v1052 = vpack.c.b16 %v1036, %v1036
      %v1053 = vpack.c.b16 %v1037, %v1037
      %v1054 = vpack.c.b16 %v1038, %v1038
      %v1055 = vpack.c.b16 %v1039, %v1039
      %v1056 = vpack.c.b16 %v1040, %v1040
      %v1057 = vpack.c.b16 %v1041, %v1041
      %v1058 = vpack.c.b16 %v1042, %v1042
      %v1059 = vpack.c.b16 %v1043, %v1043
      %v1060 = vpack.c.b16 %v1044, %v1044
      %v1061 = vpack.c.b16 %v1045, %v1045
      %v1062 = vpack.c.b16 %v1046, %v1046
      %v1063 = vpack.c.b16 %v1047, %v1047
      %1080 = vst [vmem:[%s343] sm:$0xf] %v1048
      %1081 = vst [vmem:[%s343 + $0x4] sm:$0xf] %v1049
      %1082 = vst [vmem:[%s343 + $0x8] sm:$0xf] %v1050
      %1083 = vst [vmem:[%s343 + $0xc] sm:$0xf] %v1051
      %1084 = vst [vmem:[%s343 + $0x10] sm:$0xf] %v1052
      %1085 = vst [vmem:[%s343 + $0x14] sm:$0xf] %v1053
      %1086 = vst [vmem:[%s343 + $0x18] sm:$0xf] %v1054
      %1087 = vst [vmem:[%s343 + $0x1c] sm:$0xf] %v1055
      %1088 = vst [vmem:[%s343 + $0x20] sm:$0xf] %v1056
      %1089 = vst [vmem:[%s343 + $0x24] sm:$0xf] %v1057
      %1090 = vst [vmem:[%s343 + $0x28] sm:$0xf] %v1058
      %1091 = vst [vmem:[%s343 + $0x2c] sm:$0xf] %v1059
      %1092 = vst [vmem:[%s343 + $0x30] sm:$0xf] %v1060
      %1093 = vst [vmem:[%s343 + $0x34] sm:$0xf] %v1061
      %1094 = vst [vmem:[%s343 + $0x38] sm:$0xf] %v1062
      %1095 = vst [vmem:[%s343 + $0x3c] sm:$0xf] %v1063
      %v1096 = vpack.c.bf16 %v831, %v827
      %v1097 = vpack.c.bf16 %v841, %v837
      %v1098 = vpack.c.bf16 %v851, %v847
      %v1099 = vpack.c.bf16 %v861, %v857
      %v1100 = vpack.c.bf16 %v871, %v867
      %v1101 = vpack.c.bf16 %v881, %v877
      %v1102 = vpack.c.bf16 %v891, %v887
      %v1103 = vpack.c.bf16 %v901, %v897
      %v1112 = vunpack.c.l.b16 %v1096
      %v1113 = vunpack.c.h.b16 %v1096
      %v1114 = vunpack.c.l.b16 %v1097
      %v1115 = vunpack.c.h.b16 %v1097
      %v1116 = vunpack.c.l.b16 %v1098
      %v1117 = vunpack.c.h.b16 %v1098
      %v1118 = vunpack.c.l.b16 %v1099
      %v1119 = vunpack.c.h.b16 %v1099
      %v1120 = vunpack.c.l.b16 %v1100
      %v1121 = vunpack.c.h.b16 %v1100
      %v1122 = vunpack.c.l.b16 %v1101
      %v1123 = vunpack.c.h.b16 %v1101
      %v1124 = vunpack.c.l.b16 %v1102
      %v1125 = vunpack.c.h.b16 %v1102
      %v1126 = vunpack.c.l.b16 %v1103
      %v1127 = vunpack.c.h.b16 %v1103
      %v1128 = vpack.c.b16 %v1112, %v1112
      %v1129 = vpack.c.b16 %v1113, %v1113
      %v1130 = vpack.c.b16 %v1114, %v1114
      %v1131 = vpack.c.b16 %v1115, %v1115
      %v1132 = vpack.c.b16 %v1116, %v1116
      %v1133 = vpack.c.b16 %v1117, %v1117
      %v1134 = vpack.c.b16 %v1118, %v1118
      %v1135 = vpack.c.b16 %v1119, %v1119
      %v1136 = vpack.c.b16 %v1120, %v1120
      %v1137 = vpack.c.b16 %v1121, %v1121
      %v1138 = vpack.c.b16 %v1122, %v1122
      %v1139 = vpack.c.b16 %v1123, %v1123
      %v1140 = vpack.c.b16 %v1124, %v1124
      %v1141 = vpack.c.b16 %v1125, %v1125
      %v1142 = vpack.c.b16 %v1126, %v1126
      %v1143 = vpack.c.b16 %v1127, %v1127
      %1160 = vst [vmem:[%s353] sm:$0xf] %v1128
      %1161 = vst [vmem:[%s353 + $0x4] sm:$0xf] %v1129
      %1162 = vst [vmem:[%s353 + $0x8] sm:$0xf] %v1130
      %1163 = vst [vmem:[%s353 + $0xc] sm:$0xf] %v1131
      %1164 = vst [vmem:[%s353 + $0x10] sm:$0xf] %v1132
      %1165 = vst [vmem:[%s353 + $0x14] sm:$0xf] %v1133
      %1166 = vst [vmem:[%s353 + $0x18] sm:$0xf] %v1134
      %1167 = vst [vmem:[%s353 + $0x1c] sm:$0xf] %v1135
      %1168 = vst [vmem:[%s353 + $0x20] sm:$0xf] %v1136
      %1169 = vst [vmem:[%s353 + $0x24] sm:$0xf] %v1137
      %1170 = vst [vmem:[%s353 + $0x28] sm:$0xf] %v1138
      %1171 = vst [vmem:[%s353 + $0x2c] sm:$0xf] %v1139
      %1172 = vst [vmem:[%s353 + $0x30] sm:$0xf] %v1140
      %1173 = vst [vmem:[%s353 + $0x34] sm:$0xf] %v1141
      %1174 = vst [vmem:[%s353 + $0x38] sm:$0xf] %v1142
      %1175 = vst [vmem:[%s353 + $0x3c] sm:$0xf] %v1143
      %v1176 = vpack.c.bf16 %v941, %v938
      %v1177 = vpack.c.bf16 %v949, %v946
      %v1178 = vpack.c.bf16 %v957, %v954
      %v1179 = vpack.c.bf16 %v965, %v962
      %v1180 = vpack.c.bf16 %v973, %v970
      %v1181 = vpack.c.bf16 %v981, %v978
      %v1182 = vpack.c.bf16 %v989, %v986
      %v1183 = vpack.c.bf16 %v997, %v994
      %v1192 = vunpack.c.l.b16 %v1176
      %v1193 = vunpack.c.h.b16 %v1176
      %v1194 = vunpack.c.l.b16 %v1177
      %v1195 = vunpack.c.h.b16 %v1177
      %v1196 = vunpack.c.l.b16 %v1178
      %v1197 = vunpack.c.h.b16 %v1178
      %v1198 = vunpack.c.l.b16 %v1179
      %v1199 = vunpack.c.h.b16 %v1179
      %v1200 = vunpack.c.l.b16 %v1180
      %v1201 = vunpack.c.h.b16 %v1180
      %v1202 = vunpack.c.l.b16 %v1181
      %v1203 = vunpack.c.h.b16 %v1181
      %v1204 = vunpack.c.l.b16 %v1182
      %v1205 = vunpack.c.h.b16 %v1182
      %v1206 = vunpack.c.l.b16 %v1183
      %v1207 = vunpack.c.h.b16 %v1183
      %v1208 = vpack.c.b16 %v1192, %v1192
      %v1209 = vpack.c.b16 %v1193, %v1193
      %v1210 = vpack.c.b16 %v1194, %v1194
      %v1211 = vpack.c.b16 %v1195, %v1195
      %v1212 = vpack.c.b16 %v1196, %v1196
      %v1213 = vpack.c.b16 %v1197, %v1197
      %v1214 = vpack.c.b16 %v1198, %v1198
      %v1215 = vpack.c.b16 %v1199, %v1199
      %v1216 = vpack.c.b16 %v1200, %v1200
      %v1217 = vpack.c.b16 %v1201, %v1201
      %v1218 = vpack.c.b16 %v1202, %v1202
      %v1219 = vpack.c.b16 %v1203, %v1203
      %v1220 = vpack.c.b16 %v1204, %v1204
      %v1221 = vpack.c.b16 %v1205, %v1205
      %v1222 = vpack.c.b16 %v1206, %v1206
      %v1223 = vpack.c.b16 %v1207, %v1207
      %1240 = vst [vmem:[%s363] sm:$0xf] %v1208
      %1241 = vst [vmem:[%s363 + $0x4] sm:$0xf] %v1209
      %1242 = vst [vmem:[%s363 + $0x8] sm:$0xf] %v1210
      %1243 = vst [vmem:[%s363 + $0xc] sm:$0xf] %v1211
      %1244 = vst [vmem:[%s363 + $0x10] sm:$0xf] %v1212
      %1245 = vst [vmem:[%s363 + $0x14] sm:$0xf] %v1213
      %1246 = vst [vmem:[%s363 + $0x18] sm:$0xf] %v1214
      %1247 = vst [vmem:[%s363 + $0x1c] sm:$0xf] %v1215
      %1248 = vst [vmem:[%s363 + $0x20] sm:$0xf] %v1216
      %1249 = vst [vmem:[%s363 + $0x24] sm:$0xf] %v1217
      %1250 = vst [vmem:[%s363 + $0x28] sm:$0xf] %v1218
      %1251 = vst [vmem:[%s363 + $0x2c] sm:$0xf] %v1219
      %1252 = vst [vmem:[%s363 + $0x30] sm:$0xf] %v1220
      %1253 = vst [vmem:[%s363 + $0x34] sm:$0xf] %v1221
      %1254 = vst [vmem:[%s363 + $0x38] sm:$0xf] %v1222
      %1255 = vst [vmem:[%s363 + $0x3c] sm:$0xf] %v1223
      %s1256 = smul.u32 16, %s24
      %p1257 = scmp.lt.s32.totalorder %s23, 1
      %s1258 = scalar_select %p1257, %s23, 1
      %p1259 = scmp.lt.s32.totalorder %s1256, 31
      %s1260 = scalar_select %p1259, %s1256, 31
      %s1261 = smul.addr %s1258, 32
      %s1262 = sadd.s32 %s1260, %s1261
      %s1263 = smul.addr %s1262, 4
      %s1264 = scalar_lea.vmem %s5, %s1263
      %s1265 = smul.u32 16, %s24
      %p1266 = scmp.lt.s32.totalorder %s23, 1
      %s1267 = scalar_select %p1266, %s23, 1
      %p1268 = scmp.lt.s32.totalorder %s1265, 31
      %s1269 = scalar_select %p1268, %s1265, 31
      %s1270 = smul.addr %s1267, 32
      %s1271 = sadd.s32 %s1269, %s1270
      %s1272 = smul.addr %s1271, 4
      %s1273 = scalar_lea.vmem %s6, %s1272
      %s1274 = smul.u32 16, %s24
      %p1275 = scmp.lt.s32.totalorder %s23, 1
      %s1276 = scalar_select %p1275, %s23, 1
      %p1277 = scmp.lt.s32.totalorder %s1274, 31
      %s1278 = scalar_select %p1277, %s1274, 31
      %s1279 = smul.addr %s1276, 32
      %s1280 = sadd.s32 %s1278, %s1279
      %s1281 = smul.addr %s1280, 4
      %s1282 = scalar_lea.vmem %s7, %s1281
      // Predicated region
      $region41: #{siglip_encoder_layer.3} parent=39 // pred_check
        %p1283 = pneg %p163
      $region42: #{siglip_encoder_layer.3} parent=39 // pred_check_branch
        %1285 = sbr.rel (%p1283) target = $region44
      $region43: #{siglip_encoder_layer.3} parent=39 // pred_region
        %s1286 = smul.u32 16, %s24
      $region44: #{siglip_encoder_layer.3} parent=39 // pred_fallthru
        _
      // Predicated region
      $region45: #{siglip_encoder_layer.3} parent=39 // pred_check
        %p1287 = pneg %p191
      $region46: #{siglip_encoder_layer.3} parent=39 // pred_check_branch
        %1289 = sbr.rel (%p1287) target = $region48
      $region47: #{siglip_encoder_layer.3} parent=39 // pred_region
        %s1290 = smul.u32 16, %s24
      $region48: #{siglip_encoder_layer.3} parent=39 // pred_fallthru
        _
      // Predicated region
      $region49: #{siglip_encoder_layer.3} parent=39 // pred_check
        %p1291 = pneg %p219
      $region50: #{siglip_encoder_layer.3} parent=39 // pred_check_branch
        %1293 = sbr.rel (%p1291) target = $region52
      $region51: #{siglip_encoder_layer.3} parent=39 // pred_region
        %s1294 = smul.u32 16, %s24
      $region52: #{siglip_encoder_layer.3} parent=39 // pred_fallthru
        _
    $region40: #{siglip_encoder_layer.3} parent=5 // pred_fallthru
      _
    %p1295 = scmp.le.s32.totalorder 2, %s14
    // Predicated region
    $region53: #{siglip_encoder_layer.3} parent=5 // pred_check
      %p1296 = pneg %p1295
    $region54: #{siglip_encoder_layer.3} parent=5 // pred_check_branch
      %1298 = sbr.rel (%p1296) target = $region56
    $region55: #{siglip_encoder_layer.3} parent=5 // pred_region
      %s1299 = ssub.s32 %s14, 2
      // Predicated region
      $region57: #{siglip_encoder_layer.3} parent=55 // pred_check
        %p1300 = pneg %p169
      $region58: #{siglip_encoder_layer.3} parent=55 // pred_check_branch
        %1302 = sbr.rel (%p1300) target = $region60
      $region59: #{siglip_encoder_layer.3} parent=55 // pred_region
        %s1303 = smul.u32 16, %s26
        %p1304 = scmp.lt.s32.totalorder %s25, 1
        %s1305 = scalar_select %p1304, %s25, 1
        %p1306 = scmp.lt.s32.totalorder %s1303, 31
        %s1307 = scalar_select %p1306, %s1303, 31
        %s1308 = smul.addr %s1305, 32
        %s1309 = sadd.s32 %s1307, %s1308
        %s1310 = smul.addr %s1309, 4
        %s1311 = scalar_lea.vmem %s5, %s1310
      $region60: #{siglip_encoder_layer.3} parent=55 // pred_fallthru
        _
      // Predicated region
      $region61: #{siglip_encoder_layer.3} parent=55 // pred_check
        %p1312 = pneg %p197
      $region62: #{siglip_encoder_layer.3} parent=55 // pred_check_branch
        %1314 = sbr.rel (%p1312) target = $region64
      $region63: #{siglip_encoder_layer.3} parent=55 // pred_region
        %s1315 = smul.u32 16, %s26
        %p1316 = scmp.lt.s32.totalorder %s25, 1
        %s1317 = scalar_select %p1316, %s25, 1
        %p1318 = scmp.lt.s32.totalorder %s1315, 31
        %s1319 = scalar_select %p1318, %s1315, 31
        %s1320 = smul.addr %s1317, 32
        %s1321 = sadd.s32 %s1319, %s1320
        %s1322 = smul.addr %s1321, 4
        %s1323 = scalar_lea.vmem %s6, %s1322
      $region64: #{siglip_encoder_layer.3} parent=55 // pred_fallthru
        _
      // Predicated region
      $region65: #{siglip_encoder_layer.3} parent=55 // pred_check
        %p1324 = pneg %p225
      $region66: #{siglip_encoder_layer.3} parent=55 // pred_check_branch
        %1326 = sbr.rel (%p1324) target = $region68
      $region67: #{siglip_encoder_layer.3} parent=55 // pred_region
        %s1327 = smul.u32 16, %s26
        %p1328 = scmp.lt.s32.totalorder %s25, 1
        %s1329 = scalar_select %p1328, %s25, 1
        %p1330 = scmp.lt.s32.totalorder %s1327, 31
        %s1331 = scalar_select %p1330, %s1327, 31
        %s1332 = smul.addr %s1329, 32
        %s1333 = sadd.s32 %s1331, %s1332
        %s1334 = smul.addr %s1333, 4
        %s1335 = scalar_lea.vmem %s7, %s1334
      $region68: #{siglip_encoder_layer.3} parent=55 // pred_fallthru
        _
    $region56: #{siglip_encoder_layer.3} parent=5 // pred_fallthru
      _
  $region6: #{siglip_encoder_layer.3} parent=0 // loop_footer
    %s18 = sadd.s32 1, %s14
  $region7: #{siglip_encoder_layer.3} parent=0 // loop_footer_branch
    %13 = sbr.rel target = $region3
  $region8: #{siglip_encoder_layer.3} parent=0 // loop_exit
    _

// kernel: siglip_encoder_layer.4
$region0: #{siglip_encoder_layer.4}
  #allocation0 [shape = 'u32[]', space=smem, size = 0x4, offset = 0x4, fixed_abs, tag = 'smem constant byte address 0x4 - core index']
  #allocation1 [shape = 'u32[144,128]{1,0:T(1,128)}', space=vmem, size = 0x12000, scoped, tag = 'internal scratch']
  %s0 = inlined_call_operand.vmem [shape: bf16[2,256,128], index: 0, kind: input, shape index: {}]
  %s1 = inlined_call_operand.vmem [shape: bf16[2,256,128], index: 1, kind: input, shape index: {}]
  %s2 = inlined_call_operand.vmem [shape: bf16[2,256,128], index: 2, kind: input, shape index: {}]
  %s3 = inlined_call_operand.vmem [shape: bf16[2,1,256,256], index: 3, kind: input, shape index: {}]
  %s4 = inlined_call_operand.vmem [shape: bf16[2,256,128], index: 4, kind: output, shape index: {}]
  %s5 = sld [smem:[#allocation0]]
  $region49: #{siglip_encoder_layer.4} parent=0
    _
  %s7 = ssub.s32 1, %s5
  %s8 = scalar_select 0, %s7, %s5
  loop: start=0, step=1, limit=6
  $region2: #{siglip_encoder_layer.4} parent=0 // loop_pre_header
    _
  $region3: #{siglip_encoder_layer.4} parent=0 // loop_header
    %s10 = sphi 0, %s14
    %p11 = scmp.ge.s32.totalorder %s10, 6
    %s17 = sphi 0, %s29
    %s18 = sphi 0, %s25
    %s19 = sphi 0, %s17
    %s20 = sphi 0, %s18
    %s21 = sphi 0, %s19
    %s22 = sphi 0, %s20
    %s34 = sphi 0, %s36
    %s37 = sphi 0, %s34
    %s38 = sphi 0, %s37
    %s54 = sphi 0, %s38
    %s60 = sphi 0, %s62
    %s63 = sphi 0, %s60
    %s64 = sphi 0, %s63
    %s80 = sphi 0, %s64
    %s86 = sphi 0, %s88
    %s89 = sphi 0, %s86
    %s90 = sphi 0, %s89
    %s106 = sphi 0, %s90
    %s114 = sphi 0, %s116
    %s117 = sphi 0, %s114
    %s118 = sphi 0, %s117
    %s134 = sphi 0, %s118
    %s142 = sphi 0, %s144
    %s145 = sphi 0, %s142
    %s146 = sphi 0, %s145
    %s162 = sphi 0, %s146
  $region4: #{siglip_encoder_layer.4} parent=0 // loop_header_branch
    %13 = sbr.rel (%p11) target = $region8
  $region5: #{siglip_encoder_layer.4} parent=0 // loop_body
    %s15 = ssub.s32 %s10, 1
    %s16 = ssub.s32 %s10, 2
    %s23 = sadd.s32 1, %s18
    %p24 = scmp.ge.s32.totalorder %s23, 2
    %s25 = scalar_select %p24, 0, %s23
    %s26 = sadd.s32 1, %s17
    %s27 = scalar_select %p24, %s26, %s17
    %p28 = scmp.ge.s32.totalorder %s27, 2
    %s29 = scalar_select %p28, 0, %s27
    %s30 = ssub.s32 %s17, %s29
    %s31 = ssub.s32 %s18, %s25
    %s32 = sor.u32 %s30, %s31
    %p33 = scmp.eq.s32.totalorder %s32, 0
    %s35 = sadd.s32 %s34, 1
    %s36 = scalar_select %p33, %s34, %s35
    %p39 = pneg %p33
    %p40 = scmp.eq.s32.totalorder %s10, 3
    %p41 = por %p39, %p40
    %p42 = scmp.ne.s32.totalorder %s34, %s37
    %p43 = scmp.eq.s32.totalorder %s10, 0
    %p44 = por %p42, %p43
    %p45 = scmp.ne.s32.totalorder %s34, %s37
    %p46 = scmp.eq.s32.totalorder %s15, 3
    %p47 = por %p45, %p46
    %p48 = scmp.ne.s32.totalorder %s37, %s38
    %p49 = scmp.eq.s32.totalorder %s15, 0
    %p50 = por %p48, %p49
    %p51 = scmp.ne.s32.totalorder %s37, %s38
    %p52 = scmp.eq.s32.totalorder %s16, 3
    %p53 = por %p51, %p52
    %p55 = scmp.ne.s32.totalorder %s38, %s54
    %p56 = scmp.eq.s32.totalorder %s16, 0
    %p57 = por %p55, %p56
    %s58 = ssub.s32 %s17, %s29
    %p59 = scmp.eq.s32.totalorder %s58, 0
    %s61 = sadd.s32 %s60, 1
    %s62 = scalar_select %p59, %s60, %s61
    %p65 = pneg %p59
    %p66 = scmp.eq.s32.totalorder %s10, 3
    %p67 = por %p65, %p66
    %p68 = scmp.ne.s32.totalorder %s60, %s63
    %p69 = scmp.eq.s32.totalorder %s10, 0
    %p70 = por %p68, %p69
    %p71 = scmp.ne.s32.totalorder %s60, %s63
    %p72 = scmp.eq.s32.totalorder %s15, 3
    %p73 = por %p71, %p72
    %p74 = scmp.ne.s32.totalorder %s63, %s64
    %p75 = scmp.eq.s32.totalorder %s15, 0
    %p76 = por %p74, %p75
    %p77 = scmp.ne.s32.totalorder %s63, %s64
    %p78 = scmp.eq.s32.totalorder %s16, 3
    %p79 = por %p77, %p78
    %p81 = scmp.ne.s32.totalorder %s64, %s80
    %p82 = scmp.eq.s32.totalorder %s16, 0
    %p83 = por %p81, %p82
    %s84 = ssub.s32 %s17, %s29
    %p85 = scmp.eq.s32.totalorder %s84, 0
    %s87 = sadd.s32 %s86, 1
    %s88 = scalar_select %p85, %s86, %s87
    %p91 = pneg %p85
    %p92 = scmp.eq.s32.totalorder %s10, 3
    %p93 = por %p91, %p92
    %p94 = scmp.ne.s32.totalorder %s86, %s89
    %p95 = scmp.eq.s32.totalorder %s10, 0
    %p96 = por %p94, %p95
    %p97 = scmp.ne.s32.totalorder %s86, %s89
    %p98 = scmp.eq.s32.totalorder %s15, 3
    %p99 = por %p97, %p98
    %p100 = scmp.ne.s32.totalorder %s89, %s90
    %p101 = scmp.eq.s32.totalorder %s15, 0
    %p102 = por %p100, %p101
    %p103 = scmp.ne.s32.totalorder %s89, %s90
    %p104 = scmp.eq.s32.totalorder %s16, 3
    %p105 = por %p103, %p104
    %p107 = scmp.ne.s32.totalorder %s90, %s106
    %p108 = scmp.eq.s32.totalorder %s16, 0
    %p109 = por %p107, %p108
    %s110 = ssub.s32 %s17, %s29
    %s111 = ssub.s32 %s18, %s25
    %s112 = sor.u32 %s110, %s111
    %p113 = scmp.eq.s32.totalorder %s112, 0
    %s115 = sadd.s32 %s114, 1
    %s116 = scalar_select %p113, %s114, %s115
    %p119 = pneg %p113
    %p120 = scmp.eq.s32.totalorder %s10, 3
    %p121 = por %p119, %p120
    %p122 = scmp.ne.s32.totalorder %s114, %s117
    %p123 = scmp.eq.s32.totalorder %s10, 0
    %p124 = por %p122, %p123
    %p125 = scmp.ne.s32.totalorder %s114, %s117
    %p126 = scmp.eq.s32.totalorder %s15, 3
    %p127 = por %p125, %p126
    %p128 = scmp.ne.s32.totalorder %s117, %s118
    %p129 = scmp.eq.s32.totalorder %s15, 0
    %p130 = por %p128, %p129
    %p131 = scmp.ne.s32.totalorder %s117, %s118
    %p132 = scmp.eq.s32.totalorder %s16, 3
    %p133 = por %p131, %p132
    %p135 = scmp.ne.s32.totalorder %s118, %s134
    %p136 = scmp.eq.s32.totalorder %s16, 0
    %p137 = por %p135, %p136
    %s138 = ssub.s32 %s17, %s29
    %s139 = ssub.s32 %s18, %s25
    %s140 = sor.u32 %s138, %s139
    %p141 = scmp.eq.s32.totalorder %s140, 0
    %s143 = sadd.s32 %s142, 1
    %s144 = scalar_select %p141, %s142, %s143
    %p147 = pneg %p141
    %p148 = scmp.eq.s32.totalorder %s10, 3
    %p149 = por %p147, %p148
    %p150 = scmp.ne.s32.totalorder %s142, %s145
    %p151 = scmp.eq.s32.totalorder %s10, 0
    %p152 = por %p150, %p151
    %p153 = scmp.ne.s32.totalorder %s142, %s145
    %p154 = scmp.eq.s32.totalorder %s15, 3
    %p155 = por %p153, %p154
    %p156 = scmp.ne.s32.totalorder %s145, %s146
    %p157 = scmp.eq.s32.totalorder %s15, 0
    %p158 = por %p156, %p157
    %p159 = scmp.ne.s32.totalorder %s145, %s146
    %p160 = scmp.eq.s32.totalorder %s16, 3
    %p161 = por %p159, %p160
    %p163 = scmp.ne.s32.totalorder %s146, %s162
    %p164 = scmp.eq.s32.totalorder %s16, 0
    %p165 = por %p163, %p164
    %p166 = scmp.le.s32.totalorder 1, %s10
    %p167 = scmp.lt.s32.totalorder %s10, 5
    %p168 = pnand %p166, %p167
    %p169 = pneg %p168
    // Predicated region
    $region9: #{siglip_encoder_layer.4} parent=5 // pred_check
      _
    $region10: #{siglip_encoder_layer.4} parent=5 // pred_check_branch
      %171 = sbr.rel (%p168) target = $region12
    $region11: #{siglip_encoder_layer.4} parent=5 // pred_region
      %s172 = ssub.s32 %s10, 1
    $region12: #{siglip_encoder_layer.4} parent=5 // pred_fallthru
      _
    %p173 = scmp.lt.s32.totalorder %s10, 4
    // Predicated region
    $region13: #{siglip_encoder_layer.4} parent=5 // pred_check
      %p174 = pneg %p173
    $region14: #{siglip_encoder_layer.4} parent=5 // pred_check_branch
      %176 = sbr.rel (%p174) target = $region16
    $region15: #{siglip_encoder_layer.4} parent=5 // pred_region
      // Predicated region
      $region17: #{siglip_encoder_layer.4} parent=15 // pred_check
        %p177 = pneg %p44
      $region18: #{siglip_encoder_layer.4} parent=15 // pred_check_branch
        %179 = sbr.rel (%p177) target = $region20
      $region19: #{siglip_encoder_layer.4} parent=15 // pred_region
        %s180 = smul.u32 16, %s18
        %p181 = scmp.lt.s32.totalorder %s17, 1
        %s182 = scalar_select %p181, %s17, 1
        %p183 = scmp.lt.s32.totalorder %s180, 31
        %s184 = scalar_select %p183, %s180, 31
        %s185 = smul.addr %s182, 32
        %s186 = sadd.s32 %s184, %s185
        %s187 = smul.addr %s186, 4
        %s188 = scalar_lea.vmem %s0, %s187
        %s189 = smul.u32 16, %s18
      $region20: #{siglip_encoder_layer.4} parent=15 // pred_fallthru
        _
      // Predicated region
      $region21: #{siglip_encoder_layer.4} parent=15 // pred_check
        %p190 = pneg %p70
      $region22: #{siglip_encoder_layer.4} parent=15 // pred_check_branch
        %192 = sbr.rel (%p190) target = $region24
      $region23: #{siglip_encoder_layer.4} parent=15 // pred_region
        %p193 = scmp.lt.s32.totalorder %s17, 1
        %s194 = scalar_select %p193, %s17, 1
        %s195 = smul.addr %s194, 32
        %s196 = smul.addr %s195, 4
        %s197 = scalar_lea.vmem %s1, %s196
      $region24: #{siglip_encoder_layer.4} parent=15 // pred_fallthru
        _
      // Predicated region
      $region25: #{siglip_encoder_layer.4} parent=15 // pred_check
        %p198 = pneg %p96
      $region26: #{siglip_encoder_layer.4} parent=15 // pred_check_branch
        %200 = sbr.rel (%p198) target = $region28
      $region27: #{siglip_encoder_layer.4} parent=15 // pred_region
        %p201 = scmp.lt.s32.totalorder %s17, 1
        %s202 = scalar_select %p201, %s17, 1
        %s203 = smul.addr %s202, 32
        %s204 = smul.addr %s203, 4
        %s205 = scalar_lea.vmem %s2, %s204
      $region28: #{siglip_encoder_layer.4} parent=15 // pred_fallthru
        _
      // Predicated region
      $region29: #{siglip_encoder_layer.4} parent=15 // pred_check
        %p206 = pneg %p124
      $region30: #{siglip_encoder_layer.4} parent=15 // pred_check_branch
        %208 = sbr.rel (%p206) target = $region32
      $region31: #{siglip_encoder_layer.4} parent=15 // pred_region
        %s209 = smul.u32 16, %s18
        %p210 = scmp.lt.s32.totalorder %s17, 1
        %s211 = scalar_select %p210, %s17, 1
        %p212 = scmp.lt.s32.totalorder %s209, 31
        %s213 = scalar_select %p212, %s209, 31
        %s214 = smul.addr %s213, 2
        %s215 = smul.addr %s211, 64
        %s216 = sadd.s32 %s214, %s215
        %s217 = smul.addr %s216, 4
        %s218 = scalar_lea.vmem %s3, %s217
        %s219 = smul.u32 16, %s18
      $region32: #{siglip_encoder_layer.4} parent=15 // pred_fallthru
        _
    $region16: #{siglip_encoder_layer.4} parent=5 // pred_fallthru
      _
    %p220 = scmp.le.s32.totalorder 1, %s10
    %p221 = scmp.lt.s32.totalorder %s10, 5
    %p222 = pnand %p220, %p221
    %p223 = pneg %p222
    // Predicated region
    $region33: #{siglip_encoder_layer.4} parent=5 // pred_check
      _
    $region34: #{siglip_encoder_layer.4} parent=5 // pred_check_branch
      %225 = sbr.rel (%p222) target = $region36
    $region35: #{siglip_encoder_layer.4} parent=5 // pred_region
      %s226 = ssub.s32 %s10, 1
      %s227 = smul.u32 16, %s20
      %p228 = scmp.lt.s32.totalorder %s19, 1
      %s229 = scalar_select %p228, %s19, 1
      %p230 = scmp.lt.s32.totalorder %s227, 31
      %s231 = scalar_select %p230, %s227, 31
      %s232 = smul.addr %s229, 32
      %s233 = sadd.s32 %s231, %s232
      %s234 = smul.addr %s233, 4
      %s235 = scalar_lea.vmem %s0, %s234
      %p236 = pneg %p50
      %p237 = pneg %p47
      %p238 = scmp.lt.s32.totalorder %s19, 1
      %s239 = scalar_select %p238, %s19, 1
      %s240 = smul.addr %s239, 32
      %s241 = smul.addr %s240, 4
      %s242 = scalar_lea.vmem %s1, %s241
      %p243 = pneg %p76
      %p244 = pneg %p73
      %p245 = scmp.lt.s32.totalorder %s19, 1
      %s246 = scalar_select %p245, %s19, 1
      %s247 = smul.addr %s246, 32
      %s248 = smul.addr %s247, 4
      %s249 = scalar_lea.vmem %s2, %s248
      %p250 = pneg %p102
      %p251 = pneg %p99
      %s252 = smul.u32 16, %s20
      %p253 = scmp.lt.s32.totalorder %s19, 1
      %s254 = scalar_select %p253, %s19, 1
      %p255 = scmp.lt.s32.totalorder %s252, 31
      %s256 = scalar_select %p255, %s252, 31
      %s257 = smul.addr %s256, 2
      %s258 = smul.addr %s254, 64
      %s259 = sadd.s32 %s257, %s258
      %s260 = smul.addr %s259, 4
      %s261 = scalar_lea.vmem %s3, %s260
      %p262 = pneg %p130
      %p263 = pneg %p127
      %p264 = pneg %p158
      %p265 = pneg %p155
      %s266 = smul.u32 16, %s20
      %p267 = scmp.lt.s32.totalorder %s19, 1
      %s268 = scalar_select %p267, %s19, 1
      %p269 = scmp.lt.s32.totalorder %s266, 31
      %s270 = scalar_select %p269, %s266, 31
      %s271 = smul.addr %s268, 32
      %s272 = sadd.s32 %s270, %s271
      %s273 = smul.addr %s272, 4
      %s274 = scalar_lea.vmem %s4, %s273
      %s275 = smul.u32 16, %s20
      %p276 = scmp.lt.s32.totalorder %s19, 1
      %s277 = scalar_select %p276, %s19, 1
      %p278 = scmp.lt.s32.totalorder %s275, 31
      %s279 = scalar_select %p278, %s275, 31
      %s280 = smul.addr %s277, 32
      %s281 = sadd.s32 %s279, %s280
      %s282 = smul.addr %s281, 4
      %s283 = scalar_lea.vmem %s0, %s282
      %s284 = smul.u32 16, %s20
      %p285 = scmp.lt.s32.totalorder %s19, 1
      %s286 = scalar_select %p285, %s19, 1
      %s287 = smul.addr %s286, 32
      %s288 = smul.addr %s287, 4
      %s289 = scalar_lea.vmem %s1, %s288
      %p290 = scmp.lt.s32.totalorder %s19, 1
      %s291 = scalar_select %p290, %s19, 1
      %s292 = smul.addr %s291, 32
      %s293 = smul.addr %s292, 4
      %s294 = scalar_lea.vmem %s2, %s293
      %s295 = smul.u32 16, %s20
      %p296 = scmp.lt.s32.totalorder %s19, 1
      %s297 = scalar_select %p296, %s19, 1
      %p298 = scmp.lt.s32.totalorder %s295, 31
      %s299 = scalar_select %p298, %s295, 31
      %s300 = smul.addr %s299, 2
      %s301 = smul.addr %s297, 64
      %s302 = sadd.s32 %s300, %s301
      %s303 = smul.addr %s302, 4
      %s304 = scalar_lea.vmem %s3, %s303
      %s305 = smul.u32 16, %s20
      %s306 = smul.u32 16, %s20
      %p307 = scmp.lt.s32.totalorder %s19, 1
      %s308 = scalar_select %p307, %s19, 1
      %p309 = scmp.lt.s32.totalorder %s306, 31
      %s310 = scalar_select %p309, %s306, 31
      %s311 = smul.addr %s308, 32
      %s312 = sadd.s32 %s310, %s311
      %s313 = smul.addr %s312, 4
      %s314 = scalar_lea.vmem %s4, %s313
      %s315 = smul.u32 16, %s20
      %v317 = vld [vmem:[%s283] sm:$0xf]
      %v318 = vld [vmem:[%s283 + $0x4] sm:$0xf]
      %v319 = vld [vmem:[%s283 + $0x8] sm:$0xf]
      %v320 = vld [vmem:[%s283 + $0xc] sm:$0xf]
      %v321 = vld [vmem:[%s283 + $0x10] sm:$0xf]
      %v322 = vld [vmem:[%s283 + $0x14] sm:$0xf]
      %v323 = vld [vmem:[%s283 + $0x18] sm:$0xf]
      %v324 = vld [vmem:[%s283 + $0x1c] sm:$0xf]
      %v325 = vld [vmem:[%s283 + $0x20] sm:$0xf]
      %v326 = vld [vmem:[%s283 + $0x24] sm:$0xf]
      %v327 = vld [vmem:[%s283 + $0x28] sm:$0xf]
      %v328 = vld [vmem:[%s283 + $0x2c] sm:$0xf]
      %v329 = vld [vmem:[%s283 + $0x30] sm:$0xf]
      %v330 = vld [vmem:[%s283 + $0x34] sm:$0xf]
      %v331 = vld [vmem:[%s283 + $0x38] sm:$0xf]
      %v332 = vld [vmem:[%s283 + $0x3c] sm:$0xf]
      %v333 = vld [vmem:[%s289] sm:$0xf]
      %v334 = vld [vmem:[%s289 + $0x4] sm:$0xf]
      %v335 = vld [vmem:[%s289 + $0x8] sm:$0xf]
      %v336 = vld [vmem:[%s289 + $0xc] sm:$0xf]
      %v337 = vld [vmem:[%s289 + $0x10] sm:$0xf]
      %v338 = vld [vmem:[%s289 + $0x14] sm:$0xf]
      %v339 = vld [vmem:[%s289 + $0x18] sm:$0xf]
      %v340 = vld [vmem:[%s289 + $0x1c] sm:$0xf]
      %v341 = vld [vmem:[%s289 + $0x20] sm:$0xf]
      %v342 = vld [vmem:[%s289 + $0x24] sm:$0xf]
      %v343 = vld [vmem:[%s289 + $0x28] sm:$0xf]
      %v344 = vld [vmem:[%s289 + $0x2c] sm:$0xf]
      %v345 = vld [vmem:[%s289 + $0x30] sm:$0xf]
      %v346 = vld [vmem:[%s289 + $0x34] sm:$0xf]
      %v347 = vld [vmem:[%s289 + $0x38] sm:$0xf]
      %v348 = vld [vmem:[%s289 + $0x3c] sm:$0xf]
      %v349 = vld [vmem:[%s289 + $0x40] sm:$0xf]
      %v350 = vld [vmem:[%s289 + $0x44] sm:$0xf]
      %v351 = vld [vmem:[%s289 + $0x48] sm:$0xf]
      %v352 = vld [vmem:[%s289 + $0x4c] sm:$0xf]
      %v353 = vld [vmem:[%s289 + $0x50] sm:$0xf]
      %v354 = vld [vmem:[%s289 + $0x54] sm:$0xf]
      %v355 = vld [vmem:[%s289 + $0x58] sm:$0xf]
      %v356 = vld [vmem:[%s289 + $0x5c] sm:$0xf]
      %v357 = vld [vmem:[%s289 + $0x60] sm:$0xf]
      %v358 = vld [vmem:[%s289 + $0x64] sm:$0xf]
      %v359 = vld [vmem:[%s289 + $0x68] sm:$0xf]
      %v360 = vld [vmem:[%s289 + $0x6c] sm:$0xf]
      %v361 = vld [vmem:[%s289 + $0x70] sm:$0xf]
      %v362 = vld [vmem:[%s289 + $0x74] sm:$0xf]
      %v363 = vld [vmem:[%s289 + $0x78] sm:$0xf]
      %v364 = vld [vmem:[%s289 + $0x7c] sm:$0xf]
      %v365 = vld [vmem:[%s294] sm:$0xf]
      %v366 = vld [vmem:[%s294 + $0x4] sm:$0xf]
      %v367 = vld [vmem:[%s294 + $0x8] sm:$0xf]
      %v368 = vld [vmem:[%s294 + $0xc] sm:$0xf]
      %v369 = vld [vmem:[%s294 + $0x10] sm:$0xf]
      %v370 = vld [vmem:[%s294 + $0x14] sm:$0xf]
      %v371 = vld [vmem:[%s294 + $0x18] sm:$0xf]
      %v372 = vld [vmem:[%s294 + $0x1c] sm:$0xf]
      %v373 = vld [vmem:[%s294 + $0x20] sm:$0xf]
      %v374 = vld [vmem:[%s294 + $0x24] sm:$0xf]
      %v375 = vld [vmem:[%s294 + $0x28] sm:$0xf]
      %v376 = vld [vmem:[%s294 + $0x2c] sm:$0xf]
      %v377 = vld [vmem:[%s294 + $0x30] sm:$0xf]
      %v378 = vld [vmem:[%s294 + $0x34] sm:$0xf]
      %v379 = vld [vmem:[%s294 + $0x38] sm:$0xf]
      %v380 = vld [vmem:[%s294 + $0x3c] sm:$0xf]
      %v381 = vld [vmem:[%s294 + $0x40] sm:$0xf]
      %v382 = vld [vmem:[%s294 + $0x44] sm:$0xf]
      %v383 = vld [vmem:[%s294 + $0x48] sm:$0xf]
      %v384 = vld [vmem:[%s294 + $0x4c] sm:$0xf]
      %v385 = vld [vmem:[%s294 + $0x50] sm:$0xf]
      %v386 = vld [vmem:[%s294 + $0x54] sm:$0xf]
      %v387 = vld [vmem:[%s294 + $0x58] sm:$0xf]
      %v388 = vld [vmem:[%s294 + $0x5c] sm:$0xf]
      %v389 = vld [vmem:[%s294 + $0x60] sm:$0xf]
      %v390 = vld [vmem:[%s294 + $0x64] sm:$0xf]
      %v391 = vld [vmem:[%s294 + $0x68] sm:$0xf]
      %v392 = vld [vmem:[%s294 + $0x6c] sm:$0xf]
      %v393 = vld [vmem:[%s294 + $0x70] sm:$0xf]
      %v394 = vld [vmem:[%s294 + $0x74] sm:$0xf]
      %v395 = vld [vmem:[%s294 + $0x78] sm:$0xf]
      %v396 = vld [vmem:[%s294 + $0x7c] sm:$0xf]
      %v397 = vld [vmem:[%s304] sm:$0xff]
      %v398 = vld [vmem:[%s304 + $0x8] sm:$0xff]
      %v399 = vld [vmem:[%s304 + $0x10] sm:$0xff]
      %v400 = vld [vmem:[%s304 + $0x18] sm:$0xff]
      %v401 = vld [vmem:[%s304 + $0x20] sm:$0xff]
      %v402 = vld [vmem:[%s304 + $0x28] sm:$0xff]
      %v403 = vld [vmem:[%s304 + $0x30] sm:$0xff]
      %v404 = vld [vmem:[%s304 + $0x38] sm:$0xff]
      %v405 = vld [vmem:[%s304 + $0x40] sm:$0xff]
      %v406 = vld [vmem:[%s304 + $0x48] sm:$0xff]
      %v407 = vld [vmem:[%s304 + $0x50] sm:$0xff]
      %v408 = vld [vmem:[%s304 + $0x58] sm:$0xff]
      %v409 = vld [vmem:[%s304 + $0x60] sm:$0xff]
      %v410 = vld [vmem:[%s304 + $0x68] sm:$0xff]
      %v411 = vld [vmem:[%s304 + $0x70] sm:$0xff]
      %v412 = vld [vmem:[%s304 + $0x78] sm:$0xff]
      %v413 = vunpack.c.l.bf16 %v397
      %v414 = vunpack.c.h.bf16 %v397
      %v415 = vunpack.c.l.bf16 %v398
      %v416 = vunpack.c.h.bf16 %v398
      %v417 = vunpack.c.l.bf16 %v399
      %v418 = vunpack.c.h.bf16 %v399
      %v419 = vunpack.c.l.bf16 %v400
      %v420 = vunpack.c.h.bf16 %v400
      %v421 = vunpack.c.l.bf16 %v401
      %v422 = vunpack.c.h.bf16 %v401
      %v423 = vunpack.c.l.bf16 %v402
      %v424 = vunpack.c.h.bf16 %v402
      %v425 = vunpack.c.l.bf16 %v403
      %v426 = vunpack.c.h.bf16 %v403
      %v427 = vunpack.c.l.bf16 %v404
      %v428 = vunpack.c.h.bf16 %v404
      %v429 = vunpack.c.l.bf16 %v405
      %v430 = vunpack.c.h.bf16 %v405
      %v431 = vunpack.c.l.bf16 %v406
      %v432 = vunpack.c.h.bf16 %v406
      %v433 = vunpack.c.l.bf16 %v407
      %v434 = vunpack.c.h.bf16 %v407
      %v435 = vunpack.c.l.bf16 %v408
      %v436 = vunpack.c.h.bf16 %v408
      %v437 = vunpack.c.l.bf16 %v409
      %v438 = vunpack.c.h.bf16 %v409
      %v439 = vunpack.c.l.bf16 %v410
      %v440 = vunpack.c.h.bf16 %v410
      %v441 = vunpack.c.l.bf16 %v411
      %v442 = vunpack.c.h.bf16 %v411
      %v443 = vunpack.c.l.bf16 %v412
      %v444 = vunpack.c.h.bf16 %v412
      %v461 = vunpack.c.l.b16 %v317
      %v462 = vunpack.c.l.b16 %v318
      %v463 = vunpack.c.l.b16 %v319
      %v464 = vunpack.c.l.b16 %v320
      %v465 = vunpack.c.l.b16 %v321
      %v466 = vunpack.c.l.b16 %v322
      %v467 = vunpack.c.l.b16 %v323
      %v468 = vunpack.c.l.b16 %v324
      %v469 = vunpack.c.l.b16 %v325
      %v470 = vunpack.c.l.b16 %v326
      %v471 = vunpack.c.l.b16 %v327
      %v472 = vunpack.c.l.b16 %v328
      %v473 = vunpack.c.l.b16 %v329
      %v474 = vunpack.c.l.b16 %v330
      %v475 = vunpack.c.l.b16 %v331
      %v476 = vunpack.c.l.b16 %v332
      %v477 = vpack.c.b16 %v462, %v461
      %v478 = vpack.c.b16 %v464, %v463
      %v479 = vpack.c.b16 %v466, %v465
      %v480 = vpack.c.b16 %v468, %v467
      %v481 = vpack.c.b16 %v470, %v469
      %v482 = vpack.c.b16 %v472, %v471
      %v483 = vpack.c.b16 %v474, %v473
      %v484 = vpack.c.b16 %v476, %v475
      %v517 = vunpack.c.l.b16 %v333
      %v518 = vunpack.c.l.b16 %v334
      %v519 = vunpack.c.l.b16 %v335
      %v520 = vunpack.c.l.b16 %v336
      %v521 = vunpack.c.l.b16 %v337
      %v522 = vunpack.c.l.b16 %v338
      %v523 = vunpack.c.l.b16 %v339
      %v524 = vunpack.c.l.b16 %v340
      %v525 = vunpack.c.l.b16 %v341
      %v526 = vunpack.c.l.b16 %v342
      %v527 = vunpack.c.l.b16 %v343
      %v528 = vunpack.c.l.b16 %v344
      %v529 = vunpack.c.l.b16 %v345
      %v530 = vunpack.c.l.b16 %v346
      %v531 = vunpack.c.l.b16 %v347
      %v532 = vunpack.c.l.b16 %v348
      %v533 = vunpack.c.l.b16 %v349
      %v534 = vunpack.c.l.b16 %v350
      %v535 = vunpack.c.l.b16 %v351
      %v536 = vunpack.c.l.b16 %v352
      %v537 = vunpack.c.l.b16 %v353
      %v538 = vunpack.c.l.b16 %v354
      %v539 = vunpack.c.l.b16 %v355
      %v540 = vunpack.c.l.b16 %v356
      %v541 = vunpack.c.l.b16 %v357
      %v542 = vunpack.c.l.b16 %v358
      %v543 = vunpack.c.l.b16 %v359
      %v544 = vunpack.c.l.b16 %v360
      %v545 = vunpack.c.l.b16 %v361
      %v546 = vunpack.c.l.b16 %v362
      %v547 = vunpack.c.l.b16 %v363
      %v548 = vunpack.c.l.b16 %v364
      %v549 = vpack.c.b16 %v518, %v517
      %v550 = vpack.c.b16 %v520, %v519
      %v551 = vpack.c.b16 %v522, %v521
      %v552 = vpack.c.b16 %v524, %v523
      %v553 = vpack.c.b16 %v526, %v525
      %v554 = vpack.c.b16 %v528, %v527
      %v555 = vpack.c.b16 %v530, %v529
      %v556 = vpack.c.b16 %v532, %v531
      %v557 = vpack.c.b16 %v534, %v533
      %v558 = vpack.c.b16 %v536, %v535
      %v559 = vpack.c.b16 %v538, %v537
      %v560 = vpack.c.b16 %v540, %v539
      %v561 = vpack.c.b16 %v542, %v541
      %v562 = vpack.c.b16 %v544, %v543
      %v563 = vpack.c.b16 %v546, %v545
      %v564 = vpack.c.b16 %v548, %v547
      %vm565 = vcmask 261120
      %v567 = vsel %vm565, %v477, 0
      %v570 = vsel %vm565, %v478, 0
      %v573 = vsel %vm565, %v479, 0
      %v576 = vsel %vm565, %v480, 0
      %v579 = vsel %vm565, %v481, 0
      %v582 = vsel %vm565, %v482, 0
      %v585 = vsel %vm565, %v483, 0
      %v588 = vsel %vm565, %v484, 0
      %v591 = vsel %vm565, %v549, 0
      %v594 = vsel %vm565, %v550, 0
      %v597 = vsel %vm565, %v551, 0
      %v600 = vsel %vm565, %v552, 0
      %v603 = vsel %vm565, %v553, 0
      %v606 = vsel %vm565, %v554, 0
      %v609 = vsel %vm565, %v555, 0
      %v612 = vsel %vm565, %v556, 0
      %v615 = vsel %vm565, %v557, 0
      %v618 = vsel %vm565, %v558, 0
      %v621 = vsel %vm565, %v559, 0
      %v624 = vsel %vm565, %v560, 0
      %v627 = vsel %vm565, %v561, 0
      %v630 = vsel %vm565, %v562, 0
      %v633 = vsel %vm565, %v563, 0
      %v636 = vsel %vm565, %v564, 0
      %638 = vmatprep.subr.bf16.mxu0 0
      %639 = vmatpush1.bf16.xpose.msra.mxu0 %v591
      %640 = vmatprep.subr.bf16.mxu0 0
      %641 = vmatpush1.bf16.xpose.msra.mxu0 %v594
      %642 = vmatprep.subr.bf16.mxu0 0
      %643 = vmatpush1.bf16.xpose.msra.mxu0 %v597
      %644 = vmatprep.subr.bf16.mxu0 0
      %645 = vmatpush1.bf16.xpose.msra.mxu0 %v600
      %646 = vmatprep.subr.bf16.mxu0 0
      %647 = vmatpush1.bf16.xpose.msra.mxu0 %v603
      %648 = vmatprep.subr.bf16.mxu0 0
      %649 = vmatpush1.bf16.xpose.msra.mxu0 %v606
      %650 = vmatprep.subr.bf16.mxu0 0
      %651 = vmatpush1.bf16.xpose.msra.mxu0 %v609
      %652 = vmatprep.subr.bf16.mxu0 0
      %653 = vmatpush1.bf16.xpose.msra.mxu0 %v612
      %654 = vmatprep.subr.bf16.mxu0 0
      %655 = vmatpush1.bf16.xpose.msra.mxu0 %v615
      %656 = vmatprep.subr.bf16.mxu0 0
      %657 = vmatpush1.bf16.xpose.msra.mxu0 %v618
      %658 = vmatprep.subr.bf16.mxu0 0
      %659 = vmatpush1.bf16.xpose.msra.mxu0 %v621
      %660 = vmatprep.subr.bf16.mxu0 0
      %661 = vmatpush1.bf16.xpose.msra.mxu0 %v624
      %662 = vmatprep.subr.bf16.mxu0 0
      %663 = vmatpush1.bf16.xpose.msra.mxu0 %v627
      %664 = vmatprep.subr.bf16.mxu0 0
      %665 = vmatpush1.bf16.xpose.msra.mxu0 %v630
      %666 = vmatprep.subr.bf16.mxu0 0
      %667 = vmatpush1.bf16.xpose.msra.mxu0 %v633
      %668 = vmatprep.subr.bf16.mxu0 0
      %669 = vmatpush1.bf16.xpose.msra.mxu0 %v636
      %670 = vmatprep.mubr.bf16.mxu0 0
      %671 = vmatmul.mubr.bf16.gmra.mrb[0].mxu0 %v567
      %v672 = vpop.f32.mrb[0].mxu0
      %v673 = vadd.f32 %v413, %v672
      %v674 = vpop.f32.mrb[0].mxu0
      %v675 = vadd.f32 %v414, %v674
      %v676 = vpop.f32.mrb[0].mxu0
      %v677 = vadd.f32 %v415, %v676
      %v678 = vpop.f32.mrb[0].mxu0
      %v679 = vadd.f32 %v416, %v678
      %680 = vmatprep.mubr.bf16.mxu0 0
      %681 = vmatmul.mubr.bf16.gmra.mrb[0].mxu0 %v570
      %v682 = vpop.f32.mrb[0].mxu0
      %v683 = vadd.f32 %v417, %v682
      %v684 = vpop.f32.mrb[0].mxu0
      %v685 = vadd.f32 %v418, %v684
      %v686 = vpop.f32.mrb[0].mxu0
      %v687 = vadd.f32 %v419, %v686
      %v688 = vpop.f32.mrb[0].mxu0
      %v689 = vadd.f32 %v420, %v688
      %690 = vmatprep.mubr.bf16.mxu0 0
      %691 = vmatmul.mubr.bf16.gmra.mrb[0].mxu0 %v573
      %v692 = vpop.f32.mrb[0].mxu0
      %v693 = vadd.f32 %v421, %v692
      %v694 = vpop.f32.mrb[0].mxu0
      %v695 = vadd.f32 %v422, %v694
      %v696 = vpop.f32.mrb[0].mxu0
      %v697 = vadd.f32 %v423, %v696
      %v698 = vpop.f32.mrb[0].mxu0
      %v699 = vadd.f32 %v424, %v698
      %700 = vmatprep.mubr.bf16.mxu0 0
      %701 = vmatmul.mubr.bf16.gmra.mrb[0].mxu0 %v576
      %v702 = vpop.f32.mrb[0].mxu0
      %v703 = vadd.f32 %v425, %v702
      %v704 = vpop.f32.mrb[0].mxu0
      %v705 = vadd.f32 %v426, %v704
      %v706 = vpop.f32.mrb[0].mxu0
      %v707 = vadd.f32 %v427, %v706
      %v708 = vpop.f32.mrb[0].mxu0
      %v709 = vadd.f32 %v428, %v708
      %710 = vmatprep.mubr.bf16.mxu0 0
      %711 = vmatmul.mubr.bf16.gmra.mrb[0].mxu0 %v579
      %v712 = vpop.f32.mrb[0].mxu0
      %v713 = vadd.f32 %v429, %v712
      %v714 = vpop.f32.mrb[0].mxu0
      %v715 = vadd.f32 %v430, %v714
      %v716 = vpop.f32.mrb[0].mxu0
      %v717 = vadd.f32 %v431, %v716
      %v718 = vpop.f32.mrb[0].mxu0
      %v719 = vadd.f32 %v432, %v718
      %720 = vmatprep.mubr.bf16.mxu0 0
      %721 = vmatmul.mubr.bf16.gmra.mrb[0].mxu0 %v582
      %v722 = vpop.f32.mrb[0].mxu0
      %v723 = vadd.f32 %v433, %v722
      %v724 = vpop.f32.mrb[0].mxu0
      %v725 = vadd.f32 %v434, %v724
      %v726 = vpop.f32.mrb[0].mxu0
      %v727 = vadd.f32 %v435, %v726
      %v728 = vpop.f32.mrb[0].mxu0
      %v729 = vadd.f32 %v436, %v728
      %730 = vmatprep.mubr.bf16.mxu0 0
      %731 = vmatmul.mubr.bf16.gmra.mrb[0].mxu0 %v585
      %v732 = vpop.f32.mrb[0].mxu0
      %v733 = vadd.f32 %v437, %v732
      %v734 = vpop.f32.mrb[0].mxu0
      %v735 = vadd.f32 %v438, %v734
      %v736 = vpop.f32.mrb[0].mxu0
      %v737 = vadd.f32 %v439, %v736
      %v738 = vpop.f32.mrb[0].mxu0
      %v739 = vadd.f32 %v440, %v738
      %740 = vmatprep.mubr.bf16.mxu0 0
      %741 = vmatmul.mubr.bf16.gmra.mrb[0].mxu0 %v588
      %v742 = vpop.f32.mrb[0].mxu0
      %v743 = vadd.f32 %v441, %v742
      %v744 = vpop.f32.mrb[0].mxu0
      %v745 = vadd.f32 %v442, %v744
      %v746 = vpop.f32.mrb[0].mxu0
      %v747 = vadd.f32 %v443, %v746
      %v748 = vpop.f32.mrb[0].mxu0
      %v749 = vadd.f32 %v444, %v748
      %750 = vdwg.mxu0
      %v751 = vmax.f32 %v673, %v675
      %752 = vmax.xlane.f32.xlu0 %v751
      %v753 = vpop.xlane.xlu0 %752
      %v754 = vmax.f32 %v677, %v679
      %755 = vmax.xlane.f32.xlu0 %v754
      %v756 = vpop.xlane.xlu0 %755
      %v757 = vmax.f32 %v683, %v685
      %758 = vmax.xlane.f32.xlu0 %v757
      %v759 = vpop.xlane.xlu0 %758
      %v760 = vmax.f32 %v687, %v689
      %761 = vmax.xlane.f32.xlu0 %v760
      %v762 = vpop.xlane.xlu0 %761
      %v763 = vmax.f32 %v693, %v695
      %764 = vmax.xlane.f32.xlu0 %v763
      %v765 = vpop.xlane.xlu0 %764
      %v766 = vmax.f32 %v697, %v699
      %767 = vmax.xlane.f32.xlu0 %v766
      %v768 = vpop.xlane.xlu0 %767
      %v769 = vmax.f32 %v703, %v705
      %770 = vmax.xlane.f32.xlu0 %v769
      %v771 = vpop.xlane.xlu0 %770
      %v772 = vmax.f32 %v707, %v709
      %773 = vmax.xlane.f32.xlu0 %v772
      %v774 = vpop.xlane.xlu0 %773
      %v775 = vmax.f32 %v713, %v715
      %776 = vmax.xlane.f32.xlu0 %v775
      %v777 = vpop.xlane.xlu0 %776
      %v778 = vmax.f32 %v717, %v719
      %779 = vmax.xlane.f32.xlu0 %v778
      %v780 = vpop.xlane.xlu0 %779
      %v781 = vmax.f32 %v723, %v725
      %782 = vmax.xlane.f32.xlu0 %v781
      %v783 = vpop.xlane.xlu0 %782
      %v784 = vmax.f32 %v727, %v729
      %785 = vmax.xlane.f32.xlu0 %v784
      %v786 = vpop.xlane.xlu0 %785
      %v787 = vmax.f32 %v733, %v735
      %788 = vmax.xlane.f32.xlu0 %v787
      %v789 = vpop.xlane.xlu0 %788
      %v790 = vmax.f32 %v737, %v739
      %791 = vmax.xlane.f32.xlu0 %v790
      %v792 = vpop.xlane.xlu0 %791
      %v793 = vmax.f32 %v743, %v745
      %794 = vmax.xlane.f32.xlu0 %v793
      %v795 = vpop.xlane.xlu0 %794
      %v796 = vmax.f32 %v747, %v749
      %797 = vmax.xlane.f32.xlu0 %v796
      %v798 = vpop.xlane.xlu0 %797
      %v799 = vsub.f32 %v673, %v753
      %v800 = vsub.f32 %v675, %v753
      %v801 = vsub.f32 %v677, %v756
      %v802 = vsub.f32 %v679, %v756
      %v803 = vsub.f32 %v683, %v759
      %v804 = vsub.f32 %v685, %v759
      %v805 = vsub.f32 %v687, %v762
      %v806 = vsub.f32 %v689, %v762
      %v807 = vsub.f32 %v693, %v765
      %v808 = vsub.f32 %v695, %v765
      %v809 = vsub.f32 %v697, %v768
      %v810 = vsub.f32 %v699, %v768
      %v811 = vsub.f32 %v703, %v771
      %v812 = vsub.f32 %v705, %v771
      %v813 = vsub.f32 %v707, %v774
      %v814 = vsub.f32 %v709, %v774
      %v815 = vsub.f32 %v713, %v777
      %v816 = vsub.f32 %v715, %v777
      %v817 = vsub.f32 %v717, %v780
      %v818 = vsub.f32 %v719, %v780
      %v819 = vsub.f32 %v723, %v783
      %v820 = vsub.f32 %v725, %v783
      %v821 = vsub.f32 %v727, %v786
      %v822 = vsub.f32 %v729, %v786
      %v823 = vsub.f32 %v733, %v789
      %v824 = vsub.f32 %v735, %v789
      %v825 = vsub.f32 %v737, %v792
      %v826 = vsub.f32 %v739, %v792
      %v827 = vsub.f32 %v743, %v795
      %v828 = vsub.f32 %v745, %v795
      %v829 = vsub.f32 %v747, %v798
      %v830 = vsub.f32 %v749, %v798
      %v831 = vmul.f32 %v799, 1.442695
      %v832 = vpow.pop %v831
      %v833 = vmul.f32 %v800, 1.442695
      %v834 = vpow.pop %v833
      %v835 = vmul.f32 %v801, 1.442695
      %v836 = vpow.pop %v835
      %v837 = vmul.f32 %v802, 1.442695
      %v838 = vpow.pop %v837
      %v839 = vmul.f32 %v803, 1.442695
      %v840 = vpow.pop %v839
      %v841 = vmul.f32 %v804, 1.442695
      %v842 = vpow.pop %v841
      %v843 = vmul.f32 %v805, 1.442695
      %v844 = vpow.pop %v843
      %v845 = vmul.f32 %v806, 1.442695
      %v846 = vpow.pop %v845
      %v847 = vmul.f32 %v807, 1.442695
      %v848 = vpow.pop %v847
      %v849 = vmul.f32 %v808, 1.442695
      %v850 = vpow.pop %v849
      %v851 = vmul.f32 %v809, 1.442695
      %v852 = vpow.pop %v851
      %v853 = vmul.f32 %v810, 1.442695
      %v854 = vpow.pop %v853
      %v855 = vmul.f32 %v811, 1.442695
      %v856 = vpow.pop %v855
      %v857 = vmul.f32 %v812, 1.442695
      %v858 = vpow.pop %v857
      %v859 = vmul.f32 %v813, 1.442695
      %v860 = vpow.pop %v859
      %v861 = vmul.f32 %v814, 1.442695
      %v862 = vpow.pop %v861
      %v863 = vmul.f32 %v815, 1.442695
      %v864 = vpow.pop %v863
      %v865 = vmul.f32 %v816, 1.442695
      %v866 = vpow.pop %v865
      %v867 = vmul.f32 %v817, 1.442695
      %v868 = vpow.pop %v867
      %v869 = vmul.f32 %v818, 1.442695
      %v870 = vpow.pop %v869
      %v871 = vmul.f32 %v819, 1.442695
      %v872 = vpow.pop %v871
      %v873 = vmul.f32 %v820, 1.442695
      %v874 = vpow.pop %v873
      %v875 = vmul.f32 %v821, 1.442695
      %v876 = vpow.pop %v875
      %v877 = vmul.f32 %v822, 1.442695
      %v878 = vpow.pop %v877
      %v879 = vmul.f32 %v823, 1.442695
      %v880 = vpow.pop %v879
      %v881 = vmul.f32 %v824, 1.442695
      %v882 = vpow.pop %v881
      %v883 = vmul.f32 %v825, 1.442695
      %v884 = vpow.pop %v883
      %v885 = vmul.f32 %v826, 1.442695
      %v886 = vpow.pop %v885
      %v887 = vmul.f32 %v827, 1.442695
      %v888 = vpow.pop %v887
      %v889 = vmul.f32 %v828, 1.442695
      %v890 = vpow.pop %v889
      %v891 = vmul.f32 %v829, 1.442695
      %v892 = vpow.pop %v891
      %v893 = vmul.f32 %v830, 1.442695
      %v894 = vpow.pop %v893
      %v895 = vadd.f32 %v832, %v834
      %896 = vadd.xlane.f32.xlu0 %v895
      %v897 = vpop.xlane.xlu0 %896
      %v898 = vadd.f32 %v836, %v838
      %899 = vadd.xlane.f32.xlu0 %v898
      %v900 = vpop.xlane.xlu0 %899
      %v901 = vadd.f32 %v840, %v842
      %902 = vadd.xlane.f32.xlu0 %v901
      %v903 = vpop.xlane.xlu0 %902
      %v904 = vadd.f32 %v844, %v846
      %905 = vadd.xlane.f32.xlu0 %v904
      %v906 = vpop.xlane.xlu0 %905
      %v907 = vadd.f32 %v848, %v850
      %908 = vadd.xlane.f32.xlu0 %v907
      %v909 = vpop.xlane.xlu0 %908
      %v910 = vadd.f32 %v852, %v854
      %911 = vadd.xlane.f32.xlu0 %v910
      %v912 = vpop.xlane.xlu0 %911
      %v913 = vadd.f32 %v856, %v858
      %914 = vadd.xlane.f32.xlu0 %v913
      %v915 = vpop.xlane.xlu0 %914
      %v916 = vadd.f32 %v860, %v862
      %917 = vadd.xlane.f32.xlu0 %v916
      %v918 = vpop.xlane.xlu0 %917
      %v919 = vadd.f32 %v864, %v866
      %920 = vadd.xlane.f32.xlu0 %v919
      %v921 = vpop.xlane.xlu0 %920
      %v922 = vadd.f32 %v868, %v870
      %923 = vadd.xlane.f32.xlu0 %v922
      %v924 = vpop.xlane.xlu0 %923
      %v925 = vadd.f32 %v872, %v874
      %926 = vadd.xlane.f32.xlu0 %v925
      %v927 = vpop.xlane.xlu0 %926
      %v928 = vadd.f32 %v876, %v878
      %929 = vadd.xlane.f32.xlu0 %v928
      %v930 = vpop.xlane.xlu0 %929
      %v931 = vadd.f32 %v880, %v882
      %932 = vadd.xlane.f32.xlu0 %v931
      %v933 = vpop.xlane.xlu0 %932
      %v934 = vadd.f32 %v884, %v886
      %935 = vadd.xlane.f32.xlu0 %v934
      %v936 = vpop.xlane.xlu0 %935
      %v937 = vadd.f32 %v888, %v890
      %938 = vadd.xlane.f32.xlu0 %v937
      %v939 = vpop.xlane.xlu0 %938
      %v940 = vadd.f32 %v892, %v894
      %941 = vadd.xlane.f32.xlu0 %v940
      %v942 = vpop.xlane.xlu0 %941
      %v943 = vrcp.pop %v897
      %v944 = vrcp.pop %v900
      %v945 = vrcp.pop %v903
      %v946 = vrcp.pop %v906
      %v947 = vrcp.pop %v909
      %v948 = vrcp.pop %v912
      %v949 = vrcp.pop %v915
      %v950 = vrcp.pop %v918
      %v951 = vrcp.pop %v921
      %v952 = vrcp.pop %v924
      %v953 = vrcp.pop %v927
      %v954 = vrcp.pop %v930
      %v955 = vrcp.pop %v933
      %v956 = vrcp.pop %v936
      %v957 = vrcp.pop %v939
      %v958 = vrcp.pop %v942
      %v959 = vmul.f32 %v832, %v943
      %v960 = vmul.f32 %v834, %v943
      %v961 = vmul.f32 %v836, %v944
      %v962 = vmul.f32 %v838, %v944
      %v963 = vmul.f32 %v840, %v945
      %v964 = vmul.f32 %v842, %v945
      %v965 = vmul.f32 %v844, %v946
      %v966 = vmul.f32 %v846, %v946
      %v967 = vmul.f32 %v848, %v947
      %v968 = vmul.f32 %v850, %v947
      %v969 = vmul.f32 %v852, %v948
      %v970 = vmul.f32 %v854, %v948
      %v971 = vmul.f32 %v856, %v949
      %v972 = vmul.f32 %v858, %v949
      %v973 = vmul.f32 %v860, %v950
      %v974 = vmul.f32 %v862, %v950
      %v975 = vmul.f32 %v864, %v951
      %v976 = vmul.f32 %v866, %v951
      %v977 = vmul.f32 %v868, %v952
      %v978 = vmul.f32 %v870, %v952
      %v979 = vmul.f32 %v872, %v953
      %v980 = vmul.f32 %v874, %v953
      %v981 = vmul.f32 %v876, %v954
      %v982 = vmul.f32 %v878, %v954
      %v983 = vmul.f32 %v880, %v955
      %v984 = vmul.f32 %v882, %v955
      %v985 = vmul.f32 %v884, %v956
      %v986 = vmul.f32 %v886, %v956
      %v987 = vmul.f32 %v888, %v957
      %v988 = vmul.f32 %v890, %v957
      %v989 = vmul.f32 %v892, %v958
      %v990 = vmul.f32 %v894, %v958
      %v991 = vpack.c.bf16 %v961, %v959
      %v992 = vpack.c.bf16 %v962, %v960
      %v993 = vpack.c.bf16 %v965, %v963
      %v994 = vpack.c.bf16 %v966, %v964
      %v995 = vpack.c.bf16 %v969, %v967
      %v996 = vpack.c.bf16 %v970, %v968
      %v997 = vpack.c.bf16 %v973, %v971
      %v998 = vpack.c.bf16 %v974, %v972
      %v999 = vpack.c.bf16 %v977, %v975
      %v1000 = vpack.c.bf16 %v978, %v976
      %v1001 = vpack.c.bf16 %v981, %v979
      %v1002 = vpack.c.bf16 %v982, %v980
      %v1003 = vpack.c.bf16 %v985, %v983
      %v1004 = vpack.c.bf16 %v986, %v984
      %v1005 = vpack.c.bf16 %v989, %v987
      %v1006 = vpack.c.bf16 %v990, %v988
      %v1039 = vunpack.c.l.b16 %v365
      %v1040 = vunpack.c.l.b16 %v366
      %v1041 = vunpack.c.l.b16 %v367
      %v1042 = vunpack.c.l.b16 %v368
      %v1043 = vunpack.c.l.b16 %v369
      %v1044 = vunpack.c.l.b16 %v370
      %v1045 = vunpack.c.l.b16 %v371
      %v1046 = vunpack.c.l.b16 %v372
      %v1047 = vunpack.c.l.b16 %v373
      %v1048 = vunpack.c.l.b16 %v374
      %v1049 = vunpack.c.l.b16 %v375
      %v1050 = vunpack.c.l.b16 %v376
      %v1051 = vunpack.c.l.b16 %v377
      %v1052 = vunpack.c.l.b16 %v378
      %v1053 = vunpack.c.l.b16 %v379
      %v1054 = vunpack.c.l.b16 %v380
      %v1055 = vunpack.c.l.b16 %v381
      %v1056 = vunpack.c.l.b16 %v382
      %v1057 = vunpack.c.l.b16 %v383
      %v1058 = vunpack.c.l.b16 %v384
      %v1059 = vunpack.c.l.b16 %v385
      %v1060 = vunpack.c.l.b16 %v386
      %v1061 = vunpack.c.l.b16 %v387
      %v1062 = vunpack.c.l.b16 %v388
      %v1063 = vunpack.c.l.b16 %v389
      %v1064 = vunpack.c.l.b16 %v390
      %v1065 = vunpack.c.l.b16 %v391
      %v1066 = vunpack.c.l.b16 %v392
      %v1067 = vunpack.c.l.b16 %v393
      %v1068 = vunpack.c.l.b16 %v394
      %v1069 = vunpack.c.l.b16 %v395
      %v1070 = vunpack.c.l.b16 %v396
      %v1071 = vpack.c.b16 %v1040, %v1039
      %v1072 = vpack.c.b16 %v1042, %v1041
      %v1073 = vpack.c.b16 %v1044, %v1043
      %v1074 = vpack.c.b16 %v1046, %v1045
      %v1075 = vpack.c.b16 %v1048, %v1047
      %v1076 = vpack.c.b16 %v1050, %v1049
      %v1077 = vpack.c.b16 %v1052, %v1051
      %v1078 = vpack.c.b16 %v1054, %v1053
      %v1079 = vpack.c.b16 %v1056, %v1055
      %v1080 = vpack.c.b16 %v1058, %v1057
      %v1081 = vpack.c.b16 %v1060, %v1059
      %v1082 = vpack.c.b16 %v1062, %v1061
      %v1083 = vpack.c.b16 %v1064, %v1063
      %v1084 = vpack.c.b16 %v1066, %v1065
      %v1085 = vpack.c.b16 %v1068, %v1067
      %v1086 = vpack.c.b16 %v1070, %v1069
      %1103 = vmatprep.subr.bf16.mxu0 0
      %1104 = vmatpush1.bf16.msra.mxu0 %v1071
      %1105 = vmatprep.subr.bf16.mxu0 0
      %1106 = vmatpush1.bf16.msra.mxu0 %v1072
      %1107 = vmatprep.subr.bf16.mxu0 0
      %1108 = vmatpush1.bf16.msra.mxu0 %v1073
      %1109 = vmatprep.subr.bf16.mxu0 0
      %1110 = vmatpush1.bf16.msra.mxu0 %v1074
      %1111 = vmatprep.subr.bf16.mxu0 0
      %1112 = vmatpush1.bf16.msra.mxu0 %v1075
      %1113 = vmatprep.subr.bf16.mxu0 0
      %1114 = vmatpush1.bf16.msra.mxu0 %v1076
      %1115 = vmatprep.subr.bf16.mxu0 0
      %1116 = vmatpush1.bf16.msra.mxu0 %v1077
      %1117 = vmatprep.subr.bf16.mxu0 0
      %1118 = vmatpush1.bf16.msra.mxu0 %v1078
      %1119 = vmatprep.subr.bf16.mxu0 0
      %1120 = vmatpush1.bf16.msra.mxu0 %v1079
      %1121 = vmatprep.subr.bf16.mxu0 0
      %1122 = vmatpush1.bf16.msra.mxu0 %v1080
      %1123 = vmatprep.subr.bf16.mxu0 0
      %1124 = vmatpush1.bf16.msra.mxu0 %v1081
      %1125 = vmatprep.subr.bf16.mxu0 0
      %1126 = vmatpush1.bf16.msra.mxu0 %v1082
      %1127 = vmatprep.subr.bf16.mxu0 0
      %1128 = vmatpush1.bf16.msra.mxu0 %v1083
      %1129 = vmatprep.subr.bf16.mxu0 0
      %1130 = vmatpush1.bf16.msra.mxu0 %v1084
      %1131 = vmatprep.subr.bf16.mxu0 0
      %1132 = vmatpush1.bf16.msra.mxu0 %v1085
      %1133 = vmatprep.subr.bf16.mxu0 0
      %1134 = vmatpush1.bf16.msra.mxu0 %v1086
      %1135 = vmatprep.mubr.bf16.mxu0 %v992
      %1136 = vmatmul.mubr.bf16.gmra.mrb[0].mxu0 %v991
      %v1137 = vpop.f32.mrb[0].mxu0
      %v1138 = vadd.f32 0.0, %v1137
      %v1139 = vpop.f32.mrb[0].mxu0
      %v1140 = vpop.f32.mrb[0].mxu0
      %v1141 = vadd.f32 0.0, %v1140
      %v1142 = vpop.f32.mrb[0].mxu0
      %1143 = vmatprep.mubr.bf16.mxu0 %v994
      %1144 = vmatmul.mubr.bf16.gmra.mrb[0].mxu0 %v993
      %v1145 = vpop.f32.mrb[0].mxu0
      %v1146 = vadd.f32 0.0, %v1145
      %v1147 = vpop.f32.mrb[0].mxu0
      %v1148 = vpop.f32.mrb[0].mxu0
      %v1149 = vadd.f32 0.0, %v1148
      %v1150 = vpop.f32.mrb[0].mxu0
      %1151 = vmatprep.mubr.bf16.mxu0 %v996
      %1152 = vmatmul.mubr.bf16.gmra.mrb[0].mxu0 %v995
      %v1153 = vpop.f32.mrb[0].mxu0
      %v1154 = vadd.f32 0.0, %v1153
      %v1155 = vpop.f32.mrb[0].mxu0
      %v1156 = vpop.f32.mrb[0].mxu0
      %v1157 = vadd.f32 0.0, %v1156
      %v1158 = vpop.f32.mrb[0].mxu0
      %1159 = vmatprep.mubr.bf16.mxu0 %v998
      %1160 = vmatmul.mubr.bf16.gmra.mrb[0].mxu0 %v997
      %v1161 = vpop.f32.mrb[0].mxu0
      %v1162 = vadd.f32 0.0, %v1161
      %v1163 = vpop.f32.mrb[0].mxu0
      %v1164 = vpop.f32.mrb[0].mxu0
      %v1165 = vadd.f32 0.0, %v1164
      %v1166 = vpop.f32.mrb[0].mxu0
      %1167 = vmatprep.mubr.bf16.mxu0 %v1000
      %1168 = vmatmul.mubr.bf16.gmra.mrb[0].mxu0 %v999
      %v1169 = vpop.f32.mrb[0].mxu0
      %v1170 = vadd.f32 0.0, %v1169
      %v1171 = vpop.f32.mrb[0].mxu0
      %v1172 = vpop.f32.mrb[0].mxu0
      %v1173 = vadd.f32 0.0, %v1172
      %v1174 = vpop.f32.mrb[0].mxu0
      %1175 = vmatprep.mubr.bf16.mxu0 %v1002
      %1176 = vmatmul.mubr.bf16.gmra.mrb[0].mxu0 %v1001
      %v1177 = vpop.f32.mrb[0].mxu0
      %v1178 = vadd.f32 0.0, %v1177
      %v1179 = vpop.f32.mrb[0].mxu0
      %v1180 = vpop.f32.mrb[0].mxu0
      %v1181 = vadd.f32 0.0, %v1180
      %v1182 = vpop.f32.mrb[0].mxu0
      %1183 = vmatprep.mubr.bf16.mxu0 %v1004
      %1184 = vmatmul.mubr.bf16.gmra.mrb[0].mxu0 %v1003
      %v1185 = vpop.f32.mrb[0].mxu0
      %v1186 = vadd.f32 0.0, %v1185
      %v1187 = vpop.f32.mrb[0].mxu0
      %v1188 = vpop.f32.mrb[0].mxu0
      %v1189 = vadd.f32 0.0, %v1188
      %v1190 = vpop.f32.mrb[0].mxu0
      %1191 = vmatprep.mubr.bf16.mxu0 %v1006
      %1192 = vmatmul.mubr.bf16.gmra.mrb[0].mxu0 %v1005
      %v1193 = vpop.f32.mrb[0].mxu0
      %v1194 = vadd.f32 0.0, %v1193
      %v1195 = vpop.f32.mrb[0].mxu0
      %v1196 = vpop.f32.mrb[0].mxu0
      %v1197 = vadd.f32 0.0, %v1196
      %v1198 = vpop.f32.mrb[0].mxu0
      %1199 = vdwg.mxu0
      %1200 = vrot.lane.b32.xlu0 %v477, 96
      %v1201 = vpop.permute.xlu0 %1200
      %1202 = vrot.lane.b32.xlu0 %v478, 96
      %v1203 = vpop.permute.xlu0 %1202
      %1204 = vrot.lane.b32.xlu0 %v479, 96
      %v1205 = vpop.permute.xlu0 %1204
      %1206 = vrot.lane.b32.xlu0 %v480, 96
      %v1207 = vpop.permute.xlu0 %1206
      %1208 = vrot.lane.b32.xlu0 %v481, 96
      %v1209 = vpop.permute.xlu0 %1208
      %1210 = vrot.lane.b32.xlu0 %v482, 96
      %v1211 = vpop.permute.xlu0 %1210
      %1212 = vrot.lane.b32.xlu0 %v483, 96
      %v1213 = vpop.permute.xlu0 %1212
      %1214 = vrot.lane.b32.xlu0 %v484, 96
      %v1215 = vpop.permute.xlu0 %1214
      %1216 = vrot.lane.b32.xlu0 %v549, 96
      %v1217 = vpop.permute.xlu0 %1216
      %1218 = vrot.lane.b32.xlu0 %v550, 96
      %v1219 = vpop.permute.xlu0 %1218
      %1220 = vrot.lane.b32.xlu0 %v551, 96
      %v1221 = vpop.permute.xlu0 %1220
      %1222 = vrot.lane.b32.xlu0 %v552, 96
      %v1223 = vpop.permute.xlu0 %1222
      %1224 = vrot.lane.b32.xlu0 %v553, 96
      %v1225 = vpop.permute.xlu0 %1224
      %1226 = vrot.lane.b32.xlu0 %v554, 96
      %v1227 = vpop.permute.xlu0 %1226
      %1228 = vrot.lane.b32.xlu0 %v555, 96
      %v1229 = vpop.permute.xlu0 %1228
      %1230 = vrot.lane.b32.xlu0 %v556, 96
      %v1231 = vpop.permute.xlu0 %1230
      %1232 = vrot.lane.b32.xlu0 %v557, 96
      %v1233 = vpop.permute.xlu0 %1232
      %1234 = vrot.lane.b32.xlu0 %v558, 96
      %v1235 = vpop.permute.xlu0 %1234
      %1236 = vrot.lane.b32.xlu0 %v559, 96
      %v1237 = vpop.permute.xlu0 %1236
      %1238 = vrot.lane.b32.xlu0 %v560, 96
      %v1239 = vpop.permute.xlu0 %1238
      %1240 = vrot.lane.b32.xlu0 %v561, 96
      %v1241 = vpop.permute.xlu0 %1240
      %1242 = vrot.lane.b32.xlu0 %v562, 96
      %v1243 = vpop.permute.xlu0 %1242
      %1244 = vrot.lane.b32.xlu0 %v563, 96
      %v1245 = vpop.permute.xlu0 %1244
      %1246 = vrot.lane.b32.xlu0 %v564, 96
      %v1247 = vpop.permute.xlu0 %1246
      %v1249 = vsel %vm565, %v1201, 0
      %v1252 = vsel %vm565, %v1203, 0
      %v1255 = vsel %vm565, %v1205, 0
      %v1258 = vsel %vm565, %v1207, 0
      %v1261 = vsel %vm565, %v1209, 0
      %v1264 = vsel %vm565, %v1211, 0
      %v1267 = vsel %vm565, %v1213, 0
      %v1270 = vsel %vm565, %v1215, 0
      %v1273 = vsel %vm565, %v1217, 0
      %v1276 = vsel %vm565, %v1219, 0
      %v1279 = vsel %vm565, %v1221, 0
      %v1282 = vsel %vm565, %v1223, 0
      %v1285 = vsel %vm565, %v1225, 0
      %v1288 = vsel %vm565, %v1227, 0
      %v1291 = vsel %vm565, %v1229, 0
      %v1294 = vsel %vm565, %v1231, 0
      %v1297 = vsel %vm565, %v1233, 0
      %v1300 = vsel %vm565, %v1235, 0
      %v1303 = vsel %vm565, %v1237, 0
      %v1306 = vsel %vm565, %v1239, 0
      %v1309 = vsel %vm565, %v1241, 0
      %v1312 = vsel %vm565, %v1243, 0
      %v1315 = vsel %vm565, %v1245, 0
      %v1318 = vsel %vm565, %v1247, 0
      %1320 = vmatprep.subr.bf16.mxu0 0
      %1321 = vmatpush1.bf16.xpose.msra.mxu0 %v1273
      %1322 = vmatprep.subr.bf16.mxu0 0
      %1323 = vmatpush1.bf16.xpose.msra.mxu0 %v1276
      %1324 = vmatprep.subr.bf16.mxu0 0
      %1325 = vmatpush1.bf16.xpose.msra.mxu0 %v1279
      %1326 = vmatprep.subr.bf16.mxu0 0
      %1327 = vmatpush1.bf16.xpose.msra.mxu0 %v1282
      %1328 = vmatprep.subr.bf16.mxu0 0
      %1329 = vmatpush1.bf16.xpose.msra.mxu0 %v1285
      %1330 = vmatprep.subr.bf16.mxu0 0
      %1331 = vmatpush1.bf16.xpose.msra.mxu0 %v1288
      %1332 = vmatprep.subr.bf16.mxu0 0
      %1333 = vmatpush1.bf16.xpose.msra.mxu0 %v1291
      %1334 = vmatprep.subr.bf16.mxu0 0
      %1335 = vmatpush1.bf16.xpose.msra.mxu0 %v1294
      %1336 = vmatprep.subr.bf16.mxu0 0
      %1337 = vmatpush1.bf16.xpose.msra.mxu0 %v1297
      %1338 = vmatprep.subr.bf16.mxu0 0
      %1339 = vmatpush1.bf16.xpose.msra.mxu0 %v1300
      %1340 = vmatprep.subr.bf16.mxu0 0
      %1341 = vmatpush1.bf16.xpose.msra.mxu0 %v1303
      %1342 = vmatprep.subr.bf16.mxu0 0
      %1343 = vmatpush1.bf16.xpose.msra.mxu0 %v1306
      %1344 = vmatprep.subr.bf16.mxu0 0
      %1345 = vmatpush1.bf16.xpose.msra.mxu0 %v1309
      %1346 = vmatprep.subr.bf16.mxu0 0
      %1347 = vmatpush1.bf16.xpose.msra.mxu0 %v1312
      %1348 = vmatprep.subr.bf16.mxu0 0
      %1349 = vmatpush1.bf16.xpose.msra.mxu0 %v1315
      %1350 = vmatprep.subr.bf16.mxu0 0
      %1351 = vmatpush1.bf16.xpose.msra.mxu0 %v1318
      %1352 = vmatprep.mubr.bf16.mxu0 0
      %1353 = vmatmul.mubr.bf16.gmra.mrb[0].mxu0 %v1249
      %v1354 = vpop.f32.mrb[0].mxu0
      %v1355 = vadd.f32 %v413, %v1354
      %v1356 = vpop.f32.mrb[0].mxu0
      %v1357 = vadd.f32 %v414, %v1356
      %v1358 = vpop.f32.mrb[0].mxu0
      %v1359 = vadd.f32 %v415, %v1358
      %v1360 = vpop.f32.mrb[0].mxu0
      %v1361 = vadd.f32 %v416, %v1360
      %1362 = vmatprep.mubr.bf16.mxu0 0
      %1363 = vmatmul.mubr.bf16.gmra.mrb[0].mxu0 %v1252
      %v1364 = vpop.f32.mrb[0].mxu0
      %v1365 = vadd.f32 %v417, %v1364
      %v1366 = vpop.f32.mrb[0].mxu0
      %v1367 = vadd.f32 %v418, %v1366
      %v1368 = vpop.f32.mrb[0].mxu0
      %v1369 = vadd.f32 %v419, %v1368
      %v1370 = vpop.f32.mrb[0].mxu0
      %v1371 = vadd.f32 %v420, %v1370
      %1372 = vmatprep.mubr.bf16.mxu0 0
      %1373 = vmatmul.mubr.bf16.gmra.mrb[0].mxu0 %v1255
      %v1374 = vpop.f32.mrb[0].mxu0
      %v1375 = vadd.f32 %v421, %v1374
      %v1376 = vpop.f32.mrb[0].mxu0
      %v1377 = vadd.f32 %v422, %v1376
      %v1378 = vpop.f32.mrb[0].mxu0
      %v1379 = vadd.f32 %v423, %v1378
      %v1380 = vpop.f32.mrb[0].mxu0
      %v1381 = vadd.f32 %v424, %v1380
      %1382 = vmatprep.mubr.bf16.mxu0 0
      %1383 = vmatmul.mubr.bf16.gmra.mrb[0].mxu0 %v1258
      %v1384 = vpop.f32.mrb[0].mxu0
      %v1385 = vadd.f32 %v425, %v1384
      %v1386 = vpop.f32.mrb[0].mxu0
      %v1387 = vadd.f32 %v426, %v1386
      %v1388 = vpop.f32.mrb[0].mxu0
      %v1389 = vadd.f32 %v427, %v1388
      %v1390 = vpop.f32.mrb[0].mxu0
      %v1391 = vadd.f32 %v428, %v1390
      %1392 = vmatprep.mubr.bf16.mxu0 0
      %1393 = vmatmul.mubr.bf16.gmra.mrb[0].mxu0 %v1261
      %v1394 = vpop.f32.mrb[0].mxu0
      %v1395 = vadd.f32 %v429, %v1394
      %v1396 = vpop.f32.mrb[0].mxu0
      %v1397 = vadd.f32 %v430, %v1396
      %v1398 = vpop.f32.mrb[0].mxu0
      %v1399 = vadd.f32 %v431, %v1398
      %v1400 = vpop.f32.mrb[0].mxu0
      %v1401 = vadd.f32 %v432, %v1400
      %1402 = vmatprep.mubr.bf16.mxu0 0
      %1403 = vmatmul.mubr.bf16.gmra.mrb[0].mxu0 %v1264
      %v1404 = vpop.f32.mrb[0].mxu0
      %v1405 = vadd.f32 %v433, %v1404
      %v1406 = vpop.f32.mrb[0].mxu0
      %v1407 = vadd.f32 %v434, %v1406
      %v1408 = vpop.f32.mrb[0].mxu0
      %v1409 = vadd.f32 %v435, %v1408
      %v1410 = vpop.f32.mrb[0].mxu0
      %v1411 = vadd.f32 %v436, %v1410
      %1412 = vmatprep.mubr.bf16.mxu0 0
      %1413 = vmatmul.mubr.bf16.gmra.mrb[0].mxu0 %v1267
      %v1414 = vpop.f32.mrb[0].mxu0
      %v1415 = vadd.f32 %v437, %v1414
      %v1416 = vpop.f32.mrb[0].mxu0
      %v1417 = vadd.f32 %v438, %v1416
      %v1418 = vpop.f32.mrb[0].mxu0
      %v1419 = vadd.f32 %v439, %v1418
      %v1420 = vpop.f32.mrb[0].mxu0
      %v1421 = vadd.f32 %v440, %v1420
      %1422 = vmatprep.mubr.bf16.mxu0 0
      %1423 = vmatmul.mubr.bf16.gmra.mrb[0].mxu0 %v1270
      %v1424 = vpop.f32.mrb[0].mxu0
      %v1425 = vadd.f32 %v441, %v1424
      %v1426 = vpop.f32.mrb[0].mxu0
      %v1427 = vadd.f32 %v442, %v1426
      %v1428 = vpop.f32.mrb[0].mxu0
      %v1429 = vadd.f32 %v443, %v1428
      %v1430 = vpop.f32.mrb[0].mxu0
      %v1431 = vadd.f32 %v444, %v1430
      %1432 = vdwg.mxu0
      %v1433 = vmax.f32 %v1355, %v1357
      %1434 = vmax.xlane.f32.xlu0 %v1433
      %v1435 = vpop.xlane.xlu0 %1434
      %v1436 = vmax.f32 %v1359, %v1361
      %1437 = vmax.xlane.f32.xlu0 %v1436
      %v1438 = vpop.xlane.xlu0 %1437
      %v1439 = vmax.f32 %v1365, %v1367
      %1440 = vmax.xlane.f32.xlu0 %v1439
      %v1441 = vpop.xlane.xlu0 %1440
      %v1442 = vmax.f32 %v1369, %v1371
      %1443 = vmax.xlane.f32.xlu0 %v1442
      %v1444 = vpop.xlane.xlu0 %1443
      %v1445 = vmax.f32 %v1375, %v1377
      %1446 = vmax.xlane.f32.xlu0 %v1445
      %v1447 = vpop.xlane.xlu0 %1446
      %v1448 = vmax.f32 %v1379, %v1381
      %1449 = vmax.xlane.f32.xlu0 %v1448
      %v1450 = vpop.xlane.xlu0 %1449
      %v1451 = vmax.f32 %v1385, %v1387
      %1452 = vmax.xlane.f32.xlu0 %v1451
      %v1453 = vpop.xlane.xlu0 %1452
      %v1454 = vmax.f32 %v1389, %v1391
      %1455 = vmax.xlane.f32.xlu0 %v1454
      %v1456 = vpop.xlane.xlu0 %1455
      %v1457 = vmax.f32 %v1395, %v1397
      %1458 = vmax.xlane.f32.xlu0 %v1457
      %v1459 = vpop.xlane.xlu0 %1458
      %v1460 = vmax.f32 %v1399, %v1401
      %1461 = vmax.xlane.f32.xlu0 %v1460
      %v1462 = vpop.xlane.xlu0 %1461
      %v1463 = vmax.f32 %v1405, %v1407
      %1464 = vmax.xlane.f32.xlu0 %v1463
      %v1465 = vpop.xlane.xlu0 %1464
      %v1466 = vmax.f32 %v1409, %v1411
      %1467 = vmax.xlane.f32.xlu0 %v1466
      %v1468 = vpop.xlane.xlu0 %1467
      %v1469 = vmax.f32 %v1415, %v1417
      %1470 = vmax.xlane.f32.xlu0 %v1469
      %v1471 = vpop.xlane.xlu0 %1470
      %v1472 = vmax.f32 %v1419, %v1421
      %1473 = vmax.xlane.f32.xlu0 %v1472
      %v1474 = vpop.xlane.xlu0 %1473
      %v1475 = vmax.f32 %v1425, %v1427
      %1476 = vmax.xlane.f32.xlu0 %v1475
      %v1477 = vpop.xlane.xlu0 %1476
      %v1478 = vmax.f32 %v1429, %v1431
      %1479 = vmax.xlane.f32.xlu0 %v1478
      %v1480 = vpop.xlane.xlu0 %1479
      %v1481 = vsub.f32 %v1355, %v1435
      %v1482 = vsub.f32 %v1357, %v1435
      %v1483 = vsub.f32 %v1359, %v1438
      %v1484 = vsub.f32 %v1361, %v1438
      %v1485 = vsub.f32 %v1365, %v1441
      %v1486 = vsub.f32 %v1367, %v1441
      %v1487 = vsub.f32 %v1369, %v1444
      %v1488 = vsub.f32 %v1371, %v1444
      %v1489 = vsub.f32 %v1375, %v1447
      %v1490 = vsub.f32 %v1377, %v1447
      %v1491 = vsub.f32 %v1379, %v1450
      %v1492 = vsub.f32 %v1381, %v1450
      %v1493 = vsub.f32 %v1385, %v1453
      %v1494 = vsub.f32 %v1387, %v1453
      %v1495 = vsub.f32 %v1389, %v1456
      %v1496 = vsub.f32 %v1391, %v1456
      %v1497 = vsub.f32 %v1395, %v1459
      %v1498 = vsub.f32 %v1397, %v1459
      %v1499 = vsub.f32 %v1399, %v1462
      %v1500 = vsub.f32 %v1401, %v1462
      %v1501 = vsub.f32 %v1405, %v1465
      %v1502 = vsub.f32 %v1407, %v1465
      %v1503 = vsub.f32 %v1409, %v1468
      %v1504 = vsub.f32 %v1411, %v1468
      %v1505 = vsub.f32 %v1415, %v1471
      %v1506 = vsub.f32 %v1417, %v1471
      %v1507 = vsub.f32 %v1419, %v1474
      %v1508 = vsub.f32 %v1421, %v1474
      %v1509 = vsub.f32 %v1425, %v1477
      %v1510 = vsub.f32 %v1427, %v1477
      %v1511 = vsub.f32 %v1429, %v1480
      %v1512 = vsub.f32 %v1431, %v1480
      %v1513 = vmul.f32 %v1481, 1.442695
      %v1514 = vpow.pop %v1513
      %v1515 = vmul.f32 %v1482, 1.442695
      %v1516 = vpow.pop %v1515
      %v1517 = vmul.f32 %v1483, 1.442695
      %v1518 = vpow.pop %v1517
      %v1519 = vmul.f32 %v1484, 1.442695
      %v1520 = vpow.pop %v1519
      %v1521 = vmul.f32 %v1485, 1.442695
      %v1522 = vpow.pop %v1521
      %v1523 = vmul.f32 %v1486, 1.442695
      %v1524 = vpow.pop %v1523
      %v1525 = vmul.f32 %v1487, 1.442695
      %v1526 = vpow.pop %v1525
      %v1527 = vmul.f32 %v1488, 1.442695
      %v1528 = vpow.pop %v1527
      %v1529 = vmul.f32 %v1489, 1.442695
      %v1530 = vpow.pop %v1529
      %v1531 = vmul.f32 %v1490, 1.442695
      %v1532 = vpow.pop %v1531
      %v1533 = vmul.f32 %v1491, 1.442695
      %v1534 = vpow.pop %v1533
      %v1535 = vmul.f32 %v1492, 1.442695
      %v1536 = vpow.pop %v1535
      %v1537 = vmul.f32 %v1493, 1.442695
      %v1538 = vpow.pop %v1537
      %v1539 = vmul.f32 %v1494, 1.442695
      %v1540 = vpow.pop %v1539
      %v1541 = vmul.f32 %v1495, 1.442695
      %v1542 = vpow.pop %v1541
      %v1543 = vmul.f32 %v1496, 1.442695
      %v1544 = vpow.pop %v1543
      %v1545 = vmul.f32 %v1497, 1.442695
      %v1546 = vpow.pop %v1545
      %v1547 = vmul.f32 %v1498, 1.442695
      %v1548 = vpow.pop %v1547
      %v1549 = vmul.f32 %v1499, 1.442695
      %v1550 = vpow.pop %v1549
      %v1551 = vmul.f32 %v1500, 1.442695
      %v1552 = vpow.pop %v1551
      %v1553 = vmul.f32 %v1501, 1.442695
      %v1554 = vpow.pop %v1553
      %v1555 = vmul.f32 %v1502, 1.442695
      %v1556 = vpow.pop %v1555
      %v1557 = vmul.f32 %v1503, 1.442695
      %v1558 = vpow.pop %v1557
      %v1559 = vmul.f32 %v1504, 1.442695
      %v1560 = vpow.pop %v1559
      %v1561 = vmul.f32 %v1505, 1.442695
      %v1562 = vpow.pop %v1561
      %v1563 = vmul.f32 %v1506, 1.442695
      %v1564 = vpow.pop %v1563
      %v1565 = vmul.f32 %v1507, 1.442695
      %v1566 = vpow.pop %v1565
      %v1567 = vmul.f32 %v1508, 1.442695
      %v1568 = vpow.pop %v1567
      %v1569 = vmul.f32 %v1509, 1.442695
      %v1570 = vpow.pop %v1569
      %v1571 = vmul.f32 %v1510, 1.442695
      %v1572 = vpow.pop %v1571
      %v1573 = vmul.f32 %v1511, 1.442695
      %v1574 = vpow.pop %v1573
      %v1575 = vmul.f32 %v1512, 1.442695
      %v1576 = vpow.pop %v1575
      %v1577 = vadd.f32 %v1514, %v1516
      %1578 = vadd.xlane.f32.xlu0 %v1577
      %v1579 = vpop.xlane.xlu0 %1578
      %v1580 = vadd.f32 %v1518, %v1520
      %1581 = vadd.xlane.f32.xlu0 %v1580
      %v1582 = vpop.xlane.xlu0 %1581
      %v1583 = vadd.f32 %v1522, %v1524
      %1584 = vadd.xlane.f32.xlu0 %v1583
      %v1585 = vpop.xlane.xlu0 %1584
      %v1586 = vadd.f32 %v1526, %v1528
      %1587 = vadd.xlane.f32.xlu0 %v1586
      %v1588 = vpop.xlane.xlu0 %1587
      %v1589 = vadd.f32 %v1530, %v1532
      %1590 = vadd.xlane.f32.xlu0 %v1589
      %v1591 = vpop.xlane.xlu0 %1590
      %v1592 = vadd.f32 %v1534, %v1536
      %1593 = vadd.xlane.f32.xlu0 %v1592
      %v1594 = vpop.xlane.xlu0 %1593
      %v1595 = vadd.f32 %v1538, %v1540
      %1596 = vadd.xlane.f32.xlu0 %v1595
      %v1597 = vpop.xlane.xlu0 %1596
      %v1598 = vadd.f32 %v1542, %v1544
      %1599 = vadd.xlane.f32.xlu0 %v1598
      %v1600 = vpop.xlane.xlu0 %1599
      %v1601 = vadd.f32 %v1546, %v1548
      %1602 = vadd.xlane.f32.xlu0 %v1601
      %v1603 = vpop.xlane.xlu0 %1602
      %v1604 = vadd.f32 %v1550, %v1552
      %1605 = vadd.xlane.f32.xlu0 %v1604
      %v1606 = vpop.xlane.xlu0 %1605
      %v1607 = vadd.f32 %v1554, %v1556
      %1608 = vadd.xlane.f32.xlu0 %v1607
      %v1609 = vpop.xlane.xlu0 %1608
      %v1610 = vadd.f32 %v1558, %v1560
      %1611 = vadd.xlane.f32.xlu0 %v1610
      %v1612 = vpop.xlane.xlu0 %1611
      %v1613 = vadd.f32 %v1562, %v1564
      %1614 = vadd.xlane.f32.xlu0 %v1613
      %v1615 = vpop.xlane.xlu0 %1614
      %v1616 = vadd.f32 %v1566, %v1568
      %1617 = vadd.xlane.f32.xlu0 %v1616
      %v1618 = vpop.xlane.xlu0 %1617
      %v1619 = vadd.f32 %v1570, %v1572
      %1620 = vadd.xlane.f32.xlu0 %v1619
      %v1621 = vpop.xlane.xlu0 %1620
      %v1622 = vadd.f32 %v1574, %v1576
      %1623 = vadd.xlane.f32.xlu0 %v1622
      %v1624 = vpop.xlane.xlu0 %1623
      %v1625 = vrcp.pop %v1579
      %v1626 = vrcp.pop %v1582
      %v1627 = vrcp.pop %v1585
      %v1628 = vrcp.pop %v1588
      %v1629 = vrcp.pop %v1591
      %v1630 = vrcp.pop %v1594
      %v1631 = vrcp.pop %v1597
      %v1632 = vrcp.pop %v1600
      %v1633 = vrcp.pop %v1603
      %v1634 = vrcp.pop %v1606
      %v1635 = vrcp.pop %v1609
      %v1636 = vrcp.pop %v1612
      %v1637 = vrcp.pop %v1615
      %v1638 = vrcp.pop %v1618
      %v1639 = vrcp.pop %v1621
      %v1640 = vrcp.pop %v1624
      %v1641 = vmul.f32 %v1514, %v1625
      %v1642 = vmul.f32 %v1516, %v1625
      %v1643 = vmul.f32 %v1518, %v1626
      %v1644 = vmul.f32 %v1520, %v1626
      %v1645 = vmul.f32 %v1522, %v1627
      %v1646 = vmul.f32 %v1524, %v1627
      %v1647 = vmul.f32 %v1526, %v1628
      %v1648 = vmul.f32 %v1528, %v1628
      %v1649 = vmul.f32 %v1530, %v1629
      %v1650 = vmul.f32 %v1532, %v1629
      %v1651 = vmul.f32 %v1534, %v1630
      %v1652 = vmul.f32 %v1536, %v1630
      %v1653 = vmul.f32 %v1538, %v1631
      %v1654 = vmul.f32 %v1540, %v1631
      %v1655 = vmul.f32 %v1542, %v1632
      %v1656 = vmul.f32 %v1544, %v1632
      %v1657 = vmul.f32 %v1546, %v1633
      %v1658 = vmul.f32 %v1548, %v1633
      %v1659 = vmul.f32 %v1550, %v1634
      %v1660 = vmul.f32 %v1552, %v1634
      %v1661 = vmul.f32 %v1554, %v1635
      %v1662 = vmul.f32 %v1556, %v1635
      %v1663 = vmul.f32 %v1558, %v1636
      %v1664 = vmul.f32 %v1560, %v1636
      %v1665 = vmul.f32 %v1562, %v1637
      %v1666 = vmul.f32 %v1564, %v1637
      %v1667 = vmul.f32 %v1566, %v1638
      %v1668 = vmul.f32 %v1568, %v1638
      %v1669 = vmul.f32 %v1570, %v1639
      %v1670 = vmul.f32 %v1572, %v1639
      %v1671 = vmul.f32 %v1574, %v1640
      %v1672 = vmul.f32 %v1576, %v1640
      %v1673 = vpack.c.bf16 %v1643, %v1641
      %v1674 = vpack.c.bf16 %v1644, %v1642
      %v1675 = vpack.c.bf16 %v1647, %v1645
      %v1676 = vpack.c.bf16 %v1648, %v1646
      %v1677 = vpack.c.bf16 %v1651, %v1649
      %v1678 = vpack.c.bf16 %v1652, %v1650
      %v1679 = vpack.c.bf16 %v1655, %v1653
      %v1680 = vpack.c.bf16 %v1656, %v1654
      %v1681 = vpack.c.bf16 %v1659, %v1657
      %v1682 = vpack.c.bf16 %v1660, %v1658
      %v1683 = vpack.c.bf16 %v1663, %v1661
      %v1684 = vpack.c.bf16 %v1664, %v1662
      %v1685 = vpack.c.bf16 %v1667, %v1665
      %v1686 = vpack.c.bf16 %v1668, %v1666
      %v1687 = vpack.c.bf16 %v1671, %v1669
      %v1688 = vpack.c.bf16 %v1672, %v1670
      %1689 = vrot.lane.b32.xlu0 %v1071, 96
      %v1690 = vpop.permute.xlu0 %1689
      %1691 = vrot.lane.b32.xlu0 %v1072, 96
      %v1692 = vpop.permute.xlu0 %1691
      %1693 = vrot.lane.b32.xlu0 %v1073, 96
      %v1694 = vpop.permute.xlu0 %1693
      %1695 = vrot.lane.b32.xlu0 %v1074, 96
      %v1696 = vpop.permute.xlu0 %1695
      %1697 = vrot.lane.b32.xlu0 %v1075, 96
      %v1698 = vpop.permute.xlu0 %1697
      %1699 = vrot.lane.b32.xlu0 %v1076, 96
      %v1700 = vpop.permute.xlu0 %1699
      %1701 = vrot.lane.b32.xlu0 %v1077, 96
      %v1702 = vpop.permute.xlu0 %1701
      %1703 = vrot.lane.b32.xlu0 %v1078, 96
      %v1704 = vpop.permute.xlu0 %1703
      %1705 = vrot.lane.b32.xlu0 %v1079, 96
      %v1706 = vpop.permute.xlu0 %1705
      %1707 = vrot.lane.b32.xlu0 %v1080, 96
      %v1708 = vpop.permute.xlu0 %1707
      %1709 = vrot.lane.b32.xlu0 %v1081, 96
      %v1710 = vpop.permute.xlu0 %1709
      %1711 = vrot.lane.b32.xlu0 %v1082, 96
      %v1712 = vpop.permute.xlu0 %1711
      %1713 = vrot.lane.b32.xlu0 %v1083, 96
      %v1714 = vpop.permute.xlu0 %1713
      %1715 = vrot.lane.b32.xlu0 %v1084, 96
      %v1716 = vpop.permute.xlu0 %1715
      %1717 = vrot.lane.b32.xlu0 %v1085, 96
      %v1718 = vpop.permute.xlu0 %1717
      %1719 = vrot.lane.b32.xlu0 %v1086, 96
      %v1720 = vpop.permute.xlu0 %1719
      %1737 = vmatprep.subr.bf16.mxu0 0
      %1738 = vmatpush1.bf16.msra.mxu0 %v1690
      %1739 = vmatprep.subr.bf16.mxu0 0
      %1740 = vmatpush1.bf16.msra.mxu0 %v1692
      %1741 = vmatprep.subr.bf16.mxu0 0
      %1742 = vmatpush1.bf16.msra.mxu0 %v1694
      %1743 = vmatprep.subr.bf16.mxu0 0
      %1744 = vmatpush1.bf16.msra.mxu0 %v1696
      %1745 = vmatprep.subr.bf16.mxu0 0
      %1746 = vmatpush1.bf16.msra.mxu0 %v1698
      %1747 = vmatprep.subr.bf16.mxu0 0
      %1748 = vmatpush1.bf16.msra.mxu0 %v1700
      %1749 = vmatprep.subr.bf16.mxu0 0
      %1750 = vmatpush1.bf16.msra.mxu0 %v1702
      %1751 = vmatprep.subr.bf16.mxu0 0
      %1752 = vmatpush1.bf16.msra.mxu0 %v1704
      %1753 = vmatprep.subr.bf16.mxu0 0
      %1754 = vmatpush1.bf16.msra.mxu0 %v1706
      %1755 = vmatprep.subr.bf16.mxu0 0
      %1756 = vmatpush1.bf16.msra.mxu0 %v1708
      %1757 = vmatprep.subr.bf16.mxu0 0
      %1758 = vmatpush1.bf16.msra.mxu0 %v1710
      %1759 = vmatprep.subr.bf16.mxu0 0
      %1760 = vmatpush1.bf16.msra.mxu0 %v1712
      %1761 = vmatprep.subr.bf16.mxu0 0
      %1762 = vmatpush1.bf16.msra.mxu0 %v1714
      %1763 = vmatprep.subr.bf16.mxu0 0
      %1764 = vmatpush1.bf16.msra.mxu0 %v1716
      %1765 = vmatprep.subr.bf16.mxu0 0
      %1766 = vmatpush1.bf16.msra.mxu0 %v1718
      %1767 = vmatprep.subr.bf16.mxu0 0
      %1768 = vmatpush1.bf16.msra.mxu0 %v1720
      %1769 = vmatprep.mubr.bf16.mxu0 %v1674
      %1770 = vmatmul.mubr.bf16.gmra.mrb[0].mxu0 %v1673
      %v1771 = vpop.f32.mrb[0].mxu0
      %v1772 = vadd.f32 0.0, %v1771
      %v1773 = vpop.f32.mrb[0].mxu0
      %v1774 = vpop.f32.mrb[0].mxu0
      %v1775 = vadd.f32 0.0, %v1774
      %v1776 = vpop.f32.mrb[0].mxu0
      %1777 = vmatprep.mubr.bf16.mxu0 %v1676
      %1778 = vmatmul.mubr.bf16.gmra.mrb[0].mxu0 %v1675
      %v1779 = vpop.f32.mrb[0].mxu0
      %v1780 = vadd.f32 0.0, %v1779
      %v1781 = vpop.f32.mrb[0].mxu0
      %v1782 = vpop.f32.mrb[0].mxu0
      %v1783 = vadd.f32 0.0, %v1782
      %v1784 = vpop.f32.mrb[0].mxu0
      %1785 = vmatprep.mubr.bf16.mxu0 %v1678
      %1786 = vmatmul.mubr.bf16.gmra.mrb[0].mxu0 %v1677
      %v1787 = vpop.f32.mrb[0].mxu0
      %v1788 = vadd.f32 0.0, %v1787
      %v1789 = vpop.f32.mrb[0].mxu0
      %v1790 = vpop.f32.mrb[0].mxu0
      %v1791 = vadd.f32 0.0, %v1790
      %v1792 = vpop.f32.mrb[0].mxu0
      %1793 = vmatprep.mubr.bf16.mxu0 %v1680
      %1794 = vmatmul.mubr.bf16.gmra.mrb[0].mxu0 %v1679
      %v1795 = vpop.f32.mrb[0].mxu0
      %v1796 = vadd.f32 0.0, %v1795
      %v1797 = vpop.f32.mrb[0].mxu0
      %v1798 = vpop.f32.mrb[0].mxu0
      %v1799 = vadd.f32 0.0, %v1798
      %v1800 = vpop.f32.mrb[0].mxu0
      %1801 = vmatprep.mubr.bf16.mxu0 %v1682
      %1802 = vmatmul.mubr.bf16.gmra.mrb[0].mxu0 %v1681
      %v1803 = vpop.f32.mrb[0].mxu0
      %v1804 = vadd.f32 0.0, %v1803
      %v1805 = vpop.f32.mrb[0].mxu0
      %v1806 = vpop.f32.mrb[0].mxu0
      %v1807 = vadd.f32 0.0, %v1806
      %v1808 = vpop.f32.mrb[0].mxu0
      %1809 = vmatprep.mubr.bf16.mxu0 %v1684
      %1810 = vmatmul.mubr.bf16.gmra.mrb[0].mxu0 %v1683
      %v1811 = vpop.f32.mrb[0].mxu0
      %v1812 = vadd.f32 0.0, %v1811
      %v1813 = vpop.f32.mrb[0].mxu0
      %v1814 = vpop.f32.mrb[0].mxu0
      %v1815 = vadd.f32 0.0, %v1814
      %v1816 = vpop.f32.mrb[0].mxu0
      %1817 = vmatprep.mubr.bf16.mxu0 %v1686
      %1818 = vmatmul.mubr.bf16.gmra.mrb[0].mxu0 %v1685
      %v1819 = vpop.f32.mrb[0].mxu0
      %v1820 = vadd.f32 0.0, %v1819
      %v1821 = vpop.f32.mrb[0].mxu0
      %v1822 = vpop.f32.mrb[0].mxu0
      %v1823 = vadd.f32 0.0, %v1822
      %v1824 = vpop.f32.mrb[0].mxu0
      %1825 = vmatprep.mubr.bf16.mxu0 %v1688
      %1826 = vmatmul.mubr.bf16.gmra.mrb[0].mxu0 %v1687
      %v1827 = vpop.f32.mrb[0].mxu0
      %v1828 = vadd.f32 0.0, %v1827
      %v1829 = vpop.f32.mrb[0].mxu0
      %v1830 = vpop.f32.mrb[0].mxu0
      %v1831 = vadd.f32 0.0, %v1830
      %v1832 = vpop.f32.mrb[0].mxu0
      %1833 = vdwg.mxu0
      %1834 = vrot.lane.b32.xlu0 %v477, 64
      %v1835 = vpop.permute.xlu0 %1834
      %1836 = vrot.lane.b32.xlu0 %v478, 64
      %v1837 = vpop.permute.xlu0 %1836
      %1838 = vrot.lane.b32.xlu0 %v479, 64
      %v1839 = vpop.permute.xlu0 %1838
      %1840 = vrot.lane.b32.xlu0 %v480, 64
      %v1841 = vpop.permute.xlu0 %1840
      %1842 = vrot.lane.b32.xlu0 %v481, 64
      %v1843 = vpop.permute.xlu0 %1842
      %1844 = vrot.lane.b32.xlu0 %v482, 64
      %v1845 = vpop.permute.xlu0 %1844
      %1846 = vrot.lane.b32.xlu0 %v483, 64
      %v1847 = vpop.permute.xlu0 %1846
      %1848 = vrot.lane.b32.xlu0 %v484, 64
      %v1849 = vpop.permute.xlu0 %1848
      %1850 = vrot.lane.b32.xlu0 %v549, 64
      %v1851 = vpop.permute.xlu0 %1850
      %1852 = vrot.lane.b32.xlu0 %v550, 64
      %v1853 = vpop.permute.xlu0 %1852
      %1854 = vrot.lane.b32.xlu0 %v551, 64
      %v1855 = vpop.permute.xlu0 %1854
      %1856 = vrot.lane.b32.xlu0 %v552, 64
      %v1857 = vpop.permute.xlu0 %1856
      %1858 = vrot.lane.b32.xlu0 %v553, 64
      %v1859 = vpop.permute.xlu0 %1858
      %1860 = vrot.lane.b32.xlu0 %v554, 64
      %v1861 = vpop.permute.xlu0 %1860
      %1862 = vrot.lane.b32.xlu0 %v555, 64
      %v1863 = vpop.permute.xlu0 %1862
      %1864 = vrot.lane.b32.xlu0 %v556, 64
      %v1865 = vpop.permute.xlu0 %1864
      %1866 = vrot.lane.b32.xlu0 %v557, 64
      %v1867 = vpop.permute.xlu0 %1866
      %1868 = vrot.lane.b32.xlu0 %v558, 64
      %v1869 = vpop.permute.xlu0 %1868
      %1870 = vrot.lane.b32.xlu0 %v559, 64
      %v1871 = vpop.permute.xlu0 %1870
      %1872 = vrot.lane.b32.xlu0 %v560, 64
      %v1873 = vpop.permute.xlu0 %1872
      %1874 = vrot.lane.b32.xlu0 %v561, 64
      %v1875 = vpop.permute.xlu0 %1874
      %1876 = vrot.lane.b32.xlu0 %v562, 64
      %v1877 = vpop.permute.xlu0 %1876
      %1878 = vrot.lane.b32.xlu0 %v563, 64
      %v1879 = vpop.permute.xlu0 %1878
      %1880 = vrot.lane.b32.xlu0 %v564, 64
      %v1881 = vpop.permute.xlu0 %1880
      %v1883 = vsel %vm565, %v1835, 0
      %v1886 = vsel %vm565, %v1837, 0
      %v1889 = vsel %vm565, %v1839, 0
      %v1892 = vsel %vm565, %v1841, 0
      %v1895 = vsel %vm565, %v1843, 0
      %v1898 = vsel %vm565, %v1845, 0
      %v1901 = vsel %vm565, %v1847, 0
      %v1904 = vsel %vm565, %v1849, 0
      %v1907 = vsel %vm565, %v1851, 0
      %v1910 = vsel %vm565, %v1853, 0
      %v1913 = vsel %vm565, %v1855, 0
      %v1916 = vsel %vm565, %v1857, 0
      %v1919 = vsel %vm565, %v1859, 0
      %v1922 = vsel %vm565, %v1861, 0
      %v1925 = vsel %vm565, %v1863, 0
      %v1928 = vsel %vm565, %v1865, 0
      %v1931 = vsel %vm565, %v1867, 0
      %v1934 = vsel %vm565, %v1869, 0
      %v1937 = vsel %vm565, %v1871, 0
      %v1940 = vsel %vm565, %v1873, 0
      %v1943 = vsel %vm565, %v1875, 0
      %v1946 = vsel %vm565, %v1877, 0
      %v1949 = vsel %vm565, %v1879, 0
      %v1952 = vsel %vm565, %v1881, 0
      %1954 = vmatprep.subr.bf16.mxu0 0
      %1955 = vmatpush1.bf16.xpose.msra.mxu0 %v1907
      %1956 = vmatprep.subr.bf16.mxu0 0
      %1957 = vmatpush1.bf16.xpose.msra.mxu0 %v1910
      %1958 = vmatprep.subr.bf16.mxu0 0
      %1959 = vmatpush1.bf16.xpose.msra.mxu0 %v1913
      %1960 = vmatprep.subr.bf16.mxu0 0
      %1961 = vmatpush1.bf16.xpose.msra.mxu0 %v1916
      %1962 = vmatprep.subr.bf16.mxu0 0
      %1963 = vmatpush1.bf16.xpose.msra.mxu0 %v1919
      %1964 = vmatprep.subr.bf16.mxu0 0
      %1965 = vmatpush1.bf16.xpose.msra.mxu0 %v1922
      %1966 = vmatprep.subr.bf16.mxu0 0
      %1967 = vmatpush1.bf16.xpose.msra.mxu0 %v1925
      %1968 = vmatprep.subr.bf16.mxu0 0
      %1969 = vmatpush1.bf16.xpose.msra.mxu0 %v1928
      %1970 = vmatprep.subr.bf16.mxu0 0
      %1971 = vmatpush1.bf16.xpose.msra.mxu0 %v1931
      %1972 = vmatprep.subr.bf16.mxu0 0
      %1973 = vmatpush1.bf16.xpose.msra.mxu0 %v1934
      %1974 = vmatprep.subr.bf16.mxu0 0
      %1975 = vmatpush1.bf16.xpose.msra.mxu0 %v1937
      %1976 = vmatprep.subr.bf16.mxu0 0
      %1977 = vmatpush1.bf16.xpose.msra.mxu0 %v1940
      %1978 = vmatprep.subr.bf16.mxu0 0
      %1979 = vmatpush1.bf16.xpose.msra.mxu0 %v1943
      %1980 = vmatprep.subr.bf16.mxu0 0
      %1981 = vmatpush1.bf16.xpose.msra.mxu0 %v1946
      %1982 = vmatprep.subr.bf16.mxu0 0
      %1983 = vmatpush1.bf16.xpose.msra.mxu0 %v1949
      %1984 = vmatprep.subr.bf16.mxu0 0
      %1985 = vmatpush1.bf16.xpose.msra.mxu0 %v1952
      %1986 = vmatprep.mubr.bf16.mxu0 0
      %1987 = vmatmul.mubr.bf16.gmra.mrb[0].mxu0 %v1883
      %v1988 = vpop.f32.mrb[0].mxu0
      %v1989 = vadd.f32 %v413, %v1988
      %v1990 = vpop.f32.mrb[0].mxu0
      %v1991 = vadd.f32 %v414, %v1990
      %v1992 = vpop.f32.mrb[0].mxu0
      %v1993 = vadd.f32 %v415, %v1992
      %v1994 = vpop.f32.mrb[0].mxu0
      %v1995 = vadd.f32 %v416, %v1994
      %1996 = vmatprep.mubr.bf16.mxu0 0
      %1997 = vmatmul.mubr.bf16.gmra.mrb[0].mxu0 %v1886
      %v1998 = vpop.f32.mrb[0].mxu0
      %v1999 = vadd.f32 %v417, %v1998
      %v2000 = vpop.f32.mrb[0].mxu0
      %v2001 = vadd.f32 %v418, %v2000
      %v2002 = vpop.f32.mrb[0].mxu0
      %v2003 = vadd.f32 %v419, %v2002
      %v2004 = vpop.f32.mrb[0].mxu0
      %v2005 = vadd.f32 %v420, %v2004
      %2006 = vmatprep.mubr.bf16.mxu0 0
      %2007 = vmatmul.mubr.bf16.gmra.mrb[0].mxu0 %v1889
      %v2008 = vpop.f32.mrb[0].mxu0
      %v2009 = vadd.f32 %v421, %v2008
      %v2010 = vpop.f32.mrb[0].mxu0
      %v2011 = vadd.f32 %v422, %v2010
      %v2012 = vpop.f32.mrb[0].mxu0
      %v2013 = vadd.f32 %v423, %v2012
      %v2014 = vpop.f32.mrb[0].mxu0
      %v2015 = vadd.f32 %v424, %v2014
      %2016 = vmatprep.mubr.bf16.mxu0 0
      %2017 = vmatmul.mubr.bf16.gmra.mrb[0].mxu0 %v1892
      %v2018 = vpop.f32.mrb[0].mxu0
      %v2019 = vadd.f32 %v425, %v2018
      %v2020 = vpop.f32.mrb[0].mxu0
      %v2021 = vadd.f32 %v426, %v2020
      %v2022 = vpop.f32.mrb[0].mxu0
      %v2023 = vadd.f32 %v427, %v2022
      %v2024 = vpop.f32.mrb[0].mxu0
      %v2025 = vadd.f32 %v428, %v2024
      %2026 = vmatprep.mubr.bf16.mxu0 0
      %2027 = vmatmul.mubr.bf16.gmra.mrb[0].mxu0 %v1895
      %v2028 = vpop.f32.mrb[0].mxu0
      %v2029 = vadd.f32 %v429, %v2028
      %v2030 = vpop.f32.mrb[0].mxu0
      %v2031 = vadd.f32 %v430, %v2030
      %v2032 = vpop.f32.mrb[0].mxu0
      %v2033 = vadd.f32 %v431, %v2032
      %v2034 = vpop.f32.mrb[0].mxu0
      %v2035 = vadd.f32 %v432, %v2034
      %2036 = vmatprep.mubr.bf16.mxu0 0
      %2037 = vmatmul.mubr.bf16.gmra.mrb[0].mxu0 %v1898
      %v2038 = vpop.f32.mrb[0].mxu0
      %v2039 = vadd.f32 %v433, %v2038
      %v2040 = vpop.f32.mrb[0].mxu0
      %v2041 = vadd.f32 %v434, %v2040
      %v2042 = vpop.f32.mrb[0].mxu0
      %v2043 = vadd.f32 %v435, %v2042
      %v2044 = vpop.f32.mrb[0].mxu0
      %v2045 = vadd.f32 %v436, %v2044
      %2046 = vmatprep.mubr.bf16.mxu0 0
      %2047 = vmatmul.mubr.bf16.gmra.mrb[0].mxu0 %v1901
      %v2048 = vpop.f32.mrb[0].mxu0
      %v2049 = vadd.f32 %v437, %v2048
      %v2050 = vpop.f32.mrb[0].mxu0
      %v2051 = vadd.f32 %v438, %v2050
      %v2052 = vpop.f32.mrb[0].mxu0
      %v2053 = vadd.f32 %v439, %v2052
      %v2054 = vpop.f32.mrb[0].mxu0
      %v2055 = vadd.f32 %v440, %v2054
      %2056 = vmatprep.mubr.bf16.mxu0 0
      %2057 = vmatmul.mubr.bf16.gmra.mrb[0].mxu0 %v1904
      %v2058 = vpop.f32.mrb[0].mxu0
      %v2059 = vadd.f32 %v441, %v2058
      %v2060 = vpop.f32.mrb[0].mxu0
      %v2061 = vadd.f32 %v442, %v2060
      %v2062 = vpop.f32.mrb[0].mxu0
      %v2063 = vadd.f32 %v443, %v2062
      %v2064 = vpop.f32.mrb[0].mxu0
      %v2065 = vadd.f32 %v444, %v2064
      %2066 = vdwg.mxu0
      %v2067 = vmax.f32 %v1989, %v1991
      %2068 = vmax.xlane.f32.xlu0 %v2067
      %v2069 = vpop.xlane.xlu0 %2068
      %v2070 = vmax.f32 %v1993, %v1995
      %2071 = vmax.xlane.f32.xlu0 %v2070
      %v2072 = vpop.xlane.xlu0 %2071
      %v2073 = vmax.f32 %v1999, %v2001
      %2074 = vmax.xlane.f32.xlu0 %v2073
      %v2075 = vpop.xlane.xlu0 %2074
      %v2076 = vmax.f32 %v2003, %v2005
      %2077 = vmax.xlane.f32.xlu0 %v2076
      %v2078 = vpop.xlane.xlu0 %2077
      %v2079 = vmax.f32 %v2009, %v2011
      %2080 = vmax.xlane.f32.xlu0 %v2079
      %v2081 = vpop.xlane.xlu0 %2080
      %v2082 = vmax.f32 %v2013, %v2015
      %2083 = vmax.xlane.f32.xlu0 %v2082
      %v2084 = vpop.xlane.xlu0 %2083
      %v2085 = vmax.f32 %v2019, %v2021
      %2086 = vmax.xlane.f32.xlu0 %v2085
      %v2087 = vpop.xlane.xlu0 %2086
      %v2088 = vmax.f32 %v2023, %v2025
      %2089 = vmax.xlane.f32.xlu0 %v2088
      %v2090 = vpop.xlane.xlu0 %2089
      %v2091 = vmax.f32 %v2029, %v2031
      %2092 = vmax.xlane.f32.xlu0 %v2091
      %v2093 = vpop.xlane.xlu0 %2092
      %v2094 = vmax.f32 %v2033, %v2035
      %2095 = vmax.xlane.f32.xlu0 %v2094
      %v2096 = vpop.xlane.xlu0 %2095
      %v2097 = vmax.f32 %v2039, %v2041
      %2098 = vmax.xlane.f32.xlu0 %v2097
      %v2099 = vpop.xlane.xlu0 %2098
      %v2100 = vmax.f32 %v2043, %v2045
      %2101 = vmax.xlane.f32.xlu0 %v2100
      %v2102 = vpop.xlane.xlu0 %2101
      %v2103 = vmax.f32 %v2049, %v2051
      %2104 = vmax.xlane.f32.xlu0 %v2103
      %v2105 = vpop.xlane.xlu0 %2104
      %v2106 = vmax.f32 %v2053, %v2055
      %2107 = vmax.xlane.f32.xlu0 %v2106
      %v2108 = vpop.xlane.xlu0 %2107
      %v2109 = vmax.f32 %v2059, %v2061
      %2110 = vmax.xlane.f32.xlu0 %v2109
      %v2111 = vpop.xlane.xlu0 %2110
      %v2112 = vmax.f32 %v2063, %v2065
      %2113 = vmax.xlane.f32.xlu0 %v2112
      %v2114 = vpop.xlane.xlu0 %2113
      %v2115 = vsub.f32 %v1989, %v2069
      %v2116 = vsub.f32 %v1991, %v2069
      %v2117 = vsub.f32 %v1993, %v2072
      %v2118 = vsub.f32 %v1995, %v2072
      %v2119 = vsub.f32 %v1999, %v2075
      %v2120 = vsub.f32 %v2001, %v2075
      %v2121 = vsub.f32 %v2003, %v2078
      %v2122 = vsub.f32 %v2005, %v2078
      %v2123 = vsub.f32 %v2009, %v2081
      %v2124 = vsub.f32 %v2011, %v2081
      %v2125 = vsub.f32 %v2013, %v2084
      %v2126 = vsub.f32 %v2015, %v2084
      %v2127 = vsub.f32 %v2019, %v2087
      %v2128 = vsub.f32 %v2021, %v2087
      %v2129 = vsub.f32 %v2023, %v2090
      %v2130 = vsub.f32 %v2025, %v2090
      %v2131 = vsub.f32 %v2029, %v2093
      %v2132 = vsub.f32 %v2031, %v2093
      %v2133 = vsub.f32 %v2033, %v2096
      %v2134 = vsub.f32 %v2035, %v2096
      %v2135 = vsub.f32 %v2039, %v2099
      %v2136 = vsub.f32 %v2041, %v2099
      %v2137 = vsub.f32 %v2043, %v2102
      %v2138 = vsub.f32 %v2045, %v2102
      %v2139 = vsub.f32 %v2049, %v2105
      %v2140 = vsub.f32 %v2051, %v2105
      %v2141 = vsub.f32 %v2053, %v2108
      %v2142 = vsub.f32 %v2055, %v2108
      %v2143 = vsub.f32 %v2059, %v2111
      %v2144 = vsub.f32 %v2061, %v2111
      %v2145 = vsub.f32 %v2063, %v2114
      %v2146 = vsub.f32 %v2065, %v2114
      %v2147 = vmul.f32 %v2115, 1.442695
      %v2148 = vpow.pop %v2147
      %v2149 = vmul.f32 %v2116, 1.442695
      %v2150 = vpow.pop %v2149
      %v2151 = vmul.f32 %v2117, 1.442695
      %v2152 = vpow.pop %v2151
      %v2153 = vmul.f32 %v2118, 1.442695
      %v2154 = vpow.pop %v2153
      %v2155 = vmul.f32 %v2119, 1.442695
      %v2156 = vpow.pop %v2155
      %v2157 = vmul.f32 %v2120, 1.442695
      %v2158 = vpow.pop %v2157
      %v2159 = vmul.f32 %v2121, 1.442695
      %v2160 = vpow.pop %v2159
      %v2161 = vmul.f32 %v2122, 1.442695
      %v2162 = vpow.pop %v2161
      %v2163 = vmul.f32 %v2123, 1.442695
      %v2164 = vpow.pop %v2163
      %v2165 = vmul.f32 %v2124, 1.442695
      %v2166 = vpow.pop %v2165
      %v2167 = vmul.f32 %v2125, 1.442695
      %v2168 = vpow.pop %v2167
      %v2169 = vmul.f32 %v2126, 1.442695
      %v2170 = vpow.pop %v2169
      %v2171 = vmul.f32 %v2127, 1.442695
      %v2172 = vpow.pop %v2171
      %v2173 = vmul.f32 %v2128, 1.442695
      %v2174 = vpow.pop %v2173
      %v2175 = vmul.f32 %v2129, 1.442695
      %v2176 = vpow.pop %v2175
      %v2177 = vmul.f32 %v2130, 1.442695
      %v2178 = vpow.pop %v2177
      %v2179 = vmul.f32 %v2131, 1.442695
      %v2180 = vpow.pop %v2179
      %v2181 = vmul.f32 %v2132, 1.442695
      %v2182 = vpow.pop %v2181
      %v2183 = vmul.f32 %v2133, 1.442695
      %v2184 = vpow.pop %v2183
      %v2185 = vmul.f32 %v2134, 1.442695
      %v2186 = vpow.pop %v2185
      %v2187 = vmul.f32 %v2135, 1.442695
      %v2188 = vpow.pop %v2187
      %v2189 = vmul.f32 %v2136, 1.442695
      %v2190 = vpow.pop %v2189
      %v2191 = vmul.f32 %v2137, 1.442695
      %v2192 = vpow.pop %v2191
      %v2193 = vmul.f32 %v2138, 1.442695
      %v2194 = vpow.pop %v2193
      %v2195 = vmul.f32 %v2139, 1.442695
      %v2196 = vpow.pop %v2195
      %v2197 = vmul.f32 %v2140, 1.442695
      %v2198 = vpow.pop %v2197
      %v2199 = vmul.f32 %v2141, 1.442695
      %v2200 = vpow.pop %v2199
      %v2201 = vmul.f32 %v2142, 1.442695
      %v2202 = vpow.pop %v2201
      %v2203 = vmul.f32 %v2143, 1.442695
      %v2204 = vpow.pop %v2203
      %v2205 = vmul.f32 %v2144, 1.442695
      %v2206 = vpow.pop %v2205
      %v2207 = vmul.f32 %v2145, 1.442695
      %v2208 = vpow.pop %v2207
      %v2209 = vmul.f32 %v2146, 1.442695
      %v2210 = vpow.pop %v2209
      %v2211 = vadd.f32 %v2148, %v2150
      %2212 = vadd.xlane.f32.xlu0 %v2211
      %v2213 = vpop.xlane.xlu0 %2212
      %v2214 = vadd.f32 %v2152, %v2154
      %2215 = vadd.xlane.f32.xlu0 %v2214
      %v2216 = vpop.xlane.xlu0 %2215
      %v2217 = vadd.f32 %v2156, %v2158
      %2218 = vadd.xlane.f32.xlu0 %v2217
      %v2219 = vpop.xlane.xlu0 %2218
      %v2220 = vadd.f32 %v2160, %v2162
      %2221 = vadd.xlane.f32.xlu0 %v2220
      %v2222 = vpop.xlane.xlu0 %2221
      %v2223 = vadd.f32 %v2164, %v2166
      %2224 = vadd.xlane.f32.xlu0 %v2223
      %v2225 = vpop.xlane.xlu0 %2224
      %v2226 = vadd.f32 %v2168, %v2170
      %2227 = vadd.xlane.f32.xlu0 %v2226
      %v2228 = vpop.xlane.xlu0 %2227
      %v2229 = vadd.f32 %v2172, %v2174
      %2230 = vadd.xlane.f32.xlu0 %v2229
      %v2231 = vpop.xlane.xlu0 %2230
      %v2232 = vadd.f32 %v2176, %v2178
      %2233 = vadd.xlane.f32.xlu0 %v2232
      %v2234 = vpop.xlane.xlu0 %2233
      %v2235 = vadd.f32 %v2180, %v2182
      %2236 = vadd.xlane.f32.xlu0 %v2235
      %v2237 = vpop.xlane.xlu0 %2236
      %v2238 = vadd.f32 %v2184, %v2186
      %2239 = vadd.xlane.f32.xlu0 %v2238
      %v2240 = vpop.xlane.xlu0 %2239
      %v2241 = vadd.f32 %v2188, %v2190
      %2242 = vadd.xlane.f32.xlu0 %v2241
      %v2243 = vpop.xlane.xlu0 %2242
      %v2244 = vadd.f32 %v2192, %v2194
      %2245 = vadd.xlane.f32.xlu0 %v2244
      %v2246 = vpop.xlane.xlu0 %2245
      %v2247 = vadd.f32 %v2196, %v2198
      %2248 = vadd.xlane.f32.xlu0 %v2247
      %v2249 = vpop.xlane.xlu0 %2248
      %v2250 = vadd.f32 %v2200, %v2202
      %2251 = vadd.xlane.f32.xlu0 %v2250
      %v2252 = vpop.xlane.xlu0 %2251
      %v2253 = vadd.f32 %v2204, %v2206
      %2254 = vadd.xlane.f32.xlu0 %v2253
      %v2255 = vpop.xlane.xlu0 %2254
      %v2256 = vadd.f32 %v2208, %v2210
      %2257 = vadd.xlane.f32.xlu0 %v2256
      %v2258 = vpop.xlane.xlu0 %2257
      %v2259 = vrcp.pop %v2213
      %v2260 = vrcp.pop %v2216
      %v2261 = vrcp.pop %v2219
      %v2262 = vrcp.pop %v2222
      %v2263 = vrcp.pop %v2225
      %v2264 = vrcp.pop %v2228
      %v2265 = vrcp.pop %v2231
      %v2266 = vrcp.pop %v2234
      %v2267 = vrcp.pop %v2237
      %v2268 = vrcp.pop %v2240
      %v2269 = vrcp.pop %v2243
      %v2270 = vrcp.pop %v2246
      %v2271 = vrcp.pop %v2249
      %v2272 = vrcp.pop %v2252
      %v2273 = vrcp.pop %v2255
      %v2274 = vrcp.pop %v2258
      %v2275 = vmul.f32 %v2148, %v2259
      %v2276 = vmul.f32 %v2150, %v2259
      %v2277 = vmul.f32 %v2152, %v2260
      %v2278 = vmul.f32 %v2154, %v2260
      %v2279 = vmul.f32 %v2156, %v2261
      %v2280 = vmul.f32 %v2158, %v2261
      %v2281 = vmul.f32 %v2160, %v2262
      %v2282 = vmul.f32 %v2162, %v2262
      %v2283 = vmul.f32 %v2164, %v2263
      %v2284 = vmul.f32 %v2166, %v2263
      %v2285 = vmul.f32 %v2168, %v2264
      %v2286 = vmul.f32 %v2170, %v2264
      %v2287 = vmul.f32 %v2172, %v2265
      %v2288 = vmul.f32 %v2174, %v2265
      %v2289 = vmul.f32 %v2176, %v2266
      %v2290 = vmul.f32 %v2178, %v2266
      %v2291 = vmul.f32 %v2180, %v2267
      %v2292 = vmul.f32 %v2182, %v2267
      %v2293 = vmul.f32 %v2184, %v2268
      %v2294 = vmul.f32 %v2186, %v2268
      %v2295 = vmul.f32 %v2188, %v2269
      %v2296 = vmul.f32 %v2190, %v2269
      %v2297 = vmul.f32 %v2192, %v2270
      %v2298 = vmul.f32 %v2194, %v2270
      %v2299 = vmul.f32 %v2196, %v2271
      %v2300 = vmul.f32 %v2198, %v2271
      %v2301 = vmul.f32 %v2200, %v2272
      %v2302 = vmul.f32 %v2202, %v2272
      %v2303 = vmul.f32 %v2204, %v2273
      %v2304 = vmul.f32 %v2206, %v2273
      %v2305 = vmul.f32 %v2208, %v2274
      %v2306 = vmul.f32 %v2210, %v2274
      %v2307 = vpack.c.bf16 %v2277, %v2275
      %v2308 = vpack.c.bf16 %v2278, %v2276
      %v2309 = vpack.c.bf16 %v2281, %v2279
      %v2310 = vpack.c.bf16 %v2282, %v2280
      %v2311 = vpack.c.bf16 %v2285, %v2283
      %v2312 = vpack.c.bf16 %v2286, %v2284
      %v2313 = vpack.c.bf16 %v2289, %v2287
      %v2314 = vpack.c.bf16 %v2290, %v2288
      %v2315 = vpack.c.bf16 %v2293, %v2291
      %v2316 = vpack.c.bf16 %v2294, %v2292
      %v2317 = vpack.c.bf16 %v2297, %v2295
      %v2318 = vpack.c.bf16 %v2298, %v2296
      %v2319 = vpack.c.bf16 %v2301, %v2299
      %v2320 = vpack.c.bf16 %v2302, %v2300
      %v2321 = vpack.c.bf16 %v2305, %v2303
      %v2322 = vpack.c.bf16 %v2306, %v2304
      %2323 = vrot.lane.b32.xlu0 %v1071, 64
      %v2324 = vpop.permute.xlu0 %2323
      %2325 = vrot.lane.b32.xlu0 %v1072, 64
      %v2326 = vpop.permute.xlu0 %2325
      %2327 = vrot.lane.b32.xlu0 %v1073, 64
      %v2328 = vpop.permute.xlu0 %2327
      %2329 = vrot.lane.b32.xlu0 %v1074, 64
      %v2330 = vpop.permute.xlu0 %2329
      %2331 = vrot.lane.b32.xlu0 %v1075, 64
      %v2332 = vpop.permute.xlu0 %2331
      %2333 = vrot.lane.b32.xlu0 %v1076, 64
      %v2334 = vpop.permute.xlu0 %2333
      %2335 = vrot.lane.b32.xlu0 %v1077, 64
      %v2336 = vpop.permute.xlu0 %2335
      %2337 = vrot.lane.b32.xlu0 %v1078, 64
      %v2338 = vpop.permute.xlu0 %2337
      %2339 = vrot.lane.b32.xlu0 %v1079, 64
      %v2340 = vpop.permute.xlu0 %2339
      %2341 = vrot.lane.b32.xlu0 %v1080, 64
      %v2342 = vpop.permute.xlu0 %2341
      %2343 = vrot.lane.b32.xlu0 %v1081, 64
      %v2344 = vpop.permute.xlu0 %2343
      %2345 = vrot.lane.b32.xlu0 %v1082, 64
      %v2346 = vpop.permute.xlu0 %2345
      %2347 = vrot.lane.b32.xlu0 %v1083, 64
      %v2348 = vpop.permute.xlu0 %2347
      %2349 = vrot.lane.b32.xlu0 %v1084, 64
      %v2350 = vpop.permute.xlu0 %2349
      %2351 = vrot.lane.b32.xlu0 %v1085, 64
      %v2352 = vpop.permute.xlu0 %2351
      %2353 = vrot.lane.b32.xlu0 %v1086, 64
      %v2354 = vpop.permute.xlu0 %2353
      %2371 = vmatprep.subr.bf16.mxu0 0
      %2372 = vmatpush1.bf16.msra.mxu0 %v2324
      %2373 = vmatprep.subr.bf16.mxu0 0
      %2374 = vmatpush1.bf16.msra.mxu0 %v2326
      %2375 = vmatprep.subr.bf16.mxu0 0
      %2376 = vmatpush1.bf16.msra.mxu0 %v2328
      %2377 = vmatprep.subr.bf16.mxu0 0
      %2378 = vmatpush1.bf16.msra.mxu0 %v2330
      %2379 = vmatprep.subr.bf16.mxu0 0
      %2380 = vmatpush1.bf16.msra.mxu0 %v2332
      %2381 = vmatprep.subr.bf16.mxu0 0
      %2382 = vmatpush1.bf16.msra.mxu0 %v2334
      %2383 = vmatprep.subr.bf16.mxu0 0
      %2384 = vmatpush1.bf16.msra.mxu0 %v2336
      %2385 = vmatprep.subr.bf16.mxu0 0
      %2386 = vmatpush1.bf16.msra.mxu0 %v2338
      %2387 = vmatprep.subr.bf16.mxu0 0
      %2388 = vmatpush1.bf16.msra.mxu0 %v2340
      %2389 = vmatprep.subr.bf16.mxu0 0
      %2390 = vmatpush1.bf16.msra.mxu0 %v2342
      %2391 = vmatprep.subr.bf16.mxu0 0
      %2392 = vmatpush1.bf16.msra.mxu0 %v2344
      %2393 = vmatprep.subr.bf16.mxu0 0
      %2394 = vmatpush1.bf16.msra.mxu0 %v2346
      %2395 = vmatprep.subr.bf16.mxu0 0
      %2396 = vmatpush1.bf16.msra.mxu0 %v2348
      %2397 = vmatprep.subr.bf16.mxu0 0
      %2398 = vmatpush1.bf16.msra.mxu0 %v2350
      %2399 = vmatprep.subr.bf16.mxu0 0
      %2400 = vmatpush1.bf16.msra.mxu0 %v2352
      %2401 = vmatprep.subr.bf16.mxu0 0
      %2402 = vmatpush1.bf16.msra.mxu0 %v2354
      %2403 = vmatprep.mubr.bf16.mxu0 %v2308
      %2404 = vmatmul.mubr.bf16.gmra.mrb[0].mxu0 %v2307
      %v2405 = vpop.f32.mrb[0].mxu0
      %v2406 = vadd.f32 0.0, %v2405
      %v2407 = vpop.f32.mrb[0].mxu0
      %v2408 = vpop.f32.mrb[0].mxu0
      %v2409 = vadd.f32 0.0, %v2408
      %v2410 = vpop.f32.mrb[0].mxu0
      %2411 = vmatprep.mubr.bf16.mxu0 %v2310
      %2412 = vmatmul.mubr.bf16.gmra.mrb[0].mxu0 %v2309
      %v2413 = vpop.f32.mrb[0].mxu0
      %v2414 = vadd.f32 0.0, %v2413
      %v2415 = vpop.f32.mrb[0].mxu0
      %v2416 = vpop.f32.mrb[0].mxu0
      %v2417 = vadd.f32 0.0, %v2416
      %v2418 = vpop.f32.mrb[0].mxu0
      %2419 = vmatprep.mubr.bf16.mxu0 %v2312
      %2420 = vmatmul.mubr.bf16.gmra.mrb[0].mxu0 %v2311
      %v2421 = vpop.f32.mrb[0].mxu0
      %v2422 = vadd.f32 0.0, %v2421
      %v2423 = vpop.f32.mrb[0].mxu0
      %v2424 = vpop.f32.mrb[0].mxu0
      %v2425 = vadd.f32 0.0, %v2424
      %v2426 = vpop.f32.mrb[0].mxu0
      %2427 = vmatprep.mubr.bf16.mxu0 %v2314
      %2428 = vmatmul.mubr.bf16.gmra.mrb[0].mxu0 %v2313
      %v2429 = vpop.f32.mrb[0].mxu0
      %v2430 = vadd.f32 0.0, %v2429
      %v2431 = vpop.f32.mrb[0].mxu0
      %v2432 = vpop.f32.mrb[0].mxu0
      %v2433 = vadd.f32 0.0, %v2432
      %v2434 = vpop.f32.mrb[0].mxu0
      %2435 = vmatprep.mubr.bf16.mxu0 %v2316
      %2436 = vmatmul.mubr.bf16.gmra.mrb[0].mxu0 %v2315
      %v2437 = vpop.f32.mrb[0].mxu0
      %v2438 = vadd.f32 0.0, %v2437
      %v2439 = vpop.f32.mrb[0].mxu0
      %v2440 = vpop.f32.mrb[0].mxu0
      %v2441 = vadd.f32 0.0, %v2440
      %v2442 = vpop.f32.mrb[0].mxu0
      %2443 = vmatprep.mubr.bf16.mxu0 %v2318
      %2444 = vmatmul.mubr.bf16.gmra.mrb[0].mxu0 %v2317
      %v2445 = vpop.f32.mrb[0].mxu0
      %v2446 = vadd.f32 0.0, %v2445
      %v2447 = vpop.f32.mrb[0].mxu0
      %v2448 = vpop.f32.mrb[0].mxu0
      %v2449 = vadd.f32 0.0, %v2448
      %v2450 = vpop.f32.mrb[0].mxu0
      %2451 = vmatprep.mubr.bf16.mxu0 %v2320
      %2452 = vmatmul.mubr.bf16.gmra.mrb[0].mxu0 %v2319
      %v2453 = vpop.f32.mrb[0].mxu0
      %v2454 = vadd.f32 0.0, %v2453
      %v2455 = vpop.f32.mrb[0].mxu0
      %v2456 = vpop.f32.mrb[0].mxu0
      %v2457 = vadd.f32 0.0, %v2456
      %v2458 = vpop.f32.mrb[0].mxu0
      %2459 = vmatprep.mubr.bf16.mxu0 %v2322
      %2460 = vmatmul.mubr.bf16.gmra.mrb[0].mxu0 %v2321
      %v2461 = vpop.f32.mrb[0].mxu0
      %v2462 = vadd.f32 0.0, %v2461
      %v2463 = vpop.f32.mrb[0].mxu0
      %v2464 = vpop.f32.mrb[0].mxu0
      %v2465 = vadd.f32 0.0, %v2464
      %v2466 = vpop.f32.mrb[0].mxu0
      %2467 = vdwg.mxu0
      %2468 = vrot.lane.b32.xlu0 %v477, 32
      %v2469 = vpop.permute.xlu0 %2468
      %2470 = vrot.lane.b32.xlu0 %v478, 32
      %v2471 = vpop.permute.xlu0 %2470
      %2472 = vrot.lane.b32.xlu0 %v479, 32
      %v2473 = vpop.permute.xlu0 %2472
      %2474 = vrot.lane.b32.xlu0 %v480, 32
      %v2475 = vpop.permute.xlu0 %2474
      %2476 = vrot.lane.b32.xlu0 %v481, 32
      %v2477 = vpop.permute.xlu0 %2476
      %2478 = vrot.lane.b32.xlu0 %v482, 32
      %v2479 = vpop.permute.xlu0 %2478
      %2480 = vrot.lane.b32.xlu0 %v483, 32
      %v2481 = vpop.permute.xlu0 %2480
      %2482 = vrot.lane.b32.xlu0 %v484, 32
      %v2483 = vpop.permute.xlu0 %2482
      %2484 = vrot.lane.b32.xlu0 %v549, 32
      %v2485 = vpop.permute.xlu0 %2484
      %2486 = vrot.lane.b32.xlu0 %v550, 32
      %v2487 = vpop.permute.xlu0 %2486
      %2488 = vrot.lane.b32.xlu0 %v551, 32
      %v2489 = vpop.permute.xlu0 %2488
      %2490 = vrot.lane.b32.xlu0 %v552, 32
      %v2491 = vpop.permute.xlu0 %2490
      %2492 = vrot.lane.b32.xlu0 %v553, 32
      %v2493 = vpop.permute.xlu0 %2492
      %2494 = vrot.lane.b32.xlu0 %v554, 32
      %v2495 = vpop.permute.xlu0 %2494
      %2496 = vrot.lane.b32.xlu0 %v555, 32
      %v2497 = vpop.permute.xlu0 %2496
      %2498 = vrot.lane.b32.xlu0 %v556, 32
      %v2499 = vpop.permute.xlu0 %2498
      %2500 = vrot.lane.b32.xlu0 %v557, 32
      %v2501 = vpop.permute.xlu0 %2500
      %2502 = vrot.lane.b32.xlu0 %v558, 32
      %v2503 = vpop.permute.xlu0 %2502
      %2504 = vrot.lane.b32.xlu0 %v559, 32
      %v2505 = vpop.permute.xlu0 %2504
      %2506 = vrot.lane.b32.xlu0 %v560, 32
      %v2507 = vpop.permute.xlu0 %2506
      %2508 = vrot.lane.b32.xlu0 %v561, 32
      %v2509 = vpop.permute.xlu0 %2508
      %2510 = vrot.lane.b32.xlu0 %v562, 32
      %v2511 = vpop.permute.xlu0 %2510
      %2512 = vrot.lane.b32.xlu0 %v563, 32
      %v2513 = vpop.permute.xlu0 %2512
      %2514 = vrot.lane.b32.xlu0 %v564, 32
      %v2515 = vpop.permute.xlu0 %2514
      %v2517 = vsel %vm565, %v2469, 0
      %v2520 = vsel %vm565, %v2471, 0
      %v2523 = vsel %vm565, %v2473, 0
      %v2526 = vsel %vm565, %v2475, 0
      %v2529 = vsel %vm565, %v2477, 0
      %v2532 = vsel %vm565, %v2479, 0
      %v2535 = vsel %vm565, %v2481, 0
      %v2538 = vsel %vm565, %v2483, 0
      %v2541 = vsel %vm565, %v2485, 0
      %v2544 = vsel %vm565, %v2487, 0
      %v2547 = vsel %vm565, %v2489, 0
      %v2550 = vsel %vm565, %v2491, 0
      %v2553 = vsel %vm565, %v2493, 0
      %v2556 = vsel %vm565, %v2495, 0
      %v2559 = vsel %vm565, %v2497, 0
      %v2562 = vsel %vm565, %v2499, 0
      %v2565 = vsel %vm565, %v2501, 0
      %v2568 = vsel %vm565, %v2503, 0
      %v2571 = vsel %vm565, %v2505, 0
      %v2574 = vsel %vm565, %v2507, 0
      %v2577 = vsel %vm565, %v2509, 0
      %v2580 = vsel %vm565, %v2511, 0
      %v2583 = vsel %vm565, %v2513, 0
      %v2586 = vsel %vm565, %v2515, 0
      %2588 = vmatprep.subr.bf16.mxu0 0
      %2589 = vmatpush1.bf16.xpose.msra.mxu0 %v2541
      %2590 = vmatprep.subr.bf16.mxu0 0
      %2591 = vmatpush1.bf16.xpose.msra.mxu0 %v2544
      %2592 = vmatprep.subr.bf16.mxu0 0
      %2593 = vmatpush1.bf16.xpose.msra.mxu0 %v2547
      %2594 = vmatprep.subr.bf16.mxu0 0
      %2595 = vmatpush1.bf16.xpose.msra.mxu0 %v2550
      %2596 = vmatprep.subr.bf16.mxu0 0
      %2597 = vmatpush1.bf16.xpose.msra.mxu0 %v2553
      %2598 = vmatprep.subr.bf16.mxu0 0
      %2599 = vmatpush1.bf16.xpose.msra.mxu0 %v2556
      %2600 = vmatprep.subr.bf16.mxu0 0
      %2601 = vmatpush1.bf16.xpose.msra.mxu0 %v2559
      %2602 = vmatprep.subr.bf16.mxu0 0
      %2603 = vmatpush1.bf16.xpose.msra.mxu0 %v2562
      %2604 = vmatprep.subr.bf16.mxu0 0
      %2605 = vmatpush1.bf16.xpose.msra.mxu0 %v2565
      %2606 = vmatprep.subr.bf16.mxu0 0
      %2607 = vmatpush1.bf16.xpose.msra.mxu0 %v2568
      %2608 = vmatprep.subr.bf16.mxu0 0
      %2609 = vmatpush1.bf16.xpose.msra.mxu0 %v2571
      %2610 = vmatprep.subr.bf16.mxu0 0
      %2611 = vmatpush1.bf16.xpose.msra.mxu0 %v2574
      %2612 = vmatprep.subr.bf16.mxu0 0
      %2613 = vmatpush1.bf16.xpose.msra.mxu0 %v2577
      %2614 = vmatprep.subr.bf16.mxu0 0
      %2615 = vmatpush1.bf16.xpose.msra.mxu0 %v2580
      %2616 = vmatprep.subr.bf16.mxu0 0
      %2617 = vmatpush1.bf16.xpose.msra.mxu0 %v2583
      %2618 = vmatprep.subr.bf16.mxu0 0
      %2619 = vmatpush1.bf16.xpose.msra.mxu0 %v2586
      %2620 = vmatprep.mubr.bf16.mxu0 0
      %2621 = vmatmul.mubr.bf16.gmra.mrb[0].mxu0 %v2517
      %v2622 = vpop.f32.mrb[0].mxu0
      %v2623 = vadd.f32 %v413, %v2622
      %v2624 = vpop.f32.mrb[0].mxu0
      %v2625 = vadd.f32 %v414, %v2624
      %v2626 = vpop.f32.mrb[0].mxu0
      %v2627 = vadd.f32 %v415, %v2626
      %v2628 = vpop.f32.mrb[0].mxu0
      %v2629 = vadd.f32 %v416, %v2628
      %2630 = vmatprep.mubr.bf16.mxu0 0
      %2631 = vmatmul.mubr.bf16.gmra.mrb[0].mxu0 %v2520
      %v2632 = vpop.f32.mrb[0].mxu0
      %v2633 = vadd.f32 %v417, %v2632
      %v2634 = vpop.f32.mrb[0].mxu0
      %v2635 = vadd.f32 %v418, %v2634
      %v2636 = vpop.f32.mrb[0].mxu0
      %v2637 = vadd.f32 %v419, %v2636
      %v2638 = vpop.f32.mrb[0].mxu0
      %v2639 = vadd.f32 %v420, %v2638
      %2640 = vmatprep.mubr.bf16.mxu0 0
      %2641 = vmatmul.mubr.bf16.gmra.mrb[0].mxu0 %v2523
      %v2642 = vpop.f32.mrb[0].mxu0
      %v2643 = vadd.f32 %v421, %v2642
      %v2644 = vpop.f32.mrb[0].mxu0
      %v2645 = vadd.f32 %v422, %v2644
      %v2646 = vpop.f32.mrb[0].mxu0
      %v2647 = vadd.f32 %v423, %v2646
      %v2648 = vpop.f32.mrb[0].mxu0
      %v2649 = vadd.f32 %v424, %v2648
      %2650 = vmatprep.mubr.bf16.mxu0 0
      %2651 = vmatmul.mubr.bf16.gmra.mrb[0].mxu0 %v2526
      %v2652 = vpop.f32.mrb[0].mxu0
      %v2653 = vadd.f32 %v425, %v2652
      %v2654 = vpop.f32.mrb[0].mxu0
      %v2655 = vadd.f32 %v426, %v2654
      %v2656 = vpop.f32.mrb[0].mxu0
      %v2657 = vadd.f32 %v427, %v2656
      %v2658 = vpop.f32.mrb[0].mxu0
      %v2659 = vadd.f32 %v428, %v2658
      %2660 = vmatprep.mubr.bf16.mxu0 0
      %2661 = vmatmul.mubr.bf16.gmra.mrb[0].mxu0 %v2529
      %v2662 = vpop.f32.mrb[0].mxu0
      %v2663 = vadd.f32 %v429, %v2662
      %v2664 = vpop.f32.mrb[0].mxu0
      %v2665 = vadd.f32 %v430, %v2664
      %v2666 = vpop.f32.mrb[0].mxu0
      %v2667 = vadd.f32 %v431, %v2666
      %v2668 = vpop.f32.mrb[0].mxu0
      %v2669 = vadd.f32 %v432, %v2668
      %2670 = vmatprep.mubr.bf16.mxu0 0
      %2671 = vmatmul.mubr.bf16.gmra.mrb[0].mxu0 %v2532
      %v2672 = vpop.f32.mrb[0].mxu0
      %v2673 = vadd.f32 %v433, %v2672
      %v2674 = vpop.f32.mrb[0].mxu0
      %v2675 = vadd.f32 %v434, %v2674
      %v2676 = vpop.f32.mrb[0].mxu0
      %v2677 = vadd.f32 %v435, %v2676
      %v2678 = vpop.f32.mrb[0].mxu0
      %v2679 = vadd.f32 %v436, %v2678
      %2680 = vmatprep.mubr.bf16.mxu0 0
      %2681 = vmatmul.mubr.bf16.gmra.mrb[0].mxu0 %v2535
      %v2682 = vpop.f32.mrb[0].mxu0
      %v2683 = vadd.f32 %v437, %v2682
      %v2684 = vpop.f32.mrb[0].mxu0
      %v2685 = vadd.f32 %v438, %v2684
      %v2686 = vpop.f32.mrb[0].mxu0
      %v2687 = vadd.f32 %v439, %v2686
      %v2688 = vpop.f32.mrb[0].mxu0
      %v2689 = vadd.f32 %v440, %v2688
      %2690 = vmatprep.mubr.bf16.mxu0 0
      %2691 = vmatmul.mubr.bf16.gmra.mrb[0].mxu0 %v2538
      %v2692 = vpop.f32.mrb[0].mxu0
      %v2693 = vadd.f32 %v441, %v2692
      %v2694 = vpop.f32.mrb[0].mxu0
      %v2695 = vadd.f32 %v442, %v2694
      %v2696 = vpop.f32.mrb[0].mxu0
      %v2697 = vadd.f32 %v443, %v2696
      %v2698 = vpop.f32.mrb[0].mxu0
      %v2699 = vadd.f32 %v444, %v2698
      %2700 = vdwg.mxu0
      %v2701 = vmax.f32 %v2623, %v2625
      %2702 = vmax.xlane.f32.xlu0 %v2701
      %v2703 = vpop.xlane.xlu0 %2702
      %v2704 = vmax.f32 %v2627, %v2629
      %2705 = vmax.xlane.f32.xlu0 %v2704
      %v2706 = vpop.xlane.xlu0 %2705
      %v2707 = vmax.f32 %v2633, %v2635
      %2708 = vmax.xlane.f32.xlu0 %v2707
      %v2709 = vpop.xlane.xlu0 %2708
      %v2710 = vmax.f32 %v2637, %v2639
      %2711 = vmax.xlane.f32.xlu0 %v2710
      %v2712 = vpop.xlane.xlu0 %2711
      %v2713 = vmax.f32 %v2643, %v2645
      %2714 = vmax.xlane.f32.xlu0 %v2713
      %v2715 = vpop.xlane.xlu0 %2714
      %v2716 = vmax.f32 %v2647, %v2649
      %2717 = vmax.xlane.f32.xlu0 %v2716
      %v2718 = vpop.xlane.xlu0 %2717
      %v2719 = vmax.f32 %v2653, %v2655
      %2720 = vmax.xlane.f32.xlu0 %v2719
      %v2721 = vpop.xlane.xlu0 %2720
      %v2722 = vmax.f32 %v2657, %v2659
      %2723 = vmax.xlane.f32.xlu0 %v2722
      %v2724 = vpop.xlane.xlu0 %2723
      %v2725 = vmax.f32 %v2663, %v2665
      %2726 = vmax.xlane.f32.xlu0 %v2725
      %v2727 = vpop.xlane.xlu0 %2726
      %v2728 = vmax.f32 %v2667, %v2669
      %2729 = vmax.xlane.f32.xlu0 %v2728
      %v2730 = vpop.xlane.xlu0 %2729
      %v2731 = vmax.f32 %v2673, %v2675
      %2732 = vmax.xlane.f32.xlu0 %v2731
      %v2733 = vpop.xlane.xlu0 %2732
      %v2734 = vmax.f32 %v2677, %v2679
      %2735 = vmax.xlane.f32.xlu0 %v2734
      %v2736 = vpop.xlane.xlu0 %2735
      %v2737 = vmax.f32 %v2683, %v2685
      %2738 = vmax.xlane.f32.xlu0 %v2737
      %v2739 = vpop.xlane.xlu0 %2738
      %v2740 = vmax.f32 %v2687, %v2689
      %2741 = vmax.xlane.f32.xlu0 %v2740
      %v2742 = vpop.xlane.xlu0 %2741
      %v2743 = vmax.f32 %v2693, %v2695
      %2744 = vmax.xlane.f32.xlu0 %v2743
      %v2745 = vpop.xlane.xlu0 %2744
      %v2746 = vmax.f32 %v2697, %v2699
      %2747 = vmax.xlane.f32.xlu0 %v2746
      %v2748 = vpop.xlane.xlu0 %2747
      %v2749 = vsub.f32 %v2623, %v2703
      %v2750 = vsub.f32 %v2625, %v2703
      %v2751 = vsub.f32 %v2627, %v2706
      %v2752 = vsub.f32 %v2629, %v2706
      %v2753 = vsub.f32 %v2633, %v2709
      %v2754 = vsub.f32 %v2635, %v2709
      %v2755 = vsub.f32 %v2637, %v2712
      %v2756 = vsub.f32 %v2639, %v2712
      %v2757 = vsub.f32 %v2643, %v2715
      %v2758 = vsub.f32 %v2645, %v2715
      %v2759 = vsub.f32 %v2647, %v2718
      %v2760 = vsub.f32 %v2649, %v2718
      %v2761 = vsub.f32 %v2653, %v2721
      %v2762 = vsub.f32 %v2655, %v2721
      %v2763 = vsub.f32 %v2657, %v2724
      %v2764 = vsub.f32 %v2659, %v2724
      %v2765 = vsub.f32 %v2663, %v2727
      %v2766 = vsub.f32 %v2665, %v2727
      %v2767 = vsub.f32 %v2667, %v2730
      %v2768 = vsub.f32 %v2669, %v2730
      %v2769 = vsub.f32 %v2673, %v2733
      %v2770 = vsub.f32 %v2675, %v2733
      %v2771 = vsub.f32 %v2677, %v2736
      %v2772 = vsub.f32 %v2679, %v2736
      %v2773 = vsub.f32 %v2683, %v2739
      %v2774 = vsub.f32 %v2685, %v2739
      %v2775 = vsub.f32 %v2687, %v2742
      %v2776 = vsub.f32 %v2689, %v2742
      %v2777 = vsub.f32 %v2693, %v2745
      %v2778 = vsub.f32 %v2695, %v2745
      %v2779 = vsub.f32 %v2697, %v2748
      %v2780 = vsub.f32 %v2699, %v2748
      %v2781 = vmul.f32 %v2749, 1.442695
      %v2782 = vpow.pop %v2781
      %v2783 = vmul.f32 %v2750, 1.442695
      %v2784 = vpow.pop %v2783
      %v2785 = vmul.f32 %v2751, 1.442695
      %v2786 = vpow.pop %v2785
      %v2787 = vmul.f32 %v2752, 1.442695
      %v2788 = vpow.pop %v2787
      %v2789 = vmul.f32 %v2753, 1.442695
      %v2790 = vpow.pop %v2789
      %v2791 = vmul.f32 %v2754, 1.442695
      %v2792 = vpow.pop %v2791
      %v2793 = vmul.f32 %v2755, 1.442695
      %v2794 = vpow.pop %v2793
      %v2795 = vmul.f32 %v2756, 1.442695
      %v2796 = vpow.pop %v2795
      %v2797 = vmul.f32 %v2757, 1.442695
      %v2798 = vpow.pop %v2797
      %v2799 = vmul.f32 %v2758, 1.442695
      %v2800 = vpow.pop %v2799
      %v2801 = vmul.f32 %v2759, 1.442695
      %v2802 = vpow.pop %v2801
      %v2803 = vmul.f32 %v2760, 1.442695
      %v2804 = vpow.pop %v2803
      %v2805 = vmul.f32 %v2761, 1.442695
      %v2806 = vpow.pop %v2805
      %v2807 = vmul.f32 %v2762, 1.442695
      %v2808 = vpow.pop %v2807
      %v2809 = vmul.f32 %v2763, 1.442695
      %v2810 = vpow.pop %v2809
      %v2811 = vmul.f32 %v2764, 1.442695
      %v2812 = vpow.pop %v2811
      %v2813 = vmul.f32 %v2765, 1.442695
      %v2814 = vpow.pop %v2813
      %v2815 = vmul.f32 %v2766, 1.442695
      %v2816 = vpow.pop %v2815
      %v2817 = vmul.f32 %v2767, 1.442695
      %v2818 = vpow.pop %v2817
      %v2819 = vmul.f32 %v2768, 1.442695
      %v2820 = vpow.pop %v2819
      %v2821 = vmul.f32 %v2769, 1.442695
      %v2822 = vpow.pop %v2821
      %v2823 = vmul.f32 %v2770, 1.442695
      %v2824 = vpow.pop %v2823
      %v2825 = vmul.f32 %v2771, 1.442695
      %v2826 = vpow.pop %v2825
      %v2827 = vmul.f32 %v2772, 1.442695
      %v2828 = vpow.pop %v2827
      %v2829 = vmul.f32 %v2773, 1.442695
      %v2830 = vpow.pop %v2829
      %v2831 = vmul.f32 %v2774, 1.442695
      %v2832 = vpow.pop %v2831
      %v2833 = vmul.f32 %v2775, 1.442695
      %v2834 = vpow.pop %v2833
      %v2835 = vmul.f32 %v2776, 1.442695
      %v2836 = vpow.pop %v2835
      %v2837 = vmul.f32 %v2777, 1.442695
      %v2838 = vpow.pop %v2837
      %v2839 = vmul.f32 %v2778, 1.442695
      %v2840 = vpow.pop %v2839
      %v2841 = vmul.f32 %v2779, 1.442695
      %v2842 = vpow.pop %v2841
      %v2843 = vmul.f32 %v2780, 1.442695
      %v2844 = vpow.pop %v2843
      %v2845 = vadd.f32 %v2782, %v2784
      %2846 = vadd.xlane.f32.xlu0 %v2845
      %v2847 = vpop.xlane.xlu0 %2846
      %v2848 = vadd.f32 %v2786, %v2788
      %2849 = vadd.xlane.f32.xlu0 %v2848
      %v2850 = vpop.xlane.xlu0 %2849
      %v2851 = vadd.f32 %v2790, %v2792
      %2852 = vadd.xlane.f32.xlu0 %v2851
      %v2853 = vpop.xlane.xlu0 %2852
      %v2854 = vadd.f32 %v2794, %v2796
      %2855 = vadd.xlane.f32.xlu0 %v2854
      %v2856 = vpop.xlane.xlu0 %2855
      %v2857 = vadd.f32 %v2798, %v2800
      %2858 = vadd.xlane.f32.xlu0 %v2857
      %v2859 = vpop.xlane.xlu0 %2858
      %v2860 = vadd.f32 %v2802, %v2804
      %2861 = vadd.xlane.f32.xlu0 %v2860
      %v2862 = vpop.xlane.xlu0 %2861
      %v2863 = vadd.f32 %v2806, %v2808
      %2864 = vadd.xlane.f32.xlu0 %v2863
      %v2865 = vpop.xlane.xlu0 %2864
      %v2866 = vadd.f32 %v2810, %v2812
      %2867 = vadd.xlane.f32.xlu0 %v2866
      %v2868 = vpop.xlane.xlu0 %2867
      %v2869 = vadd.f32 %v2814, %v2816
      %2870 = vadd.xlane.f32.xlu0 %v2869
      %v2871 = vpop.xlane.xlu0 %2870
      %v2872 = vadd.f32 %v2818, %v2820
      %2873 = vadd.xlane.f32.xlu0 %v2872
      %v2874 = vpop.xlane.xlu0 %2873
      %v2875 = vadd.f32 %v2822, %v2824
      %2876 = vadd.xlane.f32.xlu0 %v2875
      %v2877 = vpop.xlane.xlu0 %2876
      %v2878 = vadd.f32 %v2826, %v2828
      %2879 = vadd.xlane.f32.xlu0 %v2878
      %v2880 = vpop.xlane.xlu0 %2879
      %v2881 = vadd.f32 %v2830, %v2832
      %2882 = vadd.xlane.f32.xlu0 %v2881
      %v2883 = vpop.xlane.xlu0 %2882
      %v2884 = vadd.f32 %v2834, %v2836
      %2885 = vadd.xlane.f32.xlu0 %v2884
      %v2886 = vpop.xlane.xlu0 %2885
      %v2887 = vadd.f32 %v2838, %v2840
      %2888 = vadd.xlane.f32.xlu0 %v2887
      %v2889 = vpop.xlane.xlu0 %2888
      %v2890 = vadd.f32 %v2842, %v2844
      %2891 = vadd.xlane.f32.xlu0 %v2890
      %v2892 = vpop.xlane.xlu0 %2891
      %v2893 = vrcp.pop %v2847
      %v2894 = vrcp.pop %v2850
      %v2895 = vrcp.pop %v2853
      %v2896 = vrcp.pop %v2856
      %v2897 = vrcp.pop %v2859
      %v2898 = vrcp.pop %v2862
      %v2899 = vrcp.pop %v2865
      %v2900 = vrcp.pop %v2868
      %v2901 = vrcp.pop %v2871
      %v2902 = vrcp.pop %v2874
      %v2903 = vrcp.pop %v2877
      %v2904 = vrcp.pop %v2880
      %v2905 = vrcp.pop %v2883
      %v2906 = vrcp.pop %v2886
      %v2907 = vrcp.pop %v2889
      %v2908 = vrcp.pop %v2892
      %v2909 = vmul.f32 %v2782, %v2893
      %v2910 = vmul.f32 %v2784, %v2893
      %v2911 = vmul.f32 %v2786, %v2894
      %v2912 = vmul.f32 %v2788, %v2894
      %v2913 = vmul.f32 %v2790, %v2895
      %v2914 = vmul.f32 %v2792, %v2895
      %v2915 = vmul.f32 %v2794, %v2896
      %v2916 = vmul.f32 %v2796, %v2896
      %v2917 = vmul.f32 %v2798, %v2897
      %v2918 = vmul.f32 %v2800, %v2897
      %v2919 = vmul.f32 %v2802, %v2898
      %v2920 = vmul.f32 %v2804, %v2898
      %v2921 = vmul.f32 %v2806, %v2899
      %v2922 = vmul.f32 %v2808, %v2899
      %v2923 = vmul.f32 %v2810, %v2900
      %v2924 = vmul.f32 %v2812, %v2900
      %v2925 = vmul.f32 %v2814, %v2901
      %v2926 = vmul.f32 %v2816, %v2901
      %v2927 = vmul.f32 %v2818, %v2902
      %v2928 = vmul.f32 %v2820, %v2902
      %v2929 = vmul.f32 %v2822, %v2903
      %v2930 = vmul.f32 %v2824, %v2903
      %v2931 = vmul.f32 %v2826, %v2904
      %v2932 = vmul.f32 %v2828, %v2904
      %v2933 = vmul.f32 %v2830, %v2905
      %v2934 = vmul.f32 %v2832, %v2905
      %v2935 = vmul.f32 %v2834, %v2906
      %v2936 = vmul.f32 %v2836, %v2906
      %v2937 = vmul.f32 %v2838, %v2907
      %v2938 = vmul.f32 %v2840, %v2907
      %v2939 = vmul.f32 %v2842, %v2908
      %v2940 = vmul.f32 %v2844, %v2908
      %v2941 = vpack.c.bf16 %v2911, %v2909
      %v2942 = vpack.c.bf16 %v2912, %v2910
      %v2943 = vpack.c.bf16 %v2915, %v2913
      %v2944 = vpack.c.bf16 %v2916, %v2914
      %v2945 = vpack.c.bf16 %v2919, %v2917
      %v2946 = vpack.c.bf16 %v2920, %v2918
      %v2947 = vpack.c.bf16 %v2923, %v2921
      %v2948 = vpack.c.bf16 %v2924, %v2922
      %v2949 = vpack.c.bf16 %v2927, %v2925
      %v2950 = vpack.c.bf16 %v2928, %v2926
      %v2951 = vpack.c.bf16 %v2931, %v2929
      %v2952 = vpack.c.bf16 %v2932, %v2930
      %v2953 = vpack.c.bf16 %v2935, %v2933
      %v2954 = vpack.c.bf16 %v2936, %v2934
      %v2955 = vpack.c.bf16 %v2939, %v2937
      %v2956 = vpack.c.bf16 %v2940, %v2938
      %2957 = vrot.lane.b32.xlu0 %v1071, 32
      %v2958 = vpop.permute.xlu0 %2957
      %2959 = vrot.lane.b32.xlu0 %v1072, 32
      %v2960 = vpop.permute.xlu0 %2959
      %2961 = vrot.lane.b32.xlu0 %v1073, 32
      %v2962 = vpop.permute.xlu0 %2961
      %2963 = vrot.lane.b32.xlu0 %v1074, 32
      %v2964 = vpop.permute.xlu0 %2963
      %2965 = vrot.lane.b32.xlu0 %v1075, 32
      %v2966 = vpop.permute.xlu0 %2965
      %2967 = vrot.lane.b32.xlu0 %v1076, 32
      %v2968 = vpop.permute.xlu0 %2967
      %2969 = vrot.lane.b32.xlu0 %v1077, 32
      %v2970 = vpop.permute.xlu0 %2969
      %2971 = vrot.lane.b32.xlu0 %v1078, 32
      %v2972 = vpop.permute.xlu0 %2971
      %2973 = vrot.lane.b32.xlu0 %v1079, 32
      %v2974 = vpop.permute.xlu0 %2973
      %2975 = vrot.lane.b32.xlu0 %v1080, 32
      %v2976 = vpop.permute.xlu0 %2975
      %2977 = vrot.lane.b32.xlu0 %v1081, 32
      %v2978 = vpop.permute.xlu0 %2977
      %2979 = vrot.lane.b32.xlu0 %v1082, 32
      %v2980 = vpop.permute.xlu0 %2979
      %2981 = vrot.lane.b32.xlu0 %v1083, 32
      %v2982 = vpop.permute.xlu0 %2981
      %2983 = vrot.lane.b32.xlu0 %v1084, 32
      %v2984 = vpop.permute.xlu0 %2983
      %2985 = vrot.lane.b32.xlu0 %v1085, 32
      %v2986 = vpop.permute.xlu0 %2985
      %2987 = vrot.lane.b32.xlu0 %v1086, 32
      %v2988 = vpop.permute.xlu0 %2987
      %3005 = vmatprep.subr.bf16.mxu0 0
      %3006 = vmatpush1.bf16.msra.mxu0 %v2958
      %3007 = vmatprep.subr.bf16.mxu0 0
      %3008 = vmatpush1.bf16.msra.mxu0 %v2960
      %3009 = vmatprep.subr.bf16.mxu0 0
      %3010 = vmatpush1.bf16.msra.mxu0 %v2962
      %3011 = vmatprep.subr.bf16.mxu0 0
      %3012 = vmatpush1.bf16.msra.mxu0 %v2964
      %3013 = vmatprep.subr.bf16.mxu0 0
      %3014 = vmatpush1.bf16.msra.mxu0 %v2966
      %3015 = vmatprep.subr.bf16.mxu0 0
      %3016 = vmatpush1.bf16.msra.mxu0 %v2968
      %3017 = vmatprep.subr.bf16.mxu0 0
      %3018 = vmatpush1.bf16.msra.mxu0 %v2970
      %3019 = vmatprep.subr.bf16.mxu0 0
      %3020 = vmatpush1.bf16.msra.mxu0 %v2972
      %3021 = vmatprep.subr.bf16.mxu0 0
      %3022 = vmatpush1.bf16.msra.mxu0 %v2974
      %3023 = vmatprep.subr.bf16.mxu0 0
      %3024 = vmatpush1.bf16.msra.mxu0 %v2976
      %3025 = vmatprep.subr.bf16.mxu0 0
      %3026 = vmatpush1.bf16.msra.mxu0 %v2978
      %3027 = vmatprep.subr.bf16.mxu0 0
      %3028 = vmatpush1.bf16.msra.mxu0 %v2980
      %3029 = vmatprep.subr.bf16.mxu0 0
      %3030 = vmatpush1.bf16.msra.mxu0 %v2982
      %3031 = vmatprep.subr.bf16.mxu0 0
      %3032 = vmatpush1.bf16.msra.mxu0 %v2984
      %3033 = vmatprep.subr.bf16.mxu0 0
      %3034 = vmatpush1.bf16.msra.mxu0 %v2986
      %3035 = vmatprep.subr.bf16.mxu0 0
      %3036 = vmatpush1.bf16.msra.mxu0 %v2988
      %3037 = vmatprep.mubr.bf16.mxu0 %v2942
      %3038 = vmatmul.mubr.bf16.gmra.mrb[0].mxu0 %v2941
      %v3039 = vpop.f32.mrb[0].mxu0
      %v3040 = vadd.f32 0.0, %v3039
      %v3041 = vpop.f32.mrb[0].mxu0
      %v3042 = vpop.f32.mrb[0].mxu0
      %v3043 = vadd.f32 0.0, %v3042
      %v3044 = vpop.f32.mrb[0].mxu0
      %3045 = vmatprep.mubr.bf16.mxu0 %v2944
      %3046 = vmatmul.mubr.bf16.gmra.mrb[0].mxu0 %v2943
      %v3047 = vpop.f32.mrb[0].mxu0
      %v3048 = vadd.f32 0.0, %v3047
      %v3049 = vpop.f32.mrb[0].mxu0
      %v3050 = vpop.f32.mrb[0].mxu0
      %v3051 = vadd.f32 0.0, %v3050
      %v3052 = vpop.f32.mrb[0].mxu0
      %3053 = vmatprep.mubr.bf16.mxu0 %v2946
      %3054 = vmatmul.mubr.bf16.gmra.mrb[0].mxu0 %v2945
      %v3055 = vpop.f32.mrb[0].mxu0
      %v3056 = vadd.f32 0.0, %v3055
      %v3057 = vpop.f32.mrb[0].mxu0
      %v3058 = vpop.f32.mrb[0].mxu0
      %v3059 = vadd.f32 0.0, %v3058
      %v3060 = vpop.f32.mrb[0].mxu0
      %3061 = vmatprep.mubr.bf16.mxu0 %v2948
      %3062 = vmatmul.mubr.bf16.gmra.mrb[0].mxu0 %v2947
      %v3063 = vpop.f32.mrb[0].mxu0
      %v3064 = vadd.f32 0.0, %v3063
      %v3065 = vpop.f32.mrb[0].mxu0
      %v3066 = vpop.f32.mrb[0].mxu0
      %v3067 = vadd.f32 0.0, %v3066
      %v3068 = vpop.f32.mrb[0].mxu0
      %3069 = vmatprep.mubr.bf16.mxu0 %v2950
      %3070 = vmatmul.mubr.bf16.gmra.mrb[0].mxu0 %v2949
      %v3071 = vpop.f32.mrb[0].mxu0
      %v3072 = vadd.f32 0.0, %v3071
      %v3073 = vpop.f32.mrb[0].mxu0
      %v3074 = vpop.f32.mrb[0].mxu0
      %v3075 = vadd.f32 0.0, %v3074
      %v3076 = vpop.f32.mrb[0].mxu0
      %3077 = vmatprep.mubr.bf16.mxu0 %v2952
      %3078 = vmatmul.mubr.bf16.gmra.mrb[0].mxu0 %v2951
      %v3079 = vpop.f32.mrb[0].mxu0
      %v3080 = vadd.f32 0.0, %v3079
      %v3081 = vpop.f32.mrb[0].mxu0
      %v3082 = vpop.f32.mrb[0].mxu0
      %v3083 = vadd.f32 0.0, %v3082
      %v3084 = vpop.f32.mrb[0].mxu0
      %3085 = vmatprep.mubr.bf16.mxu0 %v2954
      %3086 = vmatmul.mubr.bf16.gmra.mrb[0].mxu0 %v2953
      %v3087 = vpop.f32.mrb[0].mxu0
      %v3088 = vadd.f32 0.0, %v3087
      %v3089 = vpop.f32.mrb[0].mxu0
      %v3090 = vpop.f32.mrb[0].mxu0
      %v3091 = vadd.f32 0.0, %v3090
      %v3092 = vpop.f32.mrb[0].mxu0
      %3093 = vmatprep.mubr.bf16.mxu0 %v2956
      %3094 = vmatmul.mubr.bf16.gmra.mrb[0].mxu0 %v2955
      %v3095 = vpop.f32.mrb[0].mxu0
      %v3096 = vadd.f32 0.0, %v3095
      %v3097 = vpop.f32.mrb[0].mxu0
      %v3098 = vpop.f32.mrb[0].mxu0
      %v3099 = vadd.f32 0.0, %v3098
      %v3100 = vpop.f32.mrb[0].mxu0
      %3101 = vdwg.mxu0
      %3118 = vrot.lane.b32.xlu0 %v1772, 32
      %v3119 = vpop.permute.xlu0 %3118
      %3120 = vrot.lane.b32.xlu0 %v1775, 32
      %v3121 = vpop.permute.xlu0 %3120
      %3122 = vrot.lane.b32.xlu0 %v1780, 32
      %v3123 = vpop.permute.xlu0 %3122
      %3124 = vrot.lane.b32.xlu0 %v1783, 32
      %v3125 = vpop.permute.xlu0 %3124
      %3126 = vrot.lane.b32.xlu0 %v1788, 32
      %v3127 = vpop.permute.xlu0 %3126
      %3128 = vrot.lane.b32.xlu0 %v1791, 32
      %v3129 = vpop.permute.xlu0 %3128
      %3130 = vrot.lane.b32.xlu0 %v1796, 32
      %v3131 = vpop.permute.xlu0 %3130
      %3132 = vrot.lane.b32.xlu0 %v1799, 32
      %v3133 = vpop.permute.xlu0 %3132
      %3134 = vrot.lane.b32.xlu0 %v1804, 32
      %v3135 = vpop.permute.xlu0 %3134
      %3136 = vrot.lane.b32.xlu0 %v1807, 32
      %v3137 = vpop.permute.xlu0 %3136
      %3138 = vrot.lane.b32.xlu0 %v1812, 32
      %v3139 = vpop.permute.xlu0 %3138
      %3140 = vrot.lane.b32.xlu0 %v1815, 32
      %v3141 = vpop.permute.xlu0 %3140
      %3142 = vrot.lane.b32.xlu0 %v1820, 32
      %v3143 = vpop.permute.xlu0 %3142
      %3144 = vrot.lane.b32.xlu0 %v1823, 32
      %v3145 = vpop.permute.xlu0 %3144
      %3146 = vrot.lane.b32.xlu0 %v1828, 32
      %v3147 = vpop.permute.xlu0 %3146
      %3148 = vrot.lane.b32.xlu0 %v1831, 32
      %v3149 = vpop.permute.xlu0 %3148
      %3182 = vrot.lane.b32.xlu0 %v2406, 64
      %v3183 = vpop.permute.xlu0 %3182
      %3184 = vrot.lane.b32.xlu0 %v2409, 64
      %v3185 = vpop.permute.xlu0 %3184
      %3186 = vrot.lane.b32.xlu0 %v2414, 64
      %v3187 = vpop.permute.xlu0 %3186
      %3188 = vrot.lane.b32.xlu0 %v2417, 64
      %v3189 = vpop.permute.xlu0 %3188
      %3190 = vrot.lane.b32.xlu0 %v2422, 64
      %v3191 = vpop.permute.xlu0 %3190
      %3192 = vrot.lane.b32.xlu0 %v2425, 64
      %v3193 = vpop.permute.xlu0 %3192
      %3194 = vrot.lane.b32.xlu0 %v2430, 64
      %v3195 = vpop.permute.xlu0 %3194
      %3196 = vrot.lane.b32.xlu0 %v2433, 64
      %v3197 = vpop.permute.xlu0 %3196
      %3198 = vrot.lane.b32.xlu0 %v2438, 64
      %v3199 = vpop.permute.xlu0 %3198
      %3200 = vrot.lane.b32.xlu0 %v2441, 64
      %v3201 = vpop.permute.xlu0 %3200
      %3202 = vrot.lane.b32.xlu0 %v2446, 64
      %v3203 = vpop.permute.xlu0 %3202
      %3204 = vrot.lane.b32.xlu0 %v2449, 64
      %v3205 = vpop.permute.xlu0 %3204
      %3206 = vrot.lane.b32.xlu0 %v2454, 64
      %v3207 = vpop.permute.xlu0 %3206
      %3208 = vrot.lane.b32.xlu0 %v2457, 64
      %v3209 = vpop.permute.xlu0 %3208
      %3210 = vrot.lane.b32.xlu0 %v2462, 64
      %v3211 = vpop.permute.xlu0 %3210
      %3212 = vrot.lane.b32.xlu0 %v2465, 64
      %v3213 = vpop.permute.xlu0 %3212
      %3246 = vrot.lane.b32.xlu0 %v3040, 96
      %v3247 = vpop.permute.xlu0 %3246
      %3248 = vrot.lane.b32.xlu0 %v3043, 96
      %v3249 = vpop.permute.xlu0 %3248
      %3250 = vrot.lane.b32.xlu0 %v3048, 96
      %v3251 = vpop.permute.xlu0 %3250
      %3252 = vrot.lane.b32.xlu0 %v3051, 96
      %v3253 = vpop.permute.xlu0 %3252
      %3254 = vrot.lane.b32.xlu0 %v3056, 96
      %v3255 = vpop.permute.xlu0 %3254
      %3256 = vrot.lane.b32.xlu0 %v3059, 96
      %v3257 = vpop.permute.xlu0 %3256
      %3258 = vrot.lane.b32.xlu0 %v3064, 96
      %v3259 = vpop.permute.xlu0 %3258
      %3260 = vrot.lane.b32.xlu0 %v3067, 96
      %v3261 = vpop.permute.xlu0 %3260
      %3262 = vrot.lane.b32.xlu0 %v3072, 96
      %v3263 = vpop.permute.xlu0 %3262
      %3264 = vrot.lane.b32.xlu0 %v3075, 96
      %v3265 = vpop.permute.xlu0 %3264
      %3266 = vrot.lane.b32.xlu0 %v3080, 96
      %v3267 = vpop.permute.xlu0 %3266
      %3268 = vrot.lane.b32.xlu0 %v3083, 96
      %v3269 = vpop.permute.xlu0 %3268
      %3270 = vrot.lane.b32.xlu0 %v3088, 96
      %v3271 = vpop.permute.xlu0 %3270
      %3272 = vrot.lane.b32.xlu0 %v3091, 96
      %v3273 = vpop.permute.xlu0 %3272
      %3274 = vrot.lane.b32.xlu0 %v3096, 96
      %v3275 = vpop.permute.xlu0 %3274
      %3276 = vrot.lane.b32.xlu0 %v3099, 96
      %v3277 = vpop.permute.xlu0 %3276
      %v3294 = vsel %vm565, %v1138, %v3119
      %v3295 = vsel %vm565, %v1141, %v3121
      %v3296 = vsel %vm565, %v1146, %v3123
      %v3297 = vsel %vm565, %v1149, %v3125
      %v3298 = vsel %vm565, %v1154, %v3127
      %v3299 = vsel %vm565, %v1157, %v3129
      %v3300 = vsel %vm565, %v1162, %v3131
      %v3301 = vsel %vm565, %v1165, %v3133
      %v3302 = vsel %vm565, %v1170, %v3135
      %v3303 = vsel %vm565, %v1173, %v3137
      %v3304 = vsel %vm565, %v1178, %v3139
      %v3305 = vsel %vm565, %v1181, %v3141
      %v3306 = vsel %vm565, %v1186, %v3143
      %v3307 = vsel %vm565, %v1189, %v3145
      %v3308 = vsel %vm565, %v1194, %v3147
      %v3309 = vsel %vm565, %v1197, %v3149
      %vm3310 = vcmask 523264
      %v3311 = vsel %vm3310, %v3294, %v3183
      %v3312 = vsel %vm3310, %v3295, %v3185
      %v3313 = vsel %vm3310, %v3296, %v3187
      %v3314 = vsel %vm3310, %v3297, %v3189
      %v3315 = vsel %vm3310, %v3298, %v3191
      %v3316 = vsel %vm3310, %v3299, %v3193
      %v3317 = vsel %vm3310, %v3300, %v3195
      %v3318 = vsel %vm3310, %v3301, %v3197
      %v3319 = vsel %vm3310, %v3302, %v3199
      %v3320 = vsel %vm3310, %v3303, %v3201
      %v3321 = vsel %vm3310, %v3304, %v3203
      %v3322 = vsel %vm3310, %v3305, %v3205
      %v3323 = vsel %vm3310, %v3306, %v3207
      %v3324 = vsel %vm3310, %v3307, %v3209
      %v3325 = vsel %vm3310, %v3308, %v3211
      %v3326 = vsel %vm3310, %v3309, %v3213
      %vm3327 = vcmask 785408
      %v3328 = vsel %vm3327, %v3311, %v3247
      %v3329 = vsel %vm3327, %v3312, %v3249
      %v3330 = vsel %vm3327, %v3313, %v3251
      %v3331 = vsel %vm3327, %v3314, %v3253
      %v3332 = vsel %vm3327, %v3315, %v3255
      %v3333 = vsel %vm3327, %v3316, %v3257
      %v3334 = vsel %vm3327, %v3317, %v3259
      %v3335 = vsel %vm3327, %v3318, %v3261
      %v3336 = vsel %vm3327, %v3319, %v3263
      %v3337 = vsel %vm3327, %v3320, %v3265
      %v3338 = vsel %vm3327, %v3321, %v3267
      %v3339 = vsel %vm3327, %v3322, %v3269
      %v3340 = vsel %vm3327, %v3323, %v3271
      %v3341 = vsel %vm3327, %v3324, %v3273
      %v3342 = vsel %vm3327, %v3325, %v3275
      %v3343 = vsel %vm3327, %v3326, %v3277
      %v3344 = vpack.c.bf16 %v3329, %v3328
      %v3345 = vpack.c.bf16 %v3331, %v3330
      %v3346 = vpack.c.bf16 %v3333, %v3332
      %v3347 = vpack.c.bf16 %v3335, %v3334
      %v3348 = vpack.c.bf16 %v3337, %v3336
      %v3349 = vpack.c.bf16 %v3339, %v3338
      %v3350 = vpack.c.bf16 %v3341, %v3340
      %v3351 = vpack.c.bf16 %v3343, %v3342
      %v3360 = vunpack.c.l.b16 %v3344
      %v3361 = vunpack.c.h.b16 %v3344
      %v3362 = vunpack.c.l.b16 %v3345
      %v3363 = vunpack.c.h.b16 %v3345
      %v3364 = vunpack.c.l.b16 %v3346
      %v3365 = vunpack.c.h.b16 %v3346
      %v3366 = vunpack.c.l.b16 %v3347
      %v3367 = vunpack.c.h.b16 %v3347
      %v3368 = vunpack.c.l.b16 %v3348
      %v3369 = vunpack.c.h.b16 %v3348
      %v3370 = vunpack.c.l.b16 %v3349
      %v3371 = vunpack.c.h.b16 %v3349
      %v3372 = vunpack.c.l.b16 %v3350
      %v3373 = vunpack.c.h.b16 %v3350
      %v3374 = vunpack.c.l.b16 %v3351
      %v3375 = vunpack.c.h.b16 %v3351
      %v3376 = vpack.c.b16 %v3360, %v3360
      %v3377 = vpack.c.b16 %v3361, %v3361
      %v3378 = vpack.c.b16 %v3362, %v3362
      %v3379 = vpack.c.b16 %v3363, %v3363
      %v3380 = vpack.c.b16 %v3364, %v3364
      %v3381 = vpack.c.b16 %v3365, %v3365
      %v3382 = vpack.c.b16 %v3366, %v3366
      %v3383 = vpack.c.b16 %v3367, %v3367
      %v3384 = vpack.c.b16 %v3368, %v3368
      %v3385 = vpack.c.b16 %v3369, %v3369
      %v3386 = vpack.c.b16 %v3370, %v3370
      %v3387 = vpack.c.b16 %v3371, %v3371
      %v3388 = vpack.c.b16 %v3372, %v3372
      %v3389 = vpack.c.b16 %v3373, %v3373
      %v3390 = vpack.c.b16 %v3374, %v3374
      %v3391 = vpack.c.b16 %v3375, %v3375
      %3408 = vst [vmem:[%s314] sm:$0xf] %v3376
      %3409 = vst [vmem:[%s314 + $0x4] sm:$0xf] %v3377
      %3410 = vst [vmem:[%s314 + $0x8] sm:$0xf] %v3378
      %3411 = vst [vmem:[%s314 + $0xc] sm:$0xf] %v3379
      %3412 = vst [vmem:[%s314 + $0x10] sm:$0xf] %v3380
      %3413 = vst [vmem:[%s314 + $0x14] sm:$0xf] %v3381
      %3414 = vst [vmem:[%s314 + $0x18] sm:$0xf] %v3382
      %3415 = vst [vmem:[%s314 + $0x1c] sm:$0xf] %v3383
      %3416 = vst [vmem:[%s314 + $0x20] sm:$0xf] %v3384
      %3417 = vst [vmem:[%s314 + $0x24] sm:$0xf] %v3385
      %3418 = vst [vmem:[%s314 + $0x28] sm:$0xf] %v3386
      %3419 = vst [vmem:[%s314 + $0x2c] sm:$0xf] %v3387
      %3420 = vst [vmem:[%s314 + $0x30] sm:$0xf] %v3388
      %3421 = vst [vmem:[%s314 + $0x34] sm:$0xf] %v3389
      %3422 = vst [vmem:[%s314 + $0x38] sm:$0xf] %v3390
      %3423 = vst [vmem:[%s314 + $0x3c] sm:$0xf] %v3391
      %s3424 = smul.u32 16, %s20
      %p3425 = scmp.lt.s32.totalorder %s19, 1
      %s3426 = scalar_select %p3425, %s19, 1
      %p3427 = scmp.lt.s32.totalorder %s3424, 31
      %s3428 = scalar_select %p3427, %s3424, 31
      %s3429 = smul.addr %s3426, 32
      %s3430 = sadd.s32 %s3428, %s3429
      %s3431 = smul.addr %s3430, 4
      %s3432 = scalar_lea.vmem %s4, %s3431
      // Predicated region
      $region37: #{siglip_encoder_layer.4} parent=35 // pred_check
        %p3433 = pneg %p155
      $region38: #{siglip_encoder_layer.4} parent=35 // pred_check_branch
        %3435 = sbr.rel (%p3433) target = $region40
      $region39: #{siglip_encoder_layer.4} parent=35 // pred_region
        %s3436 = smul.u32 16, %s20
      $region40: #{siglip_encoder_layer.4} parent=35 // pred_fallthru
        _
    $region36: #{siglip_encoder_layer.4} parent=5 // pred_fallthru
      _
    %p3437 = scmp.le.s32.totalorder 2, %s10
    // Predicated region
    $region41: #{siglip_encoder_layer.4} parent=5 // pred_check
      %p3438 = pneg %p3437
    $region42: #{siglip_encoder_layer.4} parent=5 // pred_check_branch
      %3440 = sbr.rel (%p3438) target = $region44
    $region43: #{siglip_encoder_layer.4} parent=5 // pred_region
      %s3441 = ssub.s32 %s10, 2
      // Predicated region
      $region45: #{siglip_encoder_layer.4} parent=43 // pred_check
        %p3442 = pneg %p161
      $region46: #{siglip_encoder_layer.4} parent=43 // pred_check_branch
        %3444 = sbr.rel (%p3442) target = $region48
      $region47: #{siglip_encoder_layer.4} parent=43 // pred_region
        %s3445 = smul.u32 16, %s22
        %p3446 = scmp.lt.s32.totalorder %s21, 1
        %s3447 = scalar_select %p3446, %s21, 1
        %p3448 = scmp.lt.s32.totalorder %s3445, 31
        %s3449 = scalar_select %p3448, %s3445, 31
        %s3450 = smul.addr %s3447, 32
        %s3451 = sadd.s32 %s3449, %s3450
        %s3452 = smul.addr %s3451, 4
        %s3453 = scalar_lea.vmem %s4, %s3452
      $region48: #{siglip_encoder_layer.4} parent=43 // pred_fallthru
        _
    $region44: #{siglip_encoder_layer.4} parent=5 // pred_fallthru
      _
  $region6: #{siglip_encoder_layer.4} parent=0 // loop_footer
    %s14 = sadd.s32 1, %s10
  $region7: #{siglip_encoder_layer.4} parent=0 // loop_footer_branch
    %9 = sbr.rel target = $region3
  $region8: #{siglip_encoder_layer.4} parent=0 // loop_exit
    _

// kernel: siglip_encoder_layer.5
$region0: #{siglip_encoder_layer.5}
  #allocation0 [shape = 'u32[]', space=smem, size = 0x4, offset = 0x4, fixed_abs, tag = 'smem constant byte address 0x4 - core index']
  #allocation1 [shape = 'u32[144,128]{1,0:T(1,128)}', space=vmem, size = 0x12000, scoped, tag = 'internal scratch']
  %s0 = inlined_call_operand.vmem [shape: f32[2,256,128], index: 0, kind: input, shape index: {}]
  %s1 = inlined_call_operand.vmem [shape: bf16[2,256,128], index: 1, kind: input, shape index: {}]
  %s2 = inlined_call_operand.vmem [shape: bf16[128,128], index: 2, kind: input, shape index: {}]
  %s3 = inlined_call_operand.vmem [shape: f32[1,128], index: 3, kind: input, shape index: {}]
  %s4 = inlined_call_operand.vmem [shape: f32[1,128], index: 4, kind: input, shape index: {}]
  %s5 = inlined_call_operand.vmem [shape: f32[1,128], index: 5, kind: input, shape index: {}]
  %s6 = inlined_call_operand.vmem [shape: bf16[128,1024], index: 6, kind: input, shape index: {}]
  %s7 = inlined_call_operand.vmem [shape: f32[1,1024], index: 7, kind: input, shape index: {}]
  %s8 = inlined_call_operand.vmem [shape: bf16[1024,128], index: 8, kind: input, shape index: {}]
  %s9 = inlined_call_operand.vmem [shape: f32[1,128], index: 9, kind: input, shape index: {}]
  %s10 = inlined_call_operand.hbm [shape: f32[2,256,128], index: 10, kind: output, shape index: {}]
  %s11 = sld [smem:[#allocation0]]
  $region73: #{siglip_encoder_layer.5} parent=0
    _
  %s13 = ssub.s32 1, %s11
  %s14 = scalar_select 0, %s13, %s11
  $region1: #{siglip_encoder_layer.5} parent=0
    #allocation2 [shape = 'u8[131072]{0}', space=vmem, size = 0x20000, scoped, tag = 'output window, operand 0']
    #allocation3 [shape = 's32[2]{0}', space=sflag, size = 0x8, scoped, tag = 'scoped memory for siglip_encoder_layer.5']
    %15 = vsyncpa [#allocation3], 0
    %s16 = scalar_lea.sflag [#allocation3], 1
    %17 = vsyncpa %s16, 0
    loop: start=0, step=1, limit=6
    $region2: #{siglip_encoder_layer.5} parent=1 // loop_pre_header
      _
    $region3: #{siglip_encoder_layer.5} parent=1 // loop_header
      %s19 = sphi 0, %s23
      %p20 = scmp.ge.s32.totalorder %s19, 6
      %s26 = sphi 0, %s38
      %s27 = sphi 0, %s34
      %s28 = sphi 0, %s26
      %s29 = sphi 0, %s27
      %s30 = sphi 0, %s28
      %s31 = sphi 0, %s29
      %s43 = sphi 0, %s45
      %s46 = sphi 0, %s43
      %s47 = sphi 0, %s46
      %s63 = sphi 0, %s47
      %s71 = sphi 0, %s73
      %s74 = sphi 0, %s71
      %s75 = sphi 0, %s74
      %s91 = sphi 0, %s75
      %s95 = sphi 0, %s95
      %s97 = sphi 0, %s95
      %s98 = sphi 0, %s97
      %s112 = sphi 0, %s98
      %s116 = sphi 0, %s116
      %s118 = sphi 0, %s116
      %s119 = sphi 0, %s118
      %s133 = sphi 0, %s119
      %s137 = sphi 0, %s137
      %s139 = sphi 0, %s137
      %s140 = sphi 0, %s139
      %s154 = sphi 0, %s140
      %s158 = sphi 0, %s158
      %s160 = sphi 0, %s158
      %s161 = sphi 0, %s160
      %s175 = sphi 0, %s161
      %s179 = sphi 0, %s179
      %s181 = sphi 0, %s179
      %s182 = sphi 0, %s181
      %s196 = sphi 0, %s182
      %s200 = sphi 0, %s200
      %s202 = sphi 0, %s200
      %s203 = sphi 0, %s202
      %s217 = sphi 0, %s203
      %s221 = sphi 0, %s221
      %s223 = sphi 0, %s221
      %s224 = sphi 0, %s223
      %s238 = sphi 0, %s224
      %s242 = sphi 0, %s242
      %s244 = sphi 0, %s242
      %s245 = sphi 0, %s244
      %s259 = sphi 0, %s245
      %s267 = sphi 0, %s269
      %s270 = sphi 0, %s267
      %s271 = sphi 0, %s270
      %s287 = sphi 0, %s271
    $region4: #{siglip_encoder_layer.5} parent=1 // loop_header_branch
      %22 = sbr.rel (%p20) target = $region8
    $region5: #{siglip_encoder_layer.5} parent=1 // loop_body
      %s24 = ssub.s32 %s19, 1
      %s25 = ssub.s32 %s19, 2
      %s32 = sadd.s32 1, %s27
      %p33 = scmp.ge.s32.totalorder %s32, 2
      %s34 = scalar_select %p33, 0, %s32
      %s35 = sadd.s32 1, %s26
      %s36 = scalar_select %p33, %s35, %s26
      %p37 = scmp.ge.s32.totalorder %s36, 2
      %s38 = scalar_select %p37, 0, %s36
      %s39 = ssub.s32 %s26, %s38
      %s40 = ssub.s32 %s27, %s34
      %s41 = sor.u32 %s39, %s40
      %p42 = scmp.eq.s32.totalorder %s41, 0
      %s44 = sadd.s32 %s43, 1
      %s45 = scalar_select %p42, %s43, %s44
      %p48 = pneg %p42
      %p49 = scmp.eq.s32.totalorder %s19, 3
      %p50 = por %p48, %p49
      %p51 = scmp.ne.s32.totalorder %s43, %s46
      %p52 = scmp.eq.s32.totalorder %s19, 0
      %p53 = por %p51, %p52
      %p54 = scmp.ne.s32.totalorder %s43, %s46
      %p55 = scmp.eq.s32.totalorder %s24, 3
      %p56 = por %p54, %p55
      %p57 = scmp.ne.s32.totalorder %s46, %s47
      %p58 = scmp.eq.s32.totalorder %s24, 0
      %p59 = por %p57, %p58
      %p60 = scmp.ne.s32.totalorder %s46, %s47
      %p61 = scmp.eq.s32.totalorder %s25, 3
      %p62 = por %p60, %p61
      %p64 = scmp.ne.s32.totalorder %s47, %s63
      %p65 = scmp.eq.s32.totalorder %s25, 0
      %p66 = por %p64, %p65
      %s67 = ssub.s32 %s26, %s38
      %s68 = ssub.s32 %s27, %s34
      %s69 = sor.u32 %s67, %s68
      %p70 = scmp.eq.s32.totalorder %s69, 0
      %s72 = sadd.s32 %s71, 1
      %s73 = scalar_select %p70, %s71, %s72
      %p76 = pneg %p70
      %p77 = scmp.eq.s32.totalorder %s19, 3
      %p78 = por %p76, %p77
      %p79 = scmp.ne.s32.totalorder %s71, %s74
      %p80 = scmp.eq.s32.totalorder %s19, 0
      %p81 = por %p79, %p80
      %p82 = scmp.ne.s32.totalorder %s71, %s74
      %p83 = scmp.eq.s32.totalorder %s24, 3
      %p84 = por %p82, %p83
      %p85 = scmp.ne.s32.totalorder %s74, %s75
      %p86 = scmp.eq.s32.totalorder %s24, 0
      %p87 = por %p85, %p86
      %p88 = scmp.ne.s32.totalorder %s74, %s75
      %p89 = scmp.eq.s32.totalorder %s25, 3
      %p90 = por %p88, %p89
      %p92 = scmp.ne.s32.totalorder %s75, %s91
      %p93 = scmp.eq.s32.totalorder %s25, 0
      %p94 = por %p92, %p93
      %s96 = sadd.s32 %s95, 1
      %p99 = scmp.eq.s32.totalorder %s19, 3
      %p100 = scmp.ne.s32.totalorder %s95, %s97
      %p101 = scmp.eq.s32.totalorder %s19, 0
      %p102 = por %p100, %p101
      %p103 = scmp.ne.s32.totalorder %s95, %s97
      %p104 = scmp.eq.s32.totalorder %s24, 3
      %p105 = por %p103, %p104
      %p106 = scmp.ne.s32.totalorder %s97, %s98
      %p107 = scmp.eq.s32.totalorder %s24, 0
      %p108 = por %p106, %p107
      %p109 = scmp.ne.s32.totalorder %s97, %s98
      %p110 = scmp.eq.s32.totalorder %s25, 3
      %p111 = por %p109, %p110
      %p113 = scmp.ne.s32.totalorder %s98, %s112
      %p114 = scmp.eq.s32.totalorder %s25, 0
      %p115 = por %p113, %p114
      %s117 = sadd.s32 %s116, 1
      %p120 = scmp.eq.s32.totalorder %s19, 3
      %p121 = scmp.ne.s32.totalorder %s116, %s118
      %p122 = scmp.eq.s32.totalorder %s19, 0
      %p123 = por %p121, %p122
      %p124 = scmp.ne.s32.totalorder %s116, %s118
      %p125 = scmp.eq.s32.totalorder %s24, 3
      %p126 = por %p124, %p125
      %p127 = scmp.ne.s32.totalorder %s118, %s119
      %p128 = scmp.eq.s32.totalorder %s24, 0
      %p129 = por %p127, %p128
      %p130 = scmp.ne.s32.totalorder %s118, %s119
      %p131 = scmp.eq.s32.totalorder %s25, 3
      %p132 = por %p130, %p131
      %p134 = scmp.ne.s32.totalorder %s119, %s133
      %p135 = scmp.eq.s32.totalorder %s25, 0
      %p136 = por %p134, %p135
      %s138 = sadd.s32 %s137, 1
      %p141 = scmp.eq.s32.totalorder %s19, 3
      %p142 = scmp.ne.s32.totalorder %s137, %s139
      %p143 = scmp.eq.s32.totalorder %s19, 0
      %p144 = por %p142, %p143
      %p145 = scmp.ne.s32.totalorder %s137, %s139
      %p146 = scmp.eq.s32.totalorder %s24, 3
      %p147 = por %p145, %p146
      %p148 = scmp.ne.s32.totalorder %s139, %s140
      %p149 = scmp.eq.s32.totalorder %s24, 0
      %p150 = por %p148, %p149
      %p151 = scmp.ne.s32.totalorder %s139, %s140
      %p152 = scmp.eq.s32.totalorder %s25, 3
      %p153 = por %p151, %p152
      %p155 = scmp.ne.s32.totalorder %s140, %s154
      %p156 = scmp.eq.s32.totalorder %s25, 0
      %p157 = por %p155, %p156
      %s159 = sadd.s32 %s158, 1
      %p162 = scmp.eq.s32.totalorder %s19, 3
      %p163 = scmp.ne.s32.totalorder %s158, %s160
      %p164 = scmp.eq.s32.totalorder %s19, 0
      %p165 = por %p163, %p164
      %p166 = scmp.ne.s32.totalorder %s158, %s160
      %p167 = scmp.eq.s32.totalorder %s24, 3
      %p168 = por %p166, %p167
      %p169 = scmp.ne.s32.totalorder %s160, %s161
      %p170 = scmp.eq.s32.totalorder %s24, 0
      %p171 = por %p169, %p170
      %p172 = scmp.ne.s32.totalorder %s160, %s161
      %p173 = scmp.eq.s32.totalorder %s25, 3
      %p174 = por %p172, %p173
      %p176 = scmp.ne.s32.totalorder %s161, %s175
      %p177 = scmp.eq.s32.totalorder %s25, 0
      %p178 = por %p176, %p177
      %s180 = sadd.s32 %s179, 1
      %p183 = scmp.eq.s32.totalorder %s19, 3
      %p184 = scmp.ne.s32.totalorder %s179, %s181
      %p185 = scmp.eq.s32.totalorder %s19, 0
      %p186 = por %p184, %p185
      %p187 = scmp.ne.s32.totalorder %s179, %s181
      %p188 = scmp.eq.s32.totalorder %s24, 3
      %p189 = por %p187, %p188
      %p190 = scmp.ne.s32.totalorder %s181, %s182
      %p191 = scmp.eq.s32.totalorder %s24, 0
      %p192 = por %p190, %p191
      %p193 = scmp.ne.s32.totalorder %s181, %s182
      %p194 = scmp.eq.s32.totalorder %s25, 3
      %p195 = por %p193, %p194
      %p197 = scmp.ne.s32.totalorder %s182, %s196
      %p198 = scmp.eq.s32.totalorder %s25, 0
      %p199 = por %p197, %p198
      %s201 = sadd.s32 %s200, 1
      %p204 = scmp.eq.s32.totalorder %s19, 3
      %p205 = scmp.ne.s32.totalorder %s200, %s202
      %p206 = scmp.eq.s32.totalorder %s19, 0
      %p207 = por %p205, %p206
      %p208 = scmp.ne.s32.totalorder %s200, %s202
      %p209 = scmp.eq.s32.totalorder %s24, 3
      %p210 = por %p208, %p209
      %p211 = scmp.ne.s32.totalorder %s202, %s203
      %p212 = scmp.eq.s32.totalorder %s24, 0
      %p213 = por %p211, %p212
      %p214 = scmp.ne.s32.totalorder %s202, %s203
      %p215 = scmp.eq.s32.totalorder %s25, 3
      %p216 = por %p214, %p215
      %p218 = scmp.ne.s32.totalorder %s203, %s217
      %p219 = scmp.eq.s32.totalorder %s25, 0
      %p220 = por %p218, %p219
      %s222 = sadd.s32 %s221, 1
      %p225 = scmp.eq.s32.totalorder %s19, 3
      %p226 = scmp.ne.s32.totalorder %s221, %s223
      %p227 = scmp.eq.s32.totalorder %s19, 0
      %p228 = por %p226, %p227
      %p229 = scmp.ne.s32.totalorder %s221, %s223
      %p230 = scmp.eq.s32.totalorder %s24, 3
      %p231 = por %p229, %p230
      %p232 = scmp.ne.s32.totalorder %s223, %s224
      %p233 = scmp.eq.s32.totalorder %s24, 0
      %p234 = por %p232, %p233
      %p235 = scmp.ne.s32.totalorder %s223, %s224
      %p236 = scmp.eq.s32.totalorder %s25, 3
      %p237 = por %p235, %p236
      %p239 = scmp.ne.s32.totalorder %s224, %s238
      %p240 = scmp.eq.s32.totalorder %s25, 0
      %p241 = por %p239, %p240
      %s243 = sadd.s32 %s242, 1
      %p246 = scmp.eq.s32.totalorder %s19, 3
      %p247 = scmp.ne.s32.totalorder %s242, %s244
      %p248 = scmp.eq.s32.totalorder %s19, 0
      %p249 = por %p247, %p248
      %p250 = scmp.ne.s32.totalorder %s242, %s244
      %p251 = scmp.eq.s32.totalorder %s24, 3
      %p252 = por %p250, %p251
      %p253 = scmp.ne.s32.totalorder %s244, %s245
      %p254 = scmp.eq.s32.totalorder %s24, 0
      %p255 = por %p253, %p254
      %p256 = scmp.ne.s32.totalorder %s244, %s245
      %p257 = scmp.eq.s32.totalorder %s25, 3
      %p258 = por %p256, %p257
      %p260 = scmp.ne.s32.totalorder %s245, %s259
      %p261 = scmp.eq.s32.totalorder %s25, 0
      %p262 = por %p260, %p261
      %s263 = ssub.s32 %s26, %s38
      %s264 = ssub.s32 %s27, %s34
      %s265 = sor.u32 %s263, %s264
      %p266 = scmp.eq.s32.totalorder %s265, 0
      %s268 = sadd.s32 %s267, 1
      %s269 = scalar_select %p266, %s267, %s268
      %p272 = pneg %p266
      %p273 = scmp.eq.s32.totalorder %s19, 3
      %p274 = por %p272, %p273
      %p275 = scmp.ne.s32.totalorder %s267, %s270
      %p276 = scmp.eq.s32.totalorder %s19, 0
      %p277 = por %p275, %p276
      %p278 = scmp.ne.s32.totalorder %s267, %s270
      %p279 = scmp.eq.s32.totalorder %s24, 3
      %p280 = por %p278, %p279
      %p281 = scmp.ne.s32.totalorder %s270, %s271
      %p282 = scmp.eq.s32.totalorder %s24, 0
      %p283 = por %p281, %p282
      %p284 = scmp.ne.s32.totalorder %s270, %s271
      %p285 = scmp.eq.s32.totalorder %s25, 3
      %p286 = por %p284, %p285
      %p288 = scmp.ne.s32.totalorder %s271, %s287
      %p289 = scmp.eq.s32.totalorder %s25, 0
      %p290 = por %p288, %p289
      %p291 = scmp.le.s32.totalorder 1, %s19
      %p292 = scmp.lt.s32.totalorder %s19, 5
      %p293 = pnand %p291, %p292
      %p294 = pneg %p293
      // Predicated region
      $region9: #{siglip_encoder_layer.5} parent=5 // pred_check
        _
      $region10: #{siglip_encoder_layer.5} parent=5 // pred_check_branch
        %296 = sbr.rel (%p293) target = $region12
      $region11: #{siglip_encoder_layer.5} parent=5 // pred_region
        %s297 = ssub.s32 %s19, 1
        // Predicated region
        $region13: #{siglip_encoder_layer.5} parent=11 // pred_check
          %p298 = pneg %p108
        $region14: #{siglip_encoder_layer.5} parent=11 // pred_check_branch
          %300 = sbr.rel (%p298) target = $region16
        $region15: #{siglip_encoder_layer.5} parent=11 // pred_region
          _
        $region16: #{siglip_encoder_layer.5} parent=11 // pred_fallthru
          _
        // Predicated region
        $region17: #{siglip_encoder_layer.5} parent=11 // pred_check
          %p301 = pneg %p129
        $region18: #{siglip_encoder_layer.5} parent=11 // pred_check_branch
          %303 = sbr.rel (%p301) target = $region20
        $region19: #{siglip_encoder_layer.5} parent=11 // pred_region
          _
        $region20: #{siglip_encoder_layer.5} parent=11 // pred_fallthru
          _
        // Predicated region
        $region21: #{siglip_encoder_layer.5} parent=11 // pred_check
          %p304 = pneg %p150
        $region22: #{siglip_encoder_layer.5} parent=11 // pred_check_branch
          %306 = sbr.rel (%p304) target = $region24
        $region23: #{siglip_encoder_layer.5} parent=11 // pred_region
          _
        $region24: #{siglip_encoder_layer.5} parent=11 // pred_fallthru
          _
        // Predicated region
        $region25: #{siglip_encoder_layer.5} parent=11 // pred_check
          %p307 = pneg %p171
        $region26: #{siglip_encoder_layer.5} parent=11 // pred_check_branch
          %309 = sbr.rel (%p307) target = $region28
        $region27: #{siglip_encoder_layer.5} parent=11 // pred_region
          _
        $region28: #{siglip_encoder_layer.5} parent=11 // pred_fallthru
          _
        // Predicated region
        $region29: #{siglip_encoder_layer.5} parent=11 // pred_check
          %p310 = pneg %p192
        $region30: #{siglip_encoder_layer.5} parent=11 // pred_check_branch
          %312 = sbr.rel (%p310) target = $region32
        $region31: #{siglip_encoder_layer.5} parent=11 // pred_region
          _
        $region32: #{siglip_encoder_layer.5} parent=11 // pred_fallthru
          _
        // Predicated region
        $region33: #{siglip_encoder_layer.5} parent=11 // pred_check
          %p313 = pneg %p213
        $region34: #{siglip_encoder_layer.5} parent=11 // pred_check_branch
          %315 = sbr.rel (%p313) target = $region36
        $region35: #{siglip_encoder_layer.5} parent=11 // pred_region
          _
        $region36: #{siglip_encoder_layer.5} parent=11 // pred_fallthru
          _
        // Predicated region
        $region37: #{siglip_encoder_layer.5} parent=11 // pred_check
          %p316 = pneg %p234
        $region38: #{siglip_encoder_layer.5} parent=11 // pred_check_branch
          %318 = sbr.rel (%p316) target = $region40
        $region39: #{siglip_encoder_layer.5} parent=11 // pred_region
          _
        $region40: #{siglip_encoder_layer.5} parent=11 // pred_fallthru
          _
        // Predicated region
        $region41: #{siglip_encoder_layer.5} parent=11 // pred_check
          %p319 = pneg %p255
        $region42: #{siglip_encoder_layer.5} parent=11 // pred_check_branch
          %321 = sbr.rel (%p319) target = $region44
        $region43: #{siglip_encoder_layer.5} parent=11 // pred_region
          _
        $region44: #{siglip_encoder_layer.5} parent=11 // pred_fallthru
          _
      $region12: #{siglip_encoder_layer.5} parent=5 // pred_fallthru
        _
      %p322 = scmp.lt.s32.totalorder %s19, 4
      // Predicated region
      $region45: #{siglip_encoder_layer.5} parent=5 // pred_check
        %p323 = pneg %p322
      $region46: #{siglip_encoder_layer.5} parent=5 // pred_check_branch
        %325 = sbr.rel (%p323) target = $region48
      $region47: #{siglip_encoder_layer.5} parent=5 // pred_region
        // Predicated region
        $region49: #{siglip_encoder_layer.5} parent=47 // pred_check
          %p326 = pneg %p53
        $region50: #{siglip_encoder_layer.5} parent=47 // pred_check_branch
          %328 = sbr.rel (%p326) target = $region52
        $region51: #{siglip_encoder_layer.5} parent=47 // pred_region
          %s329 = smul.u32 16, %s27
          %p330 = scmp.lt.s32.totalorder %s26, 1
          %s331 = scalar_select %p330, %s26, 1
          %p332 = scmp.lt.s32.totalorder %s329, 31
          %s333 = scalar_select %p332, %s329, 31
          %s334 = smul.addr %s331, 32
          %s335 = sadd.s32 %s333, %s334
          %s336 = smul.addr %s335, 8
          %s337 = scalar_lea.vmem %s0, %s336
          %s338 = smul.u32 16, %s27
        $region52: #{siglip_encoder_layer.5} parent=47 // pred_fallthru
          _
        // Predicated region
        $region53: #{siglip_encoder_layer.5} parent=47 // pred_check
          %p339 = pneg %p81
        $region54: #{siglip_encoder_layer.5} parent=47 // pred_check_branch
          %341 = sbr.rel (%p339) target = $region56
        $region55: #{siglip_encoder_layer.5} parent=47 // pred_region
          %s342 = smul.u32 16, %s27
          %p343 = scmp.lt.s32.totalorder %s26, 1
          %s344 = scalar_select %p343, %s26, 1
          %p345 = scmp.lt.s32.totalorder %s342, 31
          %s346 = scalar_select %p345, %s342, 31
          %s347 = smul.addr %s344, 32
          %s348 = sadd.s32 %s346, %s347
          %s349 = smul.addr %s348, 4
          %s350 = scalar_lea.vmem %s1, %s349
          %s351 = smul.u32 16, %s27
        $region56: #{siglip_encoder_layer.5} parent=47 // pred_fallthru
          _
      $region48: #{siglip_encoder_layer.5} parent=5 // pred_fallthru
        _
      %p352 = scmp.le.s32.totalorder 1, %s19
      %p353 = scmp.lt.s32.totalorder %s19, 5
      %p354 = pnand %p352, %p353
      %p355 = pneg %p354
      // Predicated region
      $region57: #{siglip_encoder_layer.5} parent=5 // pred_check
        _
      $region58: #{siglip_encoder_layer.5} parent=5 // pred_check_branch
        %357 = sbr.rel (%p354) target = $region60
      $region59: #{siglip_encoder_layer.5} parent=5 // pred_region
        %s358 = ssub.s32 %s19, 1
        %s359 = smul.u32 16, %s29
        %p360 = scmp.lt.s32.totalorder %s28, 1
        %s361 = scalar_select %p360, %s28, 1
        %p362 = scmp.lt.s32.totalorder %s359, 31
        %s363 = scalar_select %p362, %s359, 31
        %s364 = smul.addr %s361, 32
        %s365 = sadd.s32 %s363, %s364
        %s366 = smul.addr %s365, 8
        %s367 = scalar_lea.vmem %s0, %s366
        %p368 = pneg %p59
        %p369 = pneg %p56
        %s370 = smul.u32 16, %s29
        %p371 = scmp.lt.s32.totalorder %s28, 1
        %s372 = scalar_select %p371, %s28, 1
        %p373 = scmp.lt.s32.totalorder %s370, 31
        %s374 = scalar_select %p373, %s370, 31
        %s375 = smul.addr %s372, 32
        %s376 = sadd.s32 %s374, %s375
        %s377 = smul.addr %s376, 4
        %s378 = scalar_lea.vmem %s1, %s377
        %p379 = pneg %p87
        %p380 = pneg %p84
        %p381 = pneg %p108
        %p382 = pneg %p105
        %p383 = pneg %p129
        %p384 = pneg %p126
        %p385 = pneg %p150
        %p386 = pneg %p147
        %p387 = pneg %p171
        %p388 = pneg %p168
        %p389 = pneg %p192
        %p390 = pneg %p189
        %p391 = pneg %p213
        %p392 = pneg %p210
        %p393 = pneg %p234
        %p394 = pneg %p231
        %p395 = pneg %p255
        %p396 = pneg %p252
        %p397 = pneg %p283
        %p398 = pneg %p280
        %s399 = sand.u32 %s270, 1
        %s400 = scalar_lea.sflag [#allocation3], %s399
        %s401 = sand.u32 %s270, 1
        %s402 = smul.addr %s401, 128
        %s403 = scalar_lea.vmem [#allocation2], %s402
        %s404 = smul.u32 16, %s29
        %p405 = scmp.lt.s32.totalorder %s28, 1
        %s406 = scalar_select %p405, %s28, 1
        %p407 = scmp.lt.s32.totalorder %s404, 31
        %s408 = scalar_select %p407, %s404, 31
        %s409 = smul.addr %s406, 32
        %s410 = sadd.s32 %s408, %s409
        %s411 = smul.addr %s410, 8
        %s412 = scalar_lea.vmem %s0, %s411
        %s413 = smul.u32 16, %s29
        %s414 = smul.u32 16, %s29
        %p415 = scmp.lt.s32.totalorder %s28, 1
        %s416 = scalar_select %p415, %s28, 1
        %p417 = scmp.lt.s32.totalorder %s414, 31
        %s418 = scalar_select %p417, %s414, 31
        %s419 = smul.addr %s416, 32
        %s420 = sadd.s32 %s418, %s419
        %s421 = smul.addr %s420, 4
        %s422 = scalar_lea.vmem %s1, %s421
        %s423 = smul.u32 16, %s29
        %s424 = smul.u32 16, %s29
        %v426 = vld [vmem:[%s422] sm:$0xf]
        %v427 = vld [vmem:[%s422 + $0x4] sm:$0xf]
        %v428 = vld [vmem:[%s422 + $0x8] sm:$0xf]
        %v429 = vld [vmem:[%s422 + $0xc] sm:$0xf]
        %v430 = vld [vmem:[%s422 + $0x10] sm:$0xf]
        %v431 = vld [vmem:[%s422 + $0x14] sm:$0xf]
        %v432 = vld [vmem:[%s422 + $0x18] sm:$0xf]
        %v433 = vld [vmem:[%s422 + $0x1c] sm:$0xf]
        %v434 = vld [vmem:[%s422 + $0x20] sm:$0xf]
        %v435 = vld [vmem:[%s422 + $0x24] sm:$0xf]
        %v436 = vld [vmem:[%s422 + $0x28] sm:$0xf]
        %v437 = vld [vmem:[%s422 + $0x2c] sm:$0xf]
        %v438 = vld [vmem:[%s422 + $0x30] sm:$0xf]
        %v439 = vld [vmem:[%s422 + $0x34] sm:$0xf]
        %v440 = vld [vmem:[%s422 + $0x38] sm:$0xf]
        %v441 = vld [vmem:[%s422 + $0x3c] sm:$0xf]
        %v442 = vld [vmem:[%s2] sm:$0xf]
        %v443 = vld [vmem:[%s2 + $0x4] sm:$0xf]
        %v444 = vld [vmem:[%s2 + $0x8] sm:$0xf]
        %v445 = vld [vmem:[%s2 + $0xc] sm:$0xf]
        %v446 = vld [vmem:[%s2 + $0x10] sm:$0xf]
        %v447 = vld [vmem:[%s2 + $0x14] sm:$0xf]
        %v448 = vld [vmem:[%s2 + $0x18] sm:$0xf]
        %v449 = vld [vmem:[%s2 + $0x1c] sm:$0xf]
        %v450 = vld [vmem:[%s2 + $0x20] sm:$0xf]
        %v451 = vld [vmem:[%s2 + $0x24] sm:$0xf]
        %v452 = vld [vmem:[%s2 + $0x28] sm:$0xf]
        %v453 = vld [vmem:[%s2 + $0x2c] sm:$0xf]
        %v454 = vld [vmem:[%s2 + $0x30] sm:$0xf]
        %v455 = vld [vmem:[%s2 + $0x34] sm:$0xf]
        %v456 = vld [vmem:[%s2 + $0x38] sm:$0xf]
        %v457 = vld [vmem:[%s2 + $0x3c] sm:$0xf]
        %v458 = vld [vmem:[%s3] sm:$0x1]
        %v460 = vlaneseq
        %v461 = vshrl.u32 %v460, 7
        %v462 = vsub.s32 0, %v461
        %v463 = vrot.slane %v458, %v462
        %v481 = vunpack.c.l.b16 %v426
        %v482 = vunpack.c.l.b16 %v427
        %v483 = vunpack.c.l.b16 %v428
        %v484 = vunpack.c.l.b16 %v429
        %v485 = vunpack.c.l.b16 %v430
        %v486 = vunpack.c.l.b16 %v431
        %v487 = vunpack.c.l.b16 %v432
        %v488 = vunpack.c.l.b16 %v433
        %v489 = vunpack.c.l.b16 %v434
        %v490 = vunpack.c.l.b16 %v435
        %v491 = vunpack.c.l.b16 %v436
        %v492 = vunpack.c.l.b16 %v437
        %v493 = vunpack.c.l.b16 %v438
        %v494 = vunpack.c.l.b16 %v439
        %v495 = vunpack.c.l.b16 %v440
        %v496 = vunpack.c.l.b16 %v441
        %v497 = vpack.c.b16 %v482, %v481
        %v498 = vpack.c.b16 %v484, %v483
        %v499 = vpack.c.b16 %v486, %v485
        %v500 = vpack.c.b16 %v488, %v487
        %v501 = vpack.c.b16 %v490, %v489
        %v502 = vpack.c.b16 %v492, %v491
        %v503 = vpack.c.b16 %v494, %v493
        %v504 = vpack.c.b16 %v496, %v495
        %v529 = vunpack.c.l.b16 %v442
        %v530 = vunpack.c.l.b16 %v443
        %v531 = vunpack.c.l.b16 %v444
        %v532 = vunpack.c.l.b16 %v445
        %v533 = vunpack.c.l.b16 %v446
        %v534 = vunpack.c.l.b16 %v447
        %v535 = vunpack.c.l.b16 %v448
        %v536 = vunpack.c.l.b16 %v449
        %v537 = vunpack.c.l.b16 %v450
        %v538 = vunpack.c.l.b16 %v451
        %v539 = vunpack.c.l.b16 %v452
        %v540 = vunpack.c.l.b16 %v453
        %v541 = vunpack.c.l.b16 %v454
        %v542 = vunpack.c.l.b16 %v455
        %v543 = vunpack.c.l.b16 %v456
        %v544 = vunpack.c.l.b16 %v457
        %v545 = vpack.c.b16 %v530, %v529
        %v546 = vpack.c.b16 %v532, %v531
        %v547 = vpack.c.b16 %v534, %v533
        %v548 = vpack.c.b16 %v536, %v535
        %v549 = vpack.c.b16 %v538, %v537
        %v550 = vpack.c.b16 %v540, %v539
        %v551 = vpack.c.b16 %v542, %v541
        %v552 = vpack.c.b16 %v544, %v543
        %561 = vmatprep.subr.bf16.mxu0 0
        %562 = vmatpush1.bf16.msra.mxu0 %v545
        %563 = vmatprep.subr.bf16.mxu0 0
        %564 = vmatpush1.bf16.msra.mxu0 %v546
        %565 = vmatprep.subr.bf16.mxu0 0
        %566 = vmatpush1.bf16.msra.mxu0 %v547
        %567 = vmatprep.subr.bf16.mxu0 0
        %568 = vmatpush1.bf16.msra.mxu0 %v548
        %569 = vmatprep.subr.bf16.mxu0 0
        %570 = vmatpush1.bf16.msra.mxu0 %v549
        %571 = vmatprep.subr.bf16.mxu0 0
        %572 = vmatpush1.bf16.msra.mxu0 %v550
        %573 = vmatprep.subr.bf16.mxu0 0
        %574 = vmatpush1.bf16.msra.mxu0 %v551
        %575 = vmatprep.subr.bf16.mxu0 0
        %576 = vmatpush1.bf16.msra.mxu0 %v552
        %577 = vmatprep.subr.bf16.mxu0 0
        %578 = vmatpush1.bf16.msra.mxu0 0
        %579 = vmatprep.subr.bf16.mxu0 0
        %580 = vmatpush1.bf16.msra.mxu0 0
        %581 = vmatprep.subr.bf16.mxu0 0
        %582 = vmatpush1.bf16.msra.mxu0 0
        %583 = vmatprep.subr.bf16.mxu0 0
        %584 = vmatpush1.bf16.msra.mxu0 0
        %585 = vmatprep.subr.bf16.mxu0 0
        %586 = vmatpush1.bf16.msra.mxu0 0
        %587 = vmatprep.subr.bf16.mxu0 0
        %588 = vmatpush1.bf16.msra.mxu0 0
        %589 = vmatprep.subr.bf16.mxu0 0
        %590 = vmatpush1.bf16.msra.mxu0 0
        %591 = vmatprep.subr.bf16.mxu0 0
        %592 = vmatpush1.bf16.msra.mxu0 0
        %593 = vmatprep.mubr.bf16.mxu0 0
        %594 = vmatmul.mubr.bf16.gmra.mrb[0].mxu0 %v497
        %v595 = vpop.f32.mrb[0].mxu0
        %v596 = vadd.f32 %v463, %v595
        %v597 = vpop.f32.mrb[0].mxu0
        %v598 = vpop.f32.mrb[0].mxu0
        %v599 = vadd.f32 %v463, %v598
        %v600 = vpop.f32.mrb[0].mxu0
        %601 = vmatprep.mubr.bf16.mxu0 0
        %602 = vmatmul.mubr.bf16.gmra.mrb[0].mxu0 %v498
        %v603 = vpop.f32.mrb[0].mxu0
        %v604 = vadd.f32 %v463, %v603
        %v605 = vpop.f32.mrb[0].mxu0
        %v606 = vpop.f32.mrb[0].mxu0
        %v607 = vadd.f32 %v463, %v606
        %v608 = vpop.f32.mrb[0].mxu0
        %609 = vmatprep.mubr.bf16.mxu0 0
        %610 = vmatmul.mubr.bf16.gmra.mrb[0].mxu0 %v499
        %v611 = vpop.f32.mrb[0].mxu0
        %v612 = vadd.f32 %v463, %v611
        %v613 = vpop.f32.mrb[0].mxu0
        %v614 = vpop.f32.mrb[0].mxu0
        %v615 = vadd.f32 %v463, %v614
        %v616 = vpop.f32.mrb[0].mxu0
        %617 = vmatprep.mubr.bf16.mxu0 0
        %618 = vmatmul.mubr.bf16.gmra.mrb[0].mxu0 %v500
        %v619 = vpop.f32.mrb[0].mxu0
        %v620 = vadd.f32 %v463, %v619
        %v621 = vpop.f32.mrb[0].mxu0
        %v622 = vpop.f32.mrb[0].mxu0
        %v623 = vadd.f32 %v463, %v622
        %v624 = vpop.f32.mrb[0].mxu0
        %625 = vmatprep.mubr.bf16.mxu0 0
        %626 = vmatmul.mubr.bf16.gmra.mrb[0].mxu0 %v501
        %v627 = vpop.f32.mrb[0].mxu0
        %v628 = vadd.f32 %v463, %v627
        %v629 = vpop.f32.mrb[0].mxu0
        %v630 = vpop.f32.mrb[0].mxu0
        %v631 = vadd.f32 %v463, %v630
        %v632 = vpop.f32.mrb[0].mxu0
        %633 = vmatprep.mubr.bf16.mxu0 0
        %634 = vmatmul.mubr.bf16.gmra.mrb[0].mxu0 %v502
        %v635 = vpop.f32.mrb[0].mxu0
        %v636 = vadd.f32 %v463, %v635
        %v637 = vpop.f32.mrb[0].mxu0
        %v638 = vpop.f32.mrb[0].mxu0
        %v639 = vadd.f32 %v463, %v638
        %v640 = vpop.f32.mrb[0].mxu0
        %641 = vmatprep.mubr.bf16.mxu0 0
        %642 = vmatmul.mubr.bf16.gmra.mrb[0].mxu0 %v503
        %v643 = vpop.f32.mrb[0].mxu0
        %v644 = vadd.f32 %v463, %v643
        %v645 = vpop.f32.mrb[0].mxu0
        %v646 = vpop.f32.mrb[0].mxu0
        %v647 = vadd.f32 %v463, %v646
        %v648 = vpop.f32.mrb[0].mxu0
        %649 = vmatprep.mubr.bf16.mxu0 0
        %650 = vmatmul.mubr.bf16.gmra.mrb[0].mxu0 %v504
        %v651 = vpop.f32.mrb[0].mxu0
        %v652 = vadd.f32 %v463, %v651
        %v653 = vpop.f32.mrb[0].mxu0
        %v654 = vpop.f32.mrb[0].mxu0
        %v655 = vadd.f32 %v463, %v654
        %v656 = vpop.f32.mrb[0].mxu0
        %657 = vdwg.mxu0
        %v658 = vld [vmem:[%s412] sm:$0xff]
        %v659 = vld [vmem:[%s412 + $0x8] sm:$0xff]
        %v660 = vld [vmem:[%s412 + $0x10] sm:$0xff]
        %v661 = vld [vmem:[%s412 + $0x18] sm:$0xff]
        %v662 = vld [vmem:[%s412 + $0x20] sm:$0xff]
        %v663 = vld [vmem:[%s412 + $0x28] sm:$0xff]
        %v664 = vld [vmem:[%s412 + $0x30] sm:$0xff]
        %v665 = vld [vmem:[%s412 + $0x38] sm:$0xff]
        %v666 = vld [vmem:[%s412 + $0x40] sm:$0xff]
        %v667 = vld [vmem:[%s412 + $0x48] sm:$0xff]
        %v668 = vld [vmem:[%s412 + $0x50] sm:$0xff]
        %v669 = vld [vmem:[%s412 + $0x58] sm:$0xff]
        %v670 = vld [vmem:[%s412 + $0x60] sm:$0xff]
        %v671 = vld [vmem:[%s412 + $0x68] sm:$0xff]
        %v672 = vld [vmem:[%s412 + $0x70] sm:$0xff]
        %v673 = vld [vmem:[%s412 + $0x78] sm:$0xff]
        %v674 = vadd.f32 %v658, %v596
        %v675 = vadd.f32 %v659, %v599
        %v676 = vadd.f32 %v660, %v604
        %v677 = vadd.f32 %v661, %v607
        %v678 = vadd.f32 %v662, %v612
        %v679 = vadd.f32 %v663, %v615
        %v680 = vadd.f32 %v664, %v620
        %v681 = vadd.f32 %v665, %v623
        %v682 = vadd.f32 %v666, %v628
        %v683 = vadd.f32 %v667, %v631
        %v684 = vadd.f32 %v668, %v636
        %v685 = vadd.f32 %v669, %v639
        %v686 = vadd.f32 %v670, %v644
        %v687 = vadd.f32 %v671, %v647
        %v688 = vadd.f32 %v672, %v652
        %v689 = vadd.f32 %v673, %v655
        %v690 = vld [vmem:[%s4] sm:$0x1]
        %v691 = vld [vmem:[%s5] sm:$0x1]
        %692 = vadd.xlane.f32.xlu0 %v674
        %v693 = vpop.xlane.xlu0 %692
        %694 = vadd.xlane.f32.xlu0 %v675
        %v695 = vpop.xlane.xlu0 %694
        %696 = vadd.xlane.f32.xlu0 %v676
        %v697 = vpop.xlane.xlu0 %696
        %698 = vadd.xlane.f32.xlu0 %v677
        %v699 = vpop.xlane.xlu0 %698
        %700 = vadd.xlane.f32.xlu0 %v678
        %v701 = vpop.xlane.xlu0 %700
        %702 = vadd.xlane.f32.xlu0 %v679
        %v703 = vpop.xlane.xlu0 %702
        %704 = vadd.xlane.f32.xlu0 %v680
        %v705 = vpop.xlane.xlu0 %704
        %706 = vadd.xlane.f32.xlu0 %v681
        %v707 = vpop.xlane.xlu0 %706
        %708 = vadd.xlane.f32.xlu0 %v682
        %v709 = vpop.xlane.xlu0 %708
        %710 = vadd.xlane.f32.xlu0 %v683
        %v711 = vpop.xlane.xlu0 %710
        %712 = vadd.xlane.f32.xlu0 %v684
        %v713 = vpop.xlane.xlu0 %712
        %714 = vadd.xlane.f32.xlu0 %v685
        %v715 = vpop.xlane.xlu0 %714
        %716 = vadd.xlane.f32.xlu0 %v686
        %v717 = vpop.xlane.xlu0 %716
        %718 = vadd.xlane.f32.xlu0 %v687
        %v719 = vpop.xlane.xlu0 %718
        %720 = vadd.xlane.f32.xlu0 %v688
        %v721 = vpop.xlane.xlu0 %720
        %722 = vadd.xlane.f32.xlu0 %v689
        %v723 = vpop.xlane.xlu0 %722
        %v724 = vrcp.pop 128.0
        %v725 = vmul.f32 %v693, %v724
        %v726 = vmul.f32 %v695, %v724
        %v727 = vmul.f32 %v697, %v724
        %v728 = vmul.f32 %v699, %v724
        %v729 = vmul.f32 %v701, %v724
        %v730 = vmul.f32 %v703, %v724
        %v731 = vmul.f32 %v705, %v724
        %v732 = vmul.f32 %v707, %v724
        %v733 = vmul.f32 %v709, %v724
        %v734 = vmul.f32 %v711, %v724
        %v735 = vmul.f32 %v713, %v724
        %v736 = vmul.f32 %v715, %v724
        %v737 = vmul.f32 %v717, %v724
        %v738 = vmul.f32 %v719, %v724
        %v739 = vmul.f32 %v721, %v724
        %v740 = vmul.f32 %v723, %v724
        %v741 = vsub.f32 %v674, %v725
        %v742 = vsub.f32 %v675, %v726
        %v743 = vsub.f32 %v676, %v727
        %v744 = vsub.f32 %v677, %v728
        %v745 = vsub.f32 %v678, %v729
        %v746 = vsub.f32 %v679, %v730
        %v747 = vsub.f32 %v680, %v731
        %v748 = vsub.f32 %v681, %v732
        %v749 = vsub.f32 %v682, %v733
        %v750 = vsub.f32 %v683, %v734
        %v751 = vsub.f32 %v684, %v735
        %v752 = vsub.f32 %v685, %v736
        %v753 = vsub.f32 %v686, %v737
        %v754 = vsub.f32 %v687, %v738
        %v755 = vsub.f32 %v688, %v739
        %v756 = vsub.f32 %v689, %v740
        %v757 = vmul.f32 %v741, %v741
        %v758 = vmul.f32 %v742, %v742
        %v759 = vmul.f32 %v743, %v743
        %v760 = vmul.f32 %v744, %v744
        %v761 = vmul.f32 %v745, %v745
        %v762 = vmul.f32 %v746, %v746
        %v763 = vmul.f32 %v747, %v747
        %v764 = vmul.f32 %v748, %v748
        %v765 = vmul.f32 %v749, %v749
        %v766 = vmul.f32 %v750, %v750
        %v767 = vmul.f32 %v751, %v751
        %v768 = vmul.f32 %v752, %v752
        %v769 = vmul.f32 %v753, %v753
        %v770 = vmul.f32 %v754, %v754
        %v771 = vmul.f32 %v755, %v755
        %v772 = vmul.f32 %v756, %v756
        %773 = vadd.xlane.f32.xlu0 %v757
        %v774 = vpop.xlane.xlu0 %773
        %775 = vadd.xlane.f32.xlu0 %v758
        %v776 = vpop.xlane.xlu0 %775
        %777 = vadd.xlane.f32.xlu0 %v759
        %v778 = vpop.xlane.xlu0 %777
        %779 = vadd.xlane.f32.xlu0 %v760
        %v780 = vpop.xlane.xlu0 %779
        %781 = vadd.xlane.f32.xlu0 %v761
        %v782 = vpop.xlane.xlu0 %781
        %783 = vadd.xlane.f32.xlu0 %v762
        %v784 = vpop.xlane.xlu0 %783
        %785 = vadd.xlane.f32.xlu0 %v763
        %v786 = vpop.xlane.xlu0 %785
        %787 = vadd.xlane.f32.xlu0 %v764
        %v788 = vpop.xlane.xlu0 %787
        %789 = vadd.xlane.f32.xlu0 %v765
        %v790 = vpop.xlane.xlu0 %789
        %791 = vadd.xlane.f32.xlu0 %v766
        %v792 = vpop.xlane.xlu0 %791
        %793 = vadd.xlane.f32.xlu0 %v767
        %v794 = vpop.xlane.xlu0 %793
        %795 = vadd.xlane.f32.xlu0 %v768
        %v796 = vpop.xlane.xlu0 %795
        %797 = vadd.xlane.f32.xlu0 %v769
        %v798 = vpop.xlane.xlu0 %797
        %799 = vadd.xlane.f32.xlu0 %v770
        %v800 = vpop.xlane.xlu0 %799
        %801 = vadd.xlane.f32.xlu0 %v771
        %v802 = vpop.xlane.xlu0 %801
        %803 = vadd.xlane.f32.xlu0 %v772
        %v804 = vpop.xlane.xlu0 %803
        %v805 = vmul.f32 %v774, %v724
        %v806 = vmul.f32 %v776, %v724
        %v807 = vmul.f32 %v778, %v724
        %v808 = vmul.f32 %v780, %v724
        %v809 = vmul.f32 %v782, %v724
        %v810 = vmul.f32 %v784, %v724
        %v811 = vmul.f32 %v786, %v724
        %v812 = vmul.f32 %v788, %v724
        %v813 = vmul.f32 %v790, %v724
        %v814 = vmul.f32 %v792, %v724
        %v815 = vmul.f32 %v794, %v724
        %v816 = vmul.f32 %v796, %v724
        %v817 = vmul.f32 %v798, %v724
        %v818 = vmul.f32 %v800, %v724
        %v819 = vmul.f32 %v802, %v724
        %v820 = vmul.f32 %v804, %v724
        %v821 = vadd.f32 %v805, 1e-06
        %v822 = vadd.f32 %v806, 1e-06
        %v823 = vadd.f32 %v807, 1e-06
        %v824 = vadd.f32 %v808, 1e-06
        %v825 = vadd.f32 %v809, 1e-06
        %v826 = vadd.f32 %v810, 1e-06
        %v827 = vadd.f32 %v811, 1e-06
        %v828 = vadd.f32 %v812, 1e-06
        %v829 = vadd.f32 %v813, 1e-06
        %v830 = vadd.f32 %v814, 1e-06
        %v831 = vadd.f32 %v815, 1e-06
        %v832 = vadd.f32 %v816, 1e-06
        %v833 = vadd.f32 %v817, 1e-06
        %v834 = vadd.f32 %v818, 1e-06
        %v835 = vadd.f32 %v819, 1e-06
        %v836 = vadd.f32 %v820, 1e-06
        %v837 = vrsqrt.pop %v821
        %v838 = vrsqrt.pop %v822
        %v839 = vrsqrt.pop %v823
        %v840 = vrsqrt.pop %v824
        %v841 = vrsqrt.pop %v825
        %v842 = vrsqrt.pop %v826
        %v843 = vrsqrt.pop %v827
        %v844 = vrsqrt.pop %v828
        %v845 = vrsqrt.pop %v829
        %v846 = vrsqrt.pop %v830
        %v847 = vrsqrt.pop %v831
        %v848 = vrsqrt.pop %v832
        %v849 = vrsqrt.pop %v833
        %v850 = vrsqrt.pop %v834
        %v851 = vrsqrt.pop %v835
        %v852 = vrsqrt.pop %v836
        %v853 = vmul.f32 %v741, %v837
        %v854 = vmul.f32 %v742, %v838
        %v855 = vmul.f32 %v743, %v839
        %v856 = vmul.f32 %v744, %v840
        %v857 = vmul.f32 %v745, %v841
        %v858 = vmul.f32 %v746, %v842
        %v859 = vmul.f32 %v747, %v843
        %v860 = vmul.f32 %v748, %v844
        %v861 = vmul.f32 %v749, %v845
        %v862 = vmul.f32 %v750, %v846
        %v863 = vmul.f32 %v751, %v847
        %v864 = vmul.f32 %v752, %v848
        %v865 = vmul.f32 %v753, %v849
        %v866 = vmul.f32 %v754, %v850
        %v867 = vmul.f32 %v755, %v851
        %v868 = vmul.f32 %v756, %v852
        %v870 = vlaneseq
        %v871 = vshrl.u32 %v870, 7
        %v872 = vsub.s32 0, %v871
        %v873 = vrot.slane %v690, %v872
        %v875 = vmul.f32 %v853, %v873
        %v876 = vmul.f32 %v854, %v873
        %v877 = vmul.f32 %v855, %v873
        %v878 = vmul.f32 %v856, %v873
        %v879 = vmul.f32 %v857, %v873
        %v880 = vmul.f32 %v858, %v873
        %v881 = vmul.f32 %v859, %v873
        %v882 = vmul.f32 %v860, %v873
        %v883 = vmul.f32 %v861, %v873
        %v884 = vmul.f32 %v862, %v873
        %v885 = vmul.f32 %v863, %v873
        %v886 = vmul.f32 %v864, %v873
        %v887 = vmul.f32 %v865, %v873
        %v888 = vmul.f32 %v866, %v873
        %v889 = vmul.f32 %v867, %v873
        %v890 = vmul.f32 %v868, %v873
        %v892 = vlaneseq
        %v893 = vshrl.u32 %v892, 7
        %v894 = vsub.s32 0, %v893
        %v895 = vrot.slane %v691, %v894
        %v897 = vadd.f32 %v875, %v895
        %v898 = vadd.f32 %v876, %v895
        %v899 = vadd.f32 %v877, %v895
        %v900 = vadd.f32 %v878, %v895
        %v901 = vadd.f32 %v879, %v895
        %v902 = vadd.f32 %v880, %v895
        %v903 = vadd.f32 %v881, %v895
        %v904 = vadd.f32 %v882, %v895
        %v905 = vadd.f32 %v883, %v895
        %v906 = vadd.f32 %v884, %v895
        %v907 = vadd.f32 %v885, %v895
        %v908 = vadd.f32 %v886, %v895
        %v909 = vadd.f32 %v887, %v895
        %v910 = vadd.f32 %v888, %v895
        %v911 = vadd.f32 %v889, %v895
        %v912 = vadd.f32 %v890, %v895
        %v913 = vpack.c.bf16 %v898, %v897
        %v914 = vpack.c.bf16 %v900, %v899
        %v915 = vpack.c.bf16 %v902, %v901
        %v916 = vpack.c.bf16 %v904, %v903
        %v917 = vpack.c.bf16 %v906, %v905
        %v918 = vpack.c.bf16 %v908, %v907
        %v919 = vpack.c.bf16 %v910, %v909
        %v920 = vpack.c.bf16 %v912, %v911
        %v921 = vld [vmem:[%s6] sm:$0xff]
        %v922 = vld [vmem:[%s6 + $0x8] sm:$0xff]
        %v923 = vld [vmem:[%s6 + $0x10] sm:$0xff]
        %v924 = vld [vmem:[%s6 + $0x18] sm:$0xff]
        %v925 = vld [vmem:[%s6 + $0x20] sm:$0xff]
        %v926 = vld [vmem:[%s6 + $0x28] sm:$0xff]
        %v927 = vld [vmem:[%s6 + $0x30] sm:$0xff]
        %v928 = vld [vmem:[%s6 + $0x38] sm:$0xff]
        %v929 = vld [vmem:[%s6 + $0x40] sm:$0xff]
        %v930 = vld [vmem:[%s6 + $0x48] sm:$0xff]
        %v931 = vld [vmem:[%s6 + $0x50] sm:$0xff]
        %v932 = vld [vmem:[%s6 + $0x58] sm:$0xff]
        %v933 = vld [vmem:[%s6 + $0x60] sm:$0xff]
        %v934 = vld [vmem:[%s6 + $0x68] sm:$0xff]
        %v935 = vld [vmem:[%s6 + $0x70] sm:$0xff]
        %v936 = vld [vmem:[%s6 + $0x78] sm:$0xff]
        %v937 = vld [vmem:[%s6 + $0x80] sm:$0xff]
        %v938 = vld [vmem:[%s6 + $0x88] sm:$0xff]
        %v939 = vld [vmem:[%s6 + $0x90] sm:$0xff]
        %v940 = vld [vmem:[%s6 + $0x98] sm:$0xff]
        %v941 = vld [vmem:[%s6 + $0xa0] sm:$0xff]
        %v942 = vld [vmem:[%s6 + $0xa8] sm:$0xff]
        %v943 = vld [vmem:[%s6 + $0xb0] sm:$0xff]
        %v944 = vld [vmem:[%s6 + $0xb8] sm:$0xff]
        %v945 = vld [vmem:[%s6 + $0xc0] sm:$0xff]
        %v946 = vld [vmem:[%s6 + $0xc8] sm:$0xff]
        %v947 = vld [vmem:[%s6 + $0xd0] sm:$0xff]
        %v948 = vld [vmem:[%s6 + $0xd8] sm:$0xff]
        %v949 = vld [vmem:[%s6 + $0xe0] sm:$0xff]
        %v950 = vld [vmem:[%s6 + $0xe8] sm:$0xff]
        %v951 = vld [vmem:[%s6 + $0xf0] sm:$0xff]
        %v952 = vld [vmem:[%s6 + $0xf8] sm:$0xff]
        %v953 = vld [vmem:[%s6 + $0x100] sm:$0xff]
        %v954 = vld [vmem:[%s6 + $0x108] sm:$0xff]
        %v955 = vld [vmem:[%s6 + $0x110] sm:$0xff]
        %v956 = vld [vmem:[%s6 + $0x118] sm:$0xff]
        %v957 = vld [vmem:[%s6 + $0x120] sm:$0xff]
        %v958 = vld [vmem:[%s6 + $0x128] sm:$0xff]
        %v959 = vld [vmem:[%s6 + $0x130] sm:$0xff]
        %v960 = vld [vmem:[%s6 + $0x138] sm:$0xff]
        %v961 = vld [vmem:[%s6 + $0x140] sm:$0xff]
        %v962 = vld [vmem:[%s6 + $0x148] sm:$0xff]
        %v963 = vld [vmem:[%s6 + $0x150] sm:$0xff]
        %v964 = vld [vmem:[%s6 + $0x158] sm:$0xff]
        %v965 = vld [vmem:[%s6 + $0x160] sm:$0xff]
        %v966 = vld [vmem:[%s6 + $0x168] sm:$0xff]
        %v967 = vld [vmem:[%s6 + $0x170] sm:$0xff]
        %v968 = vld [vmem:[%s6 + $0x178] sm:$0xff]
        %v969 = vld [vmem:[%s6 + $0x180] sm:$0xff]
        %v970 = vld [vmem:[%s6 + $0x188] sm:$0xff]
        %v971 = vld [vmem:[%s6 + $0x190] sm:$0xff]
        %v972 = vld [vmem:[%s6 + $0x198] sm:$0xff]
        %v973 = vld [vmem:[%s6 + $0x1a0] sm:$0xff]
        %v974 = vld [vmem:[%s6 + $0x1a8] sm:$0xff]
        %v975 = vld [vmem:[%s6 + $0x1b0] sm:$0xff]
        %v976 = vld [vmem:[%s6 + $0x1b8] sm:$0xff]
        %v977 = vld [vmem:[%s6 + $0x1c0] sm:$0xff]
        %v978 = vld [vmem:[%s6 + $0x1c8] sm:$0xff]
        %v979 = vld [vmem:[%s6 + $0x1d0] sm:$0xff]
        %v980 = vld [vmem:[%s6 + $0x1d8] sm:$0xff]
        %v981 = vld [vmem:[%s6 + $0x1e0] sm:$0xff]
        %v982 = vld [vmem:[%s6 + $0x1e8] sm:$0xff]
        %v983 = vld [vmem:[%s6 + $0x1f0] sm:$0xff]
        %v984 = vld [vmem:[%s6 + $0x1f8] sm:$0xff]
        %v985 = vld [vmem:[%s7] sm:$0xff]
        %v987 = vlaneseq
        %v988 = vshrl.u32 %v987, 7
        %v989 = vsub.s32 0, %v988
        %v990 = vrot.slane %v985, %v989
        %v991 = vlaneseq
        %v992 = vshrl.u32 %v991, 7
        %v993 = vsub.s32 1, %v992
        %v994 = vrot.slane %v985, %v993
        %v995 = vlaneseq
        %v996 = vshrl.u32 %v995, 7
        %v997 = vsub.s32 2, %v996
        %v998 = vrot.slane %v985, %v997
        %v999 = vlaneseq
        %v1000 = vshrl.u32 %v999, 7
        %v1001 = vsub.s32 3, %v1000
        %v1002 = vrot.slane %v985, %v1001
        %v1003 = vlaneseq
        %v1004 = vshrl.u32 %v1003, 7
        %v1005 = vsub.s32 4, %v1004
        %v1006 = vrot.slane %v985, %v1005
        %v1007 = vlaneseq
        %v1008 = vshrl.u32 %v1007, 7
        %v1009 = vsub.s32 5, %v1008
        %v1010 = vrot.slane %v985, %v1009
        %v1011 = vlaneseq
        %v1012 = vshrl.u32 %v1011, 7
        %v1013 = vsub.s32 6, %v1012
        %v1014 = vrot.slane %v985, %v1013
        %v1015 = vlaneseq
        %v1016 = vshrl.u32 %v1015, 7
        %v1017 = vsub.s32 7, %v1016
        %v1018 = vrot.slane %v985, %v1017
        %v1091 = vunpack.c.l.b16 %v921
        %v1092 = vunpack.c.h.b16 %v921
        %v1093 = vunpack.c.l.b16 %v922
        %v1094 = vunpack.c.h.b16 %v922
        %v1095 = vunpack.c.l.b16 %v923
        %v1096 = vunpack.c.h.b16 %v923
        %v1097 = vunpack.c.l.b16 %v924
        %v1098 = vunpack.c.h.b16 %v924
        %v1099 = vunpack.c.l.b16 %v925
        %v1100 = vunpack.c.h.b16 %v925
        %v1101 = vunpack.c.l.b16 %v926
        %v1102 = vunpack.c.h.b16 %v926
        %v1103 = vunpack.c.l.b16 %v927
        %v1104 = vunpack.c.h.b16 %v927
        %v1105 = vunpack.c.l.b16 %v928
        %v1106 = vunpack.c.h.b16 %v928
        %v1107 = vunpack.c.l.b16 %v929
        %v1108 = vunpack.c.h.b16 %v929
        %v1109 = vunpack.c.l.b16 %v930
        %v1110 = vunpack.c.h.b16 %v930
        %v1111 = vunpack.c.l.b16 %v931
        %v1112 = vunpack.c.h.b16 %v931
        %v1113 = vunpack.c.l.b16 %v932
        %v1114 = vunpack.c.h.b16 %v932
        %v1115 = vunpack.c.l.b16 %v933
        %v1116 = vunpack.c.h.b16 %v933
        %v1117 = vunpack.c.l.b16 %v934
        %v1118 = vunpack.c.h.b16 %v934
        %v1119 = vunpack.c.l.b16 %v935
        %v1120 = vunpack.c.h.b16 %v935
        %v1121 = vunpack.c.l.b16 %v936
        %v1122 = vunpack.c.h.b16 %v936
        %v1123 = vunpack.c.l.b16 %v937
        %v1124 = vunpack.c.h.b16 %v937
        %v1125 = vunpack.c.l.b16 %v938
        %v1126 = vunpack.c.h.b16 %v938
        %v1127 = vunpack.c.l.b16 %v939
        %v1128 = vunpack.c.h.b16 %v939
        %v1129 = vunpack.c.l.b16 %v940
        %v1130 = vunpack.c.h.b16 %v940
        %v1131 = vunpack.c.l.b16 %v941
        %v1132 = vunpack.c.h.b16 %v941
        %v1133 = vunpack.c.l.b16 %v942
        %v1134 = vunpack.c.h.b16 %v942
        %v1135 = vunpack.c.l.b16 %v943
        %v1136 = vunpack.c.h.b16 %v943
        %v1137 = vunpack.c.l.b16 %v944
        %v1138 = vunpack.c.h.b16 %v944
        %v1139 = vunpack.c.l.b16 %v945
        %v1140 = vunpack.c.h.b16 %v945
        %v1141 = vunpack.c.l.b16 %v946
        %v1142 = vunpack.c.h.b16 %v946
        %v1143 = vunpack.c.l.b16 %v947
        %v1144 = vunpack.c.h.b16 %v947
        %v1145 = vunpack.c.l.b16 %v948
        %v1146 = vunpack.c.h.b16 %v948
        %v1147 = vunpack.c.l.b16 %v949
        %v1148 = vunpack.c.h.b16 %v949
        %v1149 = vunpack.c.l.b16 %v950
        %v1150 = vunpack.c.h.b16 %v950
        %v1151 = vunpack.c.l.b16 %v951
        %v1152 = vunpack.c.h.b16 %v951
        %v1153 = vunpack.c.l.b16 %v952
        %v1154 = vunpack.c.h.b16 %v952
        %v1155 = vunpack.c.l.b16 %v953
        %v1156 = vunpack.c.h.b16 %v953
        %v1157 = vunpack.c.l.b16 %v954
        %v1158 = vunpack.c.h.b16 %v954
        %v1159 = vunpack.c.l.b16 %v955
        %v1160 = vunpack.c.h.b16 %v955
        %v1161 = vunpack.c.l.b16 %v956
        %v1162 = vunpack.c.h.b16 %v956
        %v1163 = vunpack.c.l.b16 %v957
        %v1164 = vunpack.c.h.b16 %v957
        %v1165 = vunpack.c.l.b16 %v958
        %v1166 = vunpack.c.h.b16 %v958
        %v1167 = vunpack.c.l.b16 %v959
        %v1168 = vunpack.c.h.b16 %v959
        %v1169 = vunpack.c.l.b16 %v960
        %v1170 = vunpack.c.h.b16 %v960
        %v1171 = vunpack.c.l.b16 %v961
        %v1172 = vunpack.c.h.b16 %v961
        %v1173 = vunpack.c.l.b16 %v962
        %v1174 = vunpack.c.h.b16 %v962
        %v1175 = vunpack.c.l.b16 %v963
        %v1176 = vunpack.c.h.b16 %v963
        %v1177 = vunpack.c.l.b16 %v964
        %v1178 = vunpack.c.h.b16 %v964
        %v1179 = vunpack.c.l.b16 %v965
        %v1180 = vunpack.c.h.b16 %v965
        %v1181 = vunpack.c.l.b16 %v966
        %v1182 = vunpack.c.h.b16 %v966
        %v1183 = vunpack.c.l.b16 %v967
        %v1184 = vunpack.c.h.b16 %v967
        %v1185 = vunpack.c.l.b16 %v968
        %v1186 = vunpack.c.h.b16 %v968
        %v1187 = vunpack.c.l.b16 %v969
        %v1188 = vunpack.c.h.b16 %v969
        %v1189 = vunpack.c.l.b16 %v970
        %v1190 = vunpack.c.h.b16 %v970
        %v1191 = vunpack.c.l.b16 %v971
        %v1192 = vunpack.c.h.b16 %v971
        %v1193 = vunpack.c.l.b16 %v972
        %v1194 = vunpack.c.h.b16 %v972
        %v1195 = vunpack.c.l.b16 %v973
        %v1196 = vunpack.c.h.b16 %v973
        %v1197 = vunpack.c.l.b16 %v974
        %v1198 = vunpack.c.h.b16 %v974
        %v1199 = vunpack.c.l.b16 %v975
        %v1200 = vunpack.c.h.b16 %v975
        %v1201 = vunpack.c.l.b16 %v976
        %v1202 = vunpack.c.h.b16 %v976
        %v1203 = vunpack.c.l.b16 %v977
        %v1204 = vunpack.c.h.b16 %v977
        %v1205 = vunpack.c.l.b16 %v978
        %v1206 = vunpack.c.h.b16 %v978
        %v1207 = vunpack.c.l.b16 %v979
        %v1208 = vunpack.c.h.b16 %v979
        %v1209 = vunpack.c.l.b16 %v980
        %v1210 = vunpack.c.h.b16 %v980
        %v1211 = vunpack.c.l.b16 %v981
        %v1212 = vunpack.c.h.b16 %v981
        %v1213 = vunpack.c.l.b16 %v982
        %v1214 = vunpack.c.h.b16 %v982
        %v1215 = vunpack.c.l.b16 %v983
        %v1216 = vunpack.c.h.b16 %v983
        %v1217 = vunpack.c.l.b16 %v984
        %v1218 = vunpack.c.h.b16 %v984
        %v1219 = vpack.c.b16 %v1099, %v1091
        %v1220 = vpack.c.b16 %v1100, %v1092
        %v1221 = vpack.c.b16 %v1101, %v1093
        %v1222 = vpack.c.b16 %v1102, %v1094
        %v1223 = vpack.c.b16 %v1103, %v1095
        %v1224 = vpack.c.b16 %v1104, %v1096
        %v1225 = vpack.c.b16 %v1105, %v1097
        %v1226 = vpack.c.b16 %v1106, %v1098
        %v1227 = vpack.c.b16 %v1115, %v1107
        %v1228 = vpack.c.b16 %v1116, %v1108
        %v1229 = vpack.c.b16 %v1117, %v1109
        %v1230 = vpack.c.b16 %v1118, %v1110
        %v1231 = vpack.c.b16 %v1119, %v1111
        %v1232 = vpack.c.b16 %v1120, %v1112
        %v1233 = vpack.c.b16 %v1121, %v1113
        %v1234 = vpack.c.b16 %v1122, %v1114
        %v1235 = vpack.c.b16 %v1131, %v1123
        %v1236 = vpack.c.b16 %v1132, %v1124
        %v1237 = vpack.c.b16 %v1133, %v1125
        %v1238 = vpack.c.b16 %v1134, %v1126
        %v1239 = vpack.c.b16 %v1135, %v1127
        %v1240 = vpack.c.b16 %v1136, %v1128
        %v1241 = vpack.c.b16 %v1137, %v1129
        %v1242 = vpack.c.b16 %v1138, %v1130
        %v1243 = vpack.c.b16 %v1147, %v1139
        %v1244 = vpack.c.b16 %v1148, %v1140
        %v1245 = vpack.c.b16 %v1149, %v1141
        %v1246 = vpack.c.b16 %v1150, %v1142
        %v1247 = vpack.c.b16 %v1151, %v1143
        %v1248 = vpack.c.b16 %v1152, %v1144
        %v1249 = vpack.c.b16 %v1153, %v1145
        %v1250 = vpack.c.b16 %v1154, %v1146
        %v1251 = vpack.c.b16 %v1163, %v1155
        %v1252 = vpack.c.b16 %v1164, %v1156
        %v1253 = vpack.c.b16 %v1165, %v1157
        %v1254 = vpack.c.b16 %v1166, %v1158
        %v1255 = vpack.c.b16 %v1167, %v1159
        %v1256 = vpack.c.b16 %v1168, %v1160
        %v1257 = vpack.c.b16 %v1169, %v1161
        %v1258 = vpack.c.b16 %v1170, %v1162
        %v1259 = vpack.c.b16 %v1179, %v1171
        %v1260 = vpack.c.b16 %v1180, %v1172
        %v1261 = vpack.c.b16 %v1181, %v1173
        %v1262 = vpack.c.b16 %v1182, %v1174
        %v1263 = vpack.c.b16 %v1183, %v1175
        %v1264 = vpack.c.b16 %v1184, %v1176
        %v1265 = vpack.c.b16 %v1185, %v1177
        %v1266 = vpack.c.b16 %v1186, %v1178
        %v1267 = vpack.c.b16 %v1195, %v1187
        %v1268 = vpack.c.b16 %v1196, %v1188
        %v1269 = vpack.c.b16 %v1197, %v1189
        %v1270 = vpack.c.b16 %v1198, %v1190
        %v1271 = vpack.c.b16 %v1199, %v1191
        %v1272 = vpack.c.b16 %v1200, %v1192
        %v1273 = vpack.c.b16 %v1201, %v1193
        %v1274 = vpack.c.b16 %v1202, %v1194
        %v1275 = vpack.c.b16 %v1211, %v1203
        %v1276 = vpack.c.b16 %v1212, %v1204
        %v1277 = vpack.c.b16 %v1213, %v1205
        %v1278 = vpack.c.b16 %v1214, %v1206
        %v1279 = vpack.c.b16 %v1215, %v1207
        %v1280 = vpack.c.b16 %v1216, %v1208
        %v1281 = vpack.c.b16 %v1217, %v1209
        %v1282 = vpack.c.b16 %v1218, %v1210
        %1347 = vmatprep.subr.bf16.mxu0 %v1220
        %1348 = vmatpush1.bf16.msra.mxu0 %v1219
        %1349 = vmatprep.subr.bf16.mxu0 %v1228
        %1350 = vmatpush1.bf16.msra.mxu0 %v1227
        %1351 = vmatprep.subr.bf16.mxu0 %v1236
        %1352 = vmatpush1.bf16.msra.mxu0 %v1235
        %1353 = vmatprep.subr.bf16.mxu0 %v1244
        %1354 = vmatpush1.bf16.msra.mxu0 %v1243
        %1355 = vmatprep.subr.bf16.mxu0 %v1252
        %1356 = vmatpush1.bf16.msra.mxu0 %v1251
        %1357 = vmatprep.subr.bf16.mxu0 %v1260
        %1358 = vmatpush1.bf16.msra.mxu0 %v1259
        %1359 = vmatprep.subr.bf16.mxu0 %v1268
        %1360 = vmatpush1.bf16.msra.mxu0 %v1267
        %1361 = vmatprep.subr.bf16.mxu0 %v1276
        %1362 = vmatpush1.bf16.msra.mxu0 %v1275
        %1363 = vmatprep.subr.bf16.mxu0 0
        %1364 = vmatpush1.bf16.msra.mxu0 0
        %1365 = vmatprep.subr.bf16.mxu0 0
        %1366 = vmatpush1.bf16.msra.mxu0 0
        %1367 = vmatprep.subr.bf16.mxu0 0
        %1368 = vmatpush1.bf16.msra.mxu0 0
        %1369 = vmatprep.subr.bf16.mxu0 0
        %1370 = vmatpush1.bf16.msra.mxu0 0
        %1371 = vmatprep.subr.bf16.mxu0 0
        %1372 = vmatpush1.bf16.msra.mxu0 0
        %1373 = vmatprep.subr.bf16.mxu0 0
        %1374 = vmatpush1.bf16.msra.mxu0 0
        %1375 = vmatprep.subr.bf16.mxu0 0
        %1376 = vmatpush1.bf16.msra.mxu0 0
        %1377 = vmatprep.subr.bf16.mxu0 0
        %1378 = vmatpush1.bf16.msra.mxu0 0
        %1379 = vmatprep.mubr.bf16.mxu0 0
        %1380 = vmatmul.mubr.bf16.gmra.mrb[0].mxu0 %v913
        %v1381 = vpop.f32.mrb[0].mxu0
        %v1382 = vadd.f32 %v990, %v1381
        %v1383 = vpop.f32.mrb[0].mxu0
        %v1384 = vadd.f32 %v994, %v1383
        %v1385 = vpop.f32.mrb[0].mxu0
        %v1386 = vadd.f32 %v990, %v1385
        %v1387 = vpop.f32.mrb[0].mxu0
        %v1388 = vadd.f32 %v994, %v1387
        %1389 = vmatprep.mubr.bf16.mxu0 0
        %1390 = vmatmul.mubr.bf16.gmra.mrb[0].mxu0 %v914
        %v1391 = vpop.f32.mrb[0].mxu0
        %v1392 = vadd.f32 %v990, %v1391
        %v1393 = vpop.f32.mrb[0].mxu0
        %v1394 = vadd.f32 %v994, %v1393
        %v1395 = vpop.f32.mrb[0].mxu0
        %v1396 = vadd.f32 %v990, %v1395
        %v1397 = vpop.f32.mrb[0].mxu0
        %v1398 = vadd.f32 %v994, %v1397
        %1399 = vmatprep.mubr.bf16.mxu0 0
        %1400 = vmatmul.mubr.bf16.gmra.mrb[0].mxu0 %v915
        %v1401 = vpop.f32.mrb[0].mxu0
        %v1402 = vadd.f32 %v990, %v1401
        %v1403 = vpop.f32.mrb[0].mxu0
        %v1404 = vadd.f32 %v994, %v1403
        %v1405 = vpop.f32.mrb[0].mxu0
        %v1406 = vadd.f32 %v990, %v1405
        %v1407 = vpop.f32.mrb[0].mxu0
        %v1408 = vadd.f32 %v994, %v1407
        %1409 = vmatprep.mubr.bf16.mxu0 0
        %1410 = vmatmul.mubr.bf16.gmra.mrb[0].mxu0 %v916
        %v1411 = vpop.f32.mrb[0].mxu0
        %v1412 = vadd.f32 %v990, %v1411
        %v1413 = vpop.f32.mrb[0].mxu0
        %v1414 = vadd.f32 %v994, %v1413
        %v1415 = vpop.f32.mrb[0].mxu0
        %v1416 = vadd.f32 %v990, %v1415
        %v1417 = vpop.f32.mrb[0].mxu0
        %v1418 = vadd.f32 %v994, %v1417
        %1419 = vmatprep.mubr.bf16.mxu0 0
        %1420 = vmatmul.mubr.bf16.gmra.mrb[0].mxu0 %v917
        %v1421 = vpop.f32.mrb[0].mxu0
        %v1422 = vadd.f32 %v990, %v1421
        %v1423 = vpop.f32.mrb[0].mxu0
        %v1424 = vadd.f32 %v994, %v1423
        %v1425 = vpop.f32.mrb[0].mxu0
        %v1426 = vadd.f32 %v990, %v1425
        %v1427 = vpop.f32.mrb[0].mxu0
        %v1428 = vadd.f32 %v994, %v1427
        %1429 = vmatprep.mubr.bf16.mxu0 0
        %1430 = vmatmul.mubr.bf16.gmra.mrb[0].mxu0 %v918
        %v1431 = vpop.f32.mrb[0].mxu0
        %v1432 = vadd.f32 %v990, %v1431
        %v1433 = vpop.f32.mrb[0].mxu0
        %v1434 = vadd.f32 %v994, %v1433
        %v1435 = vpop.f32.mrb[0].mxu0
        %v1436 = vadd.f32 %v990, %v1435
        %v1437 = vpop.f32.mrb[0].mxu0
        %v1438 = vadd.f32 %v994, %v1437
        %1439 = vmatprep.mubr.bf16.mxu0 0
        %1440 = vmatmul.mubr.bf16.gmra.mrb[0].mxu0 %v919
        %v1441 = vpop.f32.mrb[0].mxu0
        %v1442 = vadd.f32 %v990, %v1441
        %v1443 = vpop.f32.mrb[0].mxu0
        %v1444 = vadd.f32 %v994, %v1443
        %v1445 = vpop.f32.mrb[0].mxu0
        %v1446 = vadd.f32 %v990, %v1445
        %v1447 = vpop.f32.mrb[0].mxu0
        %v1448 = vadd.f32 %v994, %v1447
        %1449 = vmatprep.mubr.bf16.mxu0 0
        %1450 = vmatmul.mubr.bf16.gmra.mrb[0].mxu0 %v920
        %v1451 = vpop.f32.mrb[0].mxu0
        %v1452 = vadd.f32 %v990, %v1451
        %v1453 = vpop.f32.mrb[0].mxu0
        %v1454 = vadd.f32 %v994, %v1453
        %v1455 = vpop.f32.mrb[0].mxu0
        %v1456 = vadd.f32 %v990, %v1455
        %v1457 = vpop.f32.mrb[0].mxu0
        %v1458 = vadd.f32 %v994, %v1457
        %1459 = vdwg.mxu0
        %1460 = vmatprep.subr.bf16.mxu0 %v1222
        %1461 = vmatpush1.bf16.msra.mxu0 %v1221
        %1462 = vmatprep.subr.bf16.mxu0 %v1230
        %1463 = vmatpush1.bf16.msra.mxu0 %v1229
        %1464 = vmatprep.subr.bf16.mxu0 %v1238
        %1465 = vmatpush1.bf16.msra.mxu0 %v1237
        %1466 = vmatprep.subr.bf16.mxu0 %v1246
        %1467 = vmatpush1.bf16.msra.mxu0 %v1245
        %1468 = vmatprep.subr.bf16.mxu0 %v1254
        %1469 = vmatpush1.bf16.msra.mxu0 %v1253
        %1470 = vmatprep.subr.bf16.mxu0 %v1262
        %1471 = vmatpush1.bf16.msra.mxu0 %v1261
        %1472 = vmatprep.subr.bf16.mxu0 %v1270
        %1473 = vmatpush1.bf16.msra.mxu0 %v1269
        %1474 = vmatprep.subr.bf16.mxu0 %v1278
        %1475 = vmatpush1.bf16.msra.mxu0 %v1277
        %1476 = vmatprep.subr.bf16.mxu0 0
        %1477 = vmatpush1.bf16.msra.mxu0 0
        %1478 = vmatprep.subr.bf16.mxu0 0
        %1479 = vmatpush1.bf16.msra.mxu0 0
        %1480 = vmatprep.subr.bf16.mxu0 0
        %1481 = vmatpush1.bf16.msra.mxu0 0
        %1482 = vmatprep.subr.bf16.mxu0 0
        %1483 = vmatpush1.bf16.msra.mxu0 0
        %1484 = vmatprep.subr.bf16.mxu0 0
        %1485 = vmatpush1.bf16.msra.mxu0 0
        %1486 = vmatprep.subr.bf16.mxu0 0
        %1487 = vmatpush1.bf16.msra.mxu0 0
        %1488 = vmatprep.subr.bf16.mxu0 0
        %1489 = vmatpush1.bf16.msra.mxu0 0
        %1490 = vmatprep.subr.bf16.mxu0 0
        %1491 = vmatpush1.bf16.msra.mxu0 0
        %1492 = vmatprep.mubr.bf16.mxu0 0
        %1493 = vmatmul.mubr.bf16.gmra.mrb[0].mxu0 %v913
        %v1494 = vpop.f32.mrb[0].mxu0
        %v1495 = vadd.f32 %v998, %v1494
        %v1496 = vpop.f32.mrb[0].mxu0
        %v1497 = vadd.f32 %v1002, %v1496
        %v1498 = vpop.f32.mrb[0].mxu0
        %v1499 = vadd.f32 %v998, %v1498
        %v1500 = vpop.f32.mrb[0].mxu0
        %v1501 = vadd.f32 %v1002, %v1500
        %1502 = vmatprep.mubr.bf16.mxu0 0
        %1503 = vmatmul.mubr.bf16.gmra.mrb[0].mxu0 %v914
        %v1504 = vpop.f32.mrb[0].mxu0
        %v1505 = vadd.f32 %v998, %v1504
        %v1506 = vpop.f32.mrb[0].mxu0
        %v1507 = vadd.f32 %v1002, %v1506
        %v1508 = vpop.f32.mrb[0].mxu0
        %v1509 = vadd.f32 %v998, %v1508
        %v1510 = vpop.f32.mrb[0].mxu0
        %v1511 = vadd.f32 %v1002, %v1510
        %1512 = vmatprep.mubr.bf16.mxu0 0
        %1513 = vmatmul.mubr.bf16.gmra.mrb[0].mxu0 %v915
        %v1514 = vpop.f32.mrb[0].mxu0
        %v1515 = vadd.f32 %v998, %v1514
        %v1516 = vpop.f32.mrb[0].mxu0
        %v1517 = vadd.f32 %v1002, %v1516
        %v1518 = vpop.f32.mrb[0].mxu0
        %v1519 = vadd.f32 %v998, %v1518
        %v1520 = vpop.f32.mrb[0].mxu0
        %v1521 = vadd.f32 %v1002, %v1520
        %1522 = vmatprep.mubr.bf16.mxu0 0
        %1523 = vmatmul.mubr.bf16.gmra.mrb[0].mxu0 %v916
        %v1524 = vpop.f32.mrb[0].mxu0
        %v1525 = vadd.f32 %v998, %v1524
        %v1526 = vpop.f32.mrb[0].mxu0
        %v1527 = vadd.f32 %v1002, %v1526
        %v1528 = vpop.f32.mrb[0].mxu0
        %v1529 = vadd.f32 %v998, %v1528
        %v1530 = vpop.f32.mrb[0].mxu0
        %v1531 = vadd.f32 %v1002, %v1530
        %1532 = vmatprep.mubr.bf16.mxu0 0
        %1533 = vmatmul.mubr.bf16.gmra.mrb[0].mxu0 %v917
        %v1534 = vpop.f32.mrb[0].mxu0
        %v1535 = vadd.f32 %v998, %v1534
        %v1536 = vpop.f32.mrb[0].mxu0
        %v1537 = vadd.f32 %v1002, %v1536
        %v1538 = vpop.f32.mrb[0].mxu0
        %v1539 = vadd.f32 %v998, %v1538
        %v1540 = vpop.f32.mrb[0].mxu0
        %v1541 = vadd.f32 %v1002, %v1540
        %1542 = vmatprep.mubr.bf16.mxu0 0
        %1543 = vmatmul.mubr.bf16.gmra.mrb[0].mxu0 %v918
        %v1544 = vpop.f32.mrb[0].mxu0
        %v1545 = vadd.f32 %v998, %v1544
        %v1546 = vpop.f32.mrb[0].mxu0
        %v1547 = vadd.f32 %v1002, %v1546
        %v1548 = vpop.f32.mrb[0].mxu0
        %v1549 = vadd.f32 %v998, %v1548
        %v1550 = vpop.f32.mrb[0].mxu0
        %v1551 = vadd.f32 %v1002, %v1550
        %1552 = vmatprep.mubr.bf16.mxu0 0
        %1553 = vmatmul.mubr.bf16.gmra.mrb[0].mxu0 %v919
        %v1554 = vpop.f32.mrb[0].mxu0
        %v1555 = vadd.f32 %v998, %v1554
        %v1556 = vpop.f32.mrb[0].mxu0
        %v1557 = vadd.f32 %v1002, %v1556
        %v1558 = vpop.f32.mrb[0].mxu0
        %v1559 = vadd.f32 %v998, %v1558
        %v1560 = vpop.f32.mrb[0].mxu0
        %v1561 = vadd.f32 %v1002, %v1560
        %1562 = vmatprep.mubr.bf16.mxu0 0
        %1563 = vmatmul.mubr.bf16.gmra.mrb[0].mxu0 %v920
        %v1564 = vpop.f32.mrb[0].mxu0
        %v1565 = vadd.f32 %v998, %v1564
        %v1566 = vpop.f32.mrb[0].mxu0
        %v1567 = vadd.f32 %v1002, %v1566
        %v1568 = vpop.f32.mrb[0].mxu0
        %v1569 = vadd.f32 %v998, %v1568
        %v1570 = vpop.f32.mrb[0].mxu0
        %v1571 = vadd.f32 %v1002, %v1570
        %1572 = vdwg.mxu0
        %1573 = vmatprep.subr.bf16.mxu0 %v1224
        %1574 = vmatpush1.bf16.msra.mxu0 %v1223
        %1575 = vmatprep.subr.bf16.mxu0 %v1232
        %1576 = vmatpush1.bf16.msra.mxu0 %v1231
        %1577 = vmatprep.subr.bf16.mxu0 %v1240
        %1578 = vmatpush1.bf16.msra.mxu0 %v1239
        %1579 = vmatprep.subr.bf16.mxu0 %v1248
        %1580 = vmatpush1.bf16.msra.mxu0 %v1247
        %1581 = vmatprep.subr.bf16.mxu0 %v1256
        %1582 = vmatpush1.bf16.msra.mxu0 %v1255
        %1583 = vmatprep.subr.bf16.mxu0 %v1264
        %1584 = vmatpush1.bf16.msra.mxu0 %v1263
        %1585 = vmatprep.subr.bf16.mxu0 %v1272
        %1586 = vmatpush1.bf16.msra.mxu0 %v1271
        %1587 = vmatprep.subr.bf16.mxu0 %v1280
        %1588 = vmatpush1.bf16.msra.mxu0 %v1279
        %1589 = vmatprep.subr.bf16.mxu0 0
        %1590 = vmatpush1.bf16.msra.mxu0 0
        %1591 = vmatprep.subr.bf16.mxu0 0
        %1592 = vmatpush1.bf16.msra.mxu0 0
        %1593 = vmatprep.subr.bf16.mxu0 0
        %1594 = vmatpush1.bf16.msra.mxu0 0
        %1595 = vmatprep.subr.bf16.mxu0 0
        %1596 = vmatpush1.bf16.msra.mxu0 0
        %1597 = vmatprep.subr.bf16.mxu0 0
        %1598 = vmatpush1.bf16.msra.mxu0 0
        %1599 = vmatprep.subr.bf16.mxu0 0
        %1600 = vmatpush1.bf16.msra.mxu0 0
        %1601 = vmatprep.subr.bf16.mxu0 0
        %1602 = vmatpush1.bf16.msra.mxu0 0
        %1603 = vmatprep.subr.bf16.mxu0 0
        %1604 = vmatpush1.bf16.msra.mxu0 0
        %1605 = vmatprep.mubr.bf16.mxu0 0
        %1606 = vmatmul.mubr.bf16.gmra.mrb[0].mxu0 %v913
        %v1607 = vpop.f32.mrb[0].mxu0
        %v1608 = vadd.f32 %v1006, %v1607
        %v1609 = vpop.f32.mrb[0].mxu0
        %v1610 = vadd.f32 %v1010, %v1609
        %v1611 = vpop.f32.mrb[0].mxu0
        %v1612 = vadd.f32 %v1006, %v1611
        %v1613 = vpop.f32.mrb[0].mxu0
        %v1614 = vadd.f32 %v1010, %v1613
        %1615 = vmatprep.mubr.bf16.mxu0 0
        %1616 = vmatmul.mubr.bf16.gmra.mrb[0].mxu0 %v914
        %v1617 = vpop.f32.mrb[0].mxu0
        %v1618 = vadd.f32 %v1006, %v1617
        %v1619 = vpop.f32.mrb[0].mxu0
        %v1620 = vadd.f32 %v1010, %v1619
        %v1621 = vpop.f32.mrb[0].mxu0
        %v1622 = vadd.f32 %v1006, %v1621
        %v1623 = vpop.f32.mrb[0].mxu0
        %v1624 = vadd.f32 %v1010, %v1623
        %1625 = vmatprep.mubr.bf16.mxu0 0
        %1626 = vmatmul.mubr.bf16.gmra.mrb[0].mxu0 %v915
        %v1627 = vpop.f32.mrb[0].mxu0
        %v1628 = vadd.f32 %v1006, %v1627
        %v1629 = vpop.f32.mrb[0].mxu0
        %v1630 = vadd.f32 %v1010, %v1629
        %v1631 = vpop.f32.mrb[0].mxu0
        %v1632 = vadd.f32 %v1006, %v1631
        %v1633 = vpop.f32.mrb[0].mxu0
        %v1634 = vadd.f32 %v1010, %v1633
        %1635 = vmatprep.mubr.bf16.mxu0 0
        %1636 = vmatmul.mubr.bf16.gmra.mrb[0].mxu0 %v916
        %v1637 = vpop.f32.mrb[0].mxu0
        %v1638 = vadd.f32 %v1006, %v1637
        %v1639 = vpop.f32.mrb[0].mxu0
        %v1640 = vadd.f32 %v1010, %v1639
        %v1641 = vpop.f32.mrb[0].mxu0
        %v1642 = vadd.f32 %v1006, %v1641
        %v1643 = vpop.f32.mrb[0].mxu0
        %v1644 = vadd.f32 %v1010, %v1643
        %1645 = vmatprep.mubr.bf16.mxu0 0
        %1646 = vmatmul.mubr.bf16.gmra.mrb[0].mxu0 %v917
        %v1647 = vpop.f32.mrb[0].mxu0
        %v1648 = vadd.f32 %v1006, %v1647
        %v1649 = vpop.f32.mrb[0].mxu0
        %v1650 = vadd.f32 %v1010, %v1649
        %v1651 = vpop.f32.mrb[0].mxu0
        %v1652 = vadd.f32 %v1006, %v1651
        %v1653 = vpop.f32.mrb[0].mxu0
        %v1654 = vadd.f32 %v1010, %v1653
        %1655 = vmatprep.mubr.bf16.mxu0 0
        %1656 = vmatmul.mubr.bf16.gmra.mrb[0].mxu0 %v918
        %v1657 = vpop.f32.mrb[0].mxu0
        %v1658 = vadd.f32 %v1006, %v1657
        %v1659 = vpop.f32.mrb[0].mxu0
        %v1660 = vadd.f32 %v1010, %v1659
        %v1661 = vpop.f32.mrb[0].mxu0
        %v1662 = vadd.f32 %v1006, %v1661
        %v1663 = vpop.f32.mrb[0].mxu0
        %v1664 = vadd.f32 %v1010, %v1663
        %1665 = vmatprep.mubr.bf16.mxu0 0
        %1666 = vmatmul.mubr.bf16.gmra.mrb[0].mxu0 %v919
        %v1667 = vpop.f32.mrb[0].mxu0
        %v1668 = vadd.f32 %v1006, %v1667
        %v1669 = vpop.f32.mrb[0].mxu0
        %v1670 = vadd.f32 %v1010, %v1669
        %v1671 = vpop.f32.mrb[0].mxu0
        %v1672 = vadd.f32 %v1006, %v1671
        %v1673 = vpop.f32.mrb[0].mxu0
        %v1674 = vadd.f32 %v1010, %v1673
        %1675 = vmatprep.mubr.bf16.mxu0 0
        %1676 = vmatmul.mubr.bf16.gmra.mrb[0].mxu0 %v920
        %v1677 = vpop.f32.mrb[0].mxu0
        %v1678 = vadd.f32 %v1006, %v1677
        %v1679 = vpop.f32.mrb[0].mxu0
        %v1680 = vadd.f32 %v1010, %v1679
        %v1681 = vpop.f32.mrb[0].mxu0
        %v1682 = vadd.f32 %v1006, %v1681
        %v1683 = vpop.f32.mrb[0].mxu0
        %v1684 = vadd.f32 %v1010, %v1683
        %1685 = vdwg.mxu0
        %1686 = vmatprep.subr.bf16.mxu0 %v1226
        %1687 = vmatpush1.bf16.msra.mxu0 %v1225
        %1688 = vmatprep.subr.bf16.mxu0 %v1234
        %1689 = vmatpush1.bf16.msra.mxu0 %v1233
        %1690 = vmatprep.subr.bf16.mxu0 %v1242
        %1691 = vmatpush1.bf16.msra.mxu0 %v1241
        %1692 = vmatprep.subr.bf16.mxu0 %v1250
        %1693 = vmatpush1.bf16.msra.mxu0 %v1249
        %1694 = vmatprep.subr.bf16.mxu0 %v1258
        %1695 = vmatpush1.bf16.msra.mxu0 %v1257
        %1696 = vmatprep.subr.bf16.mxu0 %v1266
        %1697 = vmatpush1.bf16.msra.mxu0 %v1265
        %1698 = vmatprep.subr.bf16.mxu0 %v1274
        %1699 = vmatpush1.bf16.msra.mxu0 %v1273
        %1700 = vmatprep.subr.bf16.mxu0 %v1282
        %1701 = vmatpush1.bf16.msra.mxu0 %v1281
        %1702 = vmatprep.subr.bf16.mxu0 0
        %1703 = vmatpush1.bf16.msra.mxu0 0
        %1704 = vmatprep.subr.bf16.mxu0 0
        %1705 = vmatpush1.bf16.msra.mxu0 0
        %1706 = vmatprep.subr.bf16.mxu0 0
        %1707 = vmatpush1.bf16.msra.mxu0 0
        %1708 = vmatprep.subr.bf16.mxu0 0
        %1709 = vmatpush1.bf16.msra.mxu0 0
        %1710 = vmatprep.subr.bf16.mxu0 0
        %1711 = vmatpush1.bf16.msra.mxu0 0
        %1712 = vmatprep.subr.bf16.mxu0 0
        %1713 = vmatpush1.bf16.msra.mxu0 0
        %1714 = vmatprep.subr.bf16.mxu0 0
        %1715 = vmatpush1.bf16.msra.mxu0 0
        %1716 = vmatprep.subr.bf16.mxu0 0
        %1717 = vmatpush1.bf16.msra.mxu0 0
        %1718 = vmatprep.mubr.bf16.mxu0 0
        %1719 = vmatmul.mubr.bf16.gmra.mrb[0].mxu0 %v913
        %v1720 = vpop.f32.mrb[0].mxu0
        %v1721 = vadd.f32 %v1014, %v1720
        %v1722 = vpop.f32.mrb[0].mxu0
        %v1723 = vadd.f32 %v1018, %v1722
        %v1724 = vpop.f32.mrb[0].mxu0
        %v1725 = vadd.f32 %v1014, %v1724
        %v1726 = vpop.f32.mrb[0].mxu0
        %v1727 = vadd.f32 %v1018, %v1726
        %1728 = vmatprep.mubr.bf16.mxu0 0
        %1729 = vmatmul.mubr.bf16.gmra.mrb[0].mxu0 %v914
        %v1730 = vpop.f32.mrb[0].mxu0
        %v1731 = vadd.f32 %v1014, %v1730
        %v1732 = vpop.f32.mrb[0].mxu0
        %v1733 = vadd.f32 %v1018, %v1732
        %v1734 = vpop.f32.mrb[0].mxu0
        %v1735 = vadd.f32 %v1014, %v1734
        %v1736 = vpop.f32.mrb[0].mxu0
        %v1737 = vadd.f32 %v1018, %v1736
        %1738 = vmatprep.mubr.bf16.mxu0 0
        %1739 = vmatmul.mubr.bf16.gmra.mrb[0].mxu0 %v915
        %v1740 = vpop.f32.mrb[0].mxu0
        %v1741 = vadd.f32 %v1014, %v1740
        %v1742 = vpop.f32.mrb[0].mxu0
        %v1743 = vadd.f32 %v1018, %v1742
        %v1744 = vpop.f32.mrb[0].mxu0
        %v1745 = vadd.f32 %v1014, %v1744
        %v1746 = vpop.f32.mrb[0].mxu0
        %v1747 = vadd.f32 %v1018, %v1746
        %1748 = vmatprep.mubr.bf16.mxu0 0
        %1749 = vmatmul.mubr.bf16.gmra.mrb[0].mxu0 %v916
        %v1750 = vpop.f32.mrb[0].mxu0
        %v1751 = vadd.f32 %v1014, %v1750
        %v1752 = vpop.f32.mrb[0].mxu0
        %v1753 = vadd.f32 %v1018, %v1752
        %v1754 = vpop.f32.mrb[0].mxu0
        %v1755 = vadd.f32 %v1014, %v1754
        %v1756 = vpop.f32.mrb[0].mxu0
        %v1757 = vadd.f32 %v1018, %v1756
        %1758 = vmatprep.mubr.bf16.mxu0 0
        %1759 = vmatmul.mubr.bf16.gmra.mrb[0].mxu0 %v917
        %v1760 = vpop.f32.mrb[0].mxu0
        %v1761 = vadd.f32 %v1014, %v1760
        %v1762 = vpop.f32.mrb[0].mxu0
        %v1763 = vadd.f32 %v1018, %v1762
        %v1764 = vpop.f32.mrb[0].mxu0
        %v1765 = vadd.f32 %v1014, %v1764
        %v1766 = vpop.f32.mrb[0].mxu0
        %v1767 = vadd.f32 %v1018, %v1766
        %1768 = vmatprep.mubr.bf16.mxu0 0
        %1769 = vmatmul.mubr.bf16.gmra.mrb[0].mxu0 %v918
        %v1770 = vpop.f32.mrb[0].mxu0
        %v1771 = vadd.f32 %v1014, %v1770
        %v1772 = vpop.f32.mrb[0].mxu0
        %v1773 = vadd.f32 %v1018, %v1772
        %v1774 = vpop.f32.mrb[0].mxu0
        %v1775 = vadd.f32 %v1014, %v1774
        %v1776 = vpop.f32.mrb[0].mxu0
        %v1777 = vadd.f32 %v1018, %v1776
        %1778 = vmatprep.mubr.bf16.mxu0 0
        %1779 = vmatmul.mubr.bf16.gmra.mrb[0].mxu0 %v919
        %v1780 = vpop.f32.mrb[0].mxu0
        %v1781 = vadd.f32 %v1014, %v1780
        %v1782 = vpop.f32.mrb[0].mxu0
        %v1783 = vadd.f32 %v1018, %v1782
        %v1784 = vpop.f32.mrb[0].mxu0
        %v1785 = vadd.f32 %v1014, %v1784
        %v1786 = vpop.f32.mrb[0].mxu0
        %v1787 = vadd.f32 %v1018, %v1786
        %1788 = vmatprep.mubr.bf16.mxu0 0
        %1789 = vmatmul.mubr.bf16.gmra.mrb[0].mxu0 %v920
        %v1790 = vpop.f32.mrb[0].mxu0
        %v1791 = vadd.f32 %v1014, %v1790
        %v1792 = vpop.f32.mrb[0].mxu0
        %v1793 = vadd.f32 %v1018, %v1792
        %v1794 = vpop.f32.mrb[0].mxu0
        %v1795 = vadd.f32 %v1014, %v1794
        %v1796 = vpop.f32.mrb[0].mxu0
        %v1797 = vadd.f32 %v1018, %v1796
        %1798 = vdwg.mxu0
        %v1799 = vmul.f32 %v1382, 0.5
        %v1800 = vmul.f32 %v1384, 0.5
        %v1801 = vmul.f32 %v1495, 0.5
        %v1802 = vmul.f32 %v1497, 0.5
        %v1803 = vmul.f32 %v1608, 0.5
        %v1804 = vmul.f32 %v1610, 0.5
        %v1805 = vmul.f32 %v1721, 0.5
        %v1806 = vmul.f32 %v1723, 0.5
        %v1807 = vmul.f32 %v1386, 0.5
        %v1808 = vmul.f32 %v1388, 0.5
        %v1809 = vmul.f32 %v1499, 0.5
        %v1810 = vmul.f32 %v1501, 0.5
        %v1811 = vmul.f32 %v1612, 0.5
        %v1812 = vmul.f32 %v1614, 0.5
        %v1813 = vmul.f32 %v1725, 0.5
        %v1814 = vmul.f32 %v1727, 0.5
        %v1815 = vmul.f32 %v1392, 0.5
        %v1816 = vmul.f32 %v1394, 0.5
        %v1817 = vmul.f32 %v1505, 0.5
        %v1818 = vmul.f32 %v1507, 0.5
        %v1819 = vmul.f32 %v1618, 0.5
        %v1820 = vmul.f32 %v1620, 0.5
        %v1821 = vmul.f32 %v1731, 0.5
        %v1822 = vmul.f32 %v1733, 0.5
        %v1823 = vmul.f32 %v1396, 0.5
        %v1824 = vmul.f32 %v1398, 0.5
        %v1825 = vmul.f32 %v1509, 0.5
        %v1826 = vmul.f32 %v1511, 0.5
        %v1827 = vmul.f32 %v1622, 0.5
        %v1828 = vmul.f32 %v1624, 0.5
        %v1829 = vmul.f32 %v1735, 0.5
        %v1830 = vmul.f32 %v1737, 0.5
        %v1831 = vmul.f32 %v1402, 0.5
        %v1832 = vmul.f32 %v1404, 0.5
        %v1833 = vmul.f32 %v1515, 0.5
        %v1834 = vmul.f32 %v1517, 0.5
        %v1835 = vmul.f32 %v1628, 0.5
        %v1836 = vmul.f32 %v1630, 0.5
        %v1837 = vmul.f32 %v1741, 0.5
        %v1838 = vmul.f32 %v1743, 0.5
        %v1839 = vmul.f32 %v1406, 0.5
        %v1840 = vmul.f32 %v1408, 0.5
        %v1841 = vmul.f32 %v1519, 0.5
        %v1842 = vmul.f32 %v1521, 0.5
        %v1843 = vmul.f32 %v1632, 0.5
        %v1844 = vmul.f32 %v1634, 0.5
        %v1845 = vmul.f32 %v1745, 0.5
        %v1846 = vmul.f32 %v1747, 0.5
        %v1847 = vmul.f32 %v1412, 0.5
        %v1848 = vmul.f32 %v1414, 0.5
        %v1849 = vmul.f32 %v1525, 0.5
        %v1850 = vmul.f32 %v1527, 0.5
        %v1851 = vmul.f32 %v1638, 0.5
        %v1852 = vmul.f32 %v1640, 0.5
        %v1853 = vmul.f32 %v1751, 0.5
        %v1854 = vmul.f32 %v1753, 0.5
        %v1855 = vmul.f32 %v1416, 0.5
        %v1856 = vmul.f32 %v1418, 0.5
        %v1857 = vmul.f32 %v1529, 0.5
        %v1858 = vmul.f32 %v1531, 0.5
        %v1859 = vmul.f32 %v1642, 0.5
        %v1860 = vmul.f32 %v1644, 0.5
        %v1861 = vmul.f32 %v1755, 0.5
        %v1862 = vmul.f32 %v1757, 0.5
        %v1863 = vmul.f32 %v1422, 0.5
        %v1864 = vmul.f32 %v1424, 0.5
        %v1865 = vmul.f32 %v1535, 0.5
        %v1866 = vmul.f32 %v1537, 0.5
        %v1867 = vmul.f32 %v1648, 0.5
        %v1868 = vmul.f32 %v1650, 0.5
        %v1869 = vmul.f32 %v1761, 0.5
        %v1870 = vmul.f32 %v1763, 0.5
        %v1871 = vmul.f32 %v1426, 0.5
        %v1872 = vmul.f32 %v1428, 0.5
        %v1873 = vmul.f32 %v1539, 0.5
        %v1874 = vmul.f32 %v1541, 0.5
        %v1875 = vmul.f32 %v1652, 0.5
        %v1876 = vmul.f32 %v1654, 0.5
        %v1877 = vmul.f32 %v1765, 0.5
        %v1878 = vmul.f32 %v1767, 0.5
        %v1879 = vmul.f32 %v1432, 0.5
        %v1880 = vmul.f32 %v1434, 0.5
        %v1881 = vmul.f32 %v1545, 0.5
        %v1882 = vmul.f32 %v1547, 0.5
        %v1883 = vmul.f32 %v1658, 0.5
        %v1884 = vmul.f32 %v1660, 0.5
        %v1885 = vmul.f32 %v1771, 0.5
        %v1886 = vmul.f32 %v1773, 0.5
        %v1887 = vmul.f32 %v1436, 0.5
        %v1888 = vmul.f32 %v1438, 0.5
        %v1889 = vmul.f32 %v1549, 0.5
        %v1890 = vmul.f32 %v1551, 0.5
        %v1891 = vmul.f32 %v1662, 0.5
        %v1892 = vmul.f32 %v1664, 0.5
        %v1893 = vmul.f32 %v1775, 0.5
        %v1894 = vmul.f32 %v1777, 0.5
        %v1895 = vmul.f32 %v1442, 0.5
        %v1896 = vmul.f32 %v1444, 0.5
        %v1897 = vmul.f32 %v1555, 0.5
        %v1898 = vmul.f32 %v1557, 0.5
        %v1899 = vmul.f32 %v1668, 0.5
        %v1900 = vmul.f32 %v1670, 0.5
        %v1901 = vmul.f32 %v1781, 0.5
        %v1902 = vmul.f32 %v1783, 0.5
        %v1903 = vmul.f32 %v1446, 0.5
        %v1904 = vmul.f32 %v1448, 0.5
        %v1905 = vmul.f32 %v1559, 0.5
        %v1906 = vmul.f32 %v1561, 0.5
        %v1907 = vmul.f32 %v1672, 0.5
        %v1908 = vmul.f32 %v1674, 0.5
        %v1909 = vmul.f32 %v1785, 0.5
        %v1910 = vmul.f32 %v1787, 0.5
        %v1911 = vmul.f32 %v1452, 0.5
        %v1912 = vmul.f32 %v1454, 0.5
        %v1913 = vmul.f32 %v1565, 0.5
        %v1914 = vmul.f32 %v1567, 0.5
        %v1915 = vmul.f32 %v1678, 0.5
        %v1916 = vmul.f32 %v1680, 0.5
        %v1917 = vmul.f32 %v1791, 0.5
        %v1918 = vmul.f32 %v1793, 0.5
        %v1919 = vmul.f32 %v1456, 0.5
        %v1920 = vmul.f32 %v1458, 0.5
        %v1921 = vmul.f32 %v1569, 0.5
        %v1922 = vmul.f32 %v1571, 0.5
        %v1923 = vmul.f32 %v1682, 0.5
        %v1924 = vmul.f32 %v1684, 0.5
        %v1925 = vmul.f32 %v1795, 0.5
        %v1926 = vmul.f32 %v1797, 0.5
        %v1927 = vmul.f32 %v1382, 0.044715
        %v1928 = vmul.f32 %v1384, 0.044715
        %v1929 = vmul.f32 %v1495, 0.044715
        %v1930 = vmul.f32 %v1497, 0.044715
        %v1931 = vmul.f32 %v1608, 0.044715
        %v1932 = vmul.f32 %v1610, 0.044715
        %v1933 = vmul.f32 %v1721, 0.044715
        %v1934 = vmul.f32 %v1723, 0.044715
        %v1935 = vmul.f32 %v1386, 0.044715
        %v1936 = vmul.f32 %v1388, 0.044715
        %v1937 = vmul.f32 %v1499, 0.044715
        %v1938 = vmul.f32 %v1501, 0.044715
        %v1939 = vmul.f32 %v1612, 0.044715
        %v1940 = vmul.f32 %v1614, 0.044715
        %v1941 = vmul.f32 %v1725, 0.044715
        %v1942 = vmul.f32 %v1727, 0.044715
        %v1943 = vmul.f32 %v1392, 0.044715
        %v1944 = vmul.f32 %v1394, 0.044715
        %v1945 = vmul.f32 %v1505, 0.044715
        %v1946 = vmul.f32 %v1507, 0.044715
        %v1947 = vmul.f32 %v1618, 0.044715
        %v1948 = vmul.f32 %v1620, 0.044715
        %v1949 = vmul.f32 %v1731, 0.044715
        %v1950 = vmul.f32 %v1733, 0.044715
        %v1951 = vmul.f32 %v1396, 0.044715
        %v1952 = vmul.f32 %v1398, 0.044715
        %v1953 = vmul.f32 %v1509, 0.044715
        %v1954 = vmul.f32 %v1511, 0.044715
        %v1955 = vmul.f32 %v1622, 0.044715
        %v1956 = vmul.f32 %v1624, 0.044715
        %v1957 = vmul.f32 %v1735, 0.044715
        %v1958 = vmul.f32 %v1737, 0.044715
        %v1959 = vmul.f32 %v1402, 0.044715
        %v1960 = vmul.f32 %v1404, 0.044715
        %v1961 = vmul.f32 %v1515, 0.044715
        %v1962 = vmul.f32 %v1517, 0.044715
        %v1963 = vmul.f32 %v1628, 0.044715
        %v1964 = vmul.f32 %v1630, 0.044715
        %v1965 = vmul.f32 %v1741, 0.044715
        %v1966 = vmul.f32 %v1743, 0.044715
        %v1967 = vmul.f32 %v1406, 0.044715
        %v1968 = vmul.f32 %v1408, 0.044715
        %v1969 = vmul.f32 %v1519, 0.044715
        %v1970 = vmul.f32 %v1521, 0.044715
        %v1971 = vmul.f32 %v1632, 0.044715
        %v1972 = vmul.f32 %v1634, 0.044715
        %v1973 = vmul.f32 %v1745, 0.044715
        %v1974 = vmul.f32 %v1747, 0.044715
        %v1975 = vmul.f32 %v1412, 0.044715
        %v1976 = vmul.f32 %v1414, 0.044715
        %v1977 = vmul.f32 %v1525, 0.044715
        %v1978 = vmul.f32 %v1527, 0.044715
        %v1979 = vmul.f32 %v1638, 0.044715
        %v1980 = vmul.f32 %v1640, 0.044715
        %v1981 = vmul.f32 %v1751, 0.044715
        %v1982 = vmul.f32 %v1753, 0.044715
        %v1983 = vmul.f32 %v1416, 0.044715
        %v1984 = vmul.f32 %v1418, 0.044715
        %v1985 = vmul.f32 %v1529, 0.044715
        %v1986 = vmul.f32 %v1531, 0.044715
        %v1987 = vmul.f32 %v1642, 0.044715
        %v1988 = vmul.f32 %v1644, 0.044715
        %v1989 = vmul.f32 %v1755, 0.044715
        %v1990 = vmul.f32 %v1757, 0.044715
        %v1991 = vmul.f32 %v1422, 0.044715
        %v1992 = vmul.f32 %v1424, 0.044715
        %v1993 = vmul.f32 %v1535, 0.044715
        %v1994 = vmul.f32 %v1537, 0.044715
        %v1995 = vmul.f32 %v1648, 0.044715
        %v1996 = vmul.f32 %v1650, 0.044715
        %v1997 = vmul.f32 %v1761, 0.044715
        %v1998 = vmul.f32 %v1763, 0.044715
        %v1999 = vmul.f32 %v1426, 0.044715
        %v2000 = vmul.f32 %v1428, 0.044715
        %v2001 = vmul.f32 %v1539, 0.044715
        %v2002 = vmul.f32 %v1541, 0.044715
        %v2003 = vmul.f32 %v1652, 0.044715
        %v2004 = vmul.f32 %v1654, 0.044715
        %v2005 = vmul.f32 %v1765, 0.044715
        %v2006 = vmul.f32 %v1767, 0.044715
        %v2007 = vmul.f32 %v1432, 0.044715
        %v2008 = vmul.f32 %v1434, 0.044715
        %v2009 = vmul.f32 %v1545, 0.044715
        %v2010 = vmul.f32 %v1547, 0.044715
        %v2011 = vmul.f32 %v1658, 0.044715
        %v2012 = vmul.f32 %v1660, 0.044715
        %v2013 = vmul.f32 %v1771, 0.044715
        %v2014 = vmul.f32 %v1773, 0.044715
        %v2015 = vmul.f32 %v1436, 0.044715
        %v2016 = vmul.f32 %v1438, 0.044715
        %v2017 = vmul.f32 %v1549, 0.044715
        %v2018 = vmul.f32 %v1551, 0.044715
        %v2019 = vmul.f32 %v1662, 0.044715
        %v2020 = vmul.f32 %v1664, 0.044715
        %v2021 = vmul.f32 %v1775, 0.044715
        %v2022 = vmul.f32 %v1777, 0.044715
        %v2023 = vmul.f32 %v1442, 0.044715
        %v2024 = vmul.f32 %v1444, 0.044715
        %v2025 = vmul.f32 %v1555, 0.044715
        %v2026 = vmul.f32 %v1557, 0.044715
        %v2027 = vmul.f32 %v1668, 0.044715
        %v2028 = vmul.f32 %v1670, 0.044715
        %v2029 = vmul.f32 %v1781, 0.044715
        %v2030 = vmul.f32 %v1783, 0.044715
        %v2031 = vmul.f32 %v1446, 0.044715
        %v2032 = vmul.f32 %v1448, 0.044715
        %v2033 = vmul.f32 %v1559, 0.044715
        %v2034 = vmul.f32 %v1561, 0.044715
        %v2035 = vmul.f32 %v1672, 0.044715
        %v2036 = vmul.f32 %v1674, 0.044715
        %v2037 = vmul.f32 %v1785, 0.044715
        %v2038 = vmul.f32 %v1787, 0.044715
        %v2039 = vmul.f32 %v1452, 0.044715
        %v2040 = vmul.f32 %v1454, 0.044715
        %v2041 = vmul.f32 %v1565, 0.044715
        %v2042 = vmul.f32 %v1567, 0.044715
        %v2043 = vmul.f32 %v1678, 0.044715
        %v2044 = vmul.f32 %v1680, 0.044715
        %v2045 = vmul.f32 %v1791, 0.044715
        %v2046 = vmul.f32 %v1793, 0.044715
        %v2047 = vmul.f32 %v1456, 0.044715
        %v2048 = vmul.f32 %v1458, 0.044715
        %v2049 = vmul.f32 %v1569, 0.044715
        %v2050 = vmul.f32 %v1571, 0.044715
        %v2051 = vmul.f32 %v1682, 0.044715
        %v2052 = vmul.f32 %v1684, 0.044715
        %v2053 = vmul.f32 %v1795, 0.044715
        %v2054 = vmul.f32 %v1797, 0.044715
        %v2055 = vmul.f32 %v1927, %v1382
        %v2056 = vmul.f32 %v1928, %v1384
        %v2057 = vmul.f32 %v1929, %v1495
        %v2058 = vmul.f32 %v1930, %v1497
        %v2059 = vmul.f32 %v1931, %v1608
        %v2060 = vmul.f32 %v1932, %v1610
        %v2061 = vmul.f32 %v1933, %v1721
        %v2062 = vmul.f32 %v1934, %v1723
        %v2063 = vmul.f32 %v1935, %v1386
        %v2064 = vmul.f32 %v1936, %v1388
        %v2065 = vmul.f32 %v1937, %v1499
        %v2066 = vmul.f32 %v1938, %v1501
        %v2067 = vmul.f32 %v1939, %v1612
        %v2068 = vmul.f32 %v1940, %v1614
        %v2069 = vmul.f32 %v1941, %v1725
        %v2070 = vmul.f32 %v1942, %v1727
        %v2071 = vmul.f32 %v1943, %v1392
        %v2072 = vmul.f32 %v1944, %v1394
        %v2073 = vmul.f32 %v1945, %v1505
        %v2074 = vmul.f32 %v1946, %v1507
        %v2075 = vmul.f32 %v1947, %v1618
        %v2076 = vmul.f32 %v1948, %v1620
        %v2077 = vmul.f32 %v1949, %v1731
        %v2078 = vmul.f32 %v1950, %v1733
        %v2079 = vmul.f32 %v1951, %v1396
        %v2080 = vmul.f32 %v1952, %v1398
        %v2081 = vmul.f32 %v1953, %v1509
        %v2082 = vmul.f32 %v1954, %v1511
        %v2083 = vmul.f32 %v1955, %v1622
        %v2084 = vmul.f32 %v1956, %v1624
        %v2085 = vmul.f32 %v1957, %v1735
        %v2086 = vmul.f32 %v1958, %v1737
        %v2087 = vmul.f32 %v1959, %v1402
        %v2088 = vmul.f32 %v1960, %v1404
        %v2089 = vmul.f32 %v1961, %v1515
        %v2090 = vmul.f32 %v1962, %v1517
        %v2091 = vmul.f32 %v1963, %v1628
        %v2092 = vmul.f32 %v1964, %v1630
        %v2093 = vmul.f32 %v1965, %v1741
        %v2094 = vmul.f32 %v1966, %v1743
        %v2095 = vmul.f32 %v1967, %v1406
        %v2096 = vmul.f32 %v1968, %v1408
        %v2097 = vmul.f32 %v1969, %v1519
        %v2098 = vmul.f32 %v1970, %v1521
        %v2099 = vmul.f32 %v1971, %v1632
        %v2100 = vmul.f32 %v1972, %v1634
        %v2101 = vmul.f32 %v1973, %v1745
        %v2102 = vmul.f32 %v1974, %v1747
        %v2103 = vmul.f32 %v1975, %v1412
        %v2104 = vmul.f32 %v1976, %v1414
        %v2105 = vmul.f32 %v1977, %v1525
        %v2106 = vmul.f32 %v1978, %v1527
        %v2107 = vmul.f32 %v1979, %v1638
        %v2108 = vmul.f32 %v1980, %v1640
        %v2109 = vmul.f32 %v1981, %v1751
        %v2110 = vmul.f32 %v1982, %v1753
        %v2111 = vmul.f32 %v1983, %v1416
        %v2112 = vmul.f32 %v1984, %v1418
        %v2113 = vmul.f32 %v1985, %v1529
        %v2114 = vmul.f32 %v1986, %v1531
        %v2115 = vmul.f32 %v1987, %v1642
        %v2116 = vmul.f32 %v1988, %v1644
        %v2117 = vmul.f32 %v1989, %v1755
        %v2118 = vmul.f32 %v1990, %v1757
        %v2119 = vmul.f32 %v1991, %v1422
        %v2120 = vmul.f32 %v1992, %v1424
        %v2121 = vmul.f32 %v1993, %v1535
        %v2122 = vmul.f32 %v1994, %v1537
        %v2123 = vmul.f32 %v1995, %v1648
        %v2124 = vmul.f32 %v1996, %v1650
        %v2125 = vmul.f32 %v1997, %v1761
        %v2126 = vmul.f32 %v1998, %v1763
        %v2127 = vmul.f32 %v1999, %v1426
        %v2128 = vmul.f32 %v2000, %v1428
        %v2129 = vmul.f32 %v2001, %v1539
        %v2130 = vmul.f32 %v2002, %v1541
        %v2131 = vmul.f32 %v2003, %v1652
        %v2132 = vmul.f32 %v2004, %v1654
        %v2133 = vmul.f32 %v2005, %v1765
        %v2134 = vmul.f32 %v2006, %v1767
        %v2135 = vmul.f32 %v2007, %v1432
        %v2136 = vmul.f32 %v2008, %v1434
        %v2137 = vmul.f32 %v2009, %v1545
        %v2138 = vmul.f32 %v2010, %v1547
        %v2139 = vmul.f32 %v2011, %v1658
        %v2140 = vmul.f32 %v2012, %v1660
        %v2141 = vmul.f32 %v2013, %v1771
        %v2142 = vmul.f32 %v2014, %v1773
        %v2143 = vmul.f32 %v2015, %v1436
        %v2144 = vmul.f32 %v2016, %v1438
        %v2145 = vmul.f32 %v2017, %v1549
        %v2146 = vmul.f32 %v2018, %v1551
        %v2147 = vmul.f32 %v2019, %v1662
        %v2148 = vmul.f32 %v2020, %v1664
        %v2149 = vmul.f32 %v2021, %v1775
        %v2150 = vmul.f32 %v2022, %v1777
        %v2151 = vmul.f32 %v2023, %v1442
        %v2152 = vmul.f32 %v2024, %v1444
        %v2153 = vmul.f32 %v2025, %v1555
        %v2154 = vmul.f32 %v2026, %v1557
        %v2155 = vmul.f32 %v2027, %v1668
        %v2156 = vmul.f32 %v2028, %v1670
        %v2157 = vmul.f32 %v2029, %v1781
        %v2158 = vmul.f32 %v2030, %v1783
        %v2159 = vmul.f32 %v2031, %v1446
        %v2160 = vmul.f32 %v2032, %v1448
        %v2161 = vmul.f32 %v2033, %v1559
        %v2162 = vmul.f32 %v2034, %v1561
        %v2163 = vmul.f32 %v2035, %v1672
        %v2164 = vmul.f32 %v2036, %v1674
        %v2165 = vmul.f32 %v2037, %v1785
        %v2166 = vmul.f32 %v2038, %v1787
        %v2167 = vmul.f32 %v2039, %v1452
        %v2168 = vmul.f32 %v2040, %v1454
        %v2169 = vmul.f32 %v2041, %v1565
        %v2170 = vmul.f32 %v2042, %v1567
        %v2171 = vmul.f32 %v2043, %v1678
        %v2172 = vmul.f32 %v2044, %v1680
        %v2173 = vmul.f32 %v2045, %v1791
        %v2174 = vmul.f32 %v2046, %v1793
        %v2175 = vmul.f32 %v2047, %v1456
        %v2176 = vmul.f32 %v2048, %v1458
        %v2177 = vmul.f32 %v2049, %v1569
        %v2178 = vmul.f32 %v2050, %v1571
        %v2179 = vmul.f32 %v2051, %v1682
        %v2180 = vmul.f32 %v2052, %v1684
        %v2181 = vmul.f32 %v2053, %v1795
        %v2182 = vmul.f32 %v2054, %v1797
        %v2183 = vmul.f32 %v2055, %v1382
        %v2184 = vmul.f32 %v2056, %v1384
        %v2185 = vmul.f32 %v2057, %v1495
        %v2186 = vmul.f32 %v2058, %v1497
        %v2187 = vmul.f32 %v2059, %v1608
        %v2188 = vmul.f32 %v2060, %v1610
        %v2189 = vmul.f32 %v2061, %v1721
        %v2190 = vmul.f32 %v2062, %v1723
        %v2191 = vmul.f32 %v2063, %v1386
        %v2192 = vmul.f32 %v2064, %v1388
        %v2193 = vmul.f32 %v2065, %v1499
        %v2194 = vmul.f32 %v2066, %v1501
        %v2195 = vmul.f32 %v2067, %v1612
        %v2196 = vmul.f32 %v2068, %v1614
        %v2197 = vmul.f32 %v2069, %v1725
        %v2198 = vmul.f32 %v2070, %v1727
        %v2199 = vmul.f32 %v2071, %v1392
        %v2200 = vmul.f32 %v2072, %v1394
        %v2201 = vmul.f32 %v2073, %v1505
        %v2202 = vmul.f32 %v2074, %v1507
        %v2203 = vmul.f32 %v2075, %v1618
        %v2204 = vmul.f32 %v2076, %v1620
        %v2205 = vmul.f32 %v2077, %v1731
        %v2206 = vmul.f32 %v2078, %v1733
        %v2207 = vmul.f32 %v2079, %v1396
        %v2208 = vmul.f32 %v2080, %v1398
        %v2209 = vmul.f32 %v2081, %v1509
        %v2210 = vmul.f32 %v2082, %v1511
        %v2211 = vmul.f32 %v2083, %v1622
        %v2212 = vmul.f32 %v2084, %v1624
        %v2213 = vmul.f32 %v2085, %v1735
        %v2214 = vmul.f32 %v2086, %v1737
        %v2215 = vmul.f32 %v2087, %v1402
        %v2216 = vmul.f32 %v2088, %v1404
        %v2217 = vmul.f32 %v2089, %v1515
        %v2218 = vmul.f32 %v2090, %v1517
        %v2219 = vmul.f32 %v2091, %v1628
        %v2220 = vmul.f32 %v2092, %v1630
        %v2221 = vmul.f32 %v2093, %v1741
        %v2222 = vmul.f32 %v2094, %v1743
        %v2223 = vmul.f32 %v2095, %v1406
        %v2224 = vmul.f32 %v2096, %v1408
        %v2225 = vmul.f32 %v2097, %v1519
        %v2226 = vmul.f32 %v2098, %v1521
        %v2227 = vmul.f32 %v2099, %v1632
        %v2228 = vmul.f32 %v2100, %v1634
        %v2229 = vmul.f32 %v2101, %v1745
        %v2230 = vmul.f32 %v2102, %v1747
        %v2231 = vmul.f32 %v2103, %v1412
        %v2232 = vmul.f32 %v2104, %v1414
        %v2233 = vmul.f32 %v2105, %v1525
        %v2234 = vmul.f32 %v2106, %v1527
        %v2235 = vmul.f32 %v2107, %v1638
        %v2236 = vmul.f32 %v2108, %v1640
        %v2237 = vmul.f32 %v2109, %v1751
        %v2238 = vmul.f32 %v2110, %v1753
        %v2239 = vmul.f32 %v2111, %v1416
        %v2240 = vmul.f32 %v2112, %v1418
        %v2241 = vmul.f32 %v2113, %v1529
        %v2242 = vmul.f32 %v2114, %v1531
        %v2243 = vmul.f32 %v2115, %v1642
        %v2244 = vmul.f32 %v2116, %v1644
        %v2245 = vmul.f32 %v2117, %v1755
        %v2246 = vmul.f32 %v2118, %v1757
        %v2247 = vmul.f32 %v2119, %v1422
        %v2248 = vmul.f32 %v2120, %v1424
        %v2249 = vmul.f32 %v2121, %v1535
        %v2250 = vmul.f32 %v2122, %v1537
        %v2251 = vmul.f32 %v2123, %v1648
        %v2252 = vmul.f32 %v2124, %v1650
        %v2253 = vmul.f32 %v2125, %v1761
        %v2254 = vmul.f32 %v2126, %v1763
        %v2255 = vmul.f32 %v2127, %v1426
        %v2256 = vmul.f32 %v2128, %v1428
        %v2257 = vmul.f32 %v2129, %v1539
        %v2258 = vmul.f32 %v2130, %v1541
        %v2259 = vmul.f32 %v2131, %v1652
        %v2260 = vmul.f32 %v2132, %v1654
        %v2261 = vmul.f32 %v2133, %v1765
        %v2262 = vmul.f32 %v2134, %v1767
        %v2263 = vmul.f32 %v2135, %v1432
        %v2264 = vmul.f32 %v2136, %v1434
        %v2265 = vmul.f32 %v2137, %v1545
        %v2266 = vmul.f32 %v2138, %v1547
        %v2267 = vmul.f32 %v2139, %v1658
        %v2268 = vmul.f32 %v2140, %v1660
        %v2269 = vmul.f32 %v2141, %v1771
        %v2270 = vmul.f32 %v2142, %v1773
        %v2271 = vmul.f32 %v2143, %v1436
        %v2272 = vmul.f32 %v2144, %v1438
        %v2273 = vmul.f32 %v2145, %v1549
        %v2274 = vmul.f32 %v2146, %v1551
        %v2275 = vmul.f32 %v2147, %v1662
        %v2276 = vmul.f32 %v2148, %v1664
        %v2277 = vmul.f32 %v2149, %v1775
        %v2278 = vmul.f32 %v2150, %v1777
        %v2279 = vmul.f32 %v2151, %v1442
        %v2280 = vmul.f32 %v2152, %v1444
        %v2281 = vmul.f32 %v2153, %v1555
        %v2282 = vmul.f32 %v2154, %v1557
        %v2283 = vmul.f32 %v2155, %v1668
        %v2284 = vmul.f32 %v2156, %v1670
        %v2285 = vmul.f32 %v2157, %v1781
        %v2286 = vmul.f32 %v2158, %v1783
        %v2287 = vmul.f32 %v2159, %v1446
        %v2288 = vmul.f32 %v2160, %v1448
        %v2289 = vmul.f32 %v2161, %v1559
        %v2290 = vmul.f32 %v2162, %v1561
        %v2291 = vmul.f32 %v2163, %v1672
        %v2292 = vmul.f32 %v2164, %v1674
        %v2293 = vmul.f32 %v2165, %v1785
        %v2294 = vmul.f32 %v2166, %v1787
        %v2295 = vmul.f32 %v2167, %v1452
        %v2296 = vmul.f32 %v2168, %v1454
        %v2297 = vmul.f32 %v2169, %v1565
        %v2298 = vmul.f32 %v2170, %v1567
        %v2299 = vmul.f32 %v2171, %v1678
        %v2300 = vmul.f32 %v2172, %v1680
        %v2301 = vmul.f32 %v2173, %v1791
        %v2302 = vmul.f32 %v2174, %v1793
        %v2303 = vmul.f32 %v2175, %v1456
        %v2304 = vmul.f32 %v2176, %v1458
        %v2305 = vmul.f32 %v2177, %v1569
        %v2306 = vmul.f32 %v2178, %v1571
        %v2307 = vmul.f32 %v2179, %v1682
        %v2308 = vmul.f32 %v2180, %v1684
        %v2309 = vmul.f32 %v2181, %v1795
        %v2310 = vmul.f32 %v2182, %v1797
        %v2311 = vadd.f32 %v1382, %v2183
        %v2312 = vadd.f32 %v1384, %v2184
        %v2313 = vadd.f32 %v1495, %v2185
        %v2314 = vadd.f32 %v1497, %v2186
        %v2315 = vadd.f32 %v1608, %v2187
        %v2316 = vadd.f32 %v1610, %v2188
        %v2317 = vadd.f32 %v1721, %v2189
        %v2318 = vadd.f32 %v1723, %v2190
        %v2319 = vadd.f32 %v1386, %v2191
        %v2320 = vadd.f32 %v1388, %v2192
        %v2321 = vadd.f32 %v1499, %v2193
        %v2322 = vadd.f32 %v1501, %v2194
        %v2323 = vadd.f32 %v1612, %v2195
        %v2324 = vadd.f32 %v1614, %v2196
        %v2325 = vadd.f32 %v1725, %v2197
        %v2326 = vadd.f32 %v1727, %v2198
        %v2327 = vadd.f32 %v1392, %v2199
        %v2328 = vadd.f32 %v1394, %v2200
        %v2329 = vadd.f32 %v1505, %v2201
        %v2330 = vadd.f32 %v1507, %v2202
        %v2331 = vadd.f32 %v1618, %v2203
        %v2332 = vadd.f32 %v1620, %v2204
        %v2333 = vadd.f32 %v1731, %v2205
        %v2334 = vadd.f32 %v1733, %v2206
        %v2335 = vadd.f32 %v1396, %v2207
        %v2336 = vadd.f32 %v1398, %v2208
        %v2337 = vadd.f32 %v1509, %v2209
        %v2338 = vadd.f32 %v1511, %v2210
        %v2339 = vadd.f32 %v1622, %v2211
        %v2340 = vadd.f32 %v1624, %v2212
        %v2341 = vadd.f32 %v1735, %v2213
        %v2342 = vadd.f32 %v1737, %v2214
        %v2343 = vadd.f32 %v1402, %v2215
        %v2344 = vadd.f32 %v1404, %v2216
        %v2345 = vadd.f32 %v1515, %v2217
        %v2346 = vadd.f32 %v1517, %v2218
        %v2347 = vadd.f32 %v1628, %v2219
        %v2348 = vadd.f32 %v1630, %v2220
        %v2349 = vadd.f32 %v1741, %v2221
        %v2350 = vadd.f32 %v1743, %v2222
        %v2351 = vadd.f32 %v1406, %v2223
        %v2352 = vadd.f32 %v1408, %v2224
        %v2353 = vadd.f32 %v1519, %v2225
        %v2354 = vadd.f32 %v1521, %v2226
        %v2355 = vadd.f32 %v1632, %v2227
        %v2356 = vadd.f32 %v1634, %v2228
        %v2357 = vadd.f32 %v1745, %v2229
        %v2358 = vadd.f32 %v1747, %v2230
        %v2359 = vadd.f32 %v1412, %v2231
        %v2360 = vadd.f32 %v1414, %v2232
        %v2361 = vadd.f32 %v1525, %v2233
        %v2362 = vadd.f32 %v1527, %v2234
        %v2363 = vadd.f32 %v1638, %v2235
        %v2364 = vadd.f32 %v1640, %v2236
        %v2365 = vadd.f32 %v1751, %v2237
        %v2366 = vadd.f32 %v1753, %v2238
        %v2367 = vadd.f32 %v1416, %v2239
        %v2368 = vadd.f32 %v1418, %v2240
        %v2369 = vadd.f32 %v1529, %v2241
        %v2370 = vadd.f32 %v1531, %v2242
        %v2371 = vadd.f32 %v1642, %v2243
        %v2372 = vadd.f32 %v1644, %v2244
        %v2373 = vadd.f32 %v1755, %v2245
        %v2374 = vadd.f32 %v1757, %v2246
        %v2375 = vadd.f32 %v1422, %v2247
        %v2376 = vadd.f32 %v1424, %v2248
        %v2377 = vadd.f32 %v1535, %v2249
        %v2378 = vadd.f32 %v1537, %v2250
        %v2379 = vadd.f32 %v1648, %v2251
        %v2380 = vadd.f32 %v1650, %v2252
        %v2381 = vadd.f32 %v1761, %v2253
        %v2382 = vadd.f32 %v1763, %v2254
        %v2383 = vadd.f32 %v1426, %v2255
        %v2384 = vadd.f32 %v1428, %v2256
        %v2385 = vadd.f32 %v1539, %v2257
        %v2386 = vadd.f32 %v1541, %v2258
        %v2387 = vadd.f32 %v1652, %v2259
        %v2388 = vadd.f32 %v1654, %v2260
        %v2389 = vadd.f32 %v1765, %v2261
        %v2390 = vadd.f32 %v1767, %v2262
        %v2391 = vadd.f32 %v1432, %v2263
        %v2392 = vadd.f32 %v1434, %v2264
        %v2393 = vadd.f32 %v1545, %v2265
        %v2394 = vadd.f32 %v1547, %v2266
        %v2395 = vadd.f32 %v1658, %v2267
        %v2396 = vadd.f32 %v1660, %v2268
        %v2397 = vadd.f32 %v1771, %v2269
        %v2398 = vadd.f32 %v1773, %v2270
        %v2399 = vadd.f32 %v1436, %v2271
        %v2400 = vadd.f32 %v1438, %v2272
        %v2401 = vadd.f32 %v1549, %v2273
        %v2402 = vadd.f32 %v1551, %v2274
        %v2403 = vadd.f32 %v1662, %v2275
        %v2404 = vadd.f32 %v1664, %v2276
        %v2405 = vadd.f32 %v1775, %v2277
        %v2406 = vadd.f32 %v1777, %v2278
        %v2407 = vadd.f32 %v1442, %v2279
        %v2408 = vadd.f32 %v1444, %v2280
        %v2409 = vadd.f32 %v1555, %v2281
        %v2410 = vadd.f32 %v1557, %v2282
        %v2411 = vadd.f32 %v1668, %v2283
        %v2412 = vadd.f32 %v1670, %v2284
        %v2413 = vadd.f32 %v1781, %v2285
        %v2414 = vadd.f32 %v1783, %v2286
        %v2415 = vadd.f32 %v1446, %v2287
        %v2416 = vadd.f32 %v1448, %v2288
        %v2417 = vadd.f32 %v1559, %v2289
        %v2418 = vadd.f32 %v1561, %v2290
        %v2419 = vadd.f32 %v1672, %v2291
        %v2420 = vadd.f32 %v1674, %v2292
        %v2421 = vadd.f32 %v1785, %v2293
        %v2422 = vadd.f32 %v1787, %v2294
        %v2423 = vadd.f32 %v1452, %v2295
        %v2424 = vadd.f32 %v1454, %v2296
        %v2425 = vadd.f32 %v1565, %v2297
        %v2426 = vadd.f32 %v1567, %v2298
        %v2427 = vadd.f32 %v1678, %v2299
        %v2428 = vadd.f32 %v1680, %v2300
        %v2429 = vadd.f32 %v1791, %v2301
        %v2430 = vadd.f32 %v1793, %v2302
        %v2431 = vadd.f32 %v1456, %v2303
        %v2432 = vadd.f32 %v1458, %v2304
        %v2433 = vadd.f32 %v1569, %v2305
        %v2434 = vadd.f32 %v1571, %v2306
        %v2435 = vadd.f32 %v1682, %v2307
        %v2436 = vadd.f32 %v1684, %v2308
        %v2437 = vadd.f32 %v1795, %v2309
        %v2438 = vadd.f32 %v1797, %v2310
        %v2439 = vmul.f32 %v2311, 0.7978846
        %v2440 = vmul.f32 %v2312, 0.7978846
        %v2441 = vmul.f32 %v2313, 0.7978846
        %v2442 = vmul.f32 %v2314, 0.7978846
        %v2443 = vmul.f32 %v2315, 0.7978846
        %v2444 = vmul.f32 %v2316, 0.7978846
        %v2445 = vmul.f32 %v2317, 0.7978846
        %v2446 = vmul.f32 %v2318, 0.7978846
        %v2447 = vmul.f32 %v2319, 0.7978846
        %v2448 = vmul.f32 %v2320, 0.7978846
        %v2449 = vmul.f32 %v2321, 0.7978846
        %v2450 = vmul.f32 %v2322, 0.7978846
        %v2451 = vmul.f32 %v2323, 0.7978846
        %v2452 = vmul.f32 %v2324, 0.7978846
        %v2453 = vmul.f32 %v2325, 0.7978846
        %v2454 = vmul.f32 %v2326, 0.7978846
        %v2455 = vmul.f32 %v2327, 0.7978846
        %v2456 = vmul.f32 %v2328, 0.7978846
        %v2457 = vmul.f32 %v2329, 0.7978846
        %v2458 = vmul.f32 %v2330, 0.7978846
        %v2459 = vmul.f32 %v2331, 0.7978846
        %v2460 = vmul.f32 %v2332, 0.7978846
        %v2461 = vmul.f32 %v2333, 0.7978846
        %v2462 = vmul.f32 %v2334, 0.7978846
        %v2463 = vmul.f32 %v2335, 0.7978846
        %v2464 = vmul.f32 %v2336, 0.7978846
        %v2465 = vmul.f32 %v2337, 0.7978846
        %v2466 = vmul.f32 %v2338, 0.7978846
        %v2467 = vmul.f32 %v2339, 0.7978846
        %v2468 = vmul.f32 %v2340, 0.7978846
        %v2469 = vmul.f32 %v2341, 0.7978846
        %v2470 = vmul.f32 %v2342, 0.7978846
        %v2471 = vmul.f32 %v2343, 0.7978846
        %v2472 = vmul.f32 %v2344, 0.7978846
        %v2473 = vmul.f32 %v2345, 0.7978846
        %v2474 = vmul.f32 %v2346, 0.7978846
        %v2475 = vmul.f32 %v2347, 0.7978846
        %v2476 = vmul.f32 %v2348, 0.7978846
        %v2477 = vmul.f32 %v2349, 0.7978846
        %v2478 = vmul.f32 %v2350, 0.7978846
        %v2479 = vmul.f32 %v2351, 0.7978846
        %v2480 = vmul.f32 %v2352, 0.7978846
        %v2481 = vmul.f32 %v2353, 0.7978846
        %v2482 = vmul.f32 %v2354, 0.7978846
        %v2483 = vmul.f32 %v2355, 0.7978846
        %v2484 = vmul.f32 %v2356, 0.7978846
        %v2485 = vmul.f32 %v2357, 0.7978846
        %v2486 = vmul.f32 %v2358, 0.7978846
        %v2487 = vmul.f32 %v2359, 0.7978846
        %v2488 = vmul.f32 %v2360, 0.7978846
        %v2489 = vmul.f32 %v2361, 0.7978846
        %v2490 = vmul.f32 %v2362, 0.7978846
        %v2491 = vmul.f32 %v2363, 0.7978846
        %v2492 = vmul.f32 %v2364, 0.7978846
        %v2493 = vmul.f32 %v2365, 0.7978846
        %v2494 = vmul.f32 %v2366, 0.7978846
        %v2495 = vmul.f32 %v2367, 0.7978846
        %v2496 = vmul.f32 %v2368, 0.7978846
        %v2497 = vmul.f32 %v2369, 0.7978846
        %v2498 = vmul.f32 %v2370, 0.7978846
        %v2499 = vmul.f32 %v2371, 0.7978846
        %v2500 = vmul.f32 %v2372, 0.7978846
        %v2501 = vmul.f32 %v2373, 0.7978846
        %v2502 = vmul.f32 %v2374, 0.7978846
        %v2503 = vmul.f32 %v2375, 0.7978846
        %v2504 = vmul.f32 %v2376, 0.7978846
        %v2505 = vmul.f32 %v2377, 0.7978846
        %v2506 = vmul.f32 %v2378, 0.7978846
        %v2507 = vmul.f32 %v2379, 0.7978846
        %v2508 = vmul.f32 %v2380, 0.7978846
        %v2509 = vmul.f32 %v2381, 0.7978846
        %v2510 = vmul.f32 %v2382, 0.7978846
        %v2511 = vmul.f32 %v2383, 0.7978846
        %v2512 = vmul.f32 %v2384, 0.7978846
        %v2513 = vmul.f32 %v2385, 0.7978846
        %v2514 = vmul.f32 %v2386, 0.7978846
        %v2515 = vmul.f32 %v2387, 0.7978846
        %v2516 = vmul.f32 %v2388, 0.7978846
        %v2517 = vmul.f32 %v2389, 0.7978846
        %v2518 = vmul.f32 %v2390, 0.7978846
        %v2519 = vmul.f32 %v2391, 0.7978846
        %v2520 = vmul.f32 %v2392, 0.7978846
        %v2521 = vmul.f32 %v2393, 0.7978846
        %v2522 = vmul.f32 %v2394, 0.7978846
        %v2523 = vmul.f32 %v2395, 0.7978846
        %v2524 = vmul.f32 %v2396, 0.7978846
        %v2525 = vmul.f32 %v2397, 0.7978846
        %v2526 = vmul.f32 %v2398, 0.7978846
        %v2527 = vmul.f32 %v2399, 0.7978846
        %v2528 = vmul.f32 %v2400, 0.7978846
        %v2529 = vmul.f32 %v2401, 0.7978846
        %v2530 = vmul.f32 %v2402, 0.7978846
        %v2531 = vmul.f32 %v2403, 0.7978846
        %v2532 = vmul.f32 %v2404, 0.7978846
        %v2533 = vmul.f32 %v2405, 0.7978846
        %v2534 = vmul.f32 %v2406, 0.7978846
        %v2535 = vmul.f32 %v2407, 0.7978846
        %v2536 = vmul.f32 %v2408, 0.7978846
        %v2537 = vmul.f32 %v2409, 0.7978846
        %v2538 = vmul.f32 %v2410, 0.7978846
        %v2539 = vmul.f32 %v2411, 0.7978846
        %v2540 = vmul.f32 %v2412, 0.7978846
        %v2541 = vmul.f32 %v2413, 0.7978846
        %v2542 = vmul.f32 %v2414, 0.7978846
        %v2543 = vmul.f32 %v2415, 0.7978846
        %v2544 = vmul.f32 %v2416, 0.7978846
        %v2545 = vmul.f32 %v2417, 0.7978846
        %v2546 = vmul.f32 %v2418, 0.7978846
        %v2547 = vmul.f32 %v2419, 0.7978846
        %v2548 = vmul.f32 %v2420, 0.7978846
        %v2549 = vmul.f32 %v2421, 0.7978846
        %v2550 = vmul.f32 %v2422, 0.7978846
        %v2551 = vmul.f32 %v2423, 0.7978846
        %v2552 = vmul.f32 %v2424, 0.7978846
        %v2553 = vmul.f32 %v2425, 0.7978846
        %v2554 = vmul.f32 %v2426, 0.7978846
        %v2555 = vmul.f32 %v2427, 0.7978846
        %v2556 = vmul.f32 %v2428, 0.7978846
        %v2557 = vmul.f32 %v2429, 0.7978846
        %v2558 = vmul.f32 %v2430, 0.7978846
        %v2559 = vmul.f32 %v2431, 0.7978846
        %v2560 = vmul.f32 %v2432, 0.7978846
        %v2561 = vmul.f32 %v2433, 0.7978846
        %v2562 = vmul.f32 %v2434, 0.7978846
        %v2563 = vmul.f32 %v2435, 0.7978846
        %v2564 = vmul.f32 %v2436, 0.7978846
        %v2565 = vmul.f32 %v2437, 0.7978846
        %v2566 = vmul.f32 %v2438, 0.7978846
        %v2567 = vtanh.pop %v2439
        %v2568 = vtanh.pop %v2440
        %v2569 = vtanh.pop %v2441
        %v2570 = vtanh.pop %v2442
        %v2571 = vtanh.pop %v2443
        %v2572 = vtanh.pop %v2444
        %v2573 = vtanh.pop %v2445
        %v2574 = vtanh.pop %v2446
        %v2575 = vtanh.pop %v2447
        %v2576 = vtanh.pop %v2448
        %v2577 = vtanh.pop %v2449
        %v2578 = vtanh.pop %v2450
        %v2579 = vtanh.pop %v2451
        %v2580 = vtanh.pop %v2452
        %v2581 = vtanh.pop %v2453
        %v2582 = vtanh.pop %v2454
        %v2583 = vtanh.pop %v2455
        %v2584 = vtanh.pop %v2456
        %v2585 = vtanh.pop %v2457
        %v2586 = vtanh.pop %v2458
        %v2587 = vtanh.pop %v2459
        %v2588 = vtanh.pop %v2460
        %v2589 = vtanh.pop %v2461
        %v2590 = vtanh.pop %v2462
        %v2591 = vtanh.pop %v2463
        %v2592 = vtanh.pop %v2464
        %v2593 = vtanh.pop %v2465
        %v2594 = vtanh.pop %v2466
        %v2595 = vtanh.pop %v2467
        %v2596 = vtanh.pop %v2468
        %v2597 = vtanh.pop %v2469
        %v2598 = vtanh.pop %v2470
        %v2599 = vtanh.pop %v2471
        %v2600 = vtanh.pop %v2472
        %v2601 = vtanh.pop %v2473
        %v2602 = vtanh.pop %v2474
        %v2603 = vtanh.pop %v2475
        %v2604 = vtanh.pop %v2476
        %v2605 = vtanh.pop %v2477
        %v2606 = vtanh.pop %v2478
        %v2607 = vtanh.pop %v2479
        %v2608 = vtanh.pop %v2480
        %v2609 = vtanh.pop %v2481
        %v2610 = vtanh.pop %v2482
        %v2611 = vtanh.pop %v2483
        %v2612 = vtanh.pop %v2484
        %v2613 = vtanh.pop %v2485
        %v2614 = vtanh.pop %v2486
        %v2615 = vtanh.pop %v2487
        %v2616 = vtanh.pop %v2488
        %v2617 = vtanh.pop %v2489
        %v2618 = vtanh.pop %v2490
        %v2619 = vtanh.pop %v2491
        %v2620 = vtanh.pop %v2492
        %v2621 = vtanh.pop %v2493
        %v2622 = vtanh.pop %v2494
        %v2623 = vtanh.pop %v2495
        %v2624 = vtanh.pop %v2496
        %v2625 = vtanh.pop %v2497
        %v2626 = vtanh.pop %v2498
        %v2627 = vtanh.pop %v2499
        %v2628 = vtanh.pop %v2500
        %v2629 = vtanh.pop %v2501
        %v2630 = vtanh.pop %v2502
        %v2631 = vtanh.pop %v2503
        %v2632 = vtanh.pop %v2504
        %v2633 = vtanh.pop %v2505
        %v2634 = vtanh.pop %v2506
        %v2635 = vtanh.pop %v2507
        %v2636 = vtanh.pop %v2508
        %v2637 = vtanh.pop %v2509
        %v2638 = vtanh.pop %v2510
        %v2639 = vtanh.pop %v2511
        %v2640 = vtanh.pop %v2512
        %v2641 = vtanh.pop %v2513
        %v2642 = vtanh.pop %v2514
        %v2643 = vtanh.pop %v2515
        %v2644 = vtanh.pop %v2516
        %v2645 = vtanh.pop %v2517
        %v2646 = vtanh.pop %v2518
        %v2647 = vtanh.pop %v2519
        %v2648 = vtanh.pop %v2520
        %v2649 = vtanh.pop %v2521
        %v2650 = vtanh.pop %v2522
        %v2651 = vtanh.pop %v2523
        %v2652 = vtanh.pop %v2524
        %v2653 = vtanh.pop %v2525
        %v2654 = vtanh.pop %v2526
        %v2655 = vtanh.pop %v2527
        %v2656 = vtanh.pop %v2528
        %v2657 = vtanh.pop %v2529
        %v2658 = vtanh.pop %v2530
        %v2659 = vtanh.pop %v2531
        %v2660 = vtanh.pop %v2532
        %v2661 = vtanh.pop %v2533
        %v2662 = vtanh.pop %v2534
        %v2663 = vtanh.pop %v2535
        %v2664 = vtanh.pop %v2536
        %v2665 = vtanh.pop %v2537
        %v2666 = vtanh.pop %v2538
        %v2667 = vtanh.pop %v2539
        %v2668 = vtanh.pop %v2540
        %v2669 = vtanh.pop %v2541
        %v2670 = vtanh.pop %v2542
        %v2671 = vtanh.pop %v2543
        %v2672 = vtanh.pop %v2544
        %v2673 = vtanh.pop %v2545
        %v2674 = vtanh.pop %v2546
        %v2675 = vtanh.pop %v2547
        %v2676 = vtanh.pop %v2548
        %v2677 = vtanh.pop %v2549
        %v2678 = vtanh.pop %v2550
        %v2679 = vtanh.pop %v2551
        %v2680 = vtanh.pop %v2552
        %v2681 = vtanh.pop %v2553
        %v2682 = vtanh.pop %v2554
        %v2683 = vtanh.pop %v2555
        %v2684 = vtanh.pop %v2556
        %v2685 = vtanh.pop %v2557
        %v2686 = vtanh.pop %v2558
        %v2687 = vtanh.pop %v2559
        %v2688 = vtanh.pop %v2560
        %v2689 = vtanh.pop %v2561
        %v2690 = vtanh.pop %v2562
        %v2691 = vtanh.pop %v2563
        %v2692 = vtanh.pop %v2564
        %v2693 = vtanh.pop %v2565
        %v2694 = vtanh.pop %v2566
        %v2695 = vadd.f32 %v2567, 1.0
        %v2696 = vadd.f32 %v2568, 1.0
        %v2697 = vadd.f32 %v2569, 1.0
        %v2698 = vadd.f32 %v2570, 1.0
        %v2699 = vadd.f32 %v2571, 1.0
        %v2700 = vadd.f32 %v2572, 1.0
        %v2701 = vadd.f32 %v2573, 1.0
        %v2702 = vadd.f32 %v2574, 1.0
        %v2703 = vadd.f32 %v2575, 1.0
        %v2704 = vadd.f32 %v2576, 1.0
        %v2705 = vadd.f32 %v2577, 1.0
        %v2706 = vadd.f32 %v2578, 1.0
        %v2707 = vadd.f32 %v2579, 1.0
        %v2708 = vadd.f32 %v2580, 1.0
        %v2709 = vadd.f32 %v2581, 1.0
        %v2710 = vadd.f32 %v2582, 1.0
        %v2711 = vadd.f32 %v2583, 1.0
        %v2712 = vadd.f32 %v2584, 1.0
        %v2713 = vadd.f32 %v2585, 1.0
        %v2714 = vadd.f32 %v2586, 1.0
        %v2715 = vadd.f32 %v2587, 1.0
        %v2716 = vadd.f32 %v2588, 1.0
        %v2717 = vadd.f32 %v2589, 1.0
        %v2718 = vadd.f32 %v2590, 1.0
        %v2719 = vadd.f32 %v2591, 1.0
        %v2720 = vadd.f32 %v2592, 1.0
        %v2721 = vadd.f32 %v2593, 1.0
        %v2722 = vadd.f32 %v2594, 1.0
        %v2723 = vadd.f32 %v2595, 1.0
        %v2724 = vadd.f32 %v2596, 1.0
        %v2725 = vadd.f32 %v2597, 1.0
        %v2726 = vadd.f32 %v2598, 1.0
        %v2727 = vadd.f32 %v2599, 1.0
        %v2728 = vadd.f32 %v2600, 1.0
        %v2729 = vadd.f32 %v2601, 1.0
        %v2730 = vadd.f32 %v2602, 1.0
        %v2731 = vadd.f32 %v2603, 1.0
        %v2732 = vadd.f32 %v2604, 1.0
        %v2733 = vadd.f32 %v2605, 1.0
        %v2734 = vadd.f32 %v2606, 1.0
        %v2735 = vadd.f32 %v2607, 1.0
        %v2736 = vadd.f32 %v2608, 1.0
        %v2737 = vadd.f32 %v2609, 1.0
        %v2738 = vadd.f32 %v2610, 1.0
        %v2739 = vadd.f32 %v2611, 1.0
        %v2740 = vadd.f32 %v2612, 1.0
        %v2741 = vadd.f32 %v2613, 1.0
        %v2742 = vadd.f32 %v2614, 1.0
        %v2743 = vadd.f32 %v2615, 1.0
        %v2744 = vadd.f32 %v2616, 1.0
        %v2745 = vadd.f32 %v2617, 1.0
        %v2746 = vadd.f32 %v2618, 1.0
        %v2747 = vadd.f32 %v2619, 1.0
        %v2748 = vadd.f32 %v2620, 1.0
        %v2749 = vadd.f32 %v2621, 1.0
        %v2750 = vadd.f32 %v2622, 1.0
        %v2751 = vadd.f32 %v2623, 1.0
        %v2752 = vadd.f32 %v2624, 1.0
        %v2753 = vadd.f32 %v2625, 1.0
        %v2754 = vadd.f32 %v2626, 1.0
        %v2755 = vadd.f32 %v2627, 1.0
        %v2756 = vadd.f32 %v2628, 1.0
        %v2757 = vadd.f32 %v2629, 1.0
        %v2758 = vadd.f32 %v2630, 1.0
        %v2759 = vadd.f32 %v2631, 1.0
        %v2760 = vadd.f32 %v2632, 1.0
        %v2761 = vadd.f32 %v2633, 1.0
        %v2762 = vadd.f32 %v2634, 1.0
        %v2763 = vadd.f32 %v2635, 1.0
        %v2764 = vadd.f32 %v2636, 1.0
        %v2765 = vadd.f32 %v2637, 1.0
        %v2766 = vadd.f32 %v2638, 1.0
        %v2767 = vadd.f32 %v2639, 1.0
        %v2768 = vadd.f32 %v2640, 1.0
        %v2769 = vadd.f32 %v2641, 1.0
        %v2770 = vadd.f32 %v2642, 1.0
        %v2771 = vadd.f32 %v2643, 1.0
        %v2772 = vadd.f32 %v2644, 1.0
        %v2773 = vadd.f32 %v2645, 1.0
        %v2774 = vadd.f32 %v2646, 1.0
        %v2775 = vadd.f32 %v2647, 1.0
        %v2776 = vadd.f32 %v2648, 1.0
        %v2777 = vadd.f32 %v2649, 1.0
        %v2778 = vadd.f32 %v2650, 1.0
        %v2779 = vadd.f32 %v2651, 1.0
        %v2780 = vadd.f32 %v2652, 1.0
        %v2781 = vadd.f32 %v2653, 1.0
        %v2782 = vadd.f32 %v2654, 1.0
        %v2783 = vadd.f32 %v2655, 1.0
        %v2784 = vadd.f32 %v2656, 1.0
        %v2785 = vadd.f32 %v2657, 1.0
        %v2786 = vadd.f32 %v2658, 1.0
        %v2787 = vadd.f32 %v2659, 1.0
        %v2788 = vadd.f32 %v2660, 1.0
        %v2789 = vadd.f32 %v2661, 1.0
        %v2790 = vadd.f32 %v2662, 1.0
        %v2791 = vadd.f32 %v2663, 1.0
        %v2792 = vadd.f32 %v2664, 1.0
        %v2793 = vadd.f32 %v2665, 1.0
        %v2794 = vadd.f32 %v2666, 1.0
        %v2795 = vadd.f32 %v2667, 1.0
        %v2796 = vadd.f32 %v2668, 1.0
        %v2797 = vadd.f32 %v2669, 1.0
        %v2798 = vadd.f32 %v2670, 1.0
        %v2799 = vadd.f32 %v2671, 1.0
        %v2800 = vadd.f32 %v2672, 1.0
        %v2801 = vadd.f32 %v2673, 1.0
        %v2802 = vadd.f32 %v2674, 1.0
        %v2803 = vadd.f32 %v2675, 1.0
        %v2804 = vadd.f32 %v2676, 1.0
        %v2805 = vadd.f32 %v2677, 1.0
        %v2806 = vadd.f32 %v2678, 1.0
        %v2807 = vadd.f32 %v2679, 1.0
        %v2808 = vadd.f32 %v2680, 1.0
        %v2809 = vadd.f32 %v2681, 1.0
        %v2810 = vadd.f32 %v2682, 1.0
        %v2811 = vadd.f32 %v2683, 1.0
        %v2812 = vadd.f32 %v2684, 1.0
        %v2813 = vadd.f32 %v2685, 1.0
        %v2814 = vadd.f32 %v2686, 1.0
        %v2815 = vadd.f32 %v2687, 1.0
        %v2816 = vadd.f32 %v2688, 1.0
        %v2817 = vadd.f32 %v2689, 1.0
        %v2818 = vadd.f32 %v2690, 1.0
        %v2819 = vadd.f32 %v2691, 1.0
        %v2820 = vadd.f32 %v2692, 1.0
        %v2821 = vadd.f32 %v2693, 1.0
        %v2822 = vadd.f32 %v2694, 1.0
        %v2823 = vmul.f32 %v1799, %v2695
        %v2824 = vmul.f32 %v1800, %v2696
        %v2825 = vmul.f32 %v1801, %v2697
        %v2826 = vmul.f32 %v1802, %v2698
        %v2827 = vmul.f32 %v1803, %v2699
        %v2828 = vmul.f32 %v1804, %v2700
        %v2829 = vmul.f32 %v1805, %v2701
        %v2830 = vmul.f32 %v1806, %v2702
        %v2831 = vmul.f32 %v1807, %v2703
        %v2832 = vmul.f32 %v1808, %v2704
        %v2833 = vmul.f32 %v1809, %v2705
        %v2834 = vmul.f32 %v1810, %v2706
        %v2835 = vmul.f32 %v1811, %v2707
        %v2836 = vmul.f32 %v1812, %v2708
        %v2837 = vmul.f32 %v1813, %v2709
        %v2838 = vmul.f32 %v1814, %v2710
        %v2839 = vmul.f32 %v1815, %v2711
        %v2840 = vmul.f32 %v1816, %v2712
        %v2841 = vmul.f32 %v1817, %v2713
        %v2842 = vmul.f32 %v1818, %v2714
        %v2843 = vmul.f32 %v1819, %v2715
        %v2844 = vmul.f32 %v1820, %v2716
        %v2845 = vmul.f32 %v1821, %v2717
        %v2846 = vmul.f32 %v1822, %v2718
        %v2847 = vmul.f32 %v1823, %v2719
        %v2848 = vmul.f32 %v1824, %v2720
        %v2849 = vmul.f32 %v1825, %v2721
        %v2850 = vmul.f32 %v1826, %v2722
        %v2851 = vmul.f32 %v1827, %v2723
        %v2852 = vmul.f32 %v1828, %v2724
        %v2853 = vmul.f32 %v1829, %v2725
        %v2854 = vmul.f32 %v1830, %v2726
        %v2855 = vmul.f32 %v1831, %v2727
        %v2856 = vmul.f32 %v1832, %v2728
        %v2857 = vmul.f32 %v1833, %v2729
        %v2858 = vmul.f32 %v1834, %v2730
        %v2859 = vmul.f32 %v1835, %v2731
        %v2860 = vmul.f32 %v1836, %v2732
        %v2861 = vmul.f32 %v1837, %v2733
        %v2862 = vmul.f32 %v1838, %v2734
        %v2863 = vmul.f32 %v1839, %v2735
        %v2864 = vmul.f32 %v1840, %v2736
        %v2865 = vmul.f32 %v1841, %v2737
        %v2866 = vmul.f32 %v1842, %v2738
        %v2867 = vmul.f32 %v1843, %v2739
        %v2868 = vmul.f32 %v1844, %v2740
        %v2869 = vmul.f32 %v1845, %v2741
        %v2870 = vmul.f32 %v1846, %v2742
        %v2871 = vmul.f32 %v1847, %v2743
        %v2872 = vmul.f32 %v1848, %v2744
        %v2873 = vmul.f32 %v1849, %v2745
        %v2874 = vmul.f32 %v1850, %v2746
        %v2875 = vmul.f32 %v1851, %v2747
        %v2876 = vmul.f32 %v1852, %v2748
        %v2877 = vmul.f32 %v1853, %v2749
        %v2878 = vmul.f32 %v1854, %v2750
        %v2879 = vmul.f32 %v1855, %v2751
        %v2880 = vmul.f32 %v1856, %v2752
        %v2881 = vmul.f32 %v1857, %v2753
        %v2882 = vmul.f32 %v1858, %v2754
        %v2883 = vmul.f32 %v1859, %v2755
        %v2884 = vmul.f32 %v1860, %v2756
        %v2885 = vmul.f32 %v1861, %v2757
        %v2886 = vmul.f32 %v1862, %v2758
        %v2887 = vmul.f32 %v1863, %v2759
        %v2888 = vmul.f32 %v1864, %v2760
        %v2889 = vmul.f32 %v1865, %v2761
        %v2890 = vmul.f32 %v1866, %v2762
        %v2891 = vmul.f32 %v1867, %v2763
        %v2892 = vmul.f32 %v1868, %v2764
        %v2893 = vmul.f32 %v1869, %v2765
        %v2894 = vmul.f32 %v1870, %v2766
        %v2895 = vmul.f32 %v1871, %v2767
        %v2896 = vmul.f32 %v1872, %v2768
        %v2897 = vmul.f32 %v1873, %v2769
        %v2898 = vmul.f32 %v1874, %v2770
        %v2899 = vmul.f32 %v1875, %v2771
        %v2900 = vmul.f32 %v1876, %v2772
        %v2901 = vmul.f32 %v1877, %v2773
        %v2902 = vmul.f32 %v1878, %v2774
        %v2903 = vmul.f32 %v1879, %v2775
        %v2904 = vmul.f32 %v1880, %v2776
        %v2905 = vmul.f32 %v1881, %v2777
        %v2906 = vmul.f32 %v1882, %v2778
        %v2907 = vmul.f32 %v1883, %v2779
        %v2908 = vmul.f32 %v1884, %v2780
        %v2909 = vmul.f32 %v1885, %v2781
        %v2910 = vmul.f32 %v1886, %v2782
        %v2911 = vmul.f32 %v1887, %v2783
        %v2912 = vmul.f32 %v1888, %v2784
        %v2913 = vmul.f32 %v1889, %v2785
        %v2914 = vmul.f32 %v1890, %v2786
        %v2915 = vmul.f32 %v1891, %v2787
        %v2916 = vmul.f32 %v1892, %v2788
        %v2917 = vmul.f32 %v1893, %v2789
        %v2918 = vmul.f32 %v1894, %v2790
        %v2919 = vmul.f32 %v1895, %v2791
        %v2920 = vmul.f32 %v1896, %v2792
        %v2921 = vmul.f32 %v1897, %v2793
        %v2922 = vmul.f32 %v1898, %v2794
        %v2923 = vmul.f32 %v1899, %v2795
        %v2924 = vmul.f32 %v1900, %v2796
        %v2925 = vmul.f32 %v1901, %v2797
        %v2926 = vmul.f32 %v1902, %v2798
        %v2927 = vmul.f32 %v1903, %v2799
        %v2928 = vmul.f32 %v1904, %v2800
        %v2929 = vmul.f32 %v1905, %v2801
        %v2930 = vmul.f32 %v1906, %v2802
        %v2931 = vmul.f32 %v1907, %v2803
        %v2932 = vmul.f32 %v1908, %v2804
        %v2933 = vmul.f32 %v1909, %v2805
        %v2934 = vmul.f32 %v1910, %v2806
        %v2935 = vmul.f32 %v1911, %v2807
        %v2936 = vmul.f32 %v1912, %v2808
        %v2937 = vmul.f32 %v1913, %v2809
        %v2938 = vmul.f32 %v1914, %v2810
        %v2939 = vmul.f32 %v1915, %v2811
        %v2940 = vmul.f32 %v1916, %v2812
        %v2941 = vmul.f32 %v1917, %v2813
        %v2942 = vmul.f32 %v1918, %v2814
        %v2943 = vmul.f32 %v1919, %v2815
        %v2944 = vmul.f32 %v1920, %v2816
        %v2945 = vmul.f32 %v1921, %v2817
        %v2946 = vmul.f32 %v1922, %v2818
        %v2947 = vmul.f32 %v1923, %v2819
        %v2948 = vmul.f32 %v1924, %v2820
        %v2949 = vmul.f32 %v1925, %v2821
        %v2950 = vmul.f32 %v1926, %v2822
        %v2951 = vpack.c.bf16 %v2831, %v2823
        %v2952 = vpack.c.bf16 %v2832, %v2824
        %v2953 = vpack.c.bf16 %v2833, %v2825
        %v2954 = vpack.c.bf16 %v2834, %v2826
        %v2955 = vpack.c.bf16 %v2835, %v2827
        %v2956 = vpack.c.bf16 %v2836, %v2828
        %v2957 = vpack.c.bf16 %v2837, %v2829
        %v2958 = vpack.c.bf16 %v2838, %v2830
        %v2959 = vpack.c.bf16 %v2847, %v2839
        %v2960 = vpack.c.bf16 %v2848, %v2840
        %v2961 = vpack.c.bf16 %v2849, %v2841
        %v2962 = vpack.c.bf16 %v2850, %v2842
        %v2963 = vpack.c.bf16 %v2851, %v2843
        %v2964 = vpack.c.bf16 %v2852, %v2844
        %v2965 = vpack.c.bf16 %v2853, %v2845
        %v2966 = vpack.c.bf16 %v2854, %v2846
        %v2967 = vpack.c.bf16 %v2863, %v2855
        %v2968 = vpack.c.bf16 %v2864, %v2856
        %v2969 = vpack.c.bf16 %v2865, %v2857
        %v2970 = vpack.c.bf16 %v2866, %v2858
        %v2971 = vpack.c.bf16 %v2867, %v2859
        %v2972 = vpack.c.bf16 %v2868, %v2860
        %v2973 = vpack.c.bf16 %v2869, %v2861
        %v2974 = vpack.c.bf16 %v2870, %v2862
        %v2975 = vpack.c.bf16 %v2879, %v2871
        %v2976 = vpack.c.bf16 %v2880, %v2872
        %v2977 = vpack.c.bf16 %v2881, %v2873
        %v2978 = vpack.c.bf16 %v2882, %v2874
        %v2979 = vpack.c.bf16 %v2883, %v2875
        %v2980 = vpack.c.bf16 %v2884, %v2876
        %v2981 = vpack.c.bf16 %v2885, %v2877
        %v2982 = vpack.c.bf16 %v2886, %v2878
        %v2983 = vpack.c.bf16 %v2895, %v2887
        %v2984 = vpack.c.bf16 %v2896, %v2888
        %v2985 = vpack.c.bf16 %v2897, %v2889
        %v2986 = vpack.c.bf16 %v2898, %v2890
        %v2987 = vpack.c.bf16 %v2899, %v2891
        %v2988 = vpack.c.bf16 %v2900, %v2892
        %v2989 = vpack.c.bf16 %v2901, %v2893
        %v2990 = vpack.c.bf16 %v2902, %v2894
        %v2991 = vpack.c.bf16 %v2911, %v2903
        %v2992 = vpack.c.bf16 %v2912, %v2904
        %v2993 = vpack.c.bf16 %v2913, %v2905
        %v2994 = vpack.c.bf16 %v2914, %v2906
        %v2995 = vpack.c.bf16 %v2915, %v2907
        %v2996 = vpack.c.bf16 %v2916, %v2908
        %v2997 = vpack.c.bf16 %v2917, %v2909
        %v2998 = vpack.c.bf16 %v2918, %v2910
        %v2999 = vpack.c.bf16 %v2927, %v2919
        %v3000 = vpack.c.bf16 %v2928, %v2920
        %v3001 = vpack.c.bf16 %v2929, %v2921
        %v3002 = vpack.c.bf16 %v2930, %v2922
        %v3003 = vpack.c.bf16 %v2931, %v2923
        %v3004 = vpack.c.bf16 %v2932, %v2924
        %v3005 = vpack.c.bf16 %v2933, %v2925
        %v3006 = vpack.c.bf16 %v2934, %v2926
        %v3007 = vpack.c.bf16 %v2943, %v2935
        %v3008 = vpack.c.bf16 %v2944, %v2936
        %v3009 = vpack.c.bf16 %v2945, %v2937
        %v3010 = vpack.c.bf16 %v2946, %v2938
        %v3011 = vpack.c.bf16 %v2947, %v2939
        %v3012 = vpack.c.bf16 %v2948, %v2940
        %v3013 = vpack.c.bf16 %v2949, %v2941
        %v3014 = vpack.c.bf16 %v2950, %v2942
        %v3015 = vld [vmem:[%s8] sm:$0xf]
        %v3016 = vld [vmem:[%s8 + $0x4] sm:$0xf]
        %v3017 = vld [vmem:[%s8 + $0x8] sm:$0xf]
        %v3018 = vld [vmem:[%s8 + $0xc] sm:$0xf]
        %v3019 = vld [vmem:[%s8 + $0x10] sm:$0xf]
        %v3020 = vld [vmem:[%s8 + $0x14] sm:$0xf]
        %v3021 = vld [vmem:[%s8 + $0x18] sm:$0xf]
        %v3022 = vld [vmem:[%s8 + $0x1c] sm:$0xf]
        %v3023 = vld [vmem:[%s8 + $0x20] sm:$0xf]
        %v3024 = vld [vmem:[%s8 + $0x24] sm:$0xf]
        %v3025 = vld [vmem:[%s8 + $0x28] sm:$0xf]
        %v3026 = vld [vmem:[%s8 + $0x2c] sm:$0xf]
        %v3027 = vld [vmem:[%s8 + $0x30] sm:$0xf]
        %v3028 = vld [vmem:[%s8 + $0x34] sm:$0xf]
        %v3029 = vld [vmem:[%s8 + $0x38] sm:$0xf]
        %v3030 = vld [vmem:[%s8 + $0x3c] sm:$0xf]
        %v3031 = vld [vmem:[%s8 + $0x40] sm:$0xf]
        %v3032 = vld [vmem:[%s8 + $0x44] sm:$0xf]
        %v3033 = vld [vmem:[%s8 + $0x48] sm:$0xf]
        %v3034 = vld [vmem:[%s8 + $0x4c] sm:$0xf]
        %v3035 = vld [vmem:[%s8 + $0x50] sm:$0xf]
        %v3036 = vld [vmem:[%s8 + $0x54] sm:$0xf]
        %v3037 = vld [vmem:[%s8 + $0x58] sm:$0xf]
        %v3038 = vld [vmem:[%s8 + $0x5c] sm:$0xf]
        %v3039 = vld [vmem:[%s8 + $0x60] sm:$0xf]
        %v3040 = vld [vmem:[%s8 + $0x64] sm:$0xf]
        %v3041 = vld [vmem:[%s8 + $0x68] sm:$0xf]
        %v3042 = vld [vmem:[%s8 + $0x6c] sm:$0xf]
        %v3043 = vld [vmem:[%s8 + $0x70] sm:$0xf]
        %v3044 = vld [vmem:[%s8 + $0x74] sm:$0xf]
        %v3045 = vld [vmem:[%s8 + $0x78] sm:$0xf]
        %v3046 = vld [vmem:[%s8 + $0x7c] sm:$0xf]
        %v3047 = vld [vmem:[%s8 + $0x80] sm:$0xf]
        %v3048 = vld [vmem:[%s8 + $0x84] sm:$0xf]
        %v3049 = vld [vmem:[%s8 + $0x88] sm:$0xf]
        %v3050 = vld [vmem:[%s8 + $0x8c] sm:$0xf]
        %v3051 = vld [vmem:[%s8 + $0x90] sm:$0xf]
        %v3052 = vld [vmem:[%s8 + $0x94] sm:$0xf]
        %v3053 = vld [vmem:[%s8 + $0x98] sm:$0xf]
        %v3054 = vld [vmem:[%s8 + $0x9c] sm:$0xf]
        %v3055 = vld [vmem:[%s8 + $0xa0] sm:$0xf]
        %v3056 = vld [vmem:[%s8 + $0xa4] sm:$0xf]
        %v3057 = vld [vmem:[%s8 + $0xa8] sm:$0xf]
        %v3058 = vld [vmem:[%s8 + $0xac] sm:$0xf]
        %v3059 = vld [vmem:[%s8 + $0xb0] sm:$0xf]
        %v3060 = vld [vmem:[%s8 + $0xb4] sm:$0xf]
        %v3061 = vld [vmem:[%s8 + $0xb8] sm:$0xf]
        %v3062 = vld [vmem:[%s8 + $0xbc] sm:$0xf]
        %v3063 = vld [vmem:[%s8 + $0xc0] sm:$0xf]
        %v3064 = vld [vmem:[%s8 + $0xc4] sm:$0xf]
        %v3065 = vld [vmem:[%s8 + $0xc8] sm:$0xf]
        %v3066 = vld [vmem:[%s8 + $0xcc] sm:$0xf]
        %v3067 = vld [vmem:[%s8 + $0xd0] sm:$0xf]
        %v3068 = vld [vmem:[%s8 + $0xd4] sm:$0xf]
        %v3069 = vld [vmem:[%s8 + $0xd8] sm:$0xf]
        %v3070 = vld [vmem:[%s8 + $0xdc] sm:$0xf]
        %v3071 = vld [vmem:[%s8 + $0xe0] sm:$0xf]
        %v3072 = vld [vmem:[%s8 + $0xe4] sm:$0xf]
        %v3073 = vld [vmem:[%s8 + $0xe8] sm:$0xf]
        %v3074 = vld [vmem:[%s8 + $0xec] sm:$0xf]
        %v3075 = vld [vmem:[%s8 + $0xf0] sm:$0xf]
        %v3076 = vld [vmem:[%s8 + $0xf4] sm:$0xf]
        %v3077 = vld [vmem:[%s8 + $0xf8] sm:$0xf]
        %v3078 = vld [vmem:[%s8 + $0xfc] sm:$0xf]
        %v3079 = vld [vmem:[%s8 + $0x100] sm:$0xf]
        %v3080 = vld [vmem:[%s8 + $0x104] sm:$0xf]
        %v3081 = vld [vmem:[%s8 + $0x108] sm:$0xf]
        %v3082 = vld [vmem:[%s8 + $0x10c] sm:$0xf]
        %v3083 = vld [vmem:[%s8 + $0x110] sm:$0xf]
        %v3084 = vld [vmem:[%s8 + $0x114] sm:$0xf]
        %v3085 = vld [vmem:[%s8 + $0x118] sm:$0xf]
        %v3086 = vld [vmem:[%s8 + $0x11c] sm:$0xf]
        %v3087 = vld [vmem:[%s8 + $0x120] sm:$0xf]
        %v3088 = vld [vmem:[%s8 + $0x124] sm:$0xf]
        %v3089 = vld [vmem:[%s8 + $0x128] sm:$0xf]
        %v3090 = vld [vmem:[%s8 + $0x12c] sm:$0xf]
        %v3091 = vld [vmem:[%s8 + $0x130] sm:$0xf]
        %v3092 = vld [vmem:[%s8 + $0x134] sm:$0xf]
        %v3093 = vld [vmem:[%s8 + $0x138] sm:$0xf]
        %v3094 = vld [vmem:[%s8 + $0x13c] sm:$0xf]
        %v3095 = vld [vmem:[%s8 + $0x140] sm:$0xf]
        %v3096 = vld [vmem:[%s8 + $0x144] sm:$0xf]
        %v3097 = vld [vmem:[%s8 + $0x148] sm:$0xf]
        %v3098 = vld [vmem:[%s8 + $0x14c] sm:$0xf]
        %v3099 = vld [vmem:[%s8 + $0x150] sm:$0xf]
        %v3100 = vld [vmem:[%s8 + $0x154] sm:$0xf]
        %v3101 = vld [vmem:[%s8 + $0x158] sm:$0xf]
        %v3102 = vld [vmem:[%s8 + $0x15c] sm:$0xf]
        %v3103 = vld [vmem:[%s8 + $0x160] sm:$0xf]
        %v3104 = vld [vmem:[%s8 + $0x164] sm:$0xf]
        %v3105 = vld [vmem:[%s8 + $0x168] sm:$0xf]
        %v3106 = vld [vmem:[%s8 + $0x16c] sm:$0xf]
        %v3107 = vld [vmem:[%s8 + $0x170] sm:$0xf]
        %v3108 = vld [vmem:[%s8 + $0x174] sm:$0xf]
        %v3109 = vld [vmem:[%s8 + $0x178] sm:$0xf]
        %v3110 = vld [vmem:[%s8 + $0x17c] sm:$0xf]
        %v3111 = vld [vmem:[%s8 + $0x180] sm:$0xf]
        %v3112 = vld [vmem:[%s8 + $0x184] sm:$0xf]
        %v3113 = vld [vmem:[%s8 + $0x188] sm:$0xf]
        %v3114 = vld [vmem:[%s8 + $0x18c] sm:$0xf]
        %v3115 = vld [vmem:[%s8 + $0x190] sm:$0xf]
        %v3116 = vld [vmem:[%s8 + $0x194] sm:$0xf]
        %v3117 = vld [vmem:[%s8 + $0x198] sm:$0xf]
        %v3118 = vld [vmem:[%s8 + $0x19c] sm:$0xf]
        %v3119 = vld [vmem:[%s8 + $0x1a0] sm:$0xf]
        %v3120 = vld [vmem:[%s8 + $0x1a4] sm:$0xf]
        %v3121 = vld [vmem:[%s8 + $0x1a8] sm:$0xf]
        %v3122 = vld [vmem:[%s8 + $0x1ac] sm:$0xf]
        %v3123 = vld [vmem:[%s8 + $0x1b0] sm:$0xf]
        %v3124 = vld [vmem:[%s8 + $0x1b4] sm:$0xf]
        %v3125 = vld [vmem:[%s8 + $0x1b8] sm:$0xf]
        %v3126 = vld [vmem:[%s8 + $0x1bc] sm:$0xf]
        %v3127 = vld [vmem:[%s8 + $0x1c0] sm:$0xf]
        %v3128 = vld [vmem:[%s8 + $0x1c4] sm:$0xf]
        %v3129 = vld [vmem:[%s8 + $0x1c8] sm:$0xf]
        %v3130 = vld [vmem:[%s8 + $0x1cc] sm:$0xf]
        %v3131 = vld [vmem:[%s8 + $0x1d0] sm:$0xf]
        %v3132 = vld [vmem:[%s8 + $0x1d4] sm:$0xf]
        %v3133 = vld [vmem:[%s8 + $0x1d8] sm:$0xf]
        %v3134 = vld [vmem:[%s8 + $0x1dc] sm:$0xf]
        %v3135 = vld [vmem:[%s8 + $0x1e0] sm:$0xf]
        %v3136 = vld [vmem:[%s8 + $0x1e4] sm:$0xf]
        %v3137 = vld [vmem:[%s8 + $0x1e8] sm:$0xf]
        %v3138 = vld [vmem:[%s8 + $0x1ec] sm:$0xf]
        %v3139 = vld [vmem:[%s8 + $0x1f0] sm:$0xf]
        %v3140 = vld [vmem:[%s8 + $0x1f4] sm:$0xf]
        %v3141 = vld [vmem:[%s8 + $0x1f8] sm:$0xf]
        %v3142 = vld [vmem:[%s8 + $0x1fc] sm:$0xf]
        %v3143 = vld [vmem:[%s9] sm:$0x1]
        %v3145 = vlaneseq
        %v3146 = vshrl.u32 %v3145, 7
        %v3147 = vsub.s32 0, %v3146
        %v3148 = vrot.slane %v3143, %v3147
        %v3278 = vunpack.c.l.b16 %v3015
        %v3279 = vunpack.c.l.b16 %v3016
        %v3280 = vunpack.c.l.b16 %v3017
        %v3281 = vunpack.c.l.b16 %v3018
        %v3282 = vunpack.c.l.b16 %v3019
        %v3283 = vunpack.c.l.b16 %v3020
        %v3284 = vunpack.c.l.b16 %v3021
        %v3285 = vunpack.c.l.b16 %v3022
        %v3286 = vunpack.c.l.b16 %v3023
        %v3287 = vunpack.c.l.b16 %v3024
        %v3288 = vunpack.c.l.b16 %v3025
        %v3289 = vunpack.c.l.b16 %v3026
        %v3290 = vunpack.c.l.b16 %v3027
        %v3291 = vunpack.c.l.b16 %v3028
        %v3292 = vunpack.c.l.b16 %v3029
        %v3293 = vunpack.c.l.b16 %v3030
        %v3294 = vunpack.c.l.b16 %v3031
        %v3295 = vunpack.c.l.b16 %v3032
        %v3296 = vunpack.c.l.b16 %v3033
        %v3297 = vunpack.c.l.b16 %v3034
        %v3298 = vunpack.c.l.b16 %v3035
        %v3299 = vunpack.c.l.b16 %v3036
        %v3300 = vunpack.c.l.b16 %v3037
        %v3301 = vunpack.c.l.b16 %v3038
        %v3302 = vunpack.c.l.b16 %v3039
        %v3303 = vunpack.c.l.b16 %v3040
        %v3304 = vunpack.c.l.b16 %v3041
        %v3305 = vunpack.c.l.b16 %v3042
        %v3306 = vunpack.c.l.b16 %v3043
        %v3307 = vunpack.c.l.b16 %v3044
        %v3308 = vunpack.c.l.b16 %v3045
        %v3309 = vunpack.c.l.b16 %v3046
        %v3310 = vunpack.c.l.b16 %v3047
        %v3311 = vunpack.c.l.b16 %v3048
        %v3312 = vunpack.c.l.b16 %v3049
        %v3313 = vunpack.c.l.b16 %v3050
        %v3314 = vunpack.c.l.b16 %v3051
        %v3315 = vunpack.c.l.b16 %v3052
        %v3316 = vunpack.c.l.b16 %v3053
        %v3317 = vunpack.c.l.b16 %v3054
        %v3318 = vunpack.c.l.b16 %v3055
        %v3319 = vunpack.c.l.b16 %v3056
        %v3320 = vunpack.c.l.b16 %v3057
        %v3321 = vunpack.c.l.b16 %v3058
        %v3322 = vunpack.c.l.b16 %v3059
        %v3323 = vunpack.c.l.b16 %v3060
        %v3324 = vunpack.c.l.b16 %v3061
        %v3325 = vunpack.c.l.b16 %v3062
        %v3326 = vunpack.c.l.b16 %v3063
        %v3327 = vunpack.c.l.b16 %v3064
        %v3328 = vunpack.c.l.b16 %v3065
        %v3329 = vunpack.c.l.b16 %v3066
        %v3330 = vunpack.c.l.b16 %v3067
        %v3331 = vunpack.c.l.b16 %v3068
        %v3332 = vunpack.c.l.b16 %v3069
        %v3333 = vunpack.c.l.b16 %v3070
        %v3334 = vunpack.c.l.b16 %v3071
        %v3335 = vunpack.c.l.b16 %v3072
        %v3336 = vunpack.c.l.b16 %v3073
        %v3337 = vunpack.c.l.b16 %v3074
        %v3338 = vunpack.c.l.b16 %v3075
        %v3339 = vunpack.c.l.b16 %v3076
        %v3340 = vunpack.c.l.b16 %v3077
        %v3341 = vunpack.c.l.b16 %v3078
        %v3342 = vunpack.c.l.b16 %v3079
        %v3343 = vunpack.c.l.b16 %v3080
        %v3344 = vunpack.c.l.b16 %v3081
        %v3345 = vunpack.c.l.b16 %v3082
        %v3346 = vunpack.c.l.b16 %v3083
        %v3347 = vunpack.c.l.b16 %v3084
        %v3348 = vunpack.c.l.b16 %v3085
        %v3349 = vunpack.c.l.b16 %v3086
        %v3350 = vunpack.c.l.b16 %v3087
        %v3351 = vunpack.c.l.b16 %v3088
        %v3352 = vunpack.c.l.b16 %v3089
        %v3353 = vunpack.c.l.b16 %v3090
        %v3354 = vunpack.c.l.b16 %v3091
        %v3355 = vunpack.c.l.b16 %v3092
        %v3356 = vunpack.c.l.b16 %v3093
        %v3357 = vunpack.c.l.b16 %v3094
        %v3358 = vunpack.c.l.b16 %v3095
        %v3359 = vunpack.c.l.b16 %v3096
        %v3360 = vunpack.c.l.b16 %v3097
        %v3361 = vunpack.c.l.b16 %v3098
        %v3362 = vunpack.c.l.b16 %v3099
        %v3363 = vunpack.c.l.b16 %v3100
        %v3364 = vunpack.c.l.b16 %v3101
        %v3365 = vunpack.c.l.b16 %v3102
        %v3366 = vunpack.c.l.b16 %v3103
        %v3367 = vunpack.c.l.b16 %v3104
        %v3368 = vunpack.c.l.b16 %v3105
        %v3369 = vunpack.c.l.b16 %v3106
        %v3370 = vunpack.c.l.b16 %v3107
        %v3371 = vunpack.c.l.b16 %v3108
        %v3372 = vunpack.c.l.b16 %v3109
        %v3373 = vunpack.c.l.b16 %v3110
        %v3374 = vunpack.c.l.b16 %v3111
        %v3375 = vunpack.c.l.b16 %v3112
        %v3376 = vunpack.c.l.b16 %v3113
        %v3377 = vunpack.c.l.b16 %v3114
        %v3378 = vunpack.c.l.b16 %v3115
        %v3379 = vunpack.c.l.b16 %v3116
        %v3380 = vunpack.c.l.b16 %v3117
        %v3381 = vunpack.c.l.b16 %v3118
        %v3382 = vunpack.c.l.b16 %v3119
        %v3383 = vunpack.c.l.b16 %v3120
        %v3384 = vunpack.c.l.b16 %v3121
        %v3385 = vunpack.c.l.b16 %v3122
        %v3386 = vunpack.c.l.b16 %v3123
        %v3387 = vunpack.c.l.b16 %v3124
        %v3388 = vunpack.c.l.b16 %v3125
        %v3389 = vunpack.c.l.b16 %v3126
        %v3390 = vunpack.c.l.b16 %v3127
        %v3391 = vunpack.c.l.b16 %v3128
        %v3392 = vunpack.c.l.b16 %v3129
        %v3393 = vunpack.c.l.b16 %v3130
        %v3394 = vunpack.c.l.b16 %v3131
        %v3395 = vunpack.c.l.b16 %v3132
        %v3396 = vunpack.c.l.b16 %v3133
        %v3397 = vunpack.c.l.b16 %v3134
        %v3398 = vunpack.c.l.b16 %v3135
        %v3399 = vunpack.c.l.b16 %v3136
        %v3400 = vunpack.c.l.b16 %v3137
        %v3401 = vunpack.c.l.b16 %v3138
        %v3402 = vunpack.c.l.b16 %v3139
        %v3403 = vunpack.c.l.b16 %v3140
        %v3404 = vunpack.c.l.b16 %v3141
        %v3405 = vunpack.c.l.b16 %v3142
        %v3406 = vpack.c.b16 %v3279, %v3278
        %v3407 = vpack.c.b16 %v3281, %v3280
        %v3408 = vpack.c.b16 %v3283, %v3282
        %v3409 = vpack.c.b16 %v3285, %v3284
        %v3410 = vpack.c.b16 %v3287, %v3286
        %v3411 = vpack.c.b16 %v3289, %v3288
        %v3412 = vpack.c.b16 %v3291, %v3290
        %v3413 = vpack.c.b16 %v3293, %v3292
        %v3414 = vpack.c.b16 %v3295, %v3294
        %v3415 = vpack.c.b16 %v3297, %v3296
        %v3416 = vpack.c.b16 %v3299, %v3298
        %v3417 = vpack.c.b16 %v3301, %v3300
        %v3418 = vpack.c.b16 %v3303, %v3302
        %v3419 = vpack.c.b16 %v3305, %v3304
        %v3420 = vpack.c.b16 %v3307, %v3306
        %v3421 = vpack.c.b16 %v3309, %v3308
        %v3422 = vpack.c.b16 %v3311, %v3310
        %v3423 = vpack.c.b16 %v3313, %v3312
        %v3424 = vpack.c.b16 %v3315, %v3314
        %v3425 = vpack.c.b16 %v3317, %v3316
        %v3426 = vpack.c.b16 %v3319, %v3318
        %v3427 = vpack.c.b16 %v3321, %v3320
        %v3428 = vpack.c.b16 %v3323, %v3322
        %v3429 = vpack.c.b16 %v3325, %v3324
        %v3430 = vpack.c.b16 %v3327, %v3326
        %v3431 = vpack.c.b16 %v3329, %v3328
        %v3432 = vpack.c.b16 %v3331, %v3330
        %v3433 = vpack.c.b16 %v3333, %v3332
        %v3434 = vpack.c.b16 %v3335, %v3334
        %v3435 = vpack.c.b16 %v3337, %v3336
        %v3436 = vpack.c.b16 %v3339, %v3338
        %v3437 = vpack.c.b16 %v3341, %v3340
        %v3438 = vpack.c.b16 %v3343, %v3342
        %v3439 = vpack.c.b16 %v3345, %v3344
        %v3440 = vpack.c.b16 %v3347, %v3346
        %v3441 = vpack.c.b16 %v3349, %v3348
        %v3442 = vpack.c.b16 %v3351, %v3350
        %v3443 = vpack.c.b16 %v3353, %v3352
        %v3444 = vpack.c.b16 %v3355, %v3354
        %v3445 = vpack.c.b16 %v3357, %v3356
        %v3446 = vpack.c.b16 %v3359, %v3358
        %v3447 = vpack.c.b16 %v3361, %v3360
        %v3448 = vpack.c.b16 %v3363, %v3362
        %v3449 = vpack.c.b16 %v3365, %v3364
        %v3450 = vpack.c.b16 %v3367, %v3366
        %v3451 = vpack.c.b16 %v3369, %v3368
        %v3452 = vpack.c.b16 %v3371, %v3370
        %v3453 = vpack.c.b16 %v3373, %v3372
        %v3454 = vpack.c.b16 %v3375, %v3374
        %v3455 = vpack.c.b16 %v3377, %v3376
        %v3456 = vpack.c.b16 %v3379, %v3378
        %v3457 = vpack.c.b16 %v3381, %v3380
        %v3458 = vpack.c.b16 %v3383, %v3382
        %v3459 = vpack.c.b16 %v3385, %v3384
        %v3460 = vpack.c.b16 %v3387, %v3386
        %v3461 = vpack.c.b16 %v3389, %v3388
        %v3462 = vpack.c.b16 %v3391, %v3390
        %v3463 = vpack.c.b16 %v3393, %v3392
        %v3464 = vpack.c.b16 %v3395, %v3394
        %v3465 = vpack.c.b16 %v3397, %v3396
        %v3466 = vpack.c.b16 %v3399, %v3398
        %v3467 = vpack.c.b16 %v3401, %v3400
        %v3468 = vpack.c.b16 %v3403, %v3402
        %v3469 = vpack.c.b16 %v3405, %v3404
        %3534 = vmatprep.subr.bf16.mxu0 0
        %3535 = vmatpush1.bf16.msra.mxu0 %v3406
        %3536 = vmatprep.subr.bf16.mxu0 0
        %3537 = vmatpush1.bf16.msra.mxu0 %v3407
        %3538 = vmatprep.subr.bf16.mxu0 0
        %3539 = vmatpush1.bf16.msra.mxu0 %v3408
        %3540 = vmatprep.subr.bf16.mxu0 0
        %3541 = vmatpush1.bf16.msra.mxu0 %v3409
        %3542 = vmatprep.subr.bf16.mxu0 0
        %3543 = vmatpush1.bf16.msra.mxu0 %v3410
        %3544 = vmatprep.subr.bf16.mxu0 0
        %3545 = vmatpush1.bf16.msra.mxu0 %v3411
        %3546 = vmatprep.subr.bf16.mxu0 0
        %3547 = vmatpush1.bf16.msra.mxu0 %v3412
        %3548 = vmatprep.subr.bf16.mxu0 0
        %3549 = vmatpush1.bf16.msra.mxu0 %v3413
        %3550 = vmatprep.subr.bf16.mxu0 0
        %3551 = vmatpush1.bf16.msra.mxu0 %v3414
        %3552 = vmatprep.subr.bf16.mxu0 0
        %3553 = vmatpush1.bf16.msra.mxu0 %v3415
        %3554 = vmatprep.subr.bf16.mxu0 0
        %3555 = vmatpush1.bf16.msra.mxu0 %v3416
        %3556 = vmatprep.subr.bf16.mxu0 0
        %3557 = vmatpush1.bf16.msra.mxu0 %v3417
        %3558 = vmatprep.subr.bf16.mxu0 0
        %3559 = vmatpush1.bf16.msra.mxu0 %v3418
        %3560 = vmatprep.subr.bf16.mxu0 0
        %3561 = vmatpush1.bf16.msra.mxu0 %v3419
        %3562 = vmatprep.subr.bf16.mxu0 0
        %3563 = vmatpush1.bf16.msra.mxu0 %v3420
        %3564 = vmatprep.subr.bf16.mxu0 0
        %3565 = vmatpush1.bf16.msra.mxu0 %v3421
        %3566 = vmatprep.mubr.bf16.mxu0 %v2952
        %3567 = vmatmul.mubr.bf16.gmra.mrb[0].mxu0 %v2951
        %v3568 = vpop.f32.mrb[0].mxu0
        %v3569 = vadd.f32 %v3148, %v3568
        %v3570 = vpop.f32.mrb[0].mxu0
        %v3571 = vpop.f32.mrb[0].mxu0
        %v3572 = vadd.f32 %v3148, %v3571
        %v3573 = vpop.f32.mrb[0].mxu0
        %3574 = vmatprep.mubr.bf16.mxu0 %v2960
        %3575 = vmatmul.mubr.bf16.gmra.mrb[0].mxu0 %v2959
        %v3576 = vpop.f32.mrb[0].mxu0
        %v3577 = vadd.f32 %v3148, %v3576
        %v3578 = vpop.f32.mrb[0].mxu0
        %v3579 = vpop.f32.mrb[0].mxu0
        %v3580 = vadd.f32 %v3148, %v3579
        %v3581 = vpop.f32.mrb[0].mxu0
        %3582 = vmatprep.mubr.bf16.mxu0 %v2968
        %3583 = vmatmul.mubr.bf16.gmra.mrb[0].mxu0 %v2967
        %v3584 = vpop.f32.mrb[0].mxu0
        %v3585 = vadd.f32 %v3148, %v3584
        %v3586 = vpop.f32.mrb[0].mxu0
        %v3587 = vpop.f32.mrb[0].mxu0
        %v3588 = vadd.f32 %v3148, %v3587
        %v3589 = vpop.f32.mrb[0].mxu0
        %3590 = vmatprep.mubr.bf16.mxu0 %v2976
        %3591 = vmatmul.mubr.bf16.gmra.mrb[0].mxu0 %v2975
        %v3592 = vpop.f32.mrb[0].mxu0
        %v3593 = vadd.f32 %v3148, %v3592
        %v3594 = vpop.f32.mrb[0].mxu0
        %v3595 = vpop.f32.mrb[0].mxu0
        %v3596 = vadd.f32 %v3148, %v3595
        %v3597 = vpop.f32.mrb[0].mxu0
        %3598 = vmatprep.mubr.bf16.mxu0 %v2984
        %3599 = vmatmul.mubr.bf16.gmra.mrb[0].mxu0 %v2983
        %v3600 = vpop.f32.mrb[0].mxu0
        %v3601 = vadd.f32 %v3148, %v3600
        %v3602 = vpop.f32.mrb[0].mxu0
        %v3603 = vpop.f32.mrb[0].mxu0
        %v3604 = vadd.f32 %v3148, %v3603
        %v3605 = vpop.f32.mrb[0].mxu0
        %3606 = vmatprep.mubr.bf16.mxu0 %v2992
        %3607 = vmatmul.mubr.bf16.gmra.mrb[0].mxu0 %v2991
        %v3608 = vpop.f32.mrb[0].mxu0
        %v3609 = vadd.f32 %v3148, %v3608
        %v3610 = vpop.f32.mrb[0].mxu0
        %v3611 = vpop.f32.mrb[0].mxu0
        %v3612 = vadd.f32 %v3148, %v3611
        %v3613 = vpop.f32.mrb[0].mxu0
        %3614 = vmatprep.mubr.bf16.mxu0 %v3000
        %3615 = vmatmul.mubr.bf16.gmra.mrb[0].mxu0 %v2999
        %v3616 = vpop.f32.mrb[0].mxu0
        %v3617 = vadd.f32 %v3148, %v3616
        %v3618 = vpop.f32.mrb[0].mxu0
        %v3619 = vpop.f32.mrb[0].mxu0
        %v3620 = vadd.f32 %v3148, %v3619
        %v3621 = vpop.f32.mrb[0].mxu0
        %3622 = vmatprep.mubr.bf16.mxu0 %v3008
        %3623 = vmatmul.mubr.bf16.gmra.mrb[0].mxu0 %v3007
        %v3624 = vpop.f32.mrb[0].mxu0
        %v3625 = vadd.f32 %v3148, %v3624
        %v3626 = vpop.f32.mrb[0].mxu0
        %v3627 = vpop.f32.mrb[0].mxu0
        %v3628 = vadd.f32 %v3148, %v3627
        %v3629 = vpop.f32.mrb[0].mxu0
        %3630 = vdwg.mxu0
        %3631 = vmatprep.subr.bf16.mxu0 0
        %3632 = vmatpush1.bf16.msra.mxu0 %v3422
        %3633 = vmatprep.subr.bf16.mxu0 0
        %3634 = vmatpush1.bf16.msra.mxu0 %v3423
        %3635 = vmatprep.subr.bf16.mxu0 0
        %3636 = vmatpush1.bf16.msra.mxu0 %v3424
        %3637 = vmatprep.subr.bf16.mxu0 0
        %3638 = vmatpush1.bf16.msra.mxu0 %v3425
        %3639 = vmatprep.subr.bf16.mxu0 0
        %3640 = vmatpush1.bf16.msra.mxu0 %v3426
        %3641 = vmatprep.subr.bf16.mxu0 0
        %3642 = vmatpush1.bf16.msra.mxu0 %v3427
        %3643 = vmatprep.subr.bf16.mxu0 0
        %3644 = vmatpush1.bf16.msra.mxu0 %v3428
        %3645 = vmatprep.subr.bf16.mxu0 0
        %3646 = vmatpush1.bf16.msra.mxu0 %v3429
        %3647 = vmatprep.subr.bf16.mxu0 0
        %3648 = vmatpush1.bf16.msra.mxu0 %v3430
        %3649 = vmatprep.subr.bf16.mxu0 0
        %3650 = vmatpush1.bf16.msra.mxu0 %v3431
        %3651 = vmatprep.subr.bf16.mxu0 0
        %3652 = vmatpush1.bf16.msra.mxu0 %v3432
        %3653 = vmatprep.subr.bf16.mxu0 0
        %3654 = vmatpush1.bf16.msra.mxu0 %v3433
        %3655 = vmatprep.subr.bf16.mxu0 0
        %3656 = vmatpush1.bf16.msra.mxu0 %v3434
        %3657 = vmatprep.subr.bf16.mxu0 0
        %3658 = vmatpush1.bf16.msra.mxu0 %v3435
        %3659 = vmatprep.subr.bf16.mxu0 0
        %3660 = vmatpush1.bf16.msra.mxu0 %v3436
        %3661 = vmatprep.subr.bf16.mxu0 0
        %3662 = vmatpush1.bf16.msra.mxu0 %v3437
        %3663 = vmatprep.mubr.bf16.mxu0 %v2954
        %3664 = vmatmul.mubr.bf16.gmra.mrb[0].mxu0 %v2953
        %v3665 = vpop.f32.mrb[0].mxu0
        %v3666 = vadd.f32 %v3569, %v3665
        %v3667 = vpop.f32.mrb[0].mxu0
        %v3668 = vpop.f32.mrb[0].mxu0
        %v3669 = vadd.f32 %v3572, %v3668
        %v3670 = vpop.f32.mrb[0].mxu0
        %3671 = vmatprep.mubr.bf16.mxu0 %v2962
        %3672 = vmatmul.mubr.bf16.gmra.mrb[0].mxu0 %v2961
        %v3673 = vpop.f32.mrb[0].mxu0
        %v3674 = vadd.f32 %v3577, %v3673
        %v3675 = vpop.f32.mrb[0].mxu0
        %v3676 = vpop.f32.mrb[0].mxu0
        %v3677 = vadd.f32 %v3580, %v3676
        %v3678 = vpop.f32.mrb[0].mxu0
        %3679 = vmatprep.mubr.bf16.mxu0 %v2970
        %3680 = vmatmul.mubr.bf16.gmra.mrb[0].mxu0 %v2969
        %v3681 = vpop.f32.mrb[0].mxu0
        %v3682 = vadd.f32 %v3585, %v3681
        %v3683 = vpop.f32.mrb[0].mxu0
        %v3684 = vpop.f32.mrb[0].mxu0
        %v3685 = vadd.f32 %v3588, %v3684
        %v3686 = vpop.f32.mrb[0].mxu0
        %3687 = vmatprep.mubr.bf16.mxu0 %v2978
        %3688 = vmatmul.mubr.bf16.gmra.mrb[0].mxu0 %v2977
        %v3689 = vpop.f32.mrb[0].mxu0
        %v3690 = vadd.f32 %v3593, %v3689
        %v3691 = vpop.f32.mrb[0].mxu0
        %v3692 = vpop.f32.mrb[0].mxu0
        %v3693 = vadd.f32 %v3596, %v3692
        %v3694 = vpop.f32.mrb[0].mxu0
        %3695 = vmatprep.mubr.bf16.mxu0 %v2986
        %3696 = vmatmul.mubr.bf16.gmra.mrb[0].mxu0 %v2985
        %v3697 = vpop.f32.mrb[0].mxu0
        %v3698 = vadd.f32 %v3601, %v3697
        %v3699 = vpop.f32.mrb[0].mxu0
        %v3700 = vpop.f32.mrb[0].mxu0
        %v3701 = vadd.f32 %v3604, %v3700
        %v3702 = vpop.f32.mrb[0].mxu0
        %3703 = vmatprep.mubr.bf16.mxu0 %v2994
        %3704 = vmatmul.mubr.bf16.gmra.mrb[0].mxu0 %v2993
        %v3705 = vpop.f32.mrb[0].mxu0
        %v3706 = vadd.f32 %v3609, %v3705
        %v3707 = vpop.f32.mrb[0].mxu0
        %v3708 = vpop.f32.mrb[0].mxu0
        %v3709 = vadd.f32 %v3612, %v3708
        %v3710 = vpop.f32.mrb[0].mxu0
        %3711 = vmatprep.mubr.bf16.mxu0 %v3002
        %3712 = vmatmul.mubr.bf16.gmra.mrb[0].mxu0 %v3001
        %v3713 = vpop.f32.mrb[0].mxu0
        %v3714 = vadd.f32 %v3617, %v3713
        %v3715 = vpop.f32.mrb[0].mxu0
        %v3716 = vpop.f32.mrb[0].mxu0
        %v3717 = vadd.f32 %v3620, %v3716
        %v3718 = vpop.f32.mrb[0].mxu0
        %3719 = vmatprep.mubr.bf16.mxu0 %v3010
        %3720 = vmatmul.mubr.bf16.gmra.mrb[0].mxu0 %v3009
        %v3721 = vpop.f32.mrb[0].mxu0
        %v3722 = vadd.f32 %v3625, %v3721
        %v3723 = vpop.f32.mrb[0].mxu0
        %v3724 = vpop.f32.mrb[0].mxu0
        %v3725 = vadd.f32 %v3628, %v3724
        %v3726 = vpop.f32.mrb[0].mxu0
        %3727 = vdwg.mxu0
        %3728 = vmatprep.subr.bf16.mxu0 0
        %3729 = vmatpush1.bf16.msra.mxu0 %v3438
        %3730 = vmatprep.subr.bf16.mxu0 0
        %3731 = vmatpush1.bf16.msra.mxu0 %v3439
        %3732 = vmatprep.subr.bf16.mxu0 0
        %3733 = vmatpush1.bf16.msra.mxu0 %v3440
        %3734 = vmatprep.subr.bf16.mxu0 0
        %3735 = vmatpush1.bf16.msra.mxu0 %v3441
        %3736 = vmatprep.subr.bf16.mxu0 0
        %3737 = vmatpush1.bf16.msra.mxu0 %v3442
        %3738 = vmatprep.subr.bf16.mxu0 0
        %3739 = vmatpush1.bf16.msra.mxu0 %v3443
        %3740 = vmatprep.subr.bf16.mxu0 0
        %3741 = vmatpush1.bf16.msra.mxu0 %v3444
        %3742 = vmatprep.subr.bf16.mxu0 0
        %3743 = vmatpush1.bf16.msra.mxu0 %v3445
        %3744 = vmatprep.subr.bf16.mxu0 0
        %3745 = vmatpush1.bf16.msra.mxu0 %v3446
        %3746 = vmatprep.subr.bf16.mxu0 0
        %3747 = vmatpush1.bf16.msra.mxu0 %v3447
        %3748 = vmatprep.subr.bf16.mxu0 0
        %3749 = vmatpush1.bf16.msra.mxu0 %v3448
        %3750 = vmatprep.subr.bf16.mxu0 0
        %3751 = vmatpush1.bf16.msra.mxu0 %v3449
        %3752 = vmatprep.subr.bf16.mxu0 0
        %3753 = vmatpush1.bf16.msra.mxu0 %v3450
        %3754 = vmatprep.subr.bf16.mxu0 0
        %3755 = vmatpush1.bf16.msra.mxu0 %v3451
        %3756 = vmatprep.subr.bf16.mxu0 0
        %3757 = vmatpush1.bf16.msra.mxu0 %v3452
        %3758 = vmatprep.subr.bf16.mxu0 0
        %3759 = vmatpush1.bf16.msra.mxu0 %v3453
        %3760 = vmatprep.mubr.bf16.mxu0 %v2956
        %3761 = vmatmul.mubr.bf16.gmra.mrb[0].mxu0 %v2955
        %v3762 = vpop.f32.mrb[0].mxu0
        %v3763 = vadd.f32 %v3666, %v3762
        %v3764 = vpop.f32.mrb[0].mxu0
        %v3765 = vpop.f32.mrb[0].mxu0
        %v3766 = vadd.f32 %v3669, %v3765
        %v3767 = vpop.f32.mrb[0].mxu0
        %3768 = vmatprep.mubr.bf16.mxu0 %v2964
        %3769 = vmatmul.mubr.bf16.gmra.mrb[0].mxu0 %v2963
        %v3770 = vpop.f32.mrb[0].mxu0
        %v3771 = vadd.f32 %v3674, %v3770
        %v3772 = vpop.f32.mrb[0].mxu0
        %v3773 = vpop.f32.mrb[0].mxu0
        %v3774 = vadd.f32 %v3677, %v3773
        %v3775 = vpop.f32.mrb[0].mxu0
        %3776 = vmatprep.mubr.bf16.mxu0 %v2972
        %3777 = vmatmul.mubr.bf16.gmra.mrb[0].mxu0 %v2971
        %v3778 = vpop.f32.mrb[0].mxu0
        %v3779 = vadd.f32 %v3682, %v3778
        %v3780 = vpop.f32.mrb[0].mxu0
        %v3781 = vpop.f32.mrb[0].mxu0
        %v3782 = vadd.f32 %v3685, %v3781
        %v3783 = vpop.f32.mrb[0].mxu0
        %3784 = vmatprep.mubr.bf16.mxu0 %v2980
        %3785 = vmatmul.mubr.bf16.gmra.mrb[0].mxu0 %v2979
        %v3786 = vpop.f32.mrb[0].mxu0
        %v3787 = vadd.f32 %v3690, %v3786
        %v3788 = vpop.f32.mrb[0].mxu0
        %v3789 = vpop.f32.mrb[0].mxu0
        %v3790 = vadd.f32 %v3693, %v3789
        %v3791 = vpop.f32.mrb[0].mxu0
        %3792 = vmatprep.mubr.bf16.mxu0 %v2988
        %3793 = vmatmul.mubr.bf16.gmra.mrb[0].mxu0 %v2987
        %v3794 = vpop.f32.mrb[0].mxu0
        %v3795 = vadd.f32 %v3698, %v3794
        %v3796 = vpop.f32.mrb[0].mxu0
        %v3797 = vpop.f32.mrb[0].mxu0
        %v3798 = vadd.f32 %v3701, %v3797
        %v3799 = vpop.f32.mrb[0].mxu0
        %3800 = vmatprep.mubr.bf16.mxu0 %v2996
        %3801 = vmatmul.mubr.bf16.gmra.mrb[0].mxu0 %v2995
        %v3802 = vpop.f32.mrb[0].mxu0
        %v3803 = vadd.f32 %v3706, %v3802
        %v3804 = vpop.f32.mrb[0].mxu0
        %v3805 = vpop.f32.mrb[0].mxu0
        %v3806 = vadd.f32 %v3709, %v3805
        %v3807 = vpop.f32.mrb[0].mxu0
        %3808 = vmatprep.mubr.bf16.mxu0 %v3004
        %3809 = vmatmul.mubr.bf16.gmra.mrb[0].mxu0 %v3003
        %v3810 = vpop.f32.mrb[0].mxu0
        %v3811 = vadd.f32 %v3714, %v3810
        %v3812 = vpop.f32.mrb[0].mxu0
        %v3813 = vpop.f32.mrb[0].mxu0
        %v3814 = vadd.f32 %v3717, %v3813
        %v3815 = vpop.f32.mrb[0].mxu0
        %3816 = vmatprep.mubr.bf16.mxu0 %v3012
        %3817 = vmatmul.mubr.bf16.gmra.mrb[0].mxu0 %v3011
        %v3818 = vpop.f32.mrb[0].mxu0
        %v3819 = vadd.f32 %v3722, %v3818
        %v3820 = vpop.f32.mrb[0].mxu0
        %v3821 = vpop.f32.mrb[0].mxu0
        %v3822 = vadd.f32 %v3725, %v3821
        %v3823 = vpop.f32.mrb[0].mxu0
        %3824 = vdwg.mxu0
        %3825 = vmatprep.subr.bf16.mxu0 0
        %3826 = vmatpush1.bf16.msra.mxu0 %v3454
        %3827 = vmatprep.subr.bf16.mxu0 0
        %3828 = vmatpush1.bf16.msra.mxu0 %v3455
        %3829 = vmatprep.subr.bf16.mxu0 0
        %3830 = vmatpush1.bf16.msra.mxu0 %v3456
        %3831 = vmatprep.subr.bf16.mxu0 0
        %3832 = vmatpush1.bf16.msra.mxu0 %v3457
        %3833 = vmatprep.subr.bf16.mxu0 0
        %3834 = vmatpush1.bf16.msra.mxu0 %v3458
        %3835 = vmatprep.subr.bf16.mxu0 0
        %3836 = vmatpush1.bf16.msra.mxu0 %v3459
        %3837 = vmatprep.subr.bf16.mxu0 0
        %3838 = vmatpush1.bf16.msra.mxu0 %v3460
        %3839 = vmatprep.subr.bf16.mxu0 0
        %3840 = vmatpush1.bf16.msra.mxu0 %v3461
        %3841 = vmatprep.subr.bf16.mxu0 0
        %3842 = vmatpush1.bf16.msra.mxu0 %v3462
        %3843 = vmatprep.subr.bf16.mxu0 0
        %3844 = vmatpush1.bf16.msra.mxu0 %v3463
        %3845 = vmatprep.subr.bf16.mxu0 0
        %3846 = vmatpush1.bf16.msra.mxu0 %v3464
        %3847 = vmatprep.subr.bf16.mxu0 0
        %3848 = vmatpush1.bf16.msra.mxu0 %v3465
        %3849 = vmatprep.subr.bf16.mxu0 0
        %3850 = vmatpush1.bf16.msra.mxu0 %v3466
        %3851 = vmatprep.subr.bf16.mxu0 0
        %3852 = vmatpush1.bf16.msra.mxu0 %v3467
        %3853 = vmatprep.subr.bf16.mxu0 0
        %3854 = vmatpush1.bf16.msra.mxu0 %v3468
        %3855 = vmatprep.subr.bf16.mxu0 0
        %3856 = vmatpush1.bf16.msra.mxu0 %v3469
        %3857 = vmatprep.mubr.bf16.mxu0 %v2958
        %3858 = vmatmul.mubr.bf16.gmra.mrb[0].mxu0 %v2957
        %v3859 = vpop.f32.mrb[0].mxu0
        %v3860 = vadd.f32 %v3763, %v3859
        %v3861 = vpop.f32.mrb[0].mxu0
        %v3862 = vpop.f32.mrb[0].mxu0
        %v3863 = vadd.f32 %v3766, %v3862
        %v3864 = vpop.f32.mrb[0].mxu0
        %3865 = vmatprep.mubr.bf16.mxu0 %v2966
        %3866 = vmatmul.mubr.bf16.gmra.mrb[0].mxu0 %v2965
        %v3867 = vpop.f32.mrb[0].mxu0
        %v3868 = vadd.f32 %v3771, %v3867
        %v3869 = vpop.f32.mrb[0].mxu0
        %v3870 = vpop.f32.mrb[0].mxu0
        %v3871 = vadd.f32 %v3774, %v3870
        %v3872 = vpop.f32.mrb[0].mxu0
        %3873 = vmatprep.mubr.bf16.mxu0 %v2974
        %3874 = vmatmul.mubr.bf16.gmra.mrb[0].mxu0 %v2973
        %v3875 = vpop.f32.mrb[0].mxu0
        %v3876 = vadd.f32 %v3779, %v3875
        %v3877 = vpop.f32.mrb[0].mxu0
        %v3878 = vpop.f32.mrb[0].mxu0
        %v3879 = vadd.f32 %v3782, %v3878
        %v3880 = vpop.f32.mrb[0].mxu0
        %3881 = vmatprep.mubr.bf16.mxu0 %v2982
        %3882 = vmatmul.mubr.bf16.gmra.mrb[0].mxu0 %v2981
        %v3883 = vpop.f32.mrb[0].mxu0
        %v3884 = vadd.f32 %v3787, %v3883
        %v3885 = vpop.f32.mrb[0].mxu0
        %v3886 = vpop.f32.mrb[0].mxu0
        %v3887 = vadd.f32 %v3790, %v3886
        %v3888 = vpop.f32.mrb[0].mxu0
        %3889 = vmatprep.mubr.bf16.mxu0 %v2990
        %3890 = vmatmul.mubr.bf16.gmra.mrb[0].mxu0 %v2989
        %v3891 = vpop.f32.mrb[0].mxu0
        %v3892 = vadd.f32 %v3795, %v3891
        %v3893 = vpop.f32.mrb[0].mxu0
        %v3894 = vpop.f32.mrb[0].mxu0
        %v3895 = vadd.f32 %v3798, %v3894
        %v3896 = vpop.f32.mrb[0].mxu0
        %3897 = vmatprep.mubr.bf16.mxu0 %v2998
        %3898 = vmatmul.mubr.bf16.gmra.mrb[0].mxu0 %v2997
        %v3899 = vpop.f32.mrb[0].mxu0
        %v3900 = vadd.f32 %v3803, %v3899
        %v3901 = vpop.f32.mrb[0].mxu0
        %v3902 = vpop.f32.mrb[0].mxu0
        %v3903 = vadd.f32 %v3806, %v3902
        %v3904 = vpop.f32.mrb[0].mxu0
        %3905 = vmatprep.mubr.bf16.mxu0 %v3006
        %3906 = vmatmul.mubr.bf16.gmra.mrb[0].mxu0 %v3005
        %v3907 = vpop.f32.mrb[0].mxu0
        %v3908 = vadd.f32 %v3811, %v3907
        %v3909 = vpop.f32.mrb[0].mxu0
        %v3910 = vpop.f32.mrb[0].mxu0
        %v3911 = vadd.f32 %v3814, %v3910
        %v3912 = vpop.f32.mrb[0].mxu0
        %3913 = vmatprep.mubr.bf16.mxu0 %v3014
        %3914 = vmatmul.mubr.bf16.gmra.mrb[0].mxu0 %v3013
        %v3915 = vpop.f32.mrb[0].mxu0
        %v3916 = vadd.f32 %v3819, %v3915
        %v3917 = vpop.f32.mrb[0].mxu0
        %v3918 = vpop.f32.mrb[0].mxu0
        %v3919 = vadd.f32 %v3822, %v3918
        %v3920 = vpop.f32.mrb[0].mxu0
        %3921 = vdwg.mxu0
        %v3922 = vadd.f32 %v674, %v3860
        %v3923 = vadd.f32 %v675, %v3863
        %v3924 = vadd.f32 %v676, %v3868
        %v3925 = vadd.f32 %v677, %v3871
        %v3926 = vadd.f32 %v678, %v3876
        %v3927 = vadd.f32 %v679, %v3879
        %v3928 = vadd.f32 %v680, %v3884
        %v3929 = vadd.f32 %v681, %v3887
        %v3930 = vadd.f32 %v682, %v3892
        %v3931 = vadd.f32 %v683, %v3895
        %v3932 = vadd.f32 %v684, %v3900
        %v3933 = vadd.f32 %v685, %v3903
        %v3934 = vadd.f32 %v686, %v3908
        %v3935 = vadd.f32 %v687, %v3911
        %v3936 = vadd.f32 %v688, %v3916
        %v3937 = vadd.f32 %v689, %v3919
        %3938 = vst [vmem:[%s403] sm:$0xff] %v3922
        %3939 = vst [vmem:[%s403 + $0x8] sm:$0xff] %v3923
        %3940 = vst [vmem:[%s403 + $0x10] sm:$0xff] %v3924
        %3941 = vst [vmem:[%s403 + $0x18] sm:$0xff] %v3925
        %3942 = vst [vmem:[%s403 + $0x20] sm:$0xff] %v3926
        %3943 = vst [vmem:[%s403 + $0x28] sm:$0xff] %v3927
        %3944 = vst [vmem:[%s403 + $0x30] sm:$0xff] %v3928
        %3945 = vst [vmem:[%s403 + $0x38] sm:$0xff] %v3929
        %3946 = vst [vmem:[%s403 + $0x40] sm:$0xff] %v3930
        %3947 = vst [vmem:[%s403 + $0x48] sm:$0xff] %v3931
        %3948 = vst [vmem:[%s403 + $0x50] sm:$0xff] %v3932
        %3949 = vst [vmem:[%s403 + $0x58] sm:$0xff] %v3933
        %3950 = vst [vmem:[%s403 + $0x60] sm:$0xff] %v3934
        %3951 = vst [vmem:[%s403 + $0x68] sm:$0xff] %v3935
        %3952 = vst [vmem:[%s403 + $0x70] sm:$0xff] %v3936
        %3953 = vst [vmem:[%s403 + $0x78] sm:$0xff] %v3937
        %s3954 = sand.u32 %s270, 1
        %s3955 = scalar_lea.sflag [#allocation3], %s3954
        %s3956 = sand.u32 %s270, 1
        %s3957 = smul.addr %s3956, 128
        %s3958 = scalar_lea.vmem [#allocation2], %s3957
        // Predicated region
        $region61: #{siglip_encoder_layer.5} parent=59 // pred_check
          %p3959 = pneg %p280
        $region62: #{siglip_encoder_layer.5} parent=59 // pred_check_branch
          %3961 = sbr.rel (%p3959) target = $region64
        $region63: #{siglip_encoder_layer.5} parent=59 // pred_region
          %s3962 = smul.u32 16, %s29
          %s3964 = ssub.s32 2048, 2048
          %3965 = vsyncadd %s3955, %s3964
          %s3966 = smul.addr %s28, 32
          %s3967 = sadd.s32 %s3962, %s3966
          %s3968 = smul.addr %s3967, 128
          %s3969 = scalar_lea.hbm %s10, %s3968
          %s3970 = sshll.u32 %s3958, 4
          %s3971 = int_to_ptr.vmem [resolvable:$true] %s3970
          %3976 = dma.vmem_to_hbm [thread:$0]  %s3971, 2048, %s3969, %s3955, 128, 128, 8
        $region64: #{siglip_encoder_layer.5} parent=59 // pred_fallthru
          _
      $region60: #{siglip_encoder_layer.5} parent=5 // pred_fallthru
        _
      %p3977 = scmp.le.s32.totalorder 2, %s19
      // Predicated region
      $region65: #{siglip_encoder_layer.5} parent=5 // pred_check
        %p3978 = pneg %p3977
      $region66: #{siglip_encoder_layer.5} parent=5 // pred_check_branch
        %3980 = sbr.rel (%p3978) target = $region68
      $region67: #{siglip_encoder_layer.5} parent=5 // pred_region
        %s3981 = ssub.s32 %s19, 2
        // Predicated region
        $region69: #{siglip_encoder_layer.5} parent=67 // pred_check
          %p3982 = pneg %p286
        $region70: #{siglip_encoder_layer.5} parent=67 // pred_check_branch
          %3984 = sbr.rel (%p3982) target = $region72
        $region71: #{siglip_encoder_layer.5} parent=67 // pred_region
          %s3985 = sand.u32 %s271, 1
          %s3986 = scalar_lea.sflag [#allocation3], %s3985
          %s3987 = sand.u32 %s271, 1
          %s3988 = smul.addr %s3987, 128
          %s3989 = scalar_lea.vmem [#allocation2], %s3988
          %3990 = dma.done %s3986, 2048
        $region72: #{siglip_encoder_layer.5} parent=67 // pred_fallthru
          _
      $region68: #{siglip_encoder_layer.5} parent=5 // pred_fallthru
        _
    $region6: #{siglip_encoder_layer.5} parent=1 // loop_footer
      %s23 = sadd.s32 1, %s19
    $region7: #{siglip_encoder_layer.5} parent=1 // loop_footer_branch
      %18 = sbr.rel target = $region3
    $region8: #{siglip_encoder_layer.5} parent=1 // loop_exit
      _
    %3991 = vsyncpa [#allocation3], 1
    %s3992 = scalar_lea.sflag [#allocation3], 1
    %3993 = vsyncpa %s3992, 1

</llo_original>
